<compile_context>
chip_gen: v6e
topology: v6e:2x2x1
jax: 0.10.0
libtpu: 0.0.40
codegen_flags: <defaults>
</compile_context>

<pallas_src>
import jax
import jax.numpy as jnp
from jax import lax
from jax.experimental import pallas as pl
from jax.experimental.pallas import tpu as pltpu

# FastWeights hyper-parameters (would come from rnn_kwargs in the PyTorch module)
LAM = 0.9        # fast-weight decay
ETA = 0.5        # fast-weight learning rate
INNER_STEPS = 1  # inner settling iterations
LN_EPS = 1e-5


def _fastweights_kernel(x_ref, wx_ref, wh_ref, b_ref, g_ref, beta_ref,
                        out_ref, zx_ref, h_ref, a_ref):
    """Whole-sequence FastWeights recurrence for one batch block.

    x_ref   : (T, BB, D)  full sequence for this batch block (VMEM resident)
    wx_ref  : (D, H)      slow input->hidden weights (resident)
    wh_ref  : (H, H)      slow hidden->hidden weights (resident)
    b_ref   : (1, H)      bias
    g_ref   : (1, H)      LayerNorm gamma
    beta_ref: (1, H)      LayerNorm beta
    out_ref : (T, BB, H)  hidden states, written per timestep (VMEM resident)
    zx_ref  : (T, BB, H)  scratch: hoisted input projection x@Wx + b
    h_ref   : (BB, H)     scratch: hidden-state carry
    a_ref   : (BB, H, H)  scratch: fast-weight carry
    """
    T, BB, D = x_ref.shape
    H = wh_ref.shape[0]

    # ---- One-time pre-pass: input projection hoisted out of the recurrence.
    # One big MXU matmul instead of T tiny ones on the serial critical path.
    # BB % 8 == 0 (wrapper-enforced), so both reshapes only merge/split the
    # sublane-aligned leading dims -> layout-preserving, no relayout copy.
    x_flat = x_ref[...].reshape(T * BB, D)
    zx = jnp.dot(x_flat, wx_ref[...], preferred_element_type=jnp.float32)
    zx_ref[...] = (zx + b_ref[...]).reshape(T, BB, H)

    # ---- Fresh recurrent state for this (independent) batch block.
    h_ref[...] = jnp.zeros_like(h_ref)
    a_ref[...] = jnp.zeros_like(a_ref)

    # ---- Loop-invariant loads / broadcasts hoisted once (JAX does not CSE
    # broadcast_in_dim, so never re-emit these inside the loops).
    wh = wh_ref[...]                                    # (H, H)
    gamma_b = jnp.broadcast_to(g_ref[...], (BB, H))     # (BB, H)
    beta_b = jnp.broadcast_to(beta_ref[...], (BB, H))   # (BB, H)

    def step(t):
        h_prev = h_ref[...]          # (BB, H)
        a_prev = a_ref[...]          # (BB, H, H)

        # Slow-weight pre-activation; x@Wx + b comes from the hoisted pre-pass.
        # zx_ref[t] is a trivially addressed leading-axis index (no dynamic
        # sublane-offset slice).
        z = zx_ref[t] + jnp.dot(h_prev, wh, preferred_element_type=jnp.float32)

        # Fast-weight update: A_t = lam * A_{t-1} + eta * h_{t-1} h_{t-1}^T.
        # Written early so the (BB,H,H) store overlaps the settling math.
        outer = h_prev[:, :, None] * h_prev[:, None, :]          # (BB, H, H)
        a_ref[...] = LAM * a_prev + ETA * outer

        # Preliminary hidden state, then layer-normalized settling loop.
        h_s = jnp.maximum(z, 0.0)
        for _ in range(INNER_STEPS):                             # static unroll
            # Algebraic split (never reads a_new):
            #   A_t h = lam * (A_{t-1} h) + eta * h_{t-1} (h_{t-1}^T h)
            a_prev_h = jnp.sum(a_prev * h_s[:, None, :], axis=-1)   # (BB, H)
            hh = jnp.sum(h_prev * h_s, axis=-1, keepdims=True)      # (BB, 1)
            a_h = LAM * a_prev_h + ETA * (h_prev * hh)
            pre = z + a_h
            mean = jnp.mean(pre, axis=-1, keepdims=True)
            var = jnp.mean((pre - mean) ** 2, axis=-1, keepdims=True)
            norm = (pre - mean) * lax.rsqrt(var + LN_EPS)
            h_s = jnp.maximum(norm * gamma_b + beta_b, 0.0)

        h_ref[...] = h_s
        out_ref[t] = h_s.astype(out_ref.dtype)   # store into resident output

    if T <= 16:
        # Full static unroll: LLO scheduler sees across timestep boundaries.
        for t in range(T):
            step(t)
    else:
        # Long sequences: partially unrolled visible loop (bounds live ranges).
        def _body(t, carry):
            step(t)
            return carry
        lax.fori_loop(0, T, _body, 0, unroll=2)


def mst_head_forward(input_embd, wx, wh, b, gamma, beta, *, batch_block=None,
                     vmem_limit_bytes=None):
    """MSTHead.forward for rnn_type='fastweights' (returns rnn_output).

    input_embd: (T, B, D) float32, B must be a multiple of 8
    returns:    (T, B, H) float32

    batch_block: batch sub-block per grid step.  Default = B//2 (kept a
    multiple of 8) so that nb >= 2: input prefetch / output writeback of
    neighbouring blocks overlap the recurrence, and on v7x the independent
    "parallel" blocks are sharded across both TensorCores.
    """
    T, B, D = input_embd.shape
    H = wh.shape[0]

    # (8,128) layout rule: the batch block is the second-minor dim of every
    # (T, BB, *) block, so it must be a sublane (8) multiple.  Require B % 8
    # outright (pad upstream) to avoid unaligned slices / relayouts.
    assert B % 8 == 0, "batch must be a multiple of 8 (pad upstream)"

    if batch_block is None:
        half = B // 2
        batch_block = half if (half >= 8 and half % 8 == 0) else B
    assert batch_block % 8 == 0 and B % batch_block == 0
    BB = batch_block
    nb = B // BB

    if vmem_limit_bytes is None:
        # Explicit VMEM budget: Pallas double-buffers every BlockSpec'd operand.
        f32b = 4
        dbuf = 2
        needed = f32b * (
            dbuf * T * BB * D                    # input block buffers
            + dbuf * T * BB * H                  # output block buffers
            + dbuf * (D * H + H * H + 3 * H)     # weights / bias / LN params
            + T * BB * H                         # zx scratch
            + BB * H + BB * H * H                # h / fast-weight carries
        )
        # 2x headroom for Mosaic internal scratch; cap at 48 MiB so the same
        # config fits v7x's 64 MiB physical VMEM.  (v5e/v6e have 128 MiB; raise
        # explicitly for large production configs, or better: T-chunk, see TODO.)
        vmem_limit_bytes = min(max(2 * needed, 16 * 1024 * 1024),
                               48 * 1024 * 1024)

    grid_spec = pltpu.PrefetchScalarGridSpec(
        num_scalar_prefetch=0,
        grid=(nb,),                                           # independent batch blocks
        in_specs=[
            pl.BlockSpec((T, BB, D), lambda i: (0, i, 0)),    # whole sequence, one block
            pl.BlockSpec((D, H), lambda i: (0, 0)),           # W_x (resident)
            pl.BlockSpec((H, H), lambda i: (0, 0)),           # W_h (resident)
            pl.BlockSpec((1, H), lambda i: (0, 0)),           # bias
            pl.BlockSpec((1, H), lambda i: (0, 0)),           # LN gamma
            pl.BlockSpec((1, H), lambda i: (0, 0)),           # LN beta
        ],
        out_specs=pl.BlockSpec((T, BB, H), lambda i: (0, i, 0)),
        scratch_shapes=[
            pltpu.VMEM((T, BB, H), jnp.float32),              # hoisted x@Wx + b
            pltpu.VMEM((BB, H), jnp.float32),                 # hidden-state carry
            pltpu.VMEM((BB, H, H), jnp.float32),              # fast-weight carry
        ],
    )

    return pl.pallas_call(
        _fastweights_kernel,
        out_shape=jax.ShapeDtypeStruct((T, B, H), jnp.float32),
        grid_spec=grid_spec,
        compiler_params=pltpu.CompilerParams(
            dimension_semantics=("parallel",),                # batch blocks are independent
            vmem_limit_bytes=vmem_limit_bytes,
        ),
    )(input_embd, wx, wh, b, gamma, beta)


def mst_head_forward_ref(input_embd, wx, wh, b, gamma, beta):
    """Pure-JAX reference (same math, unsplit A.h form) for validation."""
    T, B, D = input_embd.shape
    H = wh.shape[0]

    def step(carry, x_t):
        h_prev, a_prev = carry
        z = (jnp.dot(x_t, wx, precision=lax.Precision.HIGHEST)
             + jnp.dot(h_prev, wh, precision=lax.Precision.HIGHEST) + b)
        a_new = LAM * a_prev + ETA * (h_prev[:, :, None] * h_prev[:, None, :])
        h_s = jnp.maximum(z, 0.0)
        for _ in range(INNER_STEPS):
            a_h = jnp.sum(a_new * h_s[:, None, :], axis=-1)
            pre = z + a_h
            mean = jnp.mean(pre, axis=-1, keepdims=True)
            var = jnp.mean((pre - mean) ** 2, axis=-1, keepdims=True)
            norm = (pre - mean) * lax.rsqrt(var + LN_EPS)
            h_s = jnp.maximum(norm * gamma + beta, 0.0)
        return (h_s, a_new), h_s

    h0 = jnp.zeros((B, H), jnp.float32)
    a0 = jnp.zeros((B, H, H), jnp.float32)
    _, ys = lax.scan(step, (h0, a0), input_embd)
    return ys


def init_params(key, input_dim, hidden_dim):
    """Deterministic synthetic parameter init (shapes from rnn_kwargs)."""
    k_wx, k_wh = jax.random.split(key, 2)
    scale_x = 1.0 / jnp.sqrt(input_dim)
    scale_h = 1.0 / jnp.sqrt(hidden_dim)
    wx = jax.random.normal(k_wx, (input_dim, hidden_dim), jnp.float32) * scale_x
    wh = jax.random.normal(k_wh, (hidden_dim, hidden_dim), jnp.float32) * scale_h
    b = jnp.zeros((1, hidden_dim), jnp.float32)
    gamma = jnp.ones((1, hidden_dim), jnp.float32)
    beta = jnp.zeros((1, hidden_dim), jnp.float32)
    return wx, wh, b, gamma, beta


if __name__ == "__main__":
    # num_seq, batch, input_dim, hidden_dim.  B=16 -> BB=8, nb=2: default path
    # exercises the pipelined / megacore-shardable multi-block grid.
    T, B, D, H = 8, 16, 32, 32

    key = jax.random.PRNGKey(0)
    k_x, k_p = jax.random.split(key)
    x = jax.random.normal(k_x, (T, B, D), jnp.float32)
    wx, wh, b, gamma, beta = init_params(k_p, D, H)

    out = jax.block_until_ready(mst_head_forward(x, wx, wh, b, gamma, beta))
    assert out.shape == (T, B, H)
    assert bool(jnp.all(jnp.isfinite(out)))

    # Validate against the pure-JAX reference (tolerance covers MXU f32
    # precision modes + the algebraic reassociation of the A.h term).
    ref = jax.block_until_ready(mst_head_forward_ref(x, wx, wh, b, gamma, beta))
    max_err = float(jnp.max(jnp.abs(out - ref)))
    assert max_err < 5e-2, f"kernel/reference mismatch, max abs err = {max_err}"

    print("KERNEL_OK")
</pallas_src>

<mosaic_0001>
module attributes {stable_mosaic.version = 11 : i64} {
  func.func @_fastweights_kernel(%arg0: i32, %arg1: memref<8x8x32xf32, #tpu.memory_space<vmem>>, %arg2: memref<32x32xf32, #tpu.memory_space<vmem>>, %arg3: memref<32x32xf32, #tpu.memory_space<vmem>>, %arg4: memref<1x32xf32, #tpu.memory_space<vmem>>, %arg5: memref<1x32xf32, #tpu.memory_space<vmem>>, %arg6: memref<1x32xf32, #tpu.memory_space<vmem>>, %arg7: memref<8x8x32xf32, #tpu.memory_space<vmem>>, %arg8: memref<8x8x32xf32, #tpu.memory_space<vmem>>, %arg9: memref<8x32xf32, #tpu.memory_space<vmem>>, %arg10: memref<8x32x32xf32, #tpu.memory_space<vmem>>) attributes {dimension_semantics = [#tpu.dimension_semantics<parallel>], iteration_bounds = array<i64: 2>, scalar_prefetch = 0 : i64, scratch_operands = 3 : i64, tpu.core_type = #tpu.core_type<tc>, window_params = [{transform_indices = @transform_0, window_bounds = array<i64: 8, 8, 32>}, {pipeline_mode = #tpu.pipeline_mode<synchronous>, transform_indices = @transform_1, window_bounds = array<i64: 32, 32>}, {pipeline_mode = #tpu.pipeline_mode<synchronous>, transform_indices = @transform_2, window_bounds = array<i64: 32, 32>}, {pipeline_mode = #tpu.pipeline_mode<synchronous>, transform_indices = @transform_3, window_bounds = array<i64: 1, 32>}, {pipeline_mode = #tpu.pipeline_mode<synchronous>, transform_indices = @transform_4, window_bounds = array<i64: 1, 32>}, {pipeline_mode = #tpu.pipeline_mode<synchronous>, transform_indices = @transform_5, window_bounds = array<i64: 1, 32>}, {transform_indices = @transform_6, window_bounds = array<i64: 8, 8, 32>}]} {
    %c0 = arith.constant 0 : index
    %c0_0 = arith.constant 0 : index
    %c0_1 = arith.constant 0 : index
    %0 = vector.load %arg1[%c0, %c0_0, %c0_1] : memref<8x8x32xf32, #tpu.memory_space<vmem>>, vector<8x8x32xf32>
    %1 = vector.shape_cast %0 : vector<8x8x32xf32> to vector<64x32xf32>
    %c0_2 = arith.constant 0 : index
    %c0_3 = arith.constant 0 : index
    %2 = vector.load %arg2[%c0_2, %c0_3] : memref<32x32xf32, #tpu.memory_space<vmem>>, vector<32x32xf32>
    %cst = arith.constant dense<0.000000e+00> : vector<64x32xf32>
    %3 = tpu.matmul %1, %2, %cst {dimension_numbers = #tpu.dot_dimension_numbers<[1], [0], [0], [1], [0, 0, 1, 1], [], []>} : vector<64x32xf32>, vector<32x32xf32>, vector<64x32xf32> -> vector<64x32xf32>
    %c0_4 = arith.constant 0 : index
    %c0_5 = arith.constant 0 : index
    %4 = vector.load %arg4[%c0_4, %c0_5] : memref<1x32xf32, #tpu.memory_space<vmem>>, vector<1x32xf32>
    %5 = vector.broadcast %4 : vector<1x32xf32> to vector<64x32xf32>
    %6 = arith.addf %3, %5 : vector<64x32xf32>
    %7 = vector.shape_cast %6 : vector<64x32xf32> to vector<8x8x32xf32>
    %c0_6 = arith.constant 0 : index
    %c0_7 = arith.constant 0 : index
    %c0_8 = arith.constant 0 : index
    %8 = vector.load %arg8[%c0_6, %c0_7, %c0_8] : memref<8x8x32xf32, #tpu.memory_space<vmem>>, vector<8x8x32xf32>
    tpu.vector_store %arg8[%c0_6, %c0_7, %c0_8], %7 {strides = array<i32>} : memref<8x8x32xf32, #tpu.memory_space<vmem>>, vector<8x8x32xf32>,
    %cst_9 = arith.constant 0.000000e+00 : f32
    %9 = vector.broadcast %cst_9 : f32 to vector<8x32xf32>
    %c0_10 = arith.constant 0 : index
    %c0_11 = arith.constant 0 : index
    %10 = vector.load %arg9[%c0_10, %c0_11] : memref<8x32xf32, #tpu.memory_space<vmem>>, vector<8x32xf32>
    tpu.vector_store %arg9[%c0_10, %c0_11], %9 {strides = array<i32>} : memref<8x32xf32, #tpu.memory_space<vmem>>, vector<8x32xf32>,
    %cst_12 = arith.constant 0.000000e+00 : f32
    %11 = vector.broadcast %cst_12 : f32 to vector<8x32x32xf32>
    %c0_13 = arith.constant 0 : index
    %c0_14 = arith.constant 0 : index
    %c0_15 = arith.constant 0 : index
    %12 = vector.load %arg10[%c0_13, %c0_14, %c0_15] : memref<8x32x32xf32, #tpu.memory_space<vmem>>, vector<8x32x32xf32>
    tpu.vector_store %arg10[%c0_13, %c0_14, %c0_15], %11 {strides = array<i32>} : memref<8x32x32xf32, #tpu.memory_space<vmem>>, vector<8x32x32xf32>,
    %c0_16 = arith.constant 0 : index
    %c0_17 = arith.constant 0 : index
    %13 = vector.load %arg3[%c0_16, %c0_17] : memref<32x32xf32, #tpu.memory_space<vmem>>, vector<32x32xf32>
    %c0_18 = arith.constant 0 : index
    %c0_19 = arith.constant 0 : index
    %14 = vector.load %arg5[%c0_18, %c0_19] : memref<1x32xf32, #tpu.memory_space<vmem>>, vector<1x32xf32>
    %15 = vector.shape_cast %14 : vector<1x32xf32> to vector<1x32xf32>
    %16 = vector.broadcast %15 : vector<1x32xf32> to vector<8x32xf32>
    %c0_20 = arith.constant 0 : index
    %c0_21 = arith.constant 0 : index
    %17 = vector.load %arg6[%c0_20, %c0_21] : memref<1x32xf32, #tpu.memory_space<vmem>>, vector<1x32xf32>
    %18 = vector.shape_cast %17 : vector<1x32xf32> to vector<1x32xf32>
    %19 = vector.broadcast %18 : vector<1x32xf32> to vector<8x32xf32>
    %c0_22 = arith.constant 0 : index
    %c0_23 = arith.constant 0 : index
    %20 = vector.load %arg9[%c0_22, %c0_23] : memref<8x32xf32, #tpu.memory_space<vmem>>, vector<8x32xf32>
    %c0_24 = arith.constant 0 : index
    %c0_25 = arith.constant 0 : index
    %c0_26 = arith.constant 0 : index
    %21 = vector.load %arg10[%c0_24, %c0_25, %c0_26] : memref<8x32x32xf32, #tpu.memory_space<vmem>>, vector<8x32x32xf32>
    %c0_27 = arith.constant 0 : index
    %c0_28 = arith.constant 0 : index
    %c0_29 = arith.constant 0 : index
    %22 = vector.load %arg8[%c0_27, %c0_28, %c0_29] : memref<8x8x32xf32, #tpu.memory_space<vmem>>, vector<1x8x32xf32>
    %23 = vector.shape_cast %22 : vector<1x8x32xf32> to vector<8x32xf32>
    %cst_30 = arith.constant dense<0.000000e+00> : vector<8x32xf32>
    %24 = tpu.matmul %20, %13, %cst_30 {dimension_numbers = #tpu.dot_dimension_numbers<[1], [0], [0], [1], [0, 0, 1, 1], [], []>} : vector<8x32xf32>, vector<32x32xf32>, vector<8x32xf32> -> vector<8x32xf32>
    %25 = arith.addf %23, %24 : vector<8x32xf32>
    %26 = vector.shape_cast %20 : vector<8x32xf32> to vector<8x32x1xf32>
    %27 = vector.shape_cast %20 : vector<8x32xf32> to vector<8x1x32xf32>
    %28 = vector.broadcast %26 : vector<8x32x1xf32> to vector<8x32x32xf32>
    %29 = vector.broadcast %27 : vector<8x1x32xf32> to vector<8x32x32xf32>
    %30 = arith.mulf %28, %29 : vector<8x32x32xf32>
    %cst_31 = arith.constant 0.899999976 : f32
    %31 = vector.broadcast %cst_31 : f32 to vector<8x32x32xf32>
    %32 = arith.mulf %31, %21 : vector<8x32x32xf32>
    %cst_32 = arith.constant 5.000000e-01 : f32
    %33 = vector.broadcast %cst_32 : f32 to vector<8x32x32xf32>
    %34 = arith.mulf %33, %30 : vector<8x32x32xf32>
    %35 = arith.addf %32, %34 : vector<8x32x32xf32>
    %c0_33 = arith.constant 0 : index
    %c0_34 = arith.constant 0 : index
    %c0_35 = arith.constant 0 : index
    %36 = vector.load %arg10[%c0_33, %c0_34, %c0_35] : memref<8x32x32xf32, #tpu.memory_space<vmem>>, vector<8x32x32xf32>
    tpu.vector_store %arg10[%c0_33, %c0_34, %c0_35], %35 {strides = array<i32>} : memref<8x32x32xf32, #tpu.memory_space<vmem>>, vector<8x32x32xf32>,
    %cst_36 = arith.constant 0.000000e+00 : f32
    %37 = vector.broadcast %cst_36 : f32 to vector<8x32xf32>
    %38 = arith.maximumf %25, %37 : vector<8x32xf32>
    %39 = vector.shape_cast %38 : vector<8x32xf32> to vector<8x1x32xf32>
    %40 = vector.broadcast %39 : vector<8x1x32xf32> to vector<8x32x32xf32>
    %41 = arith.mulf %21, %40 : vector<8x32x32xf32>
    %cst_37 = arith.constant dense<0.000000e+00> : vector<8x32xf32>
    %42 = vector.multi_reduction <add>, %41, %cst_37 [2] : vector<8x32x32xf32> to vector<8x32xf32>
    %43 = arith.mulf %20, %38 : vector<8x32xf32>
    %cst_38 = arith.constant dense<0.000000e+00> : vector<8xf32>
    %44 = vector.multi_reduction <add>, %43, %cst_38 [1] : vector<8x32xf32> to vector<8xf32>
    %45 = vector.shape_cast %44 : vector<8xf32> to vector<8x1xf32>
    %cst_39 = arith.constant 0.899999976 : f32
    %46 = vector.broadcast %cst_39 : f32 to vector<8x32xf32>
    %47 = arith.mulf %46, %42 : vector<8x32xf32>
    %48 = vector.broadcast %45 : vector<8x1xf32> to vector<8x32xf32>
    %49 = arith.mulf %20, %48 : vector<8x32xf32>
    %cst_40 = arith.constant 5.000000e-01 : f32
    %50 = vector.broadcast %cst_40 : f32 to vector<8x32xf32>
    %51 = arith.mulf %50, %49 : vector<8x32xf32>
    %52 = arith.addf %47, %51 : vector<8x32xf32>
    %53 = arith.addf %25, %52 : vector<8x32xf32>
    %cst_41 = arith.constant dense<0.000000e+00> : vector<8xf32>
    %54 = vector.multi_reduction <add>, %53, %cst_41 [1] : vector<8x32xf32> to vector<8xf32>
    %55 = vector.shape_cast %54 : vector<8xf32> to vector<8x1xf32>
    %cst_42 = arith.constant 3.200000e+01 : f32
    %56 = vector.broadcast %cst_42 : f32 to vector<8x1xf32>
    %57 = arith.divf %55, %56 : vector<8x1xf32>
    %58 = vector.broadcast %57 : vector<8x1xf32> to vector<8x32xf32>
    %59 = arith.subf %53, %58 : vector<8x32xf32>
    %60 = arith.mulf %59, %59 : vector<8x32xf32>
    %cst_43 = arith.constant dense<0.000000e+00> : vector<8xf32>
    %61 = vector.multi_reduction <add>, %60, %cst_43 [1] : vector<8x32xf32> to vector<8xf32>
    %62 = vector.shape_cast %61 : vector<8xf32> to vector<8x1xf32>
    %cst_44 = arith.constant 3.200000e+01 : f32
    %63 = vector.broadcast %cst_44 : f32 to vector<8x1xf32>
    %64 = arith.divf %62, %63 : vector<8x1xf32>
    %65 = vector.broadcast %57 : vector<8x1xf32> to vector<8x32xf32>
    %66 = arith.subf %53, %65 : vector<8x32xf32>
    %cst_45 = arith.constant 9.99999974E-6 : f32
    %67 = vector.broadcast %cst_45 : f32 to vector<8x1xf32>
    %68 = arith.addf %64, %67 : vector<8x1xf32>
    %69 = math.rsqrt %68 : vector<8x1xf32>
    %70 = vector.broadcast %69 : vector<8x1xf32> to vector<8x32xf32>
    %71 = arith.mulf %66, %70 : vector<8x32xf32>
    %72 = arith.mulf %71, %16 : vector<8x32xf32>
    %73 = arith.addf %72, %19 : vector<8x32xf32>
    %cst_46 = arith.constant 0.000000e+00 : f32
    %74 = vector.broadcast %cst_46 : f32 to vector<8x32xf32>
    %75 = arith.maximumf %73, %74 : vector<8x32xf32>
    %c0_47 = arith.constant 0 : index
    %c0_48 = arith.constant 0 : index
    %76 = vector.load %arg9[%c0_47, %c0_48] : memref<8x32xf32, #tpu.memory_space<vmem>>, vector<8x32xf32>
    tpu.vector_store %arg9[%c0_47, %c0_48], %75 {strides = array<i32>} : memref<8x32xf32, #tpu.memory_space<vmem>>, vector<8x32xf32>,
    %c0_49 = arith.constant 0 : index
    %c0_50 = arith.constant 0 : index
    %c0_51 = arith.constant 0 : index
    %77 = vector.load %arg7[%c0_49, %c0_50, %c0_51] : memref<8x8x32xf32, #tpu.memory_space<vmem>>, vector<1x8x32xf32>
    %78 = vector.shape_cast %77 : vector<1x8x32xf32> to vector<8x32xf32>
    %79 = vector.shape_cast %75 : vector<8x32xf32> to vector<1x8x32xf32>
    tpu.vector_store %arg7[%c0_49, %c0_50, %c0_51], %79 {strides = array<i32>} : memref<8x8x32xf32, #tpu.memory_space<vmem>>, vector<1x8x32xf32>,
    %c0_52 = arith.constant 0 : index
    %c0_53 = arith.constant 0 : index
    %80 = vector.load %arg9[%c0_52, %c0_53] : memref<8x32xf32, #tpu.memory_space<vmem>>, vector<8x32xf32>
    %c0_54 = arith.constant 0 : index
    %c0_55 = arith.constant 0 : index
    %c0_56 = arith.constant 0 : index
    %81 = vector.load %arg10[%c0_54, %c0_55, %c0_56] : memref<8x32x32xf32, #tpu.memory_space<vmem>>, vector<8x32x32xf32>
    %c1 = arith.constant 1 : index
    %c0_57 = arith.constant 0 : index
    %c0_58 = arith.constant 0 : index
    %82 = vector.load %arg8[%c1, %c0_57, %c0_58] : memref<8x8x32xf32, #tpu.memory_space<vmem>>, vector<1x8x32xf32>
    %83 = vector.shape_cast %82 : vector<1x8x32xf32> to vector<8x32xf32>
    %cst_59 = arith.constant dense<0.000000e+00> : vector<8x32xf32>
    %84 = tpu.matmul %80, %13, %cst_59 {dimension_numbers = #tpu.dot_dimension_numbers<[1], [0], [0], [1], [0, 0, 1, 1], [], []>} : vector<8x32xf32>, vector<32x32xf32>, vector<8x32xf32> -> vector<8x32xf32>
    %85 = arith.addf %83, %84 : vector<8x32xf32>
    %86 = vector.shape_cast %80 : vector<8x32xf32> to vector<8x32x1xf32>
    %87 = vector.shape_cast %80 : vector<8x32xf32> to vector<8x1x32xf32>
    %88 = vector.broadcast %86 : vector<8x32x1xf32> to vector<8x32x32xf32>
    %89 = vector.broadcast %87 : vector<8x1x32xf32> to vector<8x32x32xf32>
    %90 = arith.mulf %88, %89 : vector<8x32x32xf32>
    %cst_60 = arith.constant 0.899999976 : f32
    %91 = vector.broadcast %cst_60 : f32 to vector<8x32x32xf32>
    %92 = arith.mulf %91, %81 : vector<8x32x32xf32>
    %cst_61 = arith.constant 5.000000e-01 : f32
    %93 = vector.broadcast %cst_61 : f32 to vector<8x32x32xf32>
    %94 = arith.mulf %93, %90 : vector<8x32x32xf32>
    %95 = arith.addf %92, %94 : vector<8x32x32xf32>
    %c0_62 = arith.constant 0 : index
    %c0_63 = arith.constant 0 : index
    %c0_64 = arith.constant 0 : index
    %96 = vector.load %arg10[%c0_62, %c0_63, %c0_64] : memref<8x32x32xf32, #tpu.memory_space<vmem>>, vector<8x32x32xf32>
    tpu.vector_store %arg10[%c0_62, %c0_63, %c0_64], %95 {strides = array<i32>} : memref<8x32x32xf32, #tpu.memory_space<vmem>>, vector<8x32x32xf32>,
    %cst_65 = arith.constant 0.000000e+00 : f32
    %97 = vector.broadcast %cst_65 : f32 to vector<8x32xf32>
    %98 = arith.maximumf %85, %97 : vector<8x32xf32>
    %99 = vector.shape_cast %98 : vector<8x32xf32> to vector<8x1x32xf32>
    %100 = vector.broadcast %99 : vector<8x1x32xf32> to vector<8x32x32xf32>
    %101 = arith.mulf %81, %100 : vector<8x32x32xf32>
    %cst_66 = arith.constant dense<0.000000e+00> : vector<8x32xf32>
    %102 = vector.multi_reduction <add>, %101, %cst_66 [2] : vector<8x32x32xf32> to vector<8x32xf32>
    %103 = arith.mulf %80, %98 : vector<8x32xf32>
    %cst_67 = arith.constant dense<0.000000e+00> : vector<8xf32>
    %104 = vector.multi_reduction <add>, %103, %cst_67 [1] : vector<8x32xf32> to vector<8xf32>
    %105 = vector.shape_cast %104 : vector<8xf32> to vector<8x1xf32>
    %cst_68 = arith.constant 0.899999976 : f32
    %106 = vector.broadcast %cst_68 : f32 to vector<8x32xf32>
    %107 = arith.mulf %106, %102 : vector<8x32xf32>
    %108 = vector.broadcast %105 : vector<8x1xf32> to vector<8x32xf32>
    %109 = arith.mulf %80, %108 : vector<8x32xf32>
    %cst_69 = arith.constant 5.000000e-01 : f32
    %110 = vector.broadcast %cst_69 : f32 to vector<8x32xf32>
    %111 = arith.mulf %110, %109 : vector<8x32xf32>
    %112 = arith.addf %107, %111 : vector<8x32xf32>
    %113 = arith.addf %85, %112 : vector<8x32xf32>
    %cst_70 = arith.constant dense<0.000000e+00> : vector<8xf32>
    %114 = vector.multi_reduction <add>, %113, %cst_70 [1] : vector<8x32xf32> to vector<8xf32>
    %115 = vector.shape_cast %114 : vector<8xf32> to vector<8x1xf32>
    %cst_71 = arith.constant 3.200000e+01 : f32
    %116 = vector.broadcast %cst_71 : f32 to vector<8x1xf32>
    %117 = arith.divf %115, %116 : vector<8x1xf32>
    %118 = vector.broadcast %117 : vector<8x1xf32> to vector<8x32xf32>
    %119 = arith.subf %113, %118 : vector<8x32xf32>
    %120 = arith.mulf %119, %119 : vector<8x32xf32>
    %cst_72 = arith.constant dense<0.000000e+00> : vector<8xf32>
    %121 = vector.multi_reduction <add>, %120, %cst_72 [1] : vector<8x32xf32> to vector<8xf32>
    %122 = vector.shape_cast %121 : vector<8xf32> to vector<8x1xf32>
    %cst_73 = arith.constant 3.200000e+01 : f32
    %123 = vector.broadcast %cst_73 : f32 to vector<8x1xf32>
    %124 = arith.divf %122, %123 : vector<8x1xf32>
    %125 = vector.broadcast %117 : vector<8x1xf32> to vector<8x32xf32>
    %126 = arith.subf %113, %125 : vector<8x32xf32>
    %cst_74 = arith.constant 9.99999974E-6 : f32
    %127 = vector.broadcast %cst_74 : f32 to vector<8x1xf32>
    %128 = arith.addf %124, %127 : vector<8x1xf32>
    %129 = math.rsqrt %128 : vector<8x1xf32>
    %130 = vector.broadcast %129 : vector<8x1xf32> to vector<8x32xf32>
    %131 = arith.mulf %126, %130 : vector<8x32xf32>
    %132 = arith.mulf %131, %16 : vector<8x32xf32>
    %133 = arith.addf %132, %19 : vector<8x32xf32>
    %cst_75 = arith.constant 0.000000e+00 : f32
    %134 = vector.broadcast %cst_75 : f32 to vector<8x32xf32>
    %135 = arith.maximumf %133, %134 : vector<8x32xf32>
    %c0_76 = arith.constant 0 : index
    %c0_77 = arith.constant 0 : index
    %136 = vector.load %arg9[%c0_76, %c0_77] : memref<8x32xf32, #tpu.memory_space<vmem>>, vector<8x32xf32>
    tpu.vector_store %arg9[%c0_76, %c0_77], %135 {strides = array<i32>} : memref<8x32xf32, #tpu.memory_space<vmem>>, vector<8x32xf32>,
    %c1_78 = arith.constant 1 : index
    %c0_79 = arith.constant 0 : index
    %c0_80 = arith.constant 0 : index
    %137 = vector.load %arg7[%c1_78, %c0_79, %c0_80] : memref<8x8x32xf32, #tpu.memory_space<vmem>>, vector<1x8x32xf32>
    %138 = vector.shape_cast %137 : vector<1x8x32xf32> to vector<8x32xf32>
    %139 = vector.shape_cast %135 : vector<8x32xf32> to vector<1x8x32xf32>
    tpu.vector_store %arg7[%c1_78, %c0_79, %c0_80], %139 {strides = array<i32>} : memref<8x8x32xf32, #tpu.memory_space<vmem>>, vector<1x8x32xf32>,
    %c0_81 = arith.constant 0 : index
    %c0_82 = arith.constant 0 : index
    %140 = vector.load %arg9[%c0_81, %c0_82] : memref<8x32xf32, #tpu.memory_space<vmem>>, vector<8x32xf32>
    %c0_83 = arith.constant 0 : index
    %c0_84 = arith.constant 0 : index
    %c0_85 = arith.constant 0 : index
    %141 = vector.load %arg10[%c0_83, %c0_84, %c0_85] : memref<8x32x32xf32, #tpu.memory_space<vmem>>, vector<8x32x32xf32>
    %c2 = arith.constant 2 : index
    %c0_86 = arith.constant 0 : index
    %c0_87 = arith.constant 0 : index
    %142 = vector.load %arg8[%c2, %c0_86, %c0_87] : memref<8x8x32xf32, #tpu.memory_space<vmem>>, vector<1x8x32xf32>
    %143 = vector.shape_cast %142 : vector<1x8x32xf32> to vector<8x32xf32>
    %cst_88 = arith.constant dense<0.000000e+00> : vector<8x32xf32>
    %144 = tpu.matmul %140, %13, %cst_88 {dimension_numbers = #tpu.dot_dimension_numbers<[1], [0], [0], [1], [0, 0, 1, 1], [], []>} : vector<8x32xf32>, vector<32x32xf32>, vector<8x32xf32> -> vector<8x32xf32>
    %145 = arith.addf %143, %144 : vector<8x32xf32>
    %146 = vector.shape_cast %140 : vector<8x32xf32> to vector<8x32x1xf32>
    %147 = vector.shape_cast %140 : vector<8x32xf32> to vector<8x1x32xf32>
    %148 = vector.broadcast %146 : vector<8x32x1xf32> to vector<8x32x32xf32>
    %149 = vector.broadcast %147 : vector<8x1x32xf32> to vector<8x32x32xf32>
    %150 = arith.mulf %148, %149 : vector<8x32x32xf32>
    %cst_89 = arith.constant 0.899999976 : f32
    %151 = vector.broadcast %cst_89 : f32 to vector<8x32x32xf32>
    %152 = arith.mulf %151, %141 : vector<8x32x32xf32>
    %cst_90 = arith.constant 5.000000e-01 : f32
    %153 = vector.broadcast %cst_90 : f32 to vector<8x32x32xf32>
    %154 = arith.mulf %153, %150 : vector<8x32x32xf32>
    %155 = arith.addf %152, %154 : vector<8x32x32xf32>
    %c0_91 = arith.constant 0 : index
    %c0_92 = arith.constant 0 : index
    %c0_93 = arith.constant 0 : index
    %156 = vector.load %arg10[%c0_91, %c0_92, %c0_93] : memref<8x32x32xf32, #tpu.memory_space<vmem>>, vector<8x32x32xf32>
    tpu.vector_store %arg10[%c0_91, %c0_92, %c0_93], %155 {strides = array<i32>} : memref<8x32x32xf32, #tpu.memory_space<vmem>>, vector<8x32x32xf32>,
    %cst_94 = arith.constant 0.000000e+00 : f32
    %157 = vector.broadcast %cst_94 : f32 to vector<8x32xf32>
    %158 = arith.maximumf %145, %157 : vector<8x32xf32>
    %159 = vector.shape_cast %158 : vector<8x32xf32> to vector<8x1x32xf32>
    %160 = vector.broadcast %159 : vector<8x1x32xf32> to vector<8x32x32xf32>
    %161 = arith.mulf %141, %160 : vector<8x32x32xf32>
    %cst_95 = arith.constant dense<0.000000e+00> : vector<8x32xf32>
    %162 = vector.multi_reduction <add>, %161, %cst_95 [2] : vector<8x32x32xf32> to vector<8x32xf32>
    %163 = arith.mulf %140, %158 : vector<8x32xf32>
    %cst_96 = arith.constant dense<0.000000e+00> : vector<8xf32>
    %164 = vector.multi_reduction <add>, %163, %cst_96 [1] : vector<8x32xf32> to vector<8xf32>
    %165 = vector.shape_cast %164 : vector<8xf32> to vector<8x1xf32>
    %cst_97 = arith.constant 0.899999976 : f32
    %166 = vector.broadcast %cst_97 : f32 to vector<8x32xf32>
    %167 = arith.mulf %166, %162 : vector<8x32xf32>
    %168 = vector.broadcast %165 : vector<8x1xf32> to vector<8x32xf32>
    %169 = arith.mulf %140, %168 : vector<8x32xf32>
    %cst_98 = arith.constant 5.000000e-01 : f32
    %170 = vector.broadcast %cst_98 : f32 to vector<8x32xf32>
    %171 = arith.mulf %170, %169 : vector<8x32xf32>
    %172 = arith.addf %167, %171 : vector<8x32xf32>
    %173 = arith.addf %145, %172 : vector<8x32xf32>
    %cst_99 = arith.constant dense<0.000000e+00> : vector<8xf32>
    %174 = vector.multi_reduction <add>, %173, %cst_99 [1] : vector<8x32xf32> to vector<8xf32>
    %175 = vector.shape_cast %174 : vector<8xf32> to vector<8x1xf32>
    %cst_100 = arith.constant 3.200000e+01 : f32
    %176 = vector.broadcast %cst_100 : f32 to vector<8x1xf32>
    %177 = arith.divf %175, %176 : vector<8x1xf32>
    %178 = vector.broadcast %177 : vector<8x1xf32> to vector<8x32xf32>
    %179 = arith.subf %173, %178 : vector<8x32xf32>
    %180 = arith.mulf %179, %179 : vector<8x32xf32>
    %cst_101 = arith.constant dense<0.000000e+00> : vector<8xf32>
    %181 = vector.multi_reduction <add>, %180, %cst_101 [1] : vector<8x32xf32> to vector<8xf32>
    %182 = vector.shape_cast %181 : vector<8xf32> to vector<8x1xf32>
    %cst_102 = arith.constant 3.200000e+01 : f32
    %183 = vector.broadcast %cst_102 : f32 to vector<8x1xf32>
    %184 = arith.divf %182, %183 : vector<8x1xf32>
    %185 = vector.broadcast %177 : vector<8x1xf32> to vector<8x32xf32>
    %186 = arith.subf %173, %185 : vector<8x32xf32>
    %cst_103 = arith.constant 9.99999974E-6 : f32
    %187 = vector.broadcast %cst_103 : f32 to vector<8x1xf32>
    %188 = arith.addf %184, %187 : vector<8x1xf32>
    %189 = math.rsqrt %188 : vector<8x1xf32>
    %190 = vector.broadcast %189 : vector<8x1xf32> to vector<8x32xf32>
    %191 = arith.mulf %186, %190 : vector<8x32xf32>
    %192 = arith.mulf %191, %16 : vector<8x32xf32>
    %193 = arith.addf %192, %19 : vector<8x32xf32>
    %cst_104 = arith.constant 0.000000e+00 : f32
    %194 = vector.broadcast %cst_104 : f32 to vector<8x32xf32>
    %195 = arith.maximumf %193, %194 : vector<8x32xf32>
    %c0_105 = arith.constant 0 : index
    %c0_106 = arith.constant 0 : index
    %196 = vector.load %arg9[%c0_105, %c0_106] : memref<8x32xf32, #tpu.memory_space<vmem>>, vector<8x32xf32>
    tpu.vector_store %arg9[%c0_105, %c0_106], %195 {strides = array<i32>} : memref<8x32xf32, #tpu.memory_space<vmem>>, vector<8x32xf32>,
    %c2_107 = arith.constant 2 : index
    %c0_108 = arith.constant 0 : index
    %c0_109 = arith.constant 0 : index
    %197 = vector.load %arg7[%c2_107, %c0_108, %c0_109] : memref<8x8x32xf32, #tpu.memory_space<vmem>>, vector<1x8x32xf32>
    %198 = vector.shape_cast %197 : vector<1x8x32xf32> to vector<8x32xf32>
    %199 = vector.shape_cast %195 : vector<8x32xf32> to vector<1x8x32xf32>
    tpu.vector_store %arg7[%c2_107, %c0_108, %c0_109], %199 {strides = array<i32>} : memref<8x8x32xf32, #tpu.memory_space<vmem>>, vector<1x8x32xf32>,
    %c0_110 = arith.constant 0 : index
    %c0_111 = arith.constant 0 : index
    %200 = vector.load %arg9[%c0_110, %c0_111] : memref<8x32xf32, #tpu.memory_space<vmem>>, vector<8x32xf32>
    %c0_112 = arith.constant 0 : index
    %c0_113 = arith.constant 0 : index
    %c0_114 = arith.constant 0 : index
    %201 = vector.load %arg10[%c0_112, %c0_113, %c0_114] : memref<8x32x32xf32, #tpu.memory_space<vmem>>, vector<8x32x32xf32>
    %c3 = arith.constant 3 : index
    %c0_115 = arith.constant 0 : index
    %c0_116 = arith.constant 0 : index
    %202 = vector.load %arg8[%c3, %c0_115, %c0_116] : memref<8x8x32xf32, #tpu.memory_space<vmem>>, vector<1x8x32xf32>
    %203 = vector.shape_cast %202 : vector<1x8x32xf32> to vector<8x32xf32>
    %cst_117 = arith.constant dense<0.000000e+00> : vector<8x32xf32>
    %204 = tpu.matmul %200, %13, %cst_117 {dimension_numbers = #tpu.dot_dimension_numbers<[1], [0], [0], [1], [0, 0, 1, 1], [], []>} : vector<8x32xf32>, vector<32x32xf32>, vector<8x32xf32> -> vector<8x32xf32>
    %205 = arith.addf %203, %204 : vector<8x32xf32>
    %206 = vector.shape_cast %200 : vector<8x32xf32> to vector<8x32x1xf32>
    %207 = vector.shape_cast %200 : vector<8x32xf32> to vector<8x1x32xf32>
    %208 = vector.broadcast %206 : vector<8x32x1xf32> to vector<8x32x32xf32>
    %209 = vector.broadcast %207 : vector<8x1x32xf32> to vector<8x32x32xf32>
    %210 = arith.mulf %208, %209 : vector<8x32x32xf32>
    %cst_118 = arith.constant 0.899999976 : f32
    %211 = vector.broadcast %cst_118 : f32 to vector<8x32x32xf32>
    %212 = arith.mulf %211, %201 : vector<8x32x32xf32>
    %cst_119 = arith.constant 5.000000e-01 : f32
    %213 = vector.broadcast %cst_119 : f32 to vector<8x32x32xf32>
    %214 = arith.mulf %213, %210 : vector<8x32x32xf32>
    %215 = arith.addf %212, %214 : vector<8x32x32xf32>
    %c0_120 = arith.constant 0 : index
    %c0_121 = arith.constant 0 : index
    %c0_122 = arith.constant 0 : index
    %216 = vector.load %arg10[%c0_120, %c0_121, %c0_122] : memref<8x32x32xf32, #tpu.memory_space<vmem>>, vector<8x32x32xf32>
    tpu.vector_store %arg10[%c0_120, %c0_121, %c0_122], %215 {strides = array<i32>} : memref<8x32x32xf32, #tpu.memory_space<vmem>>, vector<8x32x32xf32>,
    %cst_123 = arith.constant 0.000000e+00 : f32
    %217 = vector.broadcast %cst_123 : f32 to vector<8x32xf32>
    %218 = arith.maximumf %205, %217 : vector<8x32xf32>
    %219 = vector.shape_cast %218 : vector<8x32xf32> to vector<8x1x32xf32>
    %220 = vector.broadcast %219 : vector<8x1x32xf32> to vector<8x32x32xf32>
    %221 = arith.mulf %201, %220 : vector<8x32x32xf32>
    %cst_124 = arith.constant dense<0.000000e+00> : vector<8x32xf32>
    %222 = vector.multi_reduction <add>, %221, %cst_124 [2] : vector<8x32x32xf32> to vector<8x32xf32>
    %223 = arith.mulf %200, %218 : vector<8x32xf32>
    %cst_125 = arith.constant dense<0.000000e+00> : vector<8xf32>
    %224 = vector.multi_reduction <add>, %223, %cst_125 [1] : vector<8x32xf32> to vector<8xf32>
    %225 = vector.shape_cast %224 : vector<8xf32> to vector<8x1xf32>
    %cst_126 = arith.constant 0.899999976 : f32
    %226 = vector.broadcast %cst_126 : f32 to vector<8x32xf32>
    %227 = arith.mulf %226, %222 : vector<8x32xf32>
    %228 = vector.broadcast %225 : vector<8x1xf32> to vector<8x32xf32>
    %229 = arith.mulf %200, %228 : vector<8x32xf32>
    %cst_127 = arith.constant 5.000000e-01 : f32
    %230 = vector.broadcast %cst_127 : f32 to vector<8x32xf32>
    %231 = arith.mulf %230, %229 : vector<8x32xf32>
    %232 = arith.addf %227, %231 : vector<8x32xf32>
    %233 = arith.addf %205, %232 : vector<8x32xf32>
    %cst_128 = arith.constant dense<0.000000e+00> : vector<8xf32>
    %234 = vector.multi_reduction <add>, %233, %cst_128 [1] : vector<8x32xf32> to vector<8xf32>
    %235 = vector.shape_cast %234 : vector<8xf32> to vector<8x1xf32>
    %cst_129 = arith.constant 3.200000e+01 : f32
    %236 = vector.broadcast %cst_129 : f32 to vector<8x1xf32>
    %237 = arith.divf %235, %236 : vector<8x1xf32>
    %238 = vector.broadcast %237 : vector<8x1xf32> to vector<8x32xf32>
    %239 = arith.subf %233, %238 : vector<8x32xf32>
    %240 = arith.mulf %239, %239 : vector<8x32xf32>
    %cst_130 = arith.constant dense<0.000000e+00> : vector<8xf32>
    %241 = vector.multi_reduction <add>, %240, %cst_130 [1] : vector<8x32xf32> to vector<8xf32>
    %242 = vector.shape_cast %241 : vector<8xf32> to vector<8x1xf32>
    %cst_131 = arith.constant 3.200000e+01 : f32
    %243 = vector.broadcast %cst_131 : f32 to vector<8x1xf32>
    %244 = arith.divf %242, %243 : vector<8x1xf32>
    %245 = vector.broadcast %237 : vector<8x1xf32> to vector<8x32xf32>
    %246 = arith.subf %233, %245 : vector<8x32xf32>
    %cst_132 = arith.constant 9.99999974E-6 : f32
    %247 = vector.broadcast %cst_132 : f32 to vector<8x1xf32>
    %248 = arith.addf %244, %247 : vector<8x1xf32>
    %249 = math.rsqrt %248 : vector<8x1xf32>
    %250 = vector.broadcast %249 : vector<8x1xf32> to vector<8x32xf32>
    %251 = arith.mulf %246, %250 : vector<8x32xf32>
    %252 = arith.mulf %251, %16 : vector<8x32xf32>
    %253 = arith.addf %252, %19 : vector<8x32xf32>
    %cst_133 = arith.constant 0.000000e+00 : f32
    %254 = vector.broadcast %cst_133 : f32 to vector<8x32xf32>
    %255 = arith.maximumf %253, %254 : vector<8x32xf32>
    %c0_134 = arith.constant 0 : index
    %c0_135 = arith.constant 0 : index
    %256 = vector.load %arg9[%c0_134, %c0_135] : memref<8x32xf32, #tpu.memory_space<vmem>>, vector<8x32xf32>
    tpu.vector_store %arg9[%c0_134, %c0_135], %255 {strides = array<i32>} : memref<8x32xf32, #tpu.memory_space<vmem>>, vector<8x32xf32>,
    %c3_136 = arith.constant 3 : index
    %c0_137 = arith.constant 0 : index
    %c0_138 = arith.constant 0 : index
    %257 = vector.load %arg7[%c3_136, %c0_137, %c0_138] : memref<8x8x32xf32, #tpu.memory_space<vmem>>, vector<1x8x32xf32>
    %258 = vector.shape_cast %257 : vector<1x8x32xf32> to vector<8x32xf32>
    %259 = vector.shape_cast %255 : vector<8x32xf32> to vector<1x8x32xf32>
    tpu.vector_store %arg7[%c3_136, %c0_137, %c0_138], %259 {strides = array<i32>} : memref<8x8x32xf32, #tpu.memory_space<vmem>>, vector<1x8x32xf32>,
    %c0_139 = arith.constant 0 : index
    %c0_140 = arith.constant 0 : index
    %260 = vector.load %arg9[%c0_139, %c0_140] : memref<8x32xf32, #tpu.memory_space<vmem>>, vector<8x32xf32>
    %c0_141 = arith.constant 0 : index
    %c0_142 = arith.constant 0 : index
    %c0_143 = arith.constant 0 : index
    %261 = vector.load %arg10[%c0_141, %c0_142, %c0_143] : memref<8x32x32xf32, #tpu.memory_space<vmem>>, vector<8x32x32xf32>
    %c4 = arith.constant 4 : index
    %c0_144 = arith.constant 0 : index
    %c0_145 = arith.constant 0 : index
    %262 = vector.load %arg8[%c4, %c0_144, %c0_145] : memref<8x8x32xf32, #tpu.memory_space<vmem>>, vector<1x8x32xf32>
    %263 = vector.shape_cast %262 : vector<1x8x32xf32> to vector<8x32xf32>
    %cst_146 = arith.constant dense<0.000000e+00> : vector<8x32xf32>
    %264 = tpu.matmul %260, %13, %cst_146 {dimension_numbers = #tpu.dot_dimension_numbers<[1], [0], [0], [1], [0, 0, 1, 1], [], []>} : vector<8x32xf32>, vector<32x32xf32>, vector<8x32xf32> -> vector<8x32xf32>
    %265 = arith.addf %263, %264 : vector<8x32xf32>
    %266 = vector.shape_cast %260 : vector<8x32xf32> to vector<8x32x1xf32>
    %267 = vector.shape_cast %260 : vector<8x32xf32> to vector<8x1x32xf32>
    %268 = vector.broadcast %266 : vector<8x32x1xf32> to vector<8x32x32xf32>
    %269 = vector.broadcast %267 : vector<8x1x32xf32> to vector<8x32x32xf32>
    %270 = arith.mulf %268, %269 : vector<8x32x32xf32>
    %cst_147 = arith.constant 0.899999976 : f32
    %271 = vector.broadcast %cst_147 : f32 to vector<8x32x32xf32>
    %272 = arith.mulf %271, %261 : vector<8x32x32xf32>
    %cst_148 = arith.constant 5.000000e-01 : f32
    %273 = vector.broadcast %cst_148 : f32 to vector<8x32x32xf32>
    %274 = arith.mulf %273, %270 : vector<8x32x32xf32>
    %275 = arith.addf %272, %274 : vector<8x32x32xf32>
    %c0_149 = arith.constant 0 : index
    %c0_150 = arith.constant 0 : index
    %c0_151 = arith.constant 0 : index
    %276 = vector.load %arg10[%c0_149, %c0_150, %c0_151] : memref<8x32x32xf32, #tpu.memory_space<vmem>>, vector<8x32x32xf32>
    tpu.vector_store %arg10[%c0_149, %c0_150, %c0_151], %275 {strides = array<i32>} : memref<8x32x32xf32, #tpu.memory_space<vmem>>, vector<8x32x32xf32>,
    %cst_152 = arith.constant 0.000000e+00 : f32
    %277 = vector.broadcast %cst_152 : f32 to vector<8x32xf32>
    %278 = arith.maximumf %265, %277 : vector<8x32xf32>
    %279 = vector.shape_cast %278 : vector<8x32xf32> to vector<8x1x32xf32>
    %280 = vector.broadcast %279 : vector<8x1x32xf32> to vector<8x32x32xf32>
    %281 = arith.mulf %261, %280 : vector<8x32x32xf32>
    %cst_153 = arith.constant dense<0.000000e+00> : vector<8x32xf32>
    %282 = vector.multi_reduction <add>, %281, %cst_153 [2] : vector<8x32x32xf32> to vector<8x32xf32>
    %283 = arith.mulf %260, %278 : vector<8x32xf32>
    %cst_154 = arith.constant dense<0.000000e+00> : vector<8xf32>
    %284 = vector.multi_reduction <add>, %283, %cst_154 [1] : vector<8x32xf32> to vector<8xf32>
    %285 = vector.shape_cast %284 : vector<8xf32> to vector<8x1xf32>
    %cst_155 = arith.constant 0.899999976 : f32
    %286 = vector.broadcast %cst_155 : f32 to vector<8x32xf32>
    %287 = arith.mulf %286, %282 : vector<8x32xf32>
    %288 = vector.broadcast %285 : vector<8x1xf32> to vector<8x32xf32>
    %289 = arith.mulf %260, %288 : vector<8x32xf32>
    %cst_156 = arith.constant 5.000000e-01 : f32
    %290 = vector.broadcast %cst_156 : f32 to vector<8x32xf32>
    %291 = arith.mulf %290, %289 : vector<8x32xf32>
    %292 = arith.addf %287, %291 : vector<8x32xf32>
    %293 = arith.addf %265, %292 : vector<8x32xf32>
    %cst_157 = arith.constant dense<0.000000e+00> : vector<8xf32>
    %294 = vector.multi_reduction <add>, %293, %cst_157 [1] : vector<8x32xf32> to vector<8xf32>
    %295 = vector.shape_cast %294 : vector<8xf32> to vector<8x1xf32>
    %cst_158 = arith.constant 3.200000e+01 : f32
    %296 = vector.broadcast %cst_158 : f32 to vector<8x1xf32>
    %297 = arith.divf %295, %296 : vector<8x1xf32>
    %298 = vector.broadcast %297 : vector<8x1xf32> to vector<8x32xf32>
    %299 = arith.subf %293, %298 : vector<8x32xf32>
    %300 = arith.mulf %299, %299 : vector<8x32xf32>
    %cst_159 = arith.constant dense<0.000000e+00> : vector<8xf32>
    %301 = vector.multi_reduction <add>, %300, %cst_159 [1] : vector<8x32xf32> to vector<8xf32>
    %302 = vector.shape_cast %301 : vector<8xf32> to vector<8x1xf32>
    %cst_160 = arith.constant 3.200000e+01 : f32
    %303 = vector.broadcast %cst_160 : f32 to vector<8x1xf32>
    %304 = arith.divf %302, %303 : vector<8x1xf32>
    %305 = vector.broadcast %297 : vector<8x1xf32> to vector<8x32xf32>
    %306 = arith.subf %293, %305 : vector<8x32xf32>
    %cst_161 = arith.constant 9.99999974E-6 : f32
    %307 = vector.broadcast %cst_161 : f32 to vector<8x1xf32>
    %308 = arith.addf %304, %307 : vector<8x1xf32>
    %309 = math.rsqrt %308 : vector<8x1xf32>
    %310 = vector.broadcast %309 : vector<8x1xf32> to vector<8x32xf32>
    %311 = arith.mulf %306, %310 : vector<8x32xf32>
    %312 = arith.mulf %311, %16 : vector<8x32xf32>
    %313 = arith.addf %312, %19 : vector<8x32xf32>
    %cst_162 = arith.constant 0.000000e+00 : f32
    %314 = vector.broadcast %cst_162 : f32 to vector<8x32xf32>
    %315 = arith.maximumf %313, %314 : vector<8x32xf32>
    %c0_163 = arith.constant 0 : index
    %c0_164 = arith.constant 0 : index
    %316 = vector.load %arg9[%c0_163, %c0_164] : memref<8x32xf32, #tpu.memory_space<vmem>>, vector<8x32xf32>
    tpu.vector_store %arg9[%c0_163, %c0_164], %315 {strides = array<i32>} : memref<8x32xf32, #tpu.memory_space<vmem>>, vector<8x32xf32>,
    %c4_165 = arith.constant 4 : index
    %c0_166 = arith.constant 0 : index
    %c0_167 = arith.constant 0 : index
    %317 = vector.load %arg7[%c4_165, %c0_166, %c0_167] : memref<8x8x32xf32, #tpu.memory_space<vmem>>, vector<1x8x32xf32>
    %318 = vector.shape_cast %317 : vector<1x8x32xf32> to vector<8x32xf32>
    %319 = vector.shape_cast %315 : vector<8x32xf32> to vector<1x8x32xf32>
    tpu.vector_store %arg7[%c4_165, %c0_166, %c0_167], %319 {strides = array<i32>} : memref<8x8x32xf32, #tpu.memory_space<vmem>>, vector<1x8x32xf32>,
    %c0_168 = arith.constant 0 : index
    %c0_169 = arith.constant 0 : index
    %320 = vector.load %arg9[%c0_168, %c0_169] : memref<8x32xf32, #tpu.memory_space<vmem>>, vector<8x32xf32>
    %c0_170 = arith.constant 0 : index
    %c0_171 = arith.constant 0 : index
    %c0_172 = arith.constant 0 : index
    %321 = vector.load %arg10[%c0_170, %c0_171, %c0_172] : memref<8x32x32xf32, #tpu.memory_space<vmem>>, vector<8x32x32xf32>
    %c5 = arith.constant 5 : index
    %c0_173 = arith.constant 0 : index
    %c0_174 = arith.constant 0 : index
    %322 = vector.load %arg8[%c5, %c0_173, %c0_174] : memref<8x8x32xf32, #tpu.memory_space<vmem>>, vector<1x8x32xf32>
    %323 = vector.shape_cast %322 : vector<1x8x32xf32> to vector<8x32xf32>
    %cst_175 = arith.constant dense<0.000000e+00> : vector<8x32xf32>
    %324 = tpu.matmul %320, %13, %cst_175 {dimension_numbers = #tpu.dot_dimension_numbers<[1], [0], [0], [1], [0, 0, 1, 1], [], []>} : vector<8x32xf32>, vector<32x32xf32>, vector<8x32xf32> -> vector<8x32xf32>
    %325 = arith.addf %323, %324 : vector<8x32xf32>
    %326 = vector.shape_cast %320 : vector<8x32xf32> to vector<8x32x1xf32>
    %327 = vector.shape_cast %320 : vector<8x32xf32> to vector<8x1x32xf32>
    %328 = vector.broadcast %326 : vector<8x32x1xf32> to vector<8x32x32xf32>
    %329 = vector.broadcast %327 : vector<8x1x32xf32> to vector<8x32x32xf32>
    %330 = arith.mulf %328, %329 : vector<8x32x32xf32>
    %cst_176 = arith.constant 0.899999976 : f32
    %331 = vector.broadcast %cst_176 : f32 to vector<8x32x32xf32>
    %332 = arith.mulf %331, %321 : vector<8x32x32xf32>
    %cst_177 = arith.constant 5.000000e-01 : f32
    %333 = vector.broadcast %cst_177 : f32 to vector<8x32x32xf32>
    %334 = arith.mulf %333, %330 : vector<8x32x32xf32>
    %335 = arith.addf %332, %334 : vector<8x32x32xf32>
    %c0_178 = arith.constant 0 : index
    %c0_179 = arith.constant 0 : index
    %c0_180 = arith.constant 0 : index
    %336 = vector.load %arg10[%c0_178, %c0_179, %c0_180] : memref<8x32x32xf32, #tpu.memory_space<vmem>>, vector<8x32x32xf32>
    tpu.vector_store %arg10[%c0_178, %c0_179, %c0_180], %335 {strides = array<i32>} : memref<8x32x32xf32, #tpu.memory_space<vmem>>, vector<8x32x32xf32>,
    %cst_181 = arith.constant 0.000000e+00 : f32
    %337 = vector.broadcast %cst_181 : f32 to vector<8x32xf32>
    %338 = arith.maximumf %325, %337 : vector<8x32xf32>
    %339 = vector.shape_cast %338 : vector<8x32xf32> to vector<8x1x32xf32>
    %340 = vector.broadcast %339 : vector<8x1x32xf32> to vector<8x32x32xf32>
    %341 = arith.mulf %321, %340 : vector<8x32x32xf32>
    %cst_182 = arith.constant dense<0.000000e+00> : vector<8x32xf32>
    %342 = vector.multi_reduction <add>, %341, %cst_182 [2] : vector<8x32x32xf32> to vector<8x32xf32>
    %343 = arith.mulf %320, %338 : vector<8x32xf32>
    %cst_183 = arith.constant dense<0.000000e+00> : vector<8xf32>
    %344 = vector.multi_reduction <add>, %343, %cst_183 [1] : vector<8x32xf32> to vector<8xf32>
    %345 = vector.shape_cast %344 : vector<8xf32> to vector<8x1xf32>
    %cst_184 = arith.constant 0.899999976 : f32
    %346 = vector.broadcast %cst_184 : f32 to vector<8x32xf32>
    %347 = arith.mulf %346, %342 : vector<8x32xf32>
    %348 = vector.broadcast %345 : vector<8x1xf32> to vector<8x32xf32>
    %349 = arith.mulf %320, %348 : vector<8x32xf32>
    %cst_185 = arith.constant 5.000000e-01 : f32
    %350 = vector.broadcast %cst_185 : f32 to vector<8x32xf32>
    %351 = arith.mulf %350, %349 : vector<8x32xf32>
    %352 = arith.addf %347, %351 : vector<8x32xf32>
    %353 = arith.addf %325, %352 : vector<8x32xf32>
    %cst_186 = arith.constant dense<0.000000e+00> : vector<8xf32>
    %354 = vector.multi_reduction <add>, %353, %cst_186 [1] : vector<8x32xf32> to vector<8xf32>
    %355 = vector.shape_cast %354 : vector<8xf32> to vector<8x1xf32>
    %cst_187 = arith.constant 3.200000e+01 : f32
    %356 = vector.broadcast %cst_187 : f32 to vector<8x1xf32>
    %357 = arith.divf %355, %356 : vector<8x1xf32>
    %358 = vector.broadcast %357 : vector<8x1xf32> to vector<8x32xf32>
    %359 = arith.subf %353, %358 : vector<8x32xf32>
    %360 = arith.mulf %359, %359 : vector<8x32xf32>
    %cst_188 = arith.constant dense<0.000000e+00> : vector<8xf32>
    %361 = vector.multi_reduction <add>, %360, %cst_188 [1] : vector<8x32xf32> to vector<8xf32>
    %362 = vector.shape_cast %361 : vector<8xf32> to vector<8x1xf32>
    %cst_189 = arith.constant 3.200000e+01 : f32
    %363 = vector.broadcast %cst_189 : f32 to vector<8x1xf32>
    %364 = arith.divf %362, %363 : vector<8x1xf32>
    %365 = vector.broadcast %357 : vector<8x1xf32> to vector<8x32xf32>
    %366 = arith.subf %353, %365 : vector<8x32xf32>
    %cst_190 = arith.constant 9.99999974E-6 : f32
    %367 = vector.broadcast %cst_190 : f32 to vector<8x1xf32>
    %368 = arith.addf %364, %367 : vector<8x1xf32>
    %369 = math.rsqrt %368 : vector<8x1xf32>
    %370 = vector.broadcast %369 : vector<8x1xf32> to vector<8x32xf32>
    %371 = arith.mulf %366, %370 : vector<8x32xf32>
    %372 = arith.mulf %371, %16 : vector<8x32xf32>
    %373 = arith.addf %372, %19 : vector<8x32xf32>
    %cst_191 = arith.constant 0.000000e+00 : f32
    %374 = vector.broadcast %cst_191 : f32 to vector<8x32xf32>
    %375 = arith.maximumf %373, %374 : vector<8x32xf32>
    %c0_192 = arith.constant 0 : index
    %c0_193 = arith.constant 0 : index
    %376 = vector.load %arg9[%c0_192, %c0_193] : memref<8x32xf32, #tpu.memory_space<vmem>>, vector<8x32xf32>
    tpu.vector_store %arg9[%c0_192, %c0_193], %375 {strides = array<i32>} : memref<8x32xf32, #tpu.memory_space<vmem>>, vector<8x32xf32>,
    %c5_194 = arith.constant 5 : index
    %c0_195 = arith.constant 0 : index
    %c0_196 = arith.constant 0 : index
    %377 = vector.load %arg7[%c5_194, %c0_195, %c0_196] : memref<8x8x32xf32, #tpu.memory_space<vmem>>, vector<1x8x32xf32>
    %378 = vector.shape_cast %377 : vector<1x8x32xf32> to vector<8x32xf32>
    %379 = vector.shape_cast %375 : vector<8x32xf32> to vector<1x8x32xf32>
    tpu.vector_store %arg7[%c5_194, %c0_195, %c0_196], %379 {strides = array<i32>} : memref<8x8x32xf32, #tpu.memory_space<vmem>>, vector<1x8x32xf32>,
    %c0_197 = arith.constant 0 : index
    %c0_198 = arith.constant 0 : index
    %380 = vector.load %arg9[%c0_197, %c0_198] : memref<8x32xf32, #tpu.memory_space<vmem>>, vector<8x32xf32>
    %c0_199 = arith.constant 0 : index
    %c0_200 = arith.constant 0 : index
    %c0_201 = arith.constant 0 : index
    %381 = vector.load %arg10[%c0_199, %c0_200, %c0_201] : memref<8x32x32xf32, #tpu.memory_space<vmem>>, vector<8x32x32xf32>
    %c6 = arith.constant 6 : index
    %c0_202 = arith.constant 0 : index
    %c0_203 = arith.constant 0 : index
    %382 = vector.load %arg8[%c6, %c0_202, %c0_203] : memref<8x8x32xf32, #tpu.memory_space<vmem>>, vector<1x8x32xf32>
    %383 = vector.shape_cast %382 : vector<1x8x32xf32> to vector<8x32xf32>
    %cst_204 = arith.constant dense<0.000000e+00> : vector<8x32xf32>
    %384 = tpu.matmul %380, %13, %cst_204 {dimension_numbers = #tpu.dot_dimension_numbers<[1], [0], [0], [1], [0, 0, 1, 1], [], []>} : vector<8x32xf32>, vector<32x32xf32>, vector<8x32xf32> -> vector<8x32xf32>
    %385 = arith.addf %383, %384 : vector<8x32xf32>
    %386 = vector.shape_cast %380 : vector<8x32xf32> to vector<8x32x1xf32>
    %387 = vector.shape_cast %380 : vector<8x32xf32> to vector<8x1x32xf32>
    %388 = vector.broadcast %386 : vector<8x32x1xf32> to vector<8x32x32xf32>
    %389 = vector.broadcast %387 : vector<8x1x32xf32> to vector<8x32x32xf32>
    %390 = arith.mulf %388, %389 : vector<8x32x32xf32>
    %cst_205 = arith.constant 0.899999976 : f32
    %391 = vector.broadcast %cst_205 : f32 to vector<8x32x32xf32>
    %392 = arith.mulf %391, %381 : vector<8x32x32xf32>
    %cst_206 = arith.constant 5.000000e-01 : f32
    %393 = vector.broadcast %cst_206 : f32 to vector<8x32x32xf32>
    %394 = arith.mulf %393, %390 : vector<8x32x32xf32>
    %395 = arith.addf %392, %394 : vector<8x32x32xf32>
    %c0_207 = arith.constant 0 : index
    %c0_208 = arith.constant 0 : index
    %c0_209 = arith.constant 0 : index
    %396 = vector.load %arg10[%c0_207, %c0_208, %c0_209] : memref<8x32x32xf32, #tpu.memory_space<vmem>>, vector<8x32x32xf32>
    tpu.vector_store %arg10[%c0_207, %c0_208, %c0_209], %395 {strides = array<i32>} : memref<8x32x32xf32, #tpu.memory_space<vmem>>, vector<8x32x32xf32>,
    %cst_210 = arith.constant 0.000000e+00 : f32
    %397 = vector.broadcast %cst_210 : f32 to vector<8x32xf32>
    %398 = arith.maximumf %385, %397 : vector<8x32xf32>
    %399 = vector.shape_cast %398 : vector<8x32xf32> to vector<8x1x32xf32>
    %400 = vector.broadcast %399 : vector<8x1x32xf32> to vector<8x32x32xf32>
    %401 = arith.mulf %381, %400 : vector<8x32x32xf32>
    %cst_211 = arith.constant dense<0.000000e+00> : vector<8x32xf32>
    %402 = vector.multi_reduction <add>, %401, %cst_211 [2] : vector<8x32x32xf32> to vector<8x32xf32>
    %403 = arith.mulf %380, %398 : vector<8x32xf32>
    %cst_212 = arith.constant dense<0.000000e+00> : vector<8xf32>
    %404 = vector.multi_reduction <add>, %403, %cst_212 [1] : vector<8x32xf32> to vector<8xf32>
    %405 = vector.shape_cast %404 : vector<8xf32> to vector<8x1xf32>
    %cst_213 = arith.constant 0.899999976 : f32
    %406 = vector.broadcast %cst_213 : f32 to vector<8x32xf32>
    %407 = arith.mulf %406, %402 : vector<8x32xf32>
    %408 = vector.broadcast %405 : vector<8x1xf32> to vector<8x32xf32>
    %409 = arith.mulf %380, %408 : vector<8x32xf32>
    %cst_214 = arith.constant 5.000000e-01 : f32
    %410 = vector.broadcast %cst_214 : f32 to vector<8x32xf32>
    %411 = arith.mulf %410, %409 : vector<8x32xf32>
    %412 = arith.addf %407, %411 : vector<8x32xf32>
    %413 = arith.addf %385, %412 : vector<8x32xf32>
    %cst_215 = arith.constant dense<0.000000e+00> : vector<8xf32>
    %414 = vector.multi_reduction <add>, %413, %cst_215 [1] : vector<8x32xf32> to vector<8xf32>
    %415 = vector.shape_cast %414 : vector<8xf32> to vector<8x1xf32>
    %cst_216 = arith.constant 3.200000e+01 : f32
    %416 = vector.broadcast %cst_216 : f32 to vector<8x1xf32>
    %417 = arith.divf %415, %416 : vector<8x1xf32>
    %418 = vector.broadcast %417 : vector<8x1xf32> to vector<8x32xf32>
    %419 = arith.subf %413, %418 : vector<8x32xf32>
    %420 = arith.mulf %419, %419 : vector<8x32xf32>
    %cst_217 = arith.constant dense<0.000000e+00> : vector<8xf32>
    %421 = vector.multi_reduction <add>, %420, %cst_217 [1] : vector<8x32xf32> to vector<8xf32>
    %422 = vector.shape_cast %421 : vector<8xf32> to vector<8x1xf32>
    %cst_218 = arith.constant 3.200000e+01 : f32
    %423 = vector.broadcast %cst_218 : f32 to vector<8x1xf32>
    %424 = arith.divf %422, %423 : vector<8x1xf32>
    %425 = vector.broadcast %417 : vector<8x1xf32> to vector<8x32xf32>
    %426 = arith.subf %413, %425 : vector<8x32xf32>
    %cst_219 = arith.constant 9.99999974E-6 : f32
    %427 = vector.broadcast %cst_219 : f32 to vector<8x1xf32>
    %428 = arith.addf %424, %427 : vector<8x1xf32>
    %429 = math.rsqrt %428 : vector<8x1xf32>
    %430 = vector.broadcast %429 : vector<8x1xf32> to vector<8x32xf32>
    %431 = arith.mulf %426, %430 : vector<8x32xf32>
    %432 = arith.mulf %431, %16 : vector<8x32xf32>
    %433 = arith.addf %432, %19 : vector<8x32xf32>
    %cst_220 = arith.constant 0.000000e+00 : f32
    %434 = vector.broadcast %cst_220 : f32 to vector<8x32xf32>
    %435 = arith.maximumf %433, %434 : vector<8x32xf32>
    %c0_221 = arith.constant 0 : index
    %c0_222 = arith.constant 0 : index
    %436 = vector.load %arg9[%c0_221, %c0_222] : memref<8x32xf32, #tpu.memory_space<vmem>>, vector<8x32xf32>
    tpu.vector_store %arg9[%c0_221, %c0_222], %435 {strides = array<i32>} : memref<8x32xf32, #tpu.memory_space<vmem>>, vector<8x32xf32>,
    %c6_223 = arith.constant 6 : index
    %c0_224 = arith.constant 0 : index
    %c0_225 = arith.constant 0 : index
    %437 = vector.load %arg7[%c6_223, %c0_224, %c0_225] : memref<8x8x32xf32, #tpu.memory_space<vmem>>, vector<1x8x32xf32>
    %438 = vector.shape_cast %437 : vector<1x8x32xf32> to vector<8x32xf32>
    %439 = vector.shape_cast %435 : vector<8x32xf32> to vector<1x8x32xf32>
    tpu.vector_store %arg7[%c6_223, %c0_224, %c0_225], %439 {strides = array<i32>} : memref<8x8x32xf32, #tpu.memory_space<vmem>>, vector<1x8x32xf32>,
    %c0_226 = arith.constant 0 : index
    %c0_227 = arith.constant 0 : index
    %440 = vector.load %arg9[%c0_226, %c0_227] : memref<8x32xf32, #tpu.memory_space<vmem>>, vector<8x32xf32>
    %c0_228 = arith.constant 0 : index
    %c0_229 = arith.constant 0 : index
    %c0_230 = arith.constant 0 : index
    %441 = vector.load %arg10[%c0_228, %c0_229, %c0_230] : memref<8x32x32xf32, #tpu.memory_space<vmem>>, vector<8x32x32xf32>
    %c7 = arith.constant 7 : index
    %c0_231 = arith.constant 0 : index
    %c0_232 = arith.constant 0 : index
    %442 = vector.load %arg8[%c7, %c0_231, %c0_232] : memref<8x8x32xf32, #tpu.memory_space<vmem>>, vector<1x8x32xf32>
    %443 = vector.shape_cast %442 : vector<1x8x32xf32> to vector<8x32xf32>
    %cst_233 = arith.constant dense<0.000000e+00> : vector<8x32xf32>
    %444 = tpu.matmul %440, %13, %cst_233 {dimension_numbers = #tpu.dot_dimension_numbers<[1], [0], [0], [1], [0, 0, 1, 1], [], []>} : vector<8x32xf32>, vector<32x32xf32>, vector<8x32xf32> -> vector<8x32xf32>
    %445 = arith.addf %443, %444 : vector<8x32xf32>
    %446 = vector.shape_cast %440 : vector<8x32xf32> to vector<8x32x1xf32>
    %447 = vector.shape_cast %440 : vector<8x32xf32> to vector<8x1x32xf32>
    %448 = vector.broadcast %446 : vector<8x32x1xf32> to vector<8x32x32xf32>
    %449 = vector.broadcast %447 : vector<8x1x32xf32> to vector<8x32x32xf32>
    %450 = arith.mulf %448, %449 : vector<8x32x32xf32>
    %cst_234 = arith.constant 0.899999976 : f32
    %451 = vector.broadcast %cst_234 : f32 to vector<8x32x32xf32>
    %452 = arith.mulf %451, %441 : vector<8x32x32xf32>
    %cst_235 = arith.constant 5.000000e-01 : f32
    %453 = vector.broadcast %cst_235 : f32 to vector<8x32x32xf32>
    %454 = arith.mulf %453, %450 : vector<8x32x32xf32>
    %455 = arith.addf %452, %454 : vector<8x32x32xf32>
    %c0_236 = arith.constant 0 : index
    %c0_237 = arith.constant 0 : index
    %c0_238 = arith.constant 0 : index
    %456 = vector.load %arg10[%c0_236, %c0_237, %c0_238] : memref<8x32x32xf32, #tpu.memory_space<vmem>>, vector<8x32x32xf32>
    tpu.vector_store %arg10[%c0_236, %c0_237, %c0_238], %455 {strides = array<i32>} : memref<8x32x32xf32, #tpu.memory_space<vmem>>, vector<8x32x32xf32>,
    %cst_239 = arith.constant 0.000000e+00 : f32
    %457 = vector.broadcast %cst_239 : f32 to vector<8x32xf32>
    %458 = arith.maximumf %445, %457 : vector<8x32xf32>
    %459 = vector.shape_cast %458 : vector<8x32xf32> to vector<8x1x32xf32>
    %460 = vector.broadcast %459 : vector<8x1x32xf32> to vector<8x32x32xf32>
    %461 = arith.mulf %441, %460 : vector<8x32x32xf32>
    %cst_240 = arith.constant dense<0.000000e+00> : vector<8x32xf32>
    %462 = vector.multi_reduction <add>, %461, %cst_240 [2] : vector<8x32x32xf32> to vector<8x32xf32>
    %463 = arith.mulf %440, %458 : vector<8x32xf32>
    %cst_241 = arith.constant dense<0.000000e+00> : vector<8xf32>
    %464 = vector.multi_reduction <add>, %463, %cst_241 [1] : vector<8x32xf32> to vector<8xf32>
    %465 = vector.shape_cast %464 : vector<8xf32> to vector<8x1xf32>
    %cst_242 = arith.constant 0.899999976 : f32
    %466 = vector.broadcast %cst_242 : f32 to vector<8x32xf32>
    %467 = arith.mulf %466, %462 : vector<8x32xf32>
    %468 = vector.broadcast %465 : vector<8x1xf32> to vector<8x32xf32>
    %469 = arith.mulf %440, %468 : vector<8x32xf32>
    %cst_243 = arith.constant 5.000000e-01 : f32
    %470 = vector.broadcast %cst_243 : f32 to vector<8x32xf32>
    %471 = arith.mulf %470, %469 : vector<8x32xf32>
    %472 = arith.addf %467, %471 : vector<8x32xf32>
    %473 = arith.addf %445, %472 : vector<8x32xf32>
    %cst_244 = arith.constant dense<0.000000e+00> : vector<8xf32>
    %474 = vector.multi_reduction <add>, %473, %cst_244 [1] : vector<8x32xf32> to vector<8xf32>
    %475 = vector.shape_cast %474 : vector<8xf32> to vector<8x1xf32>
    %cst_245 = arith.constant 3.200000e+01 : f32
    %476 = vector.broadcast %cst_245 : f32 to vector<8x1xf32>
    %477 = arith.divf %475, %476 : vector<8x1xf32>
    %478 = vector.broadcast %477 : vector<8x1xf32> to vector<8x32xf32>
    %479 = arith.subf %473, %478 : vector<8x32xf32>
    %480 = arith.mulf %479, %479 : vector<8x32xf32>
    %cst_246 = arith.constant dense<0.000000e+00> : vector<8xf32>
    %481 = vector.multi_reduction <add>, %480, %cst_246 [1] : vector<8x32xf32> to vector<8xf32>
    %482 = vector.shape_cast %481 : vector<8xf32> to vector<8x1xf32>
    %cst_247 = arith.constant 3.200000e+01 : f32
    %483 = vector.broadcast %cst_247 : f32 to vector<8x1xf32>
    %484 = arith.divf %482, %483 : vector<8x1xf32>
    %485 = vector.broadcast %477 : vector<8x1xf32> to vector<8x32xf32>
    %486 = arith.subf %473, %485 : vector<8x32xf32>
    %cst_248 = arith.constant 9.99999974E-6 : f32
    %487 = vector.broadcast %cst_248 : f32 to vector<8x1xf32>
    %488 = arith.addf %484, %487 : vector<8x1xf32>
    %489 = math.rsqrt %488 : vector<8x1xf32>
    %490 = vector.broadcast %489 : vector<8x1xf32> to vector<8x32xf32>
    %491 = arith.mulf %486, %490 : vector<8x32xf32>
    %492 = arith.mulf %491, %16 : vector<8x32xf32>
    %493 = arith.addf %492, %19 : vector<8x32xf32>
    %cst_249 = arith.constant 0.000000e+00 : f32
    %494 = vector.broadcast %cst_249 : f32 to vector<8x32xf32>
    %495 = arith.maximumf %493, %494 : vector<8x32xf32>
    %c0_250 = arith.constant 0 : index
    %c0_251 = arith.constant 0 : index
    %496 = vector.load %arg9[%c0_250, %c0_251] : memref<8x32xf32, #tpu.memory_space<vmem>>, vector<8x32xf32>
    tpu.vector_store %arg9[%c0_250, %c0_251], %495 {strides = array<i32>} : memref<8x32xf32, #tpu.memory_space<vmem>>, vector<8x32xf32>,
    %c7_252 = arith.constant 7 : index
    %c0_253 = arith.constant 0 : index
    %c0_254 = arith.constant 0 : index
    %497 = vector.load %arg7[%c7_252, %c0_253, %c0_254] : memref<8x8x32xf32, #tpu.memory_space<vmem>>, vector<1x8x32xf32>
    %498 = vector.shape_cast %497 : vector<1x8x32xf32> to vector<8x32xf32>
    %499 = vector.shape_cast %495 : vector<8x32xf32> to vector<1x8x32xf32>
    tpu.vector_store %arg7[%c7_252, %c0_253, %c0_254], %499 {strides = array<i32>} : memref<8x8x32xf32, #tpu.memory_space<vmem>>, vector<1x8x32xf32>,
    return
  }
  func.func @transform_0(%arg0: i32) -> (i32, i32, i32) {
    %c0_i32 = arith.constant 0 : i32
    %c0_i32_0 = arith.constant 0 : i32
    %c0_i32_1 = arith.constant 0 : i32
    return %c0_i32, %arg0, %c0_i32_0 : i32, i32, i32
  }
  func.func @transform_1(%arg0: i32) -> (i32, i32) {
    %c0_i32 = arith.constant 0 : i32
    %c0_i32_0 = arith.constant 0 : i32
    %c0_i32_1 = arith.constant 0 : i32
    return %c0_i32, %c0_i32_0 : i32, i32
  }
  func.func @transform_2(%arg0: i32) -> (i32, i32) {
    %c0_i32 = arith.constant 0 : i32
    %c0_i32_0 = arith.constant 0 : i32
    %c0_i32_1 = arith.constant 0 : i32
    return %c0_i32, %c0_i32_0 : i32, i32
  }
  func.func @transform_3(%arg0: i32) -> (i32, i32) {
    %c0_i32 = arith.constant 0 : i32
    %c0_i32_0 = arith.constant 0 : i32
    %c0_i32_1 = arith.constant 0 : i32
    return %c0_i32, %c0_i32_0 : i32, i32
  }
  func.func @transform_4(%arg0: i32) -> (i32, i32) {
    %c0_i32 = arith.constant 0 : i32
    %c0_i32_0 = arith.constant 0 : i32
    %c0_i32_1 = arith.constant 0 : i32
    return %c0_i32, %c0_i32_0 : i32, i32
  }
  func.func @transform_5(%arg0: i32) -> (i32, i32) {
    %c0_i32 = arith.constant 0 : i32
    %c0_i32_0 = arith.constant 0 : i32
    %c0_i32_1 = arith.constant 0 : i32
    return %c0_i32, %c0_i32_0 : i32, i32
  }
  func.func @transform_6(%arg0: i32) -> (i32, i32, i32) {
    %c0_i32 = arith.constant 0 : i32
    %c0_i32_0 = arith.constant 0 : i32
    %c0_i32_1 = arith.constant 0 : i32
    return %c0_i32, %arg0, %c0_i32_0 : i32, i32, i32
  }
}

</mosaic_0001>

<llo_original>
// kernel: tpu_custom_call.1
$region0: #{tpu_custom_call.1}
  #allocation0 [shape = 'u32[]', space=smem, size = 0x4, offset = 0x4, fixed_abs, tag = 'smem constant byte address 0x4 - core index']
  #allocation1 [shape = 'u32[144,128]{1,0:T(1,128)}', space=vmem, size = 0x12000, scoped, tag = 'internal scratch']
  #allocation2 [shape = 'f32[8,8,32]{2,1,0:T(8,128)}', space=vmem, size = 0x8000, scoped, tag = 'scratch operand']
  #allocation3 [shape = 'f32[8,32]{1,0:T(8,128)}', space=vmem, size = 0x1000, scoped, tag = 'scratch operand']
  #allocation4 [shape = 'f32[8,32,32]{2,1,0:T(8,128)}', space=vmem, size = 0x20000, scoped, tag = 'scratch operand']
  %s0 = inlined_call_operand.hbm [shape: f32[8,16,32], index: 0, kind: input, shape index: {}]
  %s1 = inlined_call_operand.hbm [shape: f32[32,32], index: 1, kind: input, shape index: {}]
  %s2 = inlined_call_operand.hbm [shape: f32[32,32], index: 2, kind: input, shape index: {}]
  %s3 = inlined_call_operand.vmem [shape: f32[1,32], index: 3, kind: input, shape index: {}]
  %s4 = inlined_call_operand.vmem [shape: f32[1,32], index: 4, kind: input, shape index: {}]
  %s5 = inlined_call_operand.vmem [shape: f32[1,32], index: 5, kind: input, shape index: {}]
  %s6 = inlined_call_operand.hbm [shape: f32[8,16,32], index: 6, kind: output, shape index: {}]
  %s7 = sld [smem:[#allocation0]]
  $region69: #{tpu_custom_call.1} parent=0
    _
  %s9 = ssub.s32 1, %s7
  %s10 = scalar_select 0, %s9, %s7
  $region1: #{tpu_custom_call.1} parent=0
    #allocation5 [shape = 'u8[65536]{0}', space=vmem, size = 0x10000, scoped, tag = 'input window, operand 0']
    #allocation6 [shape = 's32[2]{0}', space=sflag, size = 0x8, scoped, tag = 'scoped memory for tpu_custom_call.1']
    #allocation7 [shape = 's32[2]{0}', space=sflag, size = 0x8, scoped, tag = 'scoped memory for tpu_custom_call.1']
    #allocation8 [shape = 'u8[16384]{0}', space=vmem, size = 0x4000, scoped, tag = 'input window, operand 1, single buffered']
    #allocation9 [shape = 's32[1]{0}', space=sflag, size = 0x4, scoped, tag = 'scoped memory for tpu_custom_call.1']
    #allocation10 [shape = 'u8[16384]{0}', space=vmem, size = 0x4000, scoped, tag = 'input window, operand 2, single buffered']
    #allocation11 [shape = 'u8[65536]{0}', space=vmem, size = 0x10000, scoped, tag = 'output window, operand 0']
    %11 = vsyncpa [#allocation6], 0
    %s12 = scalar_lea.sflag [#allocation6], 1
    %13 = vsyncpa %s12, 0
    %14 = vsyncpa [#allocation9], 0
    %15 = vsyncpa [#allocation7], 0
    %s16 = scalar_lea.sflag [#allocation7], 1
    %17 = vsyncpa %s16, 0
    loop: start=0, step=1, limit=4
    $region2: #{tpu_custom_call.1} parent=1 // loop_pre_header
      _
    $region3: #{tpu_custom_call.1} parent=1 // loop_header
      %s19 = sphi 0, %s23
      %p20 = scmp.ge.s32.totalorder %s19, 4
      %s29 = sphi 0, %s31
      %s32 = sphi 0, %s29
      %s33 = sphi 0, %s32
      %s49 = sphi 0, %s33
      %s53 = sphi 0, %s53
      %s55 = sphi 0, %s53
      %s56 = sphi 0, %s55
      %s70 = sphi 0, %s56
      %s74 = sphi 0, %s74
      %s76 = sphi 0, %s74
      %s77 = sphi 0, %s76
      %s91 = sphi 0, %s77
      %s95 = sphi 0, %s95
      %s97 = sphi 0, %s95
      %s98 = sphi 0, %s97
      %s112 = sphi 0, %s98
      %s116 = sphi 0, %s116
      %s118 = sphi 0, %s116
      %s119 = sphi 0, %s118
      %s133 = sphi 0, %s119
      %s137 = sphi 0, %s137
      %s139 = sphi 0, %s137
      %s140 = sphi 0, %s139
      %s154 = sphi 0, %s140
      %s160 = sphi 0, %s162
      %s163 = sphi 0, %s160
      %s164 = sphi 0, %s163
      %s180 = sphi 0, %s164
    $region4: #{tpu_custom_call.1} parent=1 // loop_header_branch
      %22 = sbr.rel (%p20) target = $region8
    $region5: #{tpu_custom_call.1} parent=1 // loop_body
      %s24 = ssub.s32 %s19, 1
      %s25 = ssub.s32 %s19, 2
      %s26 = sadd.s32 %s19, 1
      %s27 = ssub.s32 %s19, %s26
      %p28 = scmp.eq.s32.totalorder %s27, 0
      %s30 = sadd.s32 %s29, 1
      %s31 = scalar_select %p28, %s29, %s30
      %p34 = pneg %p28
      %p35 = scmp.eq.s32.totalorder %s19, 1
      %p36 = por %p34, %p35
      %p37 = scmp.ne.s32.totalorder %s29, %s32
      %p38 = scmp.eq.s32.totalorder %s19, 0
      %p39 = por %p37, %p38
      %p40 = scmp.ne.s32.totalorder %s29, %s32
      %p41 = scmp.eq.s32.totalorder %s24, 1
      %p42 = por %p40, %p41
      %p43 = scmp.ne.s32.totalorder %s32, %s33
      %p44 = scmp.eq.s32.totalorder %s24, 0
      %p45 = por %p43, %p44
      %p46 = scmp.ne.s32.totalorder %s32, %s33
      %p47 = scmp.eq.s32.totalorder %s25, 1
      %p48 = por %p46, %p47
      %p50 = scmp.ne.s32.totalorder %s33, %s49
      %p51 = scmp.eq.s32.totalorder %s25, 0
      %p52 = por %p50, %p51
      %s54 = sadd.s32 %s53, 1
      %p57 = scmp.eq.s32.totalorder %s19, 1
      %p58 = scmp.ne.s32.totalorder %s53, %s55
      %p59 = scmp.eq.s32.totalorder %s19, 0
      %p60 = por %p58, %p59
      %p61 = scmp.ne.s32.totalorder %s53, %s55
      %p62 = scmp.eq.s32.totalorder %s24, 1
      %p63 = por %p61, %p62
      %p64 = scmp.ne.s32.totalorder %s55, %s56
      %p65 = scmp.eq.s32.totalorder %s24, 0
      %p66 = por %p64, %p65
      %p67 = scmp.ne.s32.totalorder %s55, %s56
      %p68 = scmp.eq.s32.totalorder %s25, 1
      %p69 = por %p67, %p68
      %p71 = scmp.ne.s32.totalorder %s56, %s70
      %p72 = scmp.eq.s32.totalorder %s25, 0
      %p73 = por %p71, %p72
      %s75 = sadd.s32 %s74, 1
      %p78 = scmp.eq.s32.totalorder %s19, 1
      %p79 = scmp.ne.s32.totalorder %s74, %s76
      %p80 = scmp.eq.s32.totalorder %s19, 0
      %p81 = por %p79, %p80
      %p82 = scmp.ne.s32.totalorder %s74, %s76
      %p83 = scmp.eq.s32.totalorder %s24, 1
      %p84 = por %p82, %p83
      %p85 = scmp.ne.s32.totalorder %s76, %s77
      %p86 = scmp.eq.s32.totalorder %s24, 0
      %p87 = por %p85, %p86
      %p88 = scmp.ne.s32.totalorder %s76, %s77
      %p89 = scmp.eq.s32.totalorder %s25, 1
      %p90 = por %p88, %p89
      %p92 = scmp.ne.s32.totalorder %s77, %s91
      %p93 = scmp.eq.s32.totalorder %s25, 0
      %p94 = por %p92, %p93
      %s96 = sadd.s32 %s95, 1
      %p99 = scmp.eq.s32.totalorder %s19, 1
      %p100 = scmp.ne.s32.totalorder %s95, %s97
      %p101 = scmp.eq.s32.totalorder %s19, 0
      %p102 = por %p100, %p101
      %p103 = scmp.ne.s32.totalorder %s95, %s97
      %p104 = scmp.eq.s32.totalorder %s24, 1
      %p105 = por %p103, %p104
      %p106 = scmp.ne.s32.totalorder %s97, %s98
      %p107 = scmp.eq.s32.totalorder %s24, 0
      %p108 = por %p106, %p107
      %p109 = scmp.ne.s32.totalorder %s97, %s98
      %p110 = scmp.eq.s32.totalorder %s25, 1
      %p111 = por %p109, %p110
      %p113 = scmp.ne.s32.totalorder %s98, %s112
      %p114 = scmp.eq.s32.totalorder %s25, 0
      %p115 = por %p113, %p114
      %s117 = sadd.s32 %s116, 1
      %p120 = scmp.eq.s32.totalorder %s19, 1
      %p121 = scmp.ne.s32.totalorder %s116, %s118
      %p122 = scmp.eq.s32.totalorder %s19, 0
      %p123 = por %p121, %p122
      %p124 = scmp.ne.s32.totalorder %s116, %s118
      %p125 = scmp.eq.s32.totalorder %s24, 1
      %p126 = por %p124, %p125
      %p127 = scmp.ne.s32.totalorder %s118, %s119
      %p128 = scmp.eq.s32.totalorder %s24, 0
      %p129 = por %p127, %p128
      %p130 = scmp.ne.s32.totalorder %s118, %s119
      %p131 = scmp.eq.s32.totalorder %s25, 1
      %p132 = por %p130, %p131
      %p134 = scmp.ne.s32.totalorder %s119, %s133
      %p135 = scmp.eq.s32.totalorder %s25, 0
      %p136 = por %p134, %p135
      %s138 = sadd.s32 %s137, 1
      %p141 = scmp.eq.s32.totalorder %s19, 1
      %p142 = scmp.ne.s32.totalorder %s137, %s139
      %p143 = scmp.eq.s32.totalorder %s19, 0
      %p144 = por %p142, %p143
      %p145 = scmp.ne.s32.totalorder %s137, %s139
      %p146 = scmp.eq.s32.totalorder %s24, 1
      %p147 = por %p145, %p146
      %p148 = scmp.ne.s32.totalorder %s139, %s140
      %p149 = scmp.eq.s32.totalorder %s24, 0
      %p150 = por %p148, %p149
      %p151 = scmp.ne.s32.totalorder %s139, %s140
      %p152 = scmp.eq.s32.totalorder %s25, 1
      %p153 = por %p151, %p152
      %p155 = scmp.ne.s32.totalorder %s140, %s154
      %p156 = scmp.eq.s32.totalorder %s25, 0
      %p157 = por %p155, %p156
      %s158 = ssub.s32 %s19, %s26
      %p159 = scmp.eq.s32.totalorder %s158, 0
      %s161 = sadd.s32 %s160, 1
      %s162 = scalar_select %p159, %s160, %s161
      %p165 = pneg %p159
      %p166 = scmp.eq.s32.totalorder %s19, 1
      %p167 = por %p165, %p166
      %p168 = scmp.ne.s32.totalorder %s160, %s163
      %p169 = scmp.eq.s32.totalorder %s19, 0
      %p170 = por %p168, %p169
      %p171 = scmp.ne.s32.totalorder %s160, %s163
      %p172 = scmp.eq.s32.totalorder %s24, 1
      %p173 = por %p171, %p172
      %p174 = scmp.ne.s32.totalorder %s163, %s164
      %p175 = scmp.eq.s32.totalorder %s24, 0
      %p176 = por %p174, %p175
      %p177 = scmp.ne.s32.totalorder %s163, %s164
      %p178 = scmp.eq.s32.totalorder %s25, 1
      %p179 = por %p177, %p178
      %p181 = scmp.ne.s32.totalorder %s164, %s180
      %p182 = scmp.eq.s32.totalorder %s25, 0
      %p183 = por %p181, %p182
      %p184 = scmp.le.s32.totalorder 1, %s19
      %p185 = scmp.lt.s32.totalorder %s19, 3
      %p186 = pnand %p184, %p185
      %p187 = pneg %p186
      // Predicated region
      $region9: #{tpu_custom_call.1} parent=5 // pred_check
        _
      $region10: #{tpu_custom_call.1} parent=5 // pred_check_branch
        %189 = sbr.rel (%p186) target = $region12
      $region11: #{tpu_custom_call.1} parent=5 // pred_region
        %s190 = ssub.s32 %s19, 1
        // Predicated region
        $region13: #{tpu_custom_call.1} parent=11 // pred_check
          %p191 = pneg %p66
        $region14: #{tpu_custom_call.1} parent=11 // pred_check_branch
          %193 = sbr.rel (%p191) target = $region16
        $region15: #{tpu_custom_call.1} parent=11 // pred_region
          %s195 = ssub.s32 512, 512
          %196 = vsyncadd [#allocation9], %s195
          %s197 = sshll.u32 [#allocation8], 4
          %s198 = int_to_ptr.vmem [resolvable:$true] %s197
          %203 = dma.hbm_to_vmem [thread:$0]  %s1, 512, %s198, [#allocation9], 128, 128, 8
        $region16: #{tpu_custom_call.1} parent=11 // pred_fallthru
          _
        // Predicated region
        $region17: #{tpu_custom_call.1} parent=11 // pred_check
          %p204 = pneg %p87
        $region18: #{tpu_custom_call.1} parent=11 // pred_check_branch
          %206 = sbr.rel (%p204) target = $region20
        $region19: #{tpu_custom_call.1} parent=11 // pred_region
          %s208 = ssub.s32 512, 512
          %209 = vsyncadd [#allocation9], %s208
          %s210 = sshll.u32 [#allocation10], 4
          %s211 = int_to_ptr.vmem [resolvable:$true] %s210
          %216 = dma.hbm_to_vmem [thread:$0]  %s2, 512, %s211, [#allocation9], 128, 128, 8
        $region20: #{tpu_custom_call.1} parent=11 // pred_fallthru
          _
        // Predicated region
        $region21: #{tpu_custom_call.1} parent=11 // pred_check
          %p217 = pneg %p108
        $region22: #{tpu_custom_call.1} parent=11 // pred_check_branch
          %219 = sbr.rel (%p217) target = $region24
        $region23: #{tpu_custom_call.1} parent=11 // pred_region
          _
        $region24: #{tpu_custom_call.1} parent=11 // pred_fallthru
          _
        // Predicated region
        $region25: #{tpu_custom_call.1} parent=11 // pred_check
          %p220 = pneg %p129
        $region26: #{tpu_custom_call.1} parent=11 // pred_check_branch
          %222 = sbr.rel (%p220) target = $region28
        $region27: #{tpu_custom_call.1} parent=11 // pred_region
          _
        $region28: #{tpu_custom_call.1} parent=11 // pred_fallthru
          _
        // Predicated region
        $region29: #{tpu_custom_call.1} parent=11 // pred_check
          %p223 = pneg %p150
        $region30: #{tpu_custom_call.1} parent=11 // pred_check_branch
          %225 = sbr.rel (%p223) target = $region32
        $region31: #{tpu_custom_call.1} parent=11 // pred_region
          _
        $region32: #{tpu_custom_call.1} parent=11 // pred_fallthru
          _
      $region12: #{tpu_custom_call.1} parent=5 // pred_fallthru
        _
      %p226 = scmp.lt.s32.totalorder %s19, 2
      // Predicated region
      $region33: #{tpu_custom_call.1} parent=5 // pred_check
        %p227 = pneg %p226
      $region34: #{tpu_custom_call.1} parent=5 // pred_check_branch
        %229 = sbr.rel (%p227) target = $region36
      $region35: #{tpu_custom_call.1} parent=5 // pred_region
        // Predicated region
        $region37: #{tpu_custom_call.1} parent=35 // pred_check
          %p230 = pneg %p39
        $region38: #{tpu_custom_call.1} parent=35 // pred_check_branch
          %232 = sbr.rel (%p230) target = $region40
        $region39: #{tpu_custom_call.1} parent=35 // pred_region
          %s233 = sand.u32 %s29, 1
          %s234 = scalar_lea.sflag [#allocation6], %s233
          %s235 = sand.u32 %s29, 1
          %s236 = smul.addr %s235, 64
          %s237 = scalar_lea.vmem [#allocation5], %s236
          %s239 = ssub.s32 1024, 1024
          %240 = vsyncadd %s234, %s239
          %s241 = smul.addr %s19, 128
          %s242 = scalar_lea.hbm %s0, %s241
          %s243 = sshll.u32 %s237, 4
          %s244 = int_to_ptr.vmem [resolvable:$true] %s243
          %249 = dma.hbm_to_vmem [thread:$0]  %s242, 1024, %s244, %s234, 256, 128, 8
        $region40: #{tpu_custom_call.1} parent=35 // pred_fallthru
          _
      $region36: #{tpu_custom_call.1} parent=5 // pred_fallthru
        _
      %p250 = scmp.le.s32.totalorder 1, %s19
      %p251 = scmp.lt.s32.totalorder %s19, 3
      %p252 = pnand %p250, %p251
      %p253 = pneg %p252
      // Predicated region
      $region41: #{tpu_custom_call.1} parent=5 // pred_check
        _
      $region42: #{tpu_custom_call.1} parent=5 // pred_check_branch
        %255 = sbr.rel (%p252) target = $region44
      $region43: #{tpu_custom_call.1} parent=5 // pred_region
        %s256 = ssub.s32 %s19, 1
        %s257 = sand.u32 %s32, 1
        %s258 = scalar_lea.sflag [#allocation6], %s257
        %s259 = sand.u32 %s32, 1
        %s260 = smul.addr %s259, 64
        %s261 = scalar_lea.vmem [#allocation5], %s260
        // Predicated region
        $region45: #{tpu_custom_call.1} parent=43 // pred_check
          %p262 = pneg %p45
        $region46: #{tpu_custom_call.1} parent=43 // pred_check_branch
          %264 = sbr.rel (%p262) target = $region48
        $region47: #{tpu_custom_call.1} parent=43 // pred_region
          %265 = dma.done %s258, 1024
        $region48: #{tpu_custom_call.1} parent=43 // pred_fallthru
          _
        // Predicated region
        $region49: #{tpu_custom_call.1} parent=43 // pred_check
          %p266 = pneg %p66
        $region50: #{tpu_custom_call.1} parent=43 // pred_check_branch
          %268 = sbr.rel (%p266) target = $region52
        $region51: #{tpu_custom_call.1} parent=43 // pred_region
          %269 = dma.done [#allocation9], 512
        $region52: #{tpu_custom_call.1} parent=43 // pred_fallthru
          _
        // Predicated region
        $region53: #{tpu_custom_call.1} parent=43 // pred_check
          %p270 = pneg %p87
        $region54: #{tpu_custom_call.1} parent=43 // pred_check_branch
          %272 = sbr.rel (%p270) target = $region56
        $region55: #{tpu_custom_call.1} parent=43 // pred_region
          %273 = dma.done [#allocation9], 512
        $region56: #{tpu_custom_call.1} parent=43 // pred_fallthru
          _
        %s274 = sand.u32 %s32, 1
        %s275 = scalar_lea.sflag [#allocation6], %s274
        %s276 = sand.u32 %s32, 1
        %s277 = smul.addr %s276, 64
        %s278 = scalar_lea.vmem [#allocation5], %s277
        %p279 = pneg %p45
        %p280 = pneg %p42
        %p281 = pneg %p66
        %p282 = pneg %p63
        %p283 = pneg %p87
        %p284 = pneg %p84
        %p285 = pneg %p108
        %p286 = pneg %p105
        %p287 = pneg %p129
        %p288 = pneg %p126
        %p289 = pneg %p150
        %p290 = pneg %p147
        %p291 = pneg %p176
        %p292 = pneg %p173
        %s293 = sand.u32 %s163, 1
        %s294 = scalar_lea.sflag [#allocation7], %s293
        %s295 = sand.u32 %s163, 1
        %s296 = smul.addr %s295, 64
        %s297 = scalar_lea.vmem [#allocation11], %s296
        %v298 = vld [vmem:[%s261] sm:$0xff]
        %v299 = vld [vmem:[%s261 + $0x8] sm:$0xff]
        %v300 = vld [vmem:[%s261 + $0x10] sm:$0xff]
        %v301 = vld [vmem:[%s261 + $0x18] sm:$0xff]
        %v302 = vld [vmem:[%s261 + $0x20] sm:$0xff]
        %v303 = vld [vmem:[%s261 + $0x28] sm:$0xff]
        %v304 = vld [vmem:[%s261 + $0x30] sm:$0xff]
        %v305 = vld [vmem:[%s261 + $0x38] sm:$0xff]
        %v306 = vld [vmem:[#allocation8] sm:$0xff]
        %v307 = vld [vmem:[#allocation8 + $0x8] sm:$0xff]
        %v308 = vld [vmem:[#allocation8 + $0x10] sm:$0xff]
        %v309 = vld [vmem:[#allocation8 + $0x18] sm:$0xff]
        %v310 = vld [vmem:[%s3] sm:$0x1]
        %v312 = vlaneseq
        %v313 = vshrl.u32 %v312, 7
        %v314 = vsub.s32 0, %v313
        %v315 = vrot.slane %v310, %v314
        %vm317 = vcmask 261120
        %v319 = vsel %vm317, %v298, 0
        %v322 = vsel %vm317, %v299, 0
        %v325 = vsel %vm317, %v300, 0
        %v328 = vsel %vm317, %v301, 0
        %v331 = vsel %vm317, %v302, 0
        %v334 = vsel %vm317, %v303, 0
        %v337 = vsel %vm317, %v304, 0
        %v340 = vsel %vm317, %v305, 0
        %342 = vmatprep.subr.mxu0 0.0
        %343 = vmatpush1.msra.mxu0 0.0
        %344 = vmatprep.subr.mxu0 0.0
        %345 = vmatpush1.msra.mxu0 0.0
        %346 = vmatprep.subr.mxu0 0.0
        %347 = vmatpush1.msra.mxu0 0.0
        %348 = vmatprep.subr.mxu0 0.0
        %349 = vmatpush1.msra.mxu0 0.0
        %350 = vmatprep.subr.mxu0 0.0
        %351 = vmatpush1.msra.mxu0 0.0
        %352 = vmatprep.subr.mxu0 0.0
        %353 = vmatpush1.msra.mxu0 0.0
        %354 = vmatprep.subr.mxu0 0.0
        %355 = vmatpush1.msra.mxu0 0.0
        %356 = vmatprep.subr.mxu0 0.0
        %357 = vmatpush1.msra.mxu0 0.0
        %358 = vmatprep.subr.mxu0 0.0
        %359 = vmatpush1.msra.mxu0 0.0
        %360 = vmatprep.subr.mxu0 0.0
        %361 = vmatpush1.msra.mxu0 0.0
        %362 = vmatprep.subr.mxu0 0.0
        %363 = vmatpush1.msra.mxu0 0.0
        %364 = vmatprep.subr.mxu0 0.0
        %365 = vmatpush1.msra.mxu0 0.0
        %366 = vmatprep.subr.mxu0 0.0
        %367 = vmatpush1.msra.mxu0 %v309
        %368 = vmatprep.subr.mxu0 0.0
        %369 = vmatpush1.msra.mxu0 %v308
        %370 = vmatprep.subr.mxu0 0.0
        %371 = vmatpush1.msra.mxu0 %v307
        %372 = vmatprep.subr.mxu0 0.0
        %373 = vmatpush1.msra.mxu0 %v306
        %374 = vmatprep.subr.mxu0 0.0
        %375 = vmatpush2.msra.mxu0 0.0
        %376 = vmatprep.subr.mxu0 0.0
        %377 = vmatpush2.msra.mxu0 0.0
        %378 = vmatprep.subr.mxu0 0.0
        %379 = vmatpush2.msra.mxu0 0.0
        %380 = vmatprep.subr.mxu0 0.0
        %381 = vmatpush2.msra.mxu0 0.0
        %382 = vmatprep.subr.mxu0 0.0
        %383 = vmatpush2.msra.mxu0 0.0
        %384 = vmatprep.subr.mxu0 0.0
        %385 = vmatpush2.msra.mxu0 0.0
        %386 = vmatprep.subr.mxu0 0.0
        %387 = vmatpush2.msra.mxu0 0.0
        %388 = vmatprep.subr.mxu0 0.0
        %389 = vmatpush2.msra.mxu0 0.0
        %390 = vmatprep.subr.mxu0 0.0
        %391 = vmatpush2.msra.mxu0 0.0
        %392 = vmatprep.subr.mxu0 0.0
        %393 = vmatpush2.msra.mxu0 0.0
        %394 = vmatprep.subr.mxu0 0.0
        %395 = vmatpush2.msra.mxu0 0.0
        %396 = vmatprep.subr.mxu0 0.0
        %397 = vmatpush2.msra.mxu0 0.0
        %398 = vmatprep.subr.mxu0 0.0
        %399 = vmatpush2.msra.mxu0 0.0
        %400 = vmatprep.subr.mxu0 0.0
        %401 = vmatpush2.msra.mxu0 0.0
        %402 = vmatprep.subr.mxu0 0.0
        %403 = vmatpush2.msra.mxu0 0.0
        %404 = vmatprep.subr.mxu0 0.0
        %405 = vmatpush2.msra.mxu0 0.0
        %406 = vmatprep.mubr.f32.mxu0 0.0
        %407 = vmatmul.mubr.f32.gmra.mxu0 %v319
        %v408 = vpop.f32.mrf.mxu0
        %v409 = vadd.f32 %v315, %v408
        %v410 = vpop.f32.mrf.mxu0
        %411 = vmatprep.mubr.f32.mxu0 0.0
        %412 = vmatmul.mubr.f32.gmra.mxu0 %v322
        %v413 = vpop.f32.mrf.mxu0
        %v414 = vadd.f32 %v315, %v413
        %v415 = vpop.f32.mrf.mxu0
        %416 = vmatprep.mubr.f32.mxu0 0.0
        %417 = vmatmul.mubr.f32.gmra.mxu0 %v325
        %v418 = vpop.f32.mrf.mxu0
        %v419 = vadd.f32 %v315, %v418
        %v420 = vpop.f32.mrf.mxu0
        %421 = vmatprep.mubr.f32.mxu0 0.0
        %422 = vmatmul.mubr.f32.gmra.mxu0 %v328
        %v423 = vpop.f32.mrf.mxu0
        %v424 = vadd.f32 %v315, %v423
        %v425 = vpop.f32.mrf.mxu0
        %426 = vmatprep.mubr.f32.mxu0 0.0
        %427 = vmatmul.mubr.f32.gmra.mxu0 %v331
        %v428 = vpop.f32.mrf.mxu0
        %v429 = vadd.f32 %v315, %v428
        %v430 = vpop.f32.mrf.mxu0
        %431 = vmatprep.mubr.f32.mxu0 0.0
        %432 = vmatmul.mubr.f32.gmra.mxu0 %v334
        %v433 = vpop.f32.mrf.mxu0
        %v434 = vadd.f32 %v315, %v433
        %v435 = vpop.f32.mrf.mxu0
        %436 = vmatprep.mubr.f32.mxu0 0.0
        %437 = vmatmul.mubr.f32.gmra.mxu0 %v337
        %v438 = vpop.f32.mrf.mxu0
        %v439 = vadd.f32 %v315, %v438
        %v440 = vpop.f32.mrf.mxu0
        %441 = vmatprep.mubr.f32.mxu0 0.0
        %442 = vmatmul.mubr.f32.gmra.mxu0 %v340
        %v443 = vpop.f32.mrf.mxu0
        %v444 = vadd.f32 %v315, %v443
        %v445 = vpop.f32.mrf.mxu0
        %446 = vdwg.mxu0
        %447 = vst.msk [vmem:[#allocation2] sm:$0xff] %vm317, %v409
        %448 = vst.msk [vmem:[#allocation2 + $0x8] sm:$0xff] %vm317, %v414
        %449 = vst.msk [vmem:[#allocation2 + $0x10] sm:$0xff] %vm317, %v419
        %450 = vst.msk [vmem:[#allocation2 + $0x18] sm:$0xff] %vm317, %v424
        %451 = vst.msk [vmem:[#allocation2 + $0x20] sm:$0xff] %vm317, %v429
        %452 = vst.msk [vmem:[#allocation2 + $0x28] sm:$0xff] %vm317, %v434
        %453 = vst.msk [vmem:[#allocation2 + $0x30] sm:$0xff] %vm317, %v439
        %454 = vst.msk [vmem:[#allocation2 + $0x38] sm:$0xff] %vm317, %v444
        %455 = vst.msk [vmem:[#allocation3] sm:$0xff] %vm317, 0.0
        %456 = vst.msk [vmem:[#allocation4] sm:$0xff] %vm317, 0.0
        %457 = vst.msk [vmem:[#allocation4 + $0x8] sm:$0xff] %vm317, 0.0
        %458 = vst.msk [vmem:[#allocation4 + $0x10] sm:$0xff] %vm317, 0.0
        %459 = vst.msk [vmem:[#allocation4 + $0x18] sm:$0xff] %vm317, 0.0
        %460 = vst.msk [vmem:[#allocation4 + $0x20] sm:$0xff] %vm317, 0.0
        %461 = vst.msk [vmem:[#allocation4 + $0x28] sm:$0xff] %vm317, 0.0
        %462 = vst.msk [vmem:[#allocation4 + $0x30] sm:$0xff] %vm317, 0.0
        %463 = vst.msk [vmem:[#allocation4 + $0x38] sm:$0xff] %vm317, 0.0
        %464 = vst.msk [vmem:[#allocation4 + $0x40] sm:$0xff] %vm317, 0.0
        %465 = vst.msk [vmem:[#allocation4 + $0x48] sm:$0xff] %vm317, 0.0
        %466 = vst.msk [vmem:[#allocation4 + $0x50] sm:$0xff] %vm317, 0.0
        %467 = vst.msk [vmem:[#allocation4 + $0x58] sm:$0xff] %vm317, 0.0
        %468 = vst.msk [vmem:[#allocation4 + $0x60] sm:$0xff] %vm317, 0.0
        %469 = vst.msk [vmem:[#allocation4 + $0x68] sm:$0xff] %vm317, 0.0
        %470 = vst.msk [vmem:[#allocation4 + $0x70] sm:$0xff] %vm317, 0.0
        %471 = vst.msk [vmem:[#allocation4 + $0x78] sm:$0xff] %vm317, 0.0
        %472 = vst.msk [vmem:[#allocation4 + $0x80] sm:$0xff] %vm317, 0.0
        %473 = vst.msk [vmem:[#allocation4 + $0x88] sm:$0xff] %vm317, 0.0
        %474 = vst.msk [vmem:[#allocation4 + $0x90] sm:$0xff] %vm317, 0.0
        %475 = vst.msk [vmem:[#allocation4 + $0x98] sm:$0xff] %vm317, 0.0
        %476 = vst.msk [vmem:[#allocation4 + $0xa0] sm:$0xff] %vm317, 0.0
        %477 = vst.msk [vmem:[#allocation4 + $0xa8] sm:$0xff] %vm317, 0.0
        %478 = vst.msk [vmem:[#allocation4 + $0xb0] sm:$0xff] %vm317, 0.0
        %479 = vst.msk [vmem:[#allocation4 + $0xb8] sm:$0xff] %vm317, 0.0
        %480 = vst.msk [vmem:[#allocation4 + $0xc0] sm:$0xff] %vm317, 0.0
        %481 = vst.msk [vmem:[#allocation4 + $0xc8] sm:$0xff] %vm317, 0.0
        %482 = vst.msk [vmem:[#allocation4 + $0xd0] sm:$0xff] %vm317, 0.0
        %483 = vst.msk [vmem:[#allocation4 + $0xd8] sm:$0xff] %vm317, 0.0
        %484 = vst.msk [vmem:[#allocation4 + $0xe0] sm:$0xff] %vm317, 0.0
        %485 = vst.msk [vmem:[#allocation4 + $0xe8] sm:$0xff] %vm317, 0.0
        %486 = vst.msk [vmem:[#allocation4 + $0xf0] sm:$0xff] %vm317, 0.0
        %487 = vst.msk [vmem:[#allocation4 + $0xf8] sm:$0xff] %vm317, 0.0
        %v488 = vld [vmem:[#allocation10] sm:$0xff]
        %v489 = vld [vmem:[#allocation10 + $0x8] sm:$0xff]
        %v490 = vld [vmem:[#allocation10 + $0x10] sm:$0xff]
        %v491 = vld [vmem:[#allocation10 + $0x18] sm:$0xff]
        %v492 = vld [vmem:[%s4] sm:$0x1]
        %v494 = vlaneseq
        %v495 = vshrl.u32 %v494, 7
        %v496 = vsub.s32 0, %v495
        %v497 = vrot.slane %v492, %v496
        %v499 = vld [vmem:[%s5] sm:$0x1]
        %v501 = vlaneseq
        %v502 = vshrl.u32 %v501, 7
        %v503 = vsub.s32 0, %v502
        %v504 = vrot.slane %v499, %v503
        %v506 = vld [vmem:[#allocation3] sm:$0xff]
        %v507 = vld [vmem:[#allocation4] sm:$0xff]
        %v508 = vld [vmem:[#allocation4 + $0x8] sm:$0xff]
        %v509 = vld [vmem:[#allocation4 + $0x10] sm:$0xff]
        %v510 = vld [vmem:[#allocation4 + $0x18] sm:$0xff]
        %v511 = vld [vmem:[#allocation4 + $0x20] sm:$0xff]
        %v512 = vld [vmem:[#allocation4 + $0x28] sm:$0xff]
        %v513 = vld [vmem:[#allocation4 + $0x30] sm:$0xff]
        %v514 = vld [vmem:[#allocation4 + $0x38] sm:$0xff]
        %v515 = vld [vmem:[#allocation4 + $0x40] sm:$0xff]
        %v516 = vld [vmem:[#allocation4 + $0x48] sm:$0xff]
        %v517 = vld [vmem:[#allocation4 + $0x50] sm:$0xff]
        %v518 = vld [vmem:[#allocation4 + $0x58] sm:$0xff]
        %v519 = vld [vmem:[#allocation4 + $0x60] sm:$0xff]
        %v520 = vld [vmem:[#allocation4 + $0x68] sm:$0xff]
        %v521 = vld [vmem:[#allocation4 + $0x70] sm:$0xff]
        %v522 = vld [vmem:[#allocation4 + $0x78] sm:$0xff]
        %v523 = vld [vmem:[#allocation4 + $0x80] sm:$0xff]
        %v524 = vld [vmem:[#allocation4 + $0x88] sm:$0xff]
        %v525 = vld [vmem:[#allocation4 + $0x90] sm:$0xff]
        %v526 = vld [vmem:[#allocation4 + $0x98] sm:$0xff]
        %v527 = vld [vmem:[#allocation4 + $0xa0] sm:$0xff]
        %v528 = vld [vmem:[#allocation4 + $0xa8] sm:$0xff]
        %v529 = vld [vmem:[#allocation4 + $0xb0] sm:$0xff]
        %v530 = vld [vmem:[#allocation4 + $0xb8] sm:$0xff]
        %v531 = vld [vmem:[#allocation4 + $0xc0] sm:$0xff]
        %v532 = vld [vmem:[#allocation4 + $0xc8] sm:$0xff]
        %v533 = vld [vmem:[#allocation4 + $0xd0] sm:$0xff]
        %v534 = vld [vmem:[#allocation4 + $0xd8] sm:$0xff]
        %v535 = vld [vmem:[#allocation4 + $0xe0] sm:$0xff]
        %v536 = vld [vmem:[#allocation4 + $0xe8] sm:$0xff]
        %v537 = vld [vmem:[#allocation4 + $0xf0] sm:$0xff]
        %v538 = vld [vmem:[#allocation4 + $0xf8] sm:$0xff]
        %v539 = vld [vmem:[#allocation2] sm:$0xff]
        %v541 = vsel %vm317, %v506, 0
        %543 = vmatprep.subr.mxu0 0.0
        %544 = vmatpush1.msra.mxu0 0.0
        %545 = vmatprep.subr.mxu0 0.0
        %546 = vmatpush1.msra.mxu0 0.0
        %547 = vmatprep.subr.mxu0 0.0
        %548 = vmatpush1.msra.mxu0 0.0
        %549 = vmatprep.subr.mxu0 0.0
        %550 = vmatpush1.msra.mxu0 0.0
        %551 = vmatprep.subr.mxu0 0.0
        %552 = vmatpush1.msra.mxu0 0.0
        %553 = vmatprep.subr.mxu0 0.0
        %554 = vmatpush1.msra.mxu0 0.0
        %555 = vmatprep.subr.mxu0 0.0
        %556 = vmatpush1.msra.mxu0 0.0
        %557 = vmatprep.subr.mxu0 0.0
        %558 = vmatpush1.msra.mxu0 0.0
        %559 = vmatprep.subr.mxu0 0.0
        %560 = vmatpush1.msra.mxu0 0.0
        %561 = vmatprep.subr.mxu0 0.0
        %562 = vmatpush1.msra.mxu0 0.0
        %563 = vmatprep.subr.mxu0 0.0
        %564 = vmatpush1.msra.mxu0 0.0
        %565 = vmatprep.subr.mxu0 0.0
        %566 = vmatpush1.msra.mxu0 0.0
        %567 = vmatprep.subr.mxu0 0.0
        %568 = vmatpush1.msra.mxu0 %v491
        %569 = vmatprep.subr.mxu0 0.0
        %570 = vmatpush1.msra.mxu0 %v490
        %571 = vmatprep.subr.mxu0 0.0
        %572 = vmatpush1.msra.mxu0 %v489
        %573 = vmatprep.subr.mxu0 0.0
        %574 = vmatpush1.msra.mxu0 %v488
        %575 = vmatprep.subr.mxu0 0.0
        %576 = vmatpush2.msra.mxu0 0.0
        %577 = vmatprep.subr.mxu0 0.0
        %578 = vmatpush2.msra.mxu0 0.0
        %579 = vmatprep.subr.mxu0 0.0
        %580 = vmatpush2.msra.mxu0 0.0
        %581 = vmatprep.subr.mxu0 0.0
        %582 = vmatpush2.msra.mxu0 0.0
        %583 = vmatprep.subr.mxu0 0.0
        %584 = vmatpush2.msra.mxu0 0.0
        %585 = vmatprep.subr.mxu0 0.0
        %586 = vmatpush2.msra.mxu0 0.0
        %587 = vmatprep.subr.mxu0 0.0
        %588 = vmatpush2.msra.mxu0 0.0
        %589 = vmatprep.subr.mxu0 0.0
        %590 = vmatpush2.msra.mxu0 0.0
        %591 = vmatprep.subr.mxu0 0.0
        %592 = vmatpush2.msra.mxu0 0.0
        %593 = vmatprep.subr.mxu0 0.0
        %594 = vmatpush2.msra.mxu0 0.0
        %595 = vmatprep.subr.mxu0 0.0
        %596 = vmatpush2.msra.mxu0 0.0
        %597 = vmatprep.subr.mxu0 0.0
        %598 = vmatpush2.msra.mxu0 0.0
        %599 = vmatprep.subr.mxu0 0.0
        %600 = vmatpush2.msra.mxu0 0.0
        %601 = vmatprep.subr.mxu0 0.0
        %602 = vmatpush2.msra.mxu0 0.0
        %603 = vmatprep.subr.mxu0 0.0
        %604 = vmatpush2.msra.mxu0 0.0
        %605 = vmatprep.subr.mxu0 0.0
        %606 = vmatpush2.msra.mxu0 0.0
        %607 = vmatprep.mubr.f32.mxu0 0.0
        %608 = vmatmul.mubr.f32.gmra.mxu0 %v541
        %v609 = vpop.f32.mrf.mxu0
        %v610 = vadd.f32 0.0, %v609
        %v611 = vpop.f32.mrf.mxu0
        %612 = vdwg.mxu0
        %v613 = vadd.f32 %v539, %v610
        %v614 = vlaneseq
        %v615 = vshrl.u32 %v614, 7
        %v616 = vsub.s32 0, %v615
        %v617 = vrot.slane %v506, %v616
        %619 = vbcast.lane.b32.xlu0 %v617, 256
        %v620 = vpop.permute.xlu0 %619
        %s622 = sor.u32 256, 8
        %623 = vbcast.lane.b32.xlu0 %v617, %s622
        %v624 = vpop.permute.xlu0 %623
        %s626 = sor.u32 256, 16
        %627 = vbcast.lane.b32.xlu0 %v617, %s626
        %v628 = vpop.permute.xlu0 %627
        %s630 = sor.u32 256, 24
        %631 = vbcast.lane.b32.xlu0 %v617, %s630
        %v632 = vpop.permute.xlu0 %631
        %v633 = vlaneseq
        %v634 = vshrl.u32 %v633, 7
        %v635 = vsub.s32 1, %v634
        %v636 = vrot.slane %v506, %v635
        %638 = vbcast.lane.b32.xlu0 %v636, 256
        %v639 = vpop.permute.xlu0 %638
        %s641 = sor.u32 256, 8
        %642 = vbcast.lane.b32.xlu0 %v636, %s641
        %v643 = vpop.permute.xlu0 %642
        %s645 = sor.u32 256, 16
        %646 = vbcast.lane.b32.xlu0 %v636, %s645
        %v647 = vpop.permute.xlu0 %646
        %s649 = sor.u32 256, 24
        %650 = vbcast.lane.b32.xlu0 %v636, %s649
        %v651 = vpop.permute.xlu0 %650
        %v652 = vlaneseq
        %v653 = vshrl.u32 %v652, 7
        %v654 = vsub.s32 2, %v653
        %v655 = vrot.slane %v506, %v654
        %657 = vbcast.lane.b32.xlu0 %v655, 256
        %v658 = vpop.permute.xlu0 %657
        %s660 = sor.u32 256, 8
        %661 = vbcast.lane.b32.xlu0 %v655, %s660
        %v662 = vpop.permute.xlu0 %661
        %s664 = sor.u32 256, 16
        %665 = vbcast.lane.b32.xlu0 %v655, %s664
        %v666 = vpop.permute.xlu0 %665
        %s668 = sor.u32 256, 24
        %669 = vbcast.lane.b32.xlu0 %v655, %s668
        %v670 = vpop.permute.xlu0 %669
        %v671 = vlaneseq
        %v672 = vshrl.u32 %v671, 7
        %v673 = vsub.s32 3, %v672
        %v674 = vrot.slane %v506, %v673
        %676 = vbcast.lane.b32.xlu0 %v674, 256
        %v677 = vpop.permute.xlu0 %676
        %s679 = sor.u32 256, 8
        %680 = vbcast.lane.b32.xlu0 %v674, %s679
        %v681 = vpop.permute.xlu0 %680
        %s683 = sor.u32 256, 16
        %684 = vbcast.lane.b32.xlu0 %v674, %s683
        %v685 = vpop.permute.xlu0 %684
        %s687 = sor.u32 256, 24
        %688 = vbcast.lane.b32.xlu0 %v674, %s687
        %v689 = vpop.permute.xlu0 %688
        %v690 = vlaneseq
        %v691 = vshrl.u32 %v690, 7
        %v692 = vsub.s32 4, %v691
        %v693 = vrot.slane %v506, %v692
        %695 = vbcast.lane.b32.xlu0 %v693, 256
        %v696 = vpop.permute.xlu0 %695
        %s698 = sor.u32 256, 8
        %699 = vbcast.lane.b32.xlu0 %v693, %s698
        %v700 = vpop.permute.xlu0 %699
        %s702 = sor.u32 256, 16
        %703 = vbcast.lane.b32.xlu0 %v693, %s702
        %v704 = vpop.permute.xlu0 %703
        %s706 = sor.u32 256, 24
        %707 = vbcast.lane.b32.xlu0 %v693, %s706
        %v708 = vpop.permute.xlu0 %707
        %v709 = vlaneseq
        %v710 = vshrl.u32 %v709, 7
        %v711 = vsub.s32 5, %v710
        %v712 = vrot.slane %v506, %v711
        %714 = vbcast.lane.b32.xlu0 %v712, 256
        %v715 = vpop.permute.xlu0 %714
        %s717 = sor.u32 256, 8
        %718 = vbcast.lane.b32.xlu0 %v712, %s717
        %v719 = vpop.permute.xlu0 %718
        %s721 = sor.u32 256, 16
        %722 = vbcast.lane.b32.xlu0 %v712, %s721
        %v723 = vpop.permute.xlu0 %722
        %s725 = sor.u32 256, 24
        %726 = vbcast.lane.b32.xlu0 %v712, %s725
        %v727 = vpop.permute.xlu0 %726
        %v728 = vlaneseq
        %v729 = vshrl.u32 %v728, 7
        %v730 = vsub.s32 6, %v729
        %v731 = vrot.slane %v506, %v730
        %733 = vbcast.lane.b32.xlu0 %v731, 256
        %v734 = vpop.permute.xlu0 %733
        %s736 = sor.u32 256, 8
        %737 = vbcast.lane.b32.xlu0 %v731, %s736
        %v738 = vpop.permute.xlu0 %737
        %s740 = sor.u32 256, 16
        %741 = vbcast.lane.b32.xlu0 %v731, %s740
        %v742 = vpop.permute.xlu0 %741
        %s744 = sor.u32 256, 24
        %745 = vbcast.lane.b32.xlu0 %v731, %s744
        %v746 = vpop.permute.xlu0 %745
        %v747 = vlaneseq
        %v748 = vshrl.u32 %v747, 7
        %v749 = vsub.s32 7, %v748
        %v750 = vrot.slane %v506, %v749
        %752 = vbcast.lane.b32.xlu0 %v750, 256
        %v753 = vpop.permute.xlu0 %752
        %s755 = sor.u32 256, 8
        %756 = vbcast.lane.b32.xlu0 %v750, %s755
        %v757 = vpop.permute.xlu0 %756
        %s759 = sor.u32 256, 16
        %760 = vbcast.lane.b32.xlu0 %v750, %s759
        %v761 = vpop.permute.xlu0 %760
        %s763 = sor.u32 256, 24
        %764 = vbcast.lane.b32.xlu0 %v750, %s763
        %v765 = vpop.permute.xlu0 %764
        %v766 = vcombine.high %v506, %v506
        %v768 = vunpack.c.l.s4 1966171168
        %v769 = vunpack.c.0.s8 %v768
        %v770 = vlaneseq
        %v771 = vshrl.u32 %v770, 7
        %v772 = vsub.s32 %v769, %v771
        %v773 = vrot.slane %v506, %v772
        %v775 = vunpack.c.l.s4 1966171168
        %v776 = vunpack.c.0.s8 %v775
        %v777 = vlaneseq
        %v778 = vshrl.u32 %v777, 7
        %v779 = vsub.s32 %v776, %v778
        %v780 = vrot.slane %v766, %v779
        %v781 = vcombine.high %v773, %v773
        %v782 = vcombine.high %v780, %v780
        %v784 = vunpack.c.l.s4 1966171168
        %v785 = vunpack.c.0.s8 %v784
        %v786 = vlaneseq
        %v787 = vshrl.u32 %v786, 7
        %v788 = vsub.s32 %v785, %v787
        %v789 = vrot.slane %v773, %v788
        %v791 = vunpack.c.l.s4 1966171168
        %v792 = vunpack.c.0.s8 %v791
        %v793 = vlaneseq
        %v794 = vshrl.u32 %v793, 7
        %v795 = vsub.s32 %v792, %v794
        %v796 = vrot.slane %v780, %v795
        %v798 = vunpack.c.l.s4 1966171168
        %v799 = vunpack.c.0.s8 %v798
        %v800 = vlaneseq
        %v801 = vshrl.u32 %v800, 7
        %v802 = vsub.s32 %v799, %v801
        %v803 = vrot.slane %v781, %v802
        %v805 = vunpack.c.l.s4 1966171168
        %v806 = vunpack.c.0.s8 %v805
        %v807 = vlaneseq
        %v808 = vshrl.u32 %v807, 7
        %v809 = vsub.s32 %v806, %v808
        %v810 = vrot.slane %v782, %v809
        %v811 = vcombine.high %v789, %v789
        %v812 = vcombine.high %v796, %v796
        %v813 = vcombine.high %v803, %v803
        %v814 = vcombine.high %v810, %v810
        %v815 = vlaneseq
        %v816 = vshrl.u32 %v815, 7
        %v817 = vsub.s32 0, %v816
        %v818 = vrot.slane %v789, %v817
        %v819 = vlaneseq
        %v820 = vshrl.u32 %v819, 7
        %v821 = vsub.s32 0, %v820
        %v822 = vrot.slane %v803, %v821
        %v823 = vlaneseq
        %v824 = vshrl.u32 %v823, 7
        %v825 = vsub.s32 0, %v824
        %v826 = vrot.slane %v811, %v825
        %v827 = vlaneseq
        %v828 = vshrl.u32 %v827, 7
        %v829 = vsub.s32 0, %v828
        %v830 = vrot.slane %v813, %v829
        %v831 = vlaneseq
        %v832 = vshrl.u32 %v831, 7
        %v833 = vsub.s32 0, %v832
        %v834 = vrot.slane %v796, %v833
        %v835 = vlaneseq
        %v836 = vshrl.u32 %v835, 7
        %v837 = vsub.s32 0, %v836
        %v838 = vrot.slane %v810, %v837
        %v839 = vlaneseq
        %v840 = vshrl.u32 %v839, 7
        %v841 = vsub.s32 0, %v840
        %v842 = vrot.slane %v812, %v841
        %v843 = vlaneseq
        %v844 = vshrl.u32 %v843, 7
        %v845 = vsub.s32 0, %v844
        %v846 = vrot.slane %v814, %v845
        %v855 = vmul.f32 %v620, %v818
        %v856 = vmul.f32 %v624, %v818
        %v857 = vmul.f32 %v628, %v818
        %v858 = vmul.f32 %v632, %v818
        %v859 = vmul.f32 %v639, %v822
        %v860 = vmul.f32 %v643, %v822
        %v861 = vmul.f32 %v647, %v822
        %v862 = vmul.f32 %v651, %v822
        %v863 = vmul.f32 %v658, %v826
        %v864 = vmul.f32 %v662, %v826
        %v865 = vmul.f32 %v666, %v826
        %v866 = vmul.f32 %v670, %v826
        %v867 = vmul.f32 %v677, %v830
        %v868 = vmul.f32 %v681, %v830
        %v869 = vmul.f32 %v685, %v830
        %v870 = vmul.f32 %v689, %v830
        %v871 = vmul.f32 %v696, %v834
        %v872 = vmul.f32 %v700, %v834
        %v873 = vmul.f32 %v704, %v834
        %v874 = vmul.f32 %v708, %v834
        %v875 = vmul.f32 %v715, %v838
        %v876 = vmul.f32 %v719, %v838
        %v877 = vmul.f32 %v723, %v838
        %v878 = vmul.f32 %v727, %v838
        %v879 = vmul.f32 %v734, %v842
        %v880 = vmul.f32 %v738, %v842
        %v881 = vmul.f32 %v742, %v842
        %v882 = vmul.f32 %v746, %v842
        %v883 = vmul.f32 %v753, %v846
        %v884 = vmul.f32 %v757, %v846
        %v885 = vmul.f32 %v761, %v846
        %v886 = vmul.f32 %v765, %v846
        %v887 = vmul.f32 %v507, 0.9
        %v888 = vmul.f32 %v508, 0.9
        %v889 = vmul.f32 %v509, 0.9
        %v890 = vmul.f32 %v510, 0.9
        %v891 = vmul.f32 %v511, 0.9
        %v892 = vmul.f32 %v512, 0.9
        %v893 = vmul.f32 %v513, 0.9
        %v894 = vmul.f32 %v514, 0.9
        %v895 = vmul.f32 %v515, 0.9
        %v896 = vmul.f32 %v516, 0.9
        %v897 = vmul.f32 %v517, 0.9
        %v898 = vmul.f32 %v518, 0.9
        %v899 = vmul.f32 %v519, 0.9
        %v900 = vmul.f32 %v520, 0.9
        %v901 = vmul.f32 %v521, 0.9
        %v902 = vmul.f32 %v522, 0.9
        %v903 = vmul.f32 %v523, 0.9
        %v904 = vmul.f32 %v524, 0.9
        %v905 = vmul.f32 %v525, 0.9
        %v906 = vmul.f32 %v526, 0.9
        %v907 = vmul.f32 %v527, 0.9
        %v908 = vmul.f32 %v528, 0.9
        %v909 = vmul.f32 %v529, 0.9
        %v910 = vmul.f32 %v530, 0.9
        %v911 = vmul.f32 %v531, 0.9
        %v912 = vmul.f32 %v532, 0.9
        %v913 = vmul.f32 %v533, 0.9
        %v914 = vmul.f32 %v534, 0.9
        %v915 = vmul.f32 %v535, 0.9
        %v916 = vmul.f32 %v536, 0.9
        %v917 = vmul.f32 %v537, 0.9
        %v918 = vmul.f32 %v538, 0.9
        %v919 = vmul.f32 %v855, 0.5
        %v920 = vmul.f32 %v856, 0.5
        %v921 = vmul.f32 %v857, 0.5
        %v922 = vmul.f32 %v858, 0.5
        %v923 = vmul.f32 %v859, 0.5
        %v924 = vmul.f32 %v860, 0.5
        %v925 = vmul.f32 %v861, 0.5
        %v926 = vmul.f32 %v862, 0.5
        %v927 = vmul.f32 %v863, 0.5
        %v928 = vmul.f32 %v864, 0.5
        %v929 = vmul.f32 %v865, 0.5
        %v930 = vmul.f32 %v866, 0.5
        %v931 = vmul.f32 %v867, 0.5
        %v932 = vmul.f32 %v868, 0.5
        %v933 = vmul.f32 %v869, 0.5
        %v934 = vmul.f32 %v870, 0.5
        %v935 = vmul.f32 %v871, 0.5
        %v936 = vmul.f32 %v872, 0.5
        %v937 = vmul.f32 %v873, 0.5
        %v938 = vmul.f32 %v874, 0.5
        %v939 = vmul.f32 %v875, 0.5
        %v940 = vmul.f32 %v876, 0.5
        %v941 = vmul.f32 %v877, 0.5
        %v942 = vmul.f32 %v878, 0.5
        %v943 = vmul.f32 %v879, 0.5
        %v944 = vmul.f32 %v880, 0.5
        %v945 = vmul.f32 %v881, 0.5
        %v946 = vmul.f32 %v882, 0.5
        %v947 = vmul.f32 %v883, 0.5
        %v948 = vmul.f32 %v884, 0.5
        %v949 = vmul.f32 %v885, 0.5
        %v950 = vmul.f32 %v886, 0.5
        %v951 = vadd.f32 %v887, %v919
        %v952 = vadd.f32 %v888, %v920
        %v953 = vadd.f32 %v889, %v921
        %v954 = vadd.f32 %v890, %v922
        %v955 = vadd.f32 %v891, %v923
        %v956 = vadd.f32 %v892, %v924
        %v957 = vadd.f32 %v893, %v925
        %v958 = vadd.f32 %v894, %v926
        %v959 = vadd.f32 %v895, %v927
        %v960 = vadd.f32 %v896, %v928
        %v961 = vadd.f32 %v897, %v929
        %v962 = vadd.f32 %v898, %v930
        %v963 = vadd.f32 %v899, %v931
        %v964 = vadd.f32 %v900, %v932
        %v965 = vadd.f32 %v901, %v933
        %v966 = vadd.f32 %v902, %v934
        %v967 = vadd.f32 %v903, %v935
        %v968 = vadd.f32 %v904, %v936
        %v969 = vadd.f32 %v905, %v937
        %v970 = vadd.f32 %v906, %v938
        %v971 = vadd.f32 %v907, %v939
        %v972 = vadd.f32 %v908, %v940
        %v973 = vadd.f32 %v909, %v941
        %v974 = vadd.f32 %v910, %v942
        %v975 = vadd.f32 %v911, %v943
        %v976 = vadd.f32 %v912, %v944
        %v977 = vadd.f32 %v913, %v945
        %v978 = vadd.f32 %v914, %v946
        %v979 = vadd.f32 %v915, %v947
        %v980 = vadd.f32 %v916, %v948
        %v981 = vadd.f32 %v917, %v949
        %v982 = vadd.f32 %v918, %v950
        %983 = vst.msk [vmem:[#allocation4] sm:$0xff] %vm317, %v951
        %984 = vst.msk [vmem:[#allocation4 + $0x8] sm:$0xff] %vm317, %v952
        %985 = vst.msk [vmem:[#allocation4 + $0x10] sm:$0xff] %vm317, %v953
        %986 = vst.msk [vmem:[#allocation4 + $0x18] sm:$0xff] %vm317, %v954
        %987 = vst.msk [vmem:[#allocation4 + $0x20] sm:$0xff] %vm317, %v955
        %988 = vst.msk [vmem:[#allocation4 + $0x28] sm:$0xff] %vm317, %v956
        %989 = vst.msk [vmem:[#allocation4 + $0x30] sm:$0xff] %vm317, %v957
        %990 = vst.msk [vmem:[#allocation4 + $0x38] sm:$0xff] %vm317, %v958
        %991 = vst.msk [vmem:[#allocation4 + $0x40] sm:$0xff] %vm317, %v959
        %992 = vst.msk [vmem:[#allocation4 + $0x48] sm:$0xff] %vm317, %v960
        %993 = vst.msk [vmem:[#allocation4 + $0x50] sm:$0xff] %vm317, %v961
        %994 = vst.msk [vmem:[#allocation4 + $0x58] sm:$0xff] %vm317, %v962
        %995 = vst.msk [vmem:[#allocation4 + $0x60] sm:$0xff] %vm317, %v963
        %996 = vst.msk [vmem:[#allocation4 + $0x68] sm:$0xff] %vm317, %v964
        %997 = vst.msk [vmem:[#allocation4 + $0x70] sm:$0xff] %vm317, %v965
        %998 = vst.msk [vmem:[#allocation4 + $0x78] sm:$0xff] %vm317, %v966
        %999 = vst.msk [vmem:[#allocation4 + $0x80] sm:$0xff] %vm317, %v967
        %1000 = vst.msk [vmem:[#allocation4 + $0x88] sm:$0xff] %vm317, %v968
        %1001 = vst.msk [vmem:[#allocation4 + $0x90] sm:$0xff] %vm317, %v969
        %1002 = vst.msk [vmem:[#allocation4 + $0x98] sm:$0xff] %vm317, %v970
        %1003 = vst.msk [vmem:[#allocation4 + $0xa0] sm:$0xff] %vm317, %v971
        %1004 = vst.msk [vmem:[#allocation4 + $0xa8] sm:$0xff] %vm317, %v972
        %1005 = vst.msk [vmem:[#allocation4 + $0xb0] sm:$0xff] %vm317, %v973
        %1006 = vst.msk [vmem:[#allocation4 + $0xb8] sm:$0xff] %vm317, %v974
        %1007 = vst.msk [vmem:[#allocation4 + $0xc0] sm:$0xff] %vm317, %v975
        %1008 = vst.msk [vmem:[#allocation4 + $0xc8] sm:$0xff] %vm317, %v976
        %1009 = vst.msk [vmem:[#allocation4 + $0xd0] sm:$0xff] %vm317, %v977
        %1010 = vst.msk [vmem:[#allocation4 + $0xd8] sm:$0xff] %vm317, %v978
        %1011 = vst.msk [vmem:[#allocation4 + $0xe0] sm:$0xff] %vm317, %v979
        %1012 = vst.msk [vmem:[#allocation4 + $0xe8] sm:$0xff] %vm317, %v980
        %1013 = vst.msk [vmem:[#allocation4 + $0xf0] sm:$0xff] %vm317, %v981
        %1014 = vst.msk [vmem:[#allocation4 + $0xf8] sm:$0xff] %vm317, %v982
        %v1015 = vmax.f32 %v613, 0.0
        %v1017 = vcombine.high %v1015, %v1015
        %v1019 = vunpack.c.l.s4 1966171168
        %v1020 = vunpack.c.0.s8 %v1019
        %v1021 = vlaneseq
        %v1022 = vshrl.u32 %v1021, 7
        %v1023 = vsub.s32 %v1020, %v1022
        %v1024 = vrot.slane %v1015, %v1023
        %v1026 = vunpack.c.l.s4 1966171168
        %v1027 = vunpack.c.0.s8 %v1026
        %v1028 = vlaneseq
        %v1029 = vshrl.u32 %v1028, 7
        %v1030 = vsub.s32 %v1027, %v1029
        %v1031 = vrot.slane %v1017, %v1030
        %v1032 = vcombine.high %v1024, %v1024
        %v1033 = vcombine.high %v1031, %v1031
        %v1035 = vunpack.c.l.s4 1966171168
        %v1036 = vunpack.c.0.s8 %v1035
        %v1037 = vlaneseq
        %v1038 = vshrl.u32 %v1037, 7
        %v1039 = vsub.s32 %v1036, %v1038
        %v1040 = vrot.slane %v1024, %v1039
        %v1042 = vunpack.c.l.s4 1966171168
        %v1043 = vunpack.c.0.s8 %v1042
        %v1044 = vlaneseq
        %v1045 = vshrl.u32 %v1044, 7
        %v1046 = vsub.s32 %v1043, %v1045
        %v1047 = vrot.slane %v1031, %v1046
        %v1049 = vunpack.c.l.s4 1966171168
        %v1050 = vunpack.c.0.s8 %v1049
        %v1051 = vlaneseq
        %v1052 = vshrl.u32 %v1051, 7
        %v1053 = vsub.s32 %v1050, %v1052
        %v1054 = vrot.slane %v1032, %v1053
        %v1056 = vunpack.c.l.s4 1966171168
        %v1057 = vunpack.c.0.s8 %v1056
        %v1058 = vlaneseq
        %v1059 = vshrl.u32 %v1058, 7
        %v1060 = vsub.s32 %v1057, %v1059
        %v1061 = vrot.slane %v1033, %v1060
        %v1062 = vcombine.high %v1040, %v1040
        %v1063 = vcombine.high %v1047, %v1047
        %v1064 = vcombine.high %v1054, %v1054
        %v1065 = vcombine.high %v1061, %v1061
        %v1066 = vlaneseq
        %v1067 = vshrl.u32 %v1066, 7
        %v1068 = vsub.s32 0, %v1067
        %v1069 = vrot.slane %v1040, %v1068
        %v1070 = vlaneseq
        %v1071 = vshrl.u32 %v1070, 7
        %v1072 = vsub.s32 0, %v1071
        %v1073 = vrot.slane %v1054, %v1072
        %v1074 = vlaneseq
        %v1075 = vshrl.u32 %v1074, 7
        %v1076 = vsub.s32 0, %v1075
        %v1077 = vrot.slane %v1062, %v1076
        %v1078 = vlaneseq
        %v1079 = vshrl.u32 %v1078, 7
        %v1080 = vsub.s32 0, %v1079
        %v1081 = vrot.slane %v1064, %v1080
        %v1082 = vlaneseq
        %v1083 = vshrl.u32 %v1082, 7
        %v1084 = vsub.s32 0, %v1083
        %v1085 = vrot.slane %v1047, %v1084
        %v1086 = vlaneseq
        %v1087 = vshrl.u32 %v1086, 7
        %v1088 = vsub.s32 0, %v1087
        %v1089 = vrot.slane %v1061, %v1088
        %v1090 = vlaneseq
        %v1091 = vshrl.u32 %v1090, 7
        %v1092 = vsub.s32 0, %v1091
        %v1093 = vrot.slane %v1063, %v1092
        %v1094 = vlaneseq
        %v1095 = vshrl.u32 %v1094, 7
        %v1096 = vsub.s32 0, %v1095
        %v1097 = vrot.slane %v1065, %v1096
        %v1106 = vmul.f32 %v507, %v1069
        %v1107 = vmul.f32 %v508, %v1069
        %v1108 = vmul.f32 %v509, %v1069
        %v1109 = vmul.f32 %v510, %v1069
        %v1110 = vmul.f32 %v511, %v1073
        %v1111 = vmul.f32 %v512, %v1073
        %v1112 = vmul.f32 %v513, %v1073
        %v1113 = vmul.f32 %v514, %v1073
        %v1114 = vmul.f32 %v515, %v1077
        %v1115 = vmul.f32 %v516, %v1077
        %v1116 = vmul.f32 %v517, %v1077
        %v1117 = vmul.f32 %v518, %v1077
        %v1118 = vmul.f32 %v519, %v1081
        %v1119 = vmul.f32 %v520, %v1081
        %v1120 = vmul.f32 %v521, %v1081
        %v1121 = vmul.f32 %v522, %v1081
        %v1122 = vmul.f32 %v523, %v1085
        %v1123 = vmul.f32 %v524, %v1085
        %v1124 = vmul.f32 %v525, %v1085
        %v1125 = vmul.f32 %v526, %v1085
        %v1126 = vmul.f32 %v527, %v1089
        %v1127 = vmul.f32 %v528, %v1089
        %v1128 = vmul.f32 %v529, %v1089
        %v1129 = vmul.f32 %v530, %v1089
        %v1130 = vmul.f32 %v531, %v1093
        %v1131 = vmul.f32 %v532, %v1093
        %v1132 = vmul.f32 %v533, %v1093
        %v1133 = vmul.f32 %v534, %v1093
        %v1134 = vmul.f32 %v535, %v1097
        %v1135 = vmul.f32 %v536, %v1097
        %v1136 = vmul.f32 %v537, %v1097
        %v1137 = vmul.f32 %v538, %v1097
        %v1138 = vsel %vm317, %v1106, 0.0
        %1139 = vadd.xlane.f32.xlu0 %v1138
        %v1140 = vpop.xlane.xlu0 %1139
        %v1141 = vsel %vm317, %v1107, 0.0
        %1142 = vadd.xlane.f32.xlu0 %v1141
        %v1143 = vpop.xlane.xlu0 %1142
        %v1144 = vsel %vm317, %v1108, 0.0
        %1145 = vadd.xlane.f32.xlu0 %v1144
        %v1146 = vpop.xlane.xlu0 %1145
        %v1147 = vsel %vm317, %v1109, 0.0
        %1148 = vadd.xlane.f32.xlu0 %v1147
        %v1149 = vpop.xlane.xlu0 %1148
        %v1150 = vsel %vm317, %v1110, 0.0
        %1151 = vadd.xlane.f32.xlu0 %v1150
        %v1152 = vpop.xlane.xlu0 %1151
        %v1153 = vsel %vm317, %v1111, 0.0
        %1154 = vadd.xlane.f32.xlu0 %v1153
        %v1155 = vpop.xlane.xlu0 %1154
        %v1156 = vsel %vm317, %v1112, 0.0
        %1157 = vadd.xlane.f32.xlu0 %v1156
        %v1158 = vpop.xlane.xlu0 %1157
        %v1159 = vsel %vm317, %v1113, 0.0
        %1160 = vadd.xlane.f32.xlu0 %v1159
        %v1161 = vpop.xlane.xlu0 %1160
        %v1162 = vsel %vm317, %v1114, 0.0
        %1163 = vadd.xlane.f32.xlu0 %v1162
        %v1164 = vpop.xlane.xlu0 %1163
        %v1165 = vsel %vm317, %v1115, 0.0
        %1166 = vadd.xlane.f32.xlu0 %v1165
        %v1167 = vpop.xlane.xlu0 %1166
        %v1168 = vsel %vm317, %v1116, 0.0
        %1169 = vadd.xlane.f32.xlu0 %v1168
        %v1170 = vpop.xlane.xlu0 %1169
        %v1171 = vsel %vm317, %v1117, 0.0
        %1172 = vadd.xlane.f32.xlu0 %v1171
        %v1173 = vpop.xlane.xlu0 %1172
        %v1174 = vsel %vm317, %v1118, 0.0
        %1175 = vadd.xlane.f32.xlu0 %v1174
        %v1176 = vpop.xlane.xlu0 %1175
        %v1177 = vsel %vm317, %v1119, 0.0
        %1178 = vadd.xlane.f32.xlu0 %v1177
        %v1179 = vpop.xlane.xlu0 %1178
        %v1180 = vsel %vm317, %v1120, 0.0
        %1181 = vadd.xlane.f32.xlu0 %v1180
        %v1182 = vpop.xlane.xlu0 %1181
        %v1183 = vsel %vm317, %v1121, 0.0
        %1184 = vadd.xlane.f32.xlu0 %v1183
        %v1185 = vpop.xlane.xlu0 %1184
        %v1186 = vsel %vm317, %v1122, 0.0
        %1187 = vadd.xlane.f32.xlu0 %v1186
        %v1188 = vpop.xlane.xlu0 %1187
        %v1189 = vsel %vm317, %v1123, 0.0
        %1190 = vadd.xlane.f32.xlu0 %v1189
        %v1191 = vpop.xlane.xlu0 %1190
        %v1192 = vsel %vm317, %v1124, 0.0
        %1193 = vadd.xlane.f32.xlu0 %v1192
        %v1194 = vpop.xlane.xlu0 %1193
        %v1195 = vsel %vm317, %v1125, 0.0
        %1196 = vadd.xlane.f32.xlu0 %v1195
        %v1197 = vpop.xlane.xlu0 %1196
        %v1198 = vsel %vm317, %v1126, 0.0
        %1199 = vadd.xlane.f32.xlu0 %v1198
        %v1200 = vpop.xlane.xlu0 %1199
        %v1201 = vsel %vm317, %v1127, 0.0
        %1202 = vadd.xlane.f32.xlu0 %v1201
        %v1203 = vpop.xlane.xlu0 %1202
        %v1204 = vsel %vm317, %v1128, 0.0
        %1205 = vadd.xlane.f32.xlu0 %v1204
        %v1206 = vpop.xlane.xlu0 %1205
        %v1207 = vsel %vm317, %v1129, 0.0
        %1208 = vadd.xlane.f32.xlu0 %v1207
        %v1209 = vpop.xlane.xlu0 %1208
        %v1210 = vsel %vm317, %v1130, 0.0
        %1211 = vadd.xlane.f32.xlu0 %v1210
        %v1212 = vpop.xlane.xlu0 %1211
        %v1213 = vsel %vm317, %v1131, 0.0
        %1214 = vadd.xlane.f32.xlu0 %v1213
        %v1215 = vpop.xlane.xlu0 %1214
        %v1216 = vsel %vm317, %v1132, 0.0
        %1217 = vadd.xlane.f32.xlu0 %v1216
        %v1218 = vpop.xlane.xlu0 %1217
        %v1219 = vsel %vm317, %v1133, 0.0
        %1220 = vadd.xlane.f32.xlu0 %v1219
        %v1221 = vpop.xlane.xlu0 %1220
        %v1222 = vsel %vm317, %v1134, 0.0
        %1223 = vadd.xlane.f32.xlu0 %v1222
        %v1224 = vpop.xlane.xlu0 %1223
        %v1225 = vsel %vm317, %v1135, 0.0
        %1226 = vadd.xlane.f32.xlu0 %v1225
        %v1227 = vpop.xlane.xlu0 %1226
        %v1228 = vsel %vm317, %v1136, 0.0
        %1229 = vadd.xlane.f32.xlu0 %v1228
        %v1230 = vpop.xlane.xlu0 %1229
        %v1231 = vsel %vm317, %v1137, 0.0
        %1232 = vadd.xlane.f32.xlu0 %v1231
        %v1233 = vpop.xlane.xlu0 %1232
        %v1234 = vmul.f32 %v506, %v1015
        %v1235 = vsel %vm317, %v1234, 0.0
        %1236 = vadd.xlane.f32.xlu0 %v1235
        %v1237 = vpop.xlane.xlu0 %1236
        %v1238 = vmul.f32 %v1140, 0.9
        %v1239 = vmul.f32 %v1143, 0.9
        %v1240 = vmul.f32 %v1146, 0.9
        %v1241 = vmul.f32 %v1149, 0.9
        %v1242 = vmul.f32 %v1152, 0.9
        %v1243 = vmul.f32 %v1155, 0.9
        %v1244 = vmul.f32 %v1158, 0.9
        %v1245 = vmul.f32 %v1161, 0.9
        %v1246 = vmul.f32 %v1164, 0.9
        %v1247 = vmul.f32 %v1167, 0.9
        %v1248 = vmul.f32 %v1170, 0.9
        %v1249 = vmul.f32 %v1173, 0.9
        %v1250 = vmul.f32 %v1176, 0.9
        %v1251 = vmul.f32 %v1179, 0.9
        %v1252 = vmul.f32 %v1182, 0.9
        %v1253 = vmul.f32 %v1185, 0.9
        %v1254 = vmul.f32 %v1188, 0.9
        %v1255 = vmul.f32 %v1191, 0.9
        %v1256 = vmul.f32 %v1194, 0.9
        %v1257 = vmul.f32 %v1197, 0.9
        %v1258 = vmul.f32 %v1200, 0.9
        %v1259 = vmul.f32 %v1203, 0.9
        %v1260 = vmul.f32 %v1206, 0.9
        %v1261 = vmul.f32 %v1209, 0.9
        %v1262 = vmul.f32 %v1212, 0.9
        %v1263 = vmul.f32 %v1215, 0.9
        %v1264 = vmul.f32 %v1218, 0.9
        %v1265 = vmul.f32 %v1221, 0.9
        %v1266 = vmul.f32 %v1224, 0.9
        %v1267 = vmul.f32 %v1227, 0.9
        %v1268 = vmul.f32 %v1230, 0.9
        %v1269 = vmul.f32 %v1233, 0.9
        %v1270 = vmul.f32 %v506, %v1237
        %v1271 = vmul.f32 %v1270, 0.5
        %v1273 = vlaneseq
        %v1274 = vshrl.u32 %v1273, 7
        %v1275 = vsub.s32 0, %v1274
        %v1276 = vrot.slane %v1271, %v1275
        %1278 = vbcast.lane.b32.xlu0 %v1276, 256
        %v1279 = vpop.permute.xlu0 %1278
        %s1281 = sor.u32 256, 8
        %1282 = vbcast.lane.b32.xlu0 %v1276, %s1281
        %v1283 = vpop.permute.xlu0 %1282
        %s1285 = sor.u32 256, 16
        %1286 = vbcast.lane.b32.xlu0 %v1276, %s1285
        %v1287 = vpop.permute.xlu0 %1286
        %s1289 = sor.u32 256, 24
        %1290 = vbcast.lane.b32.xlu0 %v1276, %s1289
        %v1291 = vpop.permute.xlu0 %1290
        %v1292 = vlaneseq
        %v1293 = vshrl.u32 %v1292, 7
        %v1294 = vsub.s32 1, %v1293
        %v1295 = vrot.slane %v1271, %v1294
        %1297 = vbcast.lane.b32.xlu0 %v1295, 256
        %v1298 = vpop.permute.xlu0 %1297
        %s1300 = sor.u32 256, 8
        %1301 = vbcast.lane.b32.xlu0 %v1295, %s1300
        %v1302 = vpop.permute.xlu0 %1301
        %s1304 = sor.u32 256, 16
        %1305 = vbcast.lane.b32.xlu0 %v1295, %s1304
        %v1306 = vpop.permute.xlu0 %1305
        %s1308 = sor.u32 256, 24
        %1309 = vbcast.lane.b32.xlu0 %v1295, %s1308
        %v1310 = vpop.permute.xlu0 %1309
        %v1311 = vlaneseq
        %v1312 = vshrl.u32 %v1311, 7
        %v1313 = vsub.s32 2, %v1312
        %v1314 = vrot.slane %v1271, %v1313
        %1316 = vbcast.lane.b32.xlu0 %v1314, 256
        %v1317 = vpop.permute.xlu0 %1316
        %s1319 = sor.u32 256, 8
        %1320 = vbcast.lane.b32.xlu0 %v1314, %s1319
        %v1321 = vpop.permute.xlu0 %1320
        %s1323 = sor.u32 256, 16
        %1324 = vbcast.lane.b32.xlu0 %v1314, %s1323
        %v1325 = vpop.permute.xlu0 %1324
        %s1327 = sor.u32 256, 24
        %1328 = vbcast.lane.b32.xlu0 %v1314, %s1327
        %v1329 = vpop.permute.xlu0 %1328
        %v1330 = vlaneseq
        %v1331 = vshrl.u32 %v1330, 7
        %v1332 = vsub.s32 3, %v1331
        %v1333 = vrot.slane %v1271, %v1332
        %1335 = vbcast.lane.b32.xlu0 %v1333, 256
        %v1336 = vpop.permute.xlu0 %1335
        %s1338 = sor.u32 256, 8
        %1339 = vbcast.lane.b32.xlu0 %v1333, %s1338
        %v1340 = vpop.permute.xlu0 %1339
        %s1342 = sor.u32 256, 16
        %1343 = vbcast.lane.b32.xlu0 %v1333, %s1342
        %v1344 = vpop.permute.xlu0 %1343
        %s1346 = sor.u32 256, 24
        %1347 = vbcast.lane.b32.xlu0 %v1333, %s1346
        %v1348 = vpop.permute.xlu0 %1347
        %v1349 = vlaneseq
        %v1350 = vshrl.u32 %v1349, 7
        %v1351 = vsub.s32 4, %v1350
        %v1352 = vrot.slane %v1271, %v1351
        %1354 = vbcast.lane.b32.xlu0 %v1352, 256
        %v1355 = vpop.permute.xlu0 %1354
        %s1357 = sor.u32 256, 8
        %1358 = vbcast.lane.b32.xlu0 %v1352, %s1357
        %v1359 = vpop.permute.xlu0 %1358
        %s1361 = sor.u32 256, 16
        %1362 = vbcast.lane.b32.xlu0 %v1352, %s1361
        %v1363 = vpop.permute.xlu0 %1362
        %s1365 = sor.u32 256, 24
        %1366 = vbcast.lane.b32.xlu0 %v1352, %s1365
        %v1367 = vpop.permute.xlu0 %1366
        %v1368 = vlaneseq
        %v1369 = vshrl.u32 %v1368, 7
        %v1370 = vsub.s32 5, %v1369
        %v1371 = vrot.slane %v1271, %v1370
        %1373 = vbcast.lane.b32.xlu0 %v1371, 256
        %v1374 = vpop.permute.xlu0 %1373
        %s1376 = sor.u32 256, 8
        %1377 = vbcast.lane.b32.xlu0 %v1371, %s1376
        %v1378 = vpop.permute.xlu0 %1377
        %s1380 = sor.u32 256, 16
        %1381 = vbcast.lane.b32.xlu0 %v1371, %s1380
        %v1382 = vpop.permute.xlu0 %1381
        %s1384 = sor.u32 256, 24
        %1385 = vbcast.lane.b32.xlu0 %v1371, %s1384
        %v1386 = vpop.permute.xlu0 %1385
        %v1387 = vlaneseq
        %v1388 = vshrl.u32 %v1387, 7
        %v1389 = vsub.s32 6, %v1388
        %v1390 = vrot.slane %v1271, %v1389
        %1392 = vbcast.lane.b32.xlu0 %v1390, 256
        %v1393 = vpop.permute.xlu0 %1392
        %s1395 = sor.u32 256, 8
        %1396 = vbcast.lane.b32.xlu0 %v1390, %s1395
        %v1397 = vpop.permute.xlu0 %1396
        %s1399 = sor.u32 256, 16
        %1400 = vbcast.lane.b32.xlu0 %v1390, %s1399
        %v1401 = vpop.permute.xlu0 %1400
        %s1403 = sor.u32 256, 24
        %1404 = vbcast.lane.b32.xlu0 %v1390, %s1403
        %v1405 = vpop.permute.xlu0 %1404
        %v1406 = vlaneseq
        %v1407 = vshrl.u32 %v1406, 7
        %v1408 = vsub.s32 7, %v1407
        %v1409 = vrot.slane %v1271, %v1408
        %1411 = vbcast.lane.b32.xlu0 %v1409, 256
        %v1412 = vpop.permute.xlu0 %1411
        %s1414 = sor.u32 256, 8
        %1415 = vbcast.lane.b32.xlu0 %v1409, %s1414
        %v1416 = vpop.permute.xlu0 %1415
        %s1418 = sor.u32 256, 16
        %1419 = vbcast.lane.b32.xlu0 %v1409, %s1418
        %v1420 = vpop.permute.xlu0 %1419
        %s1422 = sor.u32 256, 24
        %1423 = vbcast.lane.b32.xlu0 %v1409, %s1422
        %v1424 = vpop.permute.xlu0 %1423
        %v1457 = vadd.f32 %v1238, %v1279
        %v1458 = vadd.f32 %v1239, %v1283
        %v1459 = vadd.f32 %v1240, %v1287
        %v1460 = vadd.f32 %v1241, %v1291
        %v1461 = vadd.f32 %v1242, %v1298
        %v1462 = vadd.f32 %v1243, %v1302
        %v1463 = vadd.f32 %v1244, %v1306
        %v1464 = vadd.f32 %v1245, %v1310
        %v1465 = vadd.f32 %v1246, %v1317
        %v1466 = vadd.f32 %v1247, %v1321
        %v1467 = vadd.f32 %v1248, %v1325
        %v1468 = vadd.f32 %v1249, %v1329
        %v1469 = vadd.f32 %v1250, %v1336
        %v1470 = vadd.f32 %v1251, %v1340
        %v1471 = vadd.f32 %v1252, %v1344
        %v1472 = vadd.f32 %v1253, %v1348
        %v1473 = vadd.f32 %v1254, %v1355
        %v1474 = vadd.f32 %v1255, %v1359
        %v1475 = vadd.f32 %v1256, %v1363
        %v1476 = vadd.f32 %v1257, %v1367
        %v1477 = vadd.f32 %v1258, %v1374
        %v1478 = vadd.f32 %v1259, %v1378
        %v1479 = vadd.f32 %v1260, %v1382
        %v1480 = vadd.f32 %v1261, %v1386
        %v1481 = vadd.f32 %v1262, %v1393
        %v1482 = vadd.f32 %v1263, %v1397
        %v1483 = vadd.f32 %v1264, %v1401
        %v1484 = vadd.f32 %v1265, %v1405
        %v1485 = vadd.f32 %v1266, %v1412
        %v1486 = vadd.f32 %v1267, %v1416
        %v1487 = vadd.f32 %v1268, %v1420
        %v1488 = vadd.f32 %v1269, %v1424
        %1521 = vset.pattern.permute.xlu0 0
        %1522 = vperm.xlu0 %1521, %v1457
        %v1523 = vpop.permute.xlu0 %1522
        %1524 = vset.pattern.permute.xlu0 0
        %1525 = vperm.xlu0 %1524, %v1458
        %v1526 = vpop.permute.xlu0 %1525
        %1527 = vset.pattern.permute.xlu0 0
        %1528 = vperm.xlu0 %1527, %v1459
        %v1529 = vpop.permute.xlu0 %1528
        %1530 = vset.pattern.permute.xlu0 0
        %1531 = vperm.xlu0 %1530, %v1460
        %v1532 = vpop.permute.xlu0 %1531
        %1533 = vset.pattern.permute.xlu0 0
        %1534 = vperm.xlu0 %1533, %v1461
        %v1535 = vpop.permute.xlu0 %1534
        %1536 = vset.pattern.permute.xlu0 0
        %1537 = vperm.xlu0 %1536, %v1462
        %v1538 = vpop.permute.xlu0 %1537
        %1539 = vset.pattern.permute.xlu0 0
        %1540 = vperm.xlu0 %1539, %v1463
        %v1541 = vpop.permute.xlu0 %1540
        %1542 = vset.pattern.permute.xlu0 0
        %1543 = vperm.xlu0 %1542, %v1464
        %v1544 = vpop.permute.xlu0 %1543
        %1545 = vset.pattern.permute.xlu0 0
        %1546 = vperm.xlu0 %1545, %v1465
        %v1547 = vpop.permute.xlu0 %1546
        %1548 = vset.pattern.permute.xlu0 0
        %1549 = vperm.xlu0 %1548, %v1466
        %v1550 = vpop.permute.xlu0 %1549
        %1551 = vset.pattern.permute.xlu0 0
        %1552 = vperm.xlu0 %1551, %v1467
        %v1553 = vpop.permute.xlu0 %1552
        %1554 = vset.pattern.permute.xlu0 0
        %1555 = vperm.xlu0 %1554, %v1468
        %v1556 = vpop.permute.xlu0 %1555
        %1557 = vset.pattern.permute.xlu0 0
        %1558 = vperm.xlu0 %1557, %v1469
        %v1559 = vpop.permute.xlu0 %1558
        %1560 = vset.pattern.permute.xlu0 0
        %1561 = vperm.xlu0 %1560, %v1470
        %v1562 = vpop.permute.xlu0 %1561
        %1563 = vset.pattern.permute.xlu0 0
        %1564 = vperm.xlu0 %1563, %v1471
        %v1565 = vpop.permute.xlu0 %1564
        %1566 = vset.pattern.permute.xlu0 0
        %1567 = vperm.xlu0 %1566, %v1472
        %v1568 = vpop.permute.xlu0 %1567
        %1569 = vset.pattern.permute.xlu0 0
        %1570 = vperm.xlu0 %1569, %v1473
        %v1571 = vpop.permute.xlu0 %1570
        %1572 = vset.pattern.permute.xlu0 0
        %1573 = vperm.xlu0 %1572, %v1474
        %v1574 = vpop.permute.xlu0 %1573
        %1575 = vset.pattern.permute.xlu0 0
        %1576 = vperm.xlu0 %1575, %v1475
        %v1577 = vpop.permute.xlu0 %1576
        %1578 = vset.pattern.permute.xlu0 0
        %1579 = vperm.xlu0 %1578, %v1476
        %v1580 = vpop.permute.xlu0 %1579
        %1581 = vset.pattern.permute.xlu0 0
        %1582 = vperm.xlu0 %1581, %v1477
        %v1583 = vpop.permute.xlu0 %1582
        %1584 = vset.pattern.permute.xlu0 0
        %1585 = vperm.xlu0 %1584, %v1478
        %v1586 = vpop.permute.xlu0 %1585
        %1587 = vset.pattern.permute.xlu0 0
        %1588 = vperm.xlu0 %1587, %v1479
        %v1589 = vpop.permute.xlu0 %1588
        %1590 = vset.pattern.permute.xlu0 0
        %1591 = vperm.xlu0 %1590, %v1480
        %v1592 = vpop.permute.xlu0 %1591
        %1593 = vset.pattern.permute.xlu0 0
        %1594 = vperm.xlu0 %1593, %v1481
        %v1595 = vpop.permute.xlu0 %1594
        %1596 = vset.pattern.permute.xlu0 0
        %1597 = vperm.xlu0 %1596, %v1482
        %v1598 = vpop.permute.xlu0 %1597
        %1599 = vset.pattern.permute.xlu0 0
        %1600 = vperm.xlu0 %1599, %v1483
        %v1601 = vpop.permute.xlu0 %1600
        %1602 = vset.pattern.permute.xlu0 0
        %1603 = vperm.xlu0 %1602, %v1484
        %v1604 = vpop.permute.xlu0 %1603
        %1605 = vset.pattern.permute.xlu0 0
        %1606 = vperm.xlu0 %1605, %v1485
        %v1607 = vpop.permute.xlu0 %1606
        %1608 = vset.pattern.permute.xlu0 0
        %1609 = vperm.xlu0 %1608, %v1486
        %v1610 = vpop.permute.xlu0 %1609
        %1611 = vset.pattern.permute.xlu0 0
        %1612 = vperm.xlu0 %1611, %v1487
        %v1613 = vpop.permute.xlu0 %1612
        %1614 = vset.pattern.permute.xlu0 0
        %1615 = vperm.xlu0 %1614, %v1488
        %v1616 = vpop.permute.xlu0 %1615
        %v1617 = vlaneseq
        %v1618 = vand.u32 %v1617, 127
        %v1619 = vlaneseq
        %v1620 = vshrl.u32 %v1619, 7
        %v1621 = vsub.s32 %v1618, %v1620
        %v1622 = vrot.slane %v1523, %v1621
        %v1623 = vadd.s32 %v1618, 4294967288
        %v1624 = vlaneseq
        %v1625 = vshrl.u32 %v1624, 7
        %v1626 = vsub.s32 %v1623, %v1625
        %v1627 = vrot.slane %v1526, %v1626
        %vm1628 = vcmask 130112
        %v1629 = vsel %vm1628, %v1627, %v1622
        %v1630 = vadd.s32 %v1618, 4294967280
        %v1631 = vlaneseq
        %v1632 = vshrl.u32 %v1631, 7
        %v1633 = vsub.s32 %v1630, %v1632
        %v1634 = vrot.slane %v1529, %v1633
        %vm1635 = vcmask 195712
        %v1636 = vsel %vm1635, %v1634, %v1629
        %v1637 = vadd.s32 %v1618, 4294967272
        %v1638 = vlaneseq
        %v1639 = vshrl.u32 %v1638, 7
        %v1640 = vsub.s32 %v1637, %v1639
        %v1641 = vrot.slane %v1532, %v1640
        %vm1642 = vcmask 261312
        %v1643 = vsel %vm1642, %v1641, %v1636
        %v1644 = vlaneseq
        %v1645 = vshrl.u32 %v1644, 7
        %v1646 = vsub.s32 %v1618, %v1645
        %v1647 = vrot.slane %v1535, %v1646
        %v1648 = vlaneseq
        %v1649 = vshrl.u32 %v1648, 7
        %v1650 = vsub.s32 %v1623, %v1649
        %v1651 = vrot.slane %v1538, %v1650
        %v1652 = vsel %vm1628, %v1651, %v1647
        %v1653 = vlaneseq
        %v1654 = vshrl.u32 %v1653, 7
        %v1655 = vsub.s32 %v1630, %v1654
        %v1656 = vrot.slane %v1541, %v1655
        %v1657 = vsel %vm1635, %v1656, %v1652
        %v1658 = vlaneseq
        %v1659 = vshrl.u32 %v1658, 7
        %v1660 = vsub.s32 %v1637, %v1659
        %v1661 = vrot.slane %v1544, %v1660
        %v1662 = vsel %vm1642, %v1661, %v1657
        %v1663 = vlaneseq
        %v1664 = vshrl.u32 %v1663, 7
        %v1665 = vsub.s32 %v1618, %v1664
        %v1666 = vrot.slane %v1547, %v1665
        %v1667 = vlaneseq
        %v1668 = vshrl.u32 %v1667, 7
        %v1669 = vsub.s32 %v1623, %v1668
        %v1670 = vrot.slane %v1550, %v1669
        %v1671 = vsel %vm1628, %v1670, %v1666
        %v1672 = vlaneseq
        %v1673 = vshrl.u32 %v1672, 7
        %v1674 = vsub.s32 %v1630, %v1673
        %v1675 = vrot.slane %v1553, %v1674
        %v1676 = vsel %vm1635, %v1675, %v1671
        %v1677 = vlaneseq
        %v1678 = vshrl.u32 %v1677, 7
        %v1679 = vsub.s32 %v1637, %v1678
        %v1680 = vrot.slane %v1556, %v1679
        %v1681 = vsel %vm1642, %v1680, %v1676
        %v1682 = vlaneseq
        %v1683 = vshrl.u32 %v1682, 7
        %v1684 = vsub.s32 %v1618, %v1683
        %v1685 = vrot.slane %v1559, %v1684
        %v1686 = vlaneseq
        %v1687 = vshrl.u32 %v1686, 7
        %v1688 = vsub.s32 %v1623, %v1687
        %v1689 = vrot.slane %v1562, %v1688
        %v1690 = vsel %vm1628, %v1689, %v1685
        %v1691 = vlaneseq
        %v1692 = vshrl.u32 %v1691, 7
        %v1693 = vsub.s32 %v1630, %v1692
        %v1694 = vrot.slane %v1565, %v1693
        %v1695 = vsel %vm1635, %v1694, %v1690
        %v1696 = vlaneseq
        %v1697 = vshrl.u32 %v1696, 7
        %v1698 = vsub.s32 %v1637, %v1697
        %v1699 = vrot.slane %v1568, %v1698
        %v1700 = vsel %vm1642, %v1699, %v1695
        %v1701 = vlaneseq
        %v1702 = vshrl.u32 %v1701, 7
        %v1703 = vsub.s32 %v1618, %v1702
        %v1704 = vrot.slane %v1571, %v1703
        %v1705 = vlaneseq
        %v1706 = vshrl.u32 %v1705, 7
        %v1707 = vsub.s32 %v1623, %v1706
        %v1708 = vrot.slane %v1574, %v1707
        %v1709 = vsel %vm1628, %v1708, %v1704
        %v1710 = vlaneseq
        %v1711 = vshrl.u32 %v1710, 7
        %v1712 = vsub.s32 %v1630, %v1711
        %v1713 = vrot.slane %v1577, %v1712
        %v1714 = vsel %vm1635, %v1713, %v1709
        %v1715 = vlaneseq
        %v1716 = vshrl.u32 %v1715, 7
        %v1717 = vsub.s32 %v1637, %v1716
        %v1718 = vrot.slane %v1580, %v1717
        %v1719 = vsel %vm1642, %v1718, %v1714
        %v1720 = vlaneseq
        %v1721 = vshrl.u32 %v1720, 7
        %v1722 = vsub.s32 %v1618, %v1721
        %v1723 = vrot.slane %v1583, %v1722
        %v1724 = vlaneseq
        %v1725 = vshrl.u32 %v1724, 7
        %v1726 = vsub.s32 %v1623, %v1725
        %v1727 = vrot.slane %v1586, %v1726
        %v1728 = vsel %vm1628, %v1727, %v1723
        %v1729 = vlaneseq
        %v1730 = vshrl.u32 %v1729, 7
        %v1731 = vsub.s32 %v1630, %v1730
        %v1732 = vrot.slane %v1589, %v1731
        %v1733 = vsel %vm1635, %v1732, %v1728
        %v1734 = vlaneseq
        %v1735 = vshrl.u32 %v1734, 7
        %v1736 = vsub.s32 %v1637, %v1735
        %v1737 = vrot.slane %v1592, %v1736
        %v1738 = vsel %vm1642, %v1737, %v1733
        %v1739 = vlaneseq
        %v1740 = vshrl.u32 %v1739, 7
        %v1741 = vsub.s32 %v1618, %v1740
        %v1742 = vrot.slane %v1595, %v1741
        %v1743 = vlaneseq
        %v1744 = vshrl.u32 %v1743, 7
        %v1745 = vsub.s32 %v1623, %v1744
        %v1746 = vrot.slane %v1598, %v1745
        %v1747 = vsel %vm1628, %v1746, %v1742
        %v1748 = vlaneseq
        %v1749 = vshrl.u32 %v1748, 7
        %v1750 = vsub.s32 %v1630, %v1749
        %v1751 = vrot.slane %v1601, %v1750
        %v1752 = vsel %vm1635, %v1751, %v1747
        %v1753 = vlaneseq
        %v1754 = vshrl.u32 %v1753, 7
        %v1755 = vsub.s32 %v1637, %v1754
        %v1756 = vrot.slane %v1604, %v1755
        %v1757 = vsel %vm1642, %v1756, %v1752
        %v1758 = vlaneseq
        %v1759 = vshrl.u32 %v1758, 7
        %v1760 = vsub.s32 %v1618, %v1759
        %v1761 = vrot.slane %v1607, %v1760
        %v1762 = vlaneseq
        %v1763 = vshrl.u32 %v1762, 7
        %v1764 = vsub.s32 %v1623, %v1763
        %v1765 = vrot.slane %v1610, %v1764
        %v1766 = vsel %vm1628, %v1765, %v1761
        %v1767 = vlaneseq
        %v1768 = vshrl.u32 %v1767, 7
        %v1769 = vsub.s32 %v1630, %v1768
        %v1770 = vrot.slane %v1613, %v1769
        %v1771 = vsel %vm1635, %v1770, %v1766
        %v1772 = vlaneseq
        %v1773 = vshrl.u32 %v1772, 7
        %v1774 = vsub.s32 %v1637, %v1773
        %v1775 = vrot.slane %v1616, %v1774
        %v1776 = vsel %vm1642, %v1775, %v1771
        %vm1777 = vcmask 1041409
        %v1778 = vsel %vm1777, %v1662, %v1643
        %vm1779 = vcmask 1042434
        %v1780 = vsel %vm1779, %v1681, %v1778
        %vm1781 = vcmask 1043459
        %v1782 = vsel %vm1781, %v1700, %v1780
        %vm1783 = vcmask 1044484
        %v1784 = vsel %vm1783, %v1719, %v1782
        %vm1785 = vcmask 1045509
        %v1786 = vsel %vm1785, %v1738, %v1784
        %vm1787 = vcmask 1046534
        %v1788 = vsel %vm1787, %v1757, %v1786
        %vm1789 = vcmask 1047559
        %v1790 = vsel %vm1789, %v1776, %v1788
        %v1792 = vadd.f32 %v613, %v1790
        %v1793 = vsel %vm317, %v1792, 0.0
        %1794 = vadd.xlane.f32.xlu0 %v1793
        %v1795 = vpop.xlane.xlu0 %1794
        %v1796 = vrcp.pop 32.0
        %v1797 = vmul.f32 %v1795, %v1796
        %v1798 = vsub.f32 %v1792, %v1797
        %v1799 = vmul.f32 %v1798, %v1798
        %v1800 = vsel %vm317, %v1799, 0.0
        %1801 = vadd.xlane.f32.xlu0 %v1800
        %v1802 = vpop.xlane.xlu0 %1801
        %v1803 = vmul.f32 %v1802, %v1796
        %v1804 = vadd.f32 %v1803, 1e-05
        %v1805 = vrsqrt.pop %v1804
        %v1806 = vmul.f32 %v1798, %v1805
        %v1807 = vmul.f32 %v1806, %v497
        %v1808 = vadd.f32 %v1807, %v504
        %v1809 = vmax.f32 %v1808, 0.0
        %1810 = vst.msk [vmem:[#allocation3] sm:$0xff] %vm317, %v1809
        %1811 = vst.msk [vmem:[%s297] sm:$0xff] %vm317, %v1809
        %v1812 = vld [vmem:[#allocation3] sm:$0xff]
        %v1813 = vld [vmem:[#allocation4] sm:$0xff]
        %v1814 = vld [vmem:[#allocation4 + $0x8] sm:$0xff]
        %v1815 = vld [vmem:[#allocation4 + $0x10] sm:$0xff]
        %v1816 = vld [vmem:[#allocation4 + $0x18] sm:$0xff]
        %v1817 = vld [vmem:[#allocation4 + $0x20] sm:$0xff]
        %v1818 = vld [vmem:[#allocation4 + $0x28] sm:$0xff]
        %v1819 = vld [vmem:[#allocation4 + $0x30] sm:$0xff]
        %v1820 = vld [vmem:[#allocation4 + $0x38] sm:$0xff]
        %v1821 = vld [vmem:[#allocation4 + $0x40] sm:$0xff]
        %v1822 = vld [vmem:[#allocation4 + $0x48] sm:$0xff]
        %v1823 = vld [vmem:[#allocation4 + $0x50] sm:$0xff]
        %v1824 = vld [vmem:[#allocation4 + $0x58] sm:$0xff]
        %v1825 = vld [vmem:[#allocation4 + $0x60] sm:$0xff]
        %v1826 = vld [vmem:[#allocation4 + $0x68] sm:$0xff]
        %v1827 = vld [vmem:[#allocation4 + $0x70] sm:$0xff]
        %v1828 = vld [vmem:[#allocation4 + $0x78] sm:$0xff]
        %v1829 = vld [vmem:[#allocation4 + $0x80] sm:$0xff]
        %v1830 = vld [vmem:[#allocation4 + $0x88] sm:$0xff]
        %v1831 = vld [vmem:[#allocation4 + $0x90] sm:$0xff]
        %v1832 = vld [vmem:[#allocation4 + $0x98] sm:$0xff]
        %v1833 = vld [vmem:[#allocation4 + $0xa0] sm:$0xff]
        %v1834 = vld [vmem:[#allocation4 + $0xa8] sm:$0xff]
        %v1835 = vld [vmem:[#allocation4 + $0xb0] sm:$0xff]
        %v1836 = vld [vmem:[#allocation4 + $0xb8] sm:$0xff]
        %v1837 = vld [vmem:[#allocation4 + $0xc0] sm:$0xff]
        %v1838 = vld [vmem:[#allocation4 + $0xc8] sm:$0xff]
        %v1839 = vld [vmem:[#allocation4 + $0xd0] sm:$0xff]
        %v1840 = vld [vmem:[#allocation4 + $0xd8] sm:$0xff]
        %v1841 = vld [vmem:[#allocation4 + $0xe0] sm:$0xff]
        %v1842 = vld [vmem:[#allocation4 + $0xe8] sm:$0xff]
        %v1843 = vld [vmem:[#allocation4 + $0xf0] sm:$0xff]
        %v1844 = vld [vmem:[#allocation4 + $0xf8] sm:$0xff]
        %s1845 = scalar_lea.vmem [#allocation2], 8
        %v1846 = vld [vmem:[%s1845] sm:$0xff]
        %v1848 = vsel %vm317, %v1812, 0
        %1850 = vmatprep.subr.mxu0 0.0
        %1851 = vmatpush1.msra.mxu0 0.0
        %1852 = vmatprep.subr.mxu0 0.0
        %1853 = vmatpush1.msra.mxu0 0.0
        %1854 = vmatprep.subr.mxu0 0.0
        %1855 = vmatpush1.msra.mxu0 0.0
        %1856 = vmatprep.subr.mxu0 0.0
        %1857 = vmatpush1.msra.mxu0 0.0
        %1858 = vmatprep.subr.mxu0 0.0
        %1859 = vmatpush1.msra.mxu0 0.0
        %1860 = vmatprep.subr.mxu0 0.0
        %1861 = vmatpush1.msra.mxu0 0.0
        %1862 = vmatprep.subr.mxu0 0.0
        %1863 = vmatpush1.msra.mxu0 0.0
        %1864 = vmatprep.subr.mxu0 0.0
        %1865 = vmatpush1.msra.mxu0 0.0
        %1866 = vmatprep.subr.mxu0 0.0
        %1867 = vmatpush1.msra.mxu0 0.0
        %1868 = vmatprep.subr.mxu0 0.0
        %1869 = vmatpush1.msra.mxu0 0.0
        %1870 = vmatprep.subr.mxu0 0.0
        %1871 = vmatpush1.msra.mxu0 0.0
        %1872 = vmatprep.subr.mxu0 0.0
        %1873 = vmatpush1.msra.mxu0 0.0
        %1874 = vmatprep.subr.mxu0 0.0
        %1875 = vmatpush1.msra.mxu0 %v491
        %1876 = vmatprep.subr.mxu0 0.0
        %1877 = vmatpush1.msra.mxu0 %v490
        %1878 = vmatprep.subr.mxu0 0.0
        %1879 = vmatpush1.msra.mxu0 %v489
        %1880 = vmatprep.subr.mxu0 0.0
        %1881 = vmatpush1.msra.mxu0 %v488
        %1882 = vmatprep.subr.mxu0 0.0
        %1883 = vmatpush2.msra.mxu0 0.0
        %1884 = vmatprep.subr.mxu0 0.0
        %1885 = vmatpush2.msra.mxu0 0.0
        %1886 = vmatprep.subr.mxu0 0.0
        %1887 = vmatpush2.msra.mxu0 0.0
        %1888 = vmatprep.subr.mxu0 0.0
        %1889 = vmatpush2.msra.mxu0 0.0
        %1890 = vmatprep.subr.mxu0 0.0
        %1891 = vmatpush2.msra.mxu0 0.0
        %1892 = vmatprep.subr.mxu0 0.0
        %1893 = vmatpush2.msra.mxu0 0.0
        %1894 = vmatprep.subr.mxu0 0.0
        %1895 = vmatpush2.msra.mxu0 0.0
        %1896 = vmatprep.subr.mxu0 0.0
        %1897 = vmatpush2.msra.mxu0 0.0
        %1898 = vmatprep.subr.mxu0 0.0
        %1899 = vmatpush2.msra.mxu0 0.0
        %1900 = vmatprep.subr.mxu0 0.0
        %1901 = vmatpush2.msra.mxu0 0.0
        %1902 = vmatprep.subr.mxu0 0.0
        %1903 = vmatpush2.msra.mxu0 0.0
        %1904 = vmatprep.subr.mxu0 0.0
        %1905 = vmatpush2.msra.mxu0 0.0
        %1906 = vmatprep.subr.mxu0 0.0
        %1907 = vmatpush2.msra.mxu0 0.0
        %1908 = vmatprep.subr.mxu0 0.0
        %1909 = vmatpush2.msra.mxu0 0.0
        %1910 = vmatprep.subr.mxu0 0.0
        %1911 = vmatpush2.msra.mxu0 0.0
        %1912 = vmatprep.subr.mxu0 0.0
        %1913 = vmatpush2.msra.mxu0 0.0
        %1914 = vmatprep.mubr.f32.mxu0 0.0
        %1915 = vmatmul.mubr.f32.gmra.mxu0 %v1848
        %v1916 = vpop.f32.mrf.mxu0
        %v1917 = vadd.f32 0.0, %v1916
        %v1918 = vpop.f32.mrf.mxu0
        %1919 = vdwg.mxu0
        %v1920 = vadd.f32 %v1846, %v1917
        %v1921 = vlaneseq
        %v1922 = vshrl.u32 %v1921, 7
        %v1923 = vsub.s32 0, %v1922
        %v1924 = vrot.slane %v1812, %v1923
        %1926 = vbcast.lane.b32.xlu0 %v1924, 256
        %v1927 = vpop.permute.xlu0 %1926
        %s1929 = sor.u32 256, 8
        %1930 = vbcast.lane.b32.xlu0 %v1924, %s1929
        %v1931 = vpop.permute.xlu0 %1930
        %s1933 = sor.u32 256, 16
        %1934 = vbcast.lane.b32.xlu0 %v1924, %s1933
        %v1935 = vpop.permute.xlu0 %1934
        %s1937 = sor.u32 256, 24
        %1938 = vbcast.lane.b32.xlu0 %v1924, %s1937
        %v1939 = vpop.permute.xlu0 %1938
        %v1940 = vlaneseq
        %v1941 = vshrl.u32 %v1940, 7
        %v1942 = vsub.s32 1, %v1941
        %v1943 = vrot.slane %v1812, %v1942
        %1945 = vbcast.lane.b32.xlu0 %v1943, 256
        %v1946 = vpop.permute.xlu0 %1945
        %s1948 = sor.u32 256, 8
        %1949 = vbcast.lane.b32.xlu0 %v1943, %s1948
        %v1950 = vpop.permute.xlu0 %1949
        %s1952 = sor.u32 256, 16
        %1953 = vbcast.lane.b32.xlu0 %v1943, %s1952
        %v1954 = vpop.permute.xlu0 %1953
        %s1956 = sor.u32 256, 24
        %1957 = vbcast.lane.b32.xlu0 %v1943, %s1956
        %v1958 = vpop.permute.xlu0 %1957
        %v1959 = vlaneseq
        %v1960 = vshrl.u32 %v1959, 7
        %v1961 = vsub.s32 2, %v1960
        %v1962 = vrot.slane %v1812, %v1961
        %1964 = vbcast.lane.b32.xlu0 %v1962, 256
        %v1965 = vpop.permute.xlu0 %1964
        %s1967 = sor.u32 256, 8
        %1968 = vbcast.lane.b32.xlu0 %v1962, %s1967
        %v1969 = vpop.permute.xlu0 %1968
        %s1971 = sor.u32 256, 16
        %1972 = vbcast.lane.b32.xlu0 %v1962, %s1971
        %v1973 = vpop.permute.xlu0 %1972
        %s1975 = sor.u32 256, 24
        %1976 = vbcast.lane.b32.xlu0 %v1962, %s1975
        %v1977 = vpop.permute.xlu0 %1976
        %v1978 = vlaneseq
        %v1979 = vshrl.u32 %v1978, 7
        %v1980 = vsub.s32 3, %v1979
        %v1981 = vrot.slane %v1812, %v1980
        %1983 = vbcast.lane.b32.xlu0 %v1981, 256
        %v1984 = vpop.permute.xlu0 %1983
        %s1986 = sor.u32 256, 8
        %1987 = vbcast.lane.b32.xlu0 %v1981, %s1986
        %v1988 = vpop.permute.xlu0 %1987
        %s1990 = sor.u32 256, 16
        %1991 = vbcast.lane.b32.xlu0 %v1981, %s1990
        %v1992 = vpop.permute.xlu0 %1991
        %s1994 = sor.u32 256, 24
        %1995 = vbcast.lane.b32.xlu0 %v1981, %s1994
        %v1996 = vpop.permute.xlu0 %1995
        %v1997 = vlaneseq
        %v1998 = vshrl.u32 %v1997, 7
        %v1999 = vsub.s32 4, %v1998
        %v2000 = vrot.slane %v1812, %v1999
        %2002 = vbcast.lane.b32.xlu0 %v2000, 256
        %v2003 = vpop.permute.xlu0 %2002
        %s2005 = sor.u32 256, 8
        %2006 = vbcast.lane.b32.xlu0 %v2000, %s2005
        %v2007 = vpop.permute.xlu0 %2006
        %s2009 = sor.u32 256, 16
        %2010 = vbcast.lane.b32.xlu0 %v2000, %s2009
        %v2011 = vpop.permute.xlu0 %2010
        %s2013 = sor.u32 256, 24
        %2014 = vbcast.lane.b32.xlu0 %v2000, %s2013
        %v2015 = vpop.permute.xlu0 %2014
        %v2016 = vlaneseq
        %v2017 = vshrl.u32 %v2016, 7
        %v2018 = vsub.s32 5, %v2017
        %v2019 = vrot.slane %v1812, %v2018
        %2021 = vbcast.lane.b32.xlu0 %v2019, 256
        %v2022 = vpop.permute.xlu0 %2021
        %s2024 = sor.u32 256, 8
        %2025 = vbcast.lane.b32.xlu0 %v2019, %s2024
        %v2026 = vpop.permute.xlu0 %2025
        %s2028 = sor.u32 256, 16
        %2029 = vbcast.lane.b32.xlu0 %v2019, %s2028
        %v2030 = vpop.permute.xlu0 %2029
        %s2032 = sor.u32 256, 24
        %2033 = vbcast.lane.b32.xlu0 %v2019, %s2032
        %v2034 = vpop.permute.xlu0 %2033
        %v2035 = vlaneseq
        %v2036 = vshrl.u32 %v2035, 7
        %v2037 = vsub.s32 6, %v2036
        %v2038 = vrot.slane %v1812, %v2037
        %2040 = vbcast.lane.b32.xlu0 %v2038, 256
        %v2041 = vpop.permute.xlu0 %2040
        %s2043 = sor.u32 256, 8
        %2044 = vbcast.lane.b32.xlu0 %v2038, %s2043
        %v2045 = vpop.permute.xlu0 %2044
        %s2047 = sor.u32 256, 16
        %2048 = vbcast.lane.b32.xlu0 %v2038, %s2047
        %v2049 = vpop.permute.xlu0 %2048
        %s2051 = sor.u32 256, 24
        %2052 = vbcast.lane.b32.xlu0 %v2038, %s2051
        %v2053 = vpop.permute.xlu0 %2052
        %v2054 = vlaneseq
        %v2055 = vshrl.u32 %v2054, 7
        %v2056 = vsub.s32 7, %v2055
        %v2057 = vrot.slane %v1812, %v2056
        %2059 = vbcast.lane.b32.xlu0 %v2057, 256
        %v2060 = vpop.permute.xlu0 %2059
        %s2062 = sor.u32 256, 8
        %2063 = vbcast.lane.b32.xlu0 %v2057, %s2062
        %v2064 = vpop.permute.xlu0 %2063
        %s2066 = sor.u32 256, 16
        %2067 = vbcast.lane.b32.xlu0 %v2057, %s2066
        %v2068 = vpop.permute.xlu0 %2067
        %s2070 = sor.u32 256, 24
        %2071 = vbcast.lane.b32.xlu0 %v2057, %s2070
        %v2072 = vpop.permute.xlu0 %2071
        %v2073 = vcombine.high %v1812, %v1812
        %v2075 = vunpack.c.l.s4 1966171168
        %v2076 = vunpack.c.0.s8 %v2075
        %v2077 = vlaneseq
        %v2078 = vshrl.u32 %v2077, 7
        %v2079 = vsub.s32 %v2076, %v2078
        %v2080 = vrot.slane %v1812, %v2079
        %v2082 = vunpack.c.l.s4 1966171168
        %v2083 = vunpack.c.0.s8 %v2082
        %v2084 = vlaneseq
        %v2085 = vshrl.u32 %v2084, 7
        %v2086 = vsub.s32 %v2083, %v2085
        %v2087 = vrot.slane %v2073, %v2086
        %v2088 = vcombine.high %v2080, %v2080
        %v2089 = vcombine.high %v2087, %v2087
        %v2091 = vunpack.c.l.s4 1966171168
        %v2092 = vunpack.c.0.s8 %v2091
        %v2093 = vlaneseq
        %v2094 = vshrl.u32 %v2093, 7
        %v2095 = vsub.s32 %v2092, %v2094
        %v2096 = vrot.slane %v2080, %v2095
        %v2098 = vunpack.c.l.s4 1966171168
        %v2099 = vunpack.c.0.s8 %v2098
        %v2100 = vlaneseq
        %v2101 = vshrl.u32 %v2100, 7
        %v2102 = vsub.s32 %v2099, %v2101
        %v2103 = vrot.slane %v2087, %v2102
        %v2105 = vunpack.c.l.s4 1966171168
        %v2106 = vunpack.c.0.s8 %v2105
        %v2107 = vlaneseq
        %v2108 = vshrl.u32 %v2107, 7
        %v2109 = vsub.s32 %v2106, %v2108
        %v2110 = vrot.slane %v2088, %v2109
        %v2112 = vunpack.c.l.s4 1966171168
        %v2113 = vunpack.c.0.s8 %v2112
        %v2114 = vlaneseq
        %v2115 = vshrl.u32 %v2114, 7
        %v2116 = vsub.s32 %v2113, %v2115
        %v2117 = vrot.slane %v2089, %v2116
        %v2118 = vcombine.high %v2096, %v2096
        %v2119 = vcombine.high %v2103, %v2103
        %v2120 = vcombine.high %v2110, %v2110
        %v2121 = vcombine.high %v2117, %v2117
        %v2122 = vlaneseq
        %v2123 = vshrl.u32 %v2122, 7
        %v2124 = vsub.s32 0, %v2123
        %v2125 = vrot.slane %v2096, %v2124
        %v2126 = vlaneseq
        %v2127 = vshrl.u32 %v2126, 7
        %v2128 = vsub.s32 0, %v2127
        %v2129 = vrot.slane %v2110, %v2128
        %v2130 = vlaneseq
        %v2131 = vshrl.u32 %v2130, 7
        %v2132 = vsub.s32 0, %v2131
        %v2133 = vrot.slane %v2118, %v2132
        %v2134 = vlaneseq
        %v2135 = vshrl.u32 %v2134, 7
        %v2136 = vsub.s32 0, %v2135
        %v2137 = vrot.slane %v2120, %v2136
        %v2138 = vlaneseq
        %v2139 = vshrl.u32 %v2138, 7
        %v2140 = vsub.s32 0, %v2139
        %v2141 = vrot.slane %v2103, %v2140
        %v2142 = vlaneseq
        %v2143 = vshrl.u32 %v2142, 7
        %v2144 = vsub.s32 0, %v2143
        %v2145 = vrot.slane %v2117, %v2144
        %v2146 = vlaneseq
        %v2147 = vshrl.u32 %v2146, 7
        %v2148 = vsub.s32 0, %v2147
        %v2149 = vrot.slane %v2119, %v2148
        %v2150 = vlaneseq
        %v2151 = vshrl.u32 %v2150, 7
        %v2152 = vsub.s32 0, %v2151
        %v2153 = vrot.slane %v2121, %v2152
        %v2162 = vmul.f32 %v1927, %v2125
        %v2163 = vmul.f32 %v1931, %v2125
        %v2164 = vmul.f32 %v1935, %v2125
        %v2165 = vmul.f32 %v1939, %v2125
        %v2166 = vmul.f32 %v1946, %v2129
        %v2167 = vmul.f32 %v1950, %v2129
        %v2168 = vmul.f32 %v1954, %v2129
        %v2169 = vmul.f32 %v1958, %v2129
        %v2170 = vmul.f32 %v1965, %v2133
        %v2171 = vmul.f32 %v1969, %v2133
        %v2172 = vmul.f32 %v1973, %v2133
        %v2173 = vmul.f32 %v1977, %v2133
        %v2174 = vmul.f32 %v1984, %v2137
        %v2175 = vmul.f32 %v1988, %v2137
        %v2176 = vmul.f32 %v1992, %v2137
        %v2177 = vmul.f32 %v1996, %v2137
        %v2178 = vmul.f32 %v2003, %v2141
        %v2179 = vmul.f32 %v2007, %v2141
        %v2180 = vmul.f32 %v2011, %v2141
        %v2181 = vmul.f32 %v2015, %v2141
        %v2182 = vmul.f32 %v2022, %v2145
        %v2183 = vmul.f32 %v2026, %v2145
        %v2184 = vmul.f32 %v2030, %v2145
        %v2185 = vmul.f32 %v2034, %v2145
        %v2186 = vmul.f32 %v2041, %v2149
        %v2187 = vmul.f32 %v2045, %v2149
        %v2188 = vmul.f32 %v2049, %v2149
        %v2189 = vmul.f32 %v2053, %v2149
        %v2190 = vmul.f32 %v2060, %v2153
        %v2191 = vmul.f32 %v2064, %v2153
        %v2192 = vmul.f32 %v2068, %v2153
        %v2193 = vmul.f32 %v2072, %v2153
        %v2194 = vmul.f32 %v1813, 0.9
        %v2195 = vmul.f32 %v1814, 0.9
        %v2196 = vmul.f32 %v1815, 0.9
        %v2197 = vmul.f32 %v1816, 0.9
        %v2198 = vmul.f32 %v1817, 0.9
        %v2199 = vmul.f32 %v1818, 0.9
        %v2200 = vmul.f32 %v1819, 0.9
        %v2201 = vmul.f32 %v1820, 0.9
        %v2202 = vmul.f32 %v1821, 0.9
        %v2203 = vmul.f32 %v1822, 0.9
        %v2204 = vmul.f32 %v1823, 0.9
        %v2205 = vmul.f32 %v1824, 0.9
        %v2206 = vmul.f32 %v1825, 0.9
        %v2207 = vmul.f32 %v1826, 0.9
        %v2208 = vmul.f32 %v1827, 0.9
        %v2209 = vmul.f32 %v1828, 0.9
        %v2210 = vmul.f32 %v1829, 0.9
        %v2211 = vmul.f32 %v1830, 0.9
        %v2212 = vmul.f32 %v1831, 0.9
        %v2213 = vmul.f32 %v1832, 0.9
        %v2214 = vmul.f32 %v1833, 0.9
        %v2215 = vmul.f32 %v1834, 0.9
        %v2216 = vmul.f32 %v1835, 0.9
        %v2217 = vmul.f32 %v1836, 0.9
        %v2218 = vmul.f32 %v1837, 0.9
        %v2219 = vmul.f32 %v1838, 0.9
        %v2220 = vmul.f32 %v1839, 0.9
        %v2221 = vmul.f32 %v1840, 0.9
        %v2222 = vmul.f32 %v1841, 0.9
        %v2223 = vmul.f32 %v1842, 0.9
        %v2224 = vmul.f32 %v1843, 0.9
        %v2225 = vmul.f32 %v1844, 0.9
        %v2226 = vmul.f32 %v2162, 0.5
        %v2227 = vmul.f32 %v2163, 0.5
        %v2228 = vmul.f32 %v2164, 0.5
        %v2229 = vmul.f32 %v2165, 0.5
        %v2230 = vmul.f32 %v2166, 0.5
        %v2231 = vmul.f32 %v2167, 0.5
        %v2232 = vmul.f32 %v2168, 0.5
        %v2233 = vmul.f32 %v2169, 0.5
        %v2234 = vmul.f32 %v2170, 0.5
        %v2235 = vmul.f32 %v2171, 0.5
        %v2236 = vmul.f32 %v2172, 0.5
        %v2237 = vmul.f32 %v2173, 0.5
        %v2238 = vmul.f32 %v2174, 0.5
        %v2239 = vmul.f32 %v2175, 0.5
        %v2240 = vmul.f32 %v2176, 0.5
        %v2241 = vmul.f32 %v2177, 0.5
        %v2242 = vmul.f32 %v2178, 0.5
        %v2243 = vmul.f32 %v2179, 0.5
        %v2244 = vmul.f32 %v2180, 0.5
        %v2245 = vmul.f32 %v2181, 0.5
        %v2246 = vmul.f32 %v2182, 0.5
        %v2247 = vmul.f32 %v2183, 0.5
        %v2248 = vmul.f32 %v2184, 0.5
        %v2249 = vmul.f32 %v2185, 0.5
        %v2250 = vmul.f32 %v2186, 0.5
        %v2251 = vmul.f32 %v2187, 0.5
        %v2252 = vmul.f32 %v2188, 0.5
        %v2253 = vmul.f32 %v2189, 0.5
        %v2254 = vmul.f32 %v2190, 0.5
        %v2255 = vmul.f32 %v2191, 0.5
        %v2256 = vmul.f32 %v2192, 0.5
        %v2257 = vmul.f32 %v2193, 0.5
        %v2258 = vadd.f32 %v2194, %v2226
        %v2259 = vadd.f32 %v2195, %v2227
        %v2260 = vadd.f32 %v2196, %v2228
        %v2261 = vadd.f32 %v2197, %v2229
        %v2262 = vadd.f32 %v2198, %v2230
        %v2263 = vadd.f32 %v2199, %v2231
        %v2264 = vadd.f32 %v2200, %v2232
        %v2265 = vadd.f32 %v2201, %v2233
        %v2266 = vadd.f32 %v2202, %v2234
        %v2267 = vadd.f32 %v2203, %v2235
        %v2268 = vadd.f32 %v2204, %v2236
        %v2269 = vadd.f32 %v2205, %v2237
        %v2270 = vadd.f32 %v2206, %v2238
        %v2271 = vadd.f32 %v2207, %v2239
        %v2272 = vadd.f32 %v2208, %v2240
        %v2273 = vadd.f32 %v2209, %v2241
        %v2274 = vadd.f32 %v2210, %v2242
        %v2275 = vadd.f32 %v2211, %v2243
        %v2276 = vadd.f32 %v2212, %v2244
        %v2277 = vadd.f32 %v2213, %v2245
        %v2278 = vadd.f32 %v2214, %v2246
        %v2279 = vadd.f32 %v2215, %v2247
        %v2280 = vadd.f32 %v2216, %v2248
        %v2281 = vadd.f32 %v2217, %v2249
        %v2282 = vadd.f32 %v2218, %v2250
        %v2283 = vadd.f32 %v2219, %v2251
        %v2284 = vadd.f32 %v2220, %v2252
        %v2285 = vadd.f32 %v2221, %v2253
        %v2286 = vadd.f32 %v2222, %v2254
        %v2287 = vadd.f32 %v2223, %v2255
        %v2288 = vadd.f32 %v2224, %v2256
        %v2289 = vadd.f32 %v2225, %v2257
        %2290 = vst.msk [vmem:[#allocation4] sm:$0xff] %vm317, %v2258
        %2291 = vst.msk [vmem:[#allocation4 + $0x8] sm:$0xff] %vm317, %v2259
        %2292 = vst.msk [vmem:[#allocation4 + $0x10] sm:$0xff] %vm317, %v2260
        %2293 = vst.msk [vmem:[#allocation4 + $0x18] sm:$0xff] %vm317, %v2261
        %2294 = vst.msk [vmem:[#allocation4 + $0x20] sm:$0xff] %vm317, %v2262
        %2295 = vst.msk [vmem:[#allocation4 + $0x28] sm:$0xff] %vm317, %v2263
        %2296 = vst.msk [vmem:[#allocation4 + $0x30] sm:$0xff] %vm317, %v2264
        %2297 = vst.msk [vmem:[#allocation4 + $0x38] sm:$0xff] %vm317, %v2265
        %2298 = vst.msk [vmem:[#allocation4 + $0x40] sm:$0xff] %vm317, %v2266
        %2299 = vst.msk [vmem:[#allocation4 + $0x48] sm:$0xff] %vm317, %v2267
        %2300 = vst.msk [vmem:[#allocation4 + $0x50] sm:$0xff] %vm317, %v2268
        %2301 = vst.msk [vmem:[#allocation4 + $0x58] sm:$0xff] %vm317, %v2269
        %2302 = vst.msk [vmem:[#allocation4 + $0x60] sm:$0xff] %vm317, %v2270
        %2303 = vst.msk [vmem:[#allocation4 + $0x68] sm:$0xff] %vm317, %v2271
        %2304 = vst.msk [vmem:[#allocation4 + $0x70] sm:$0xff] %vm317, %v2272
        %2305 = vst.msk [vmem:[#allocation4 + $0x78] sm:$0xff] %vm317, %v2273
        %2306 = vst.msk [vmem:[#allocation4 + $0x80] sm:$0xff] %vm317, %v2274
        %2307 = vst.msk [vmem:[#allocation4 + $0x88] sm:$0xff] %vm317, %v2275
        %2308 = vst.msk [vmem:[#allocation4 + $0x90] sm:$0xff] %vm317, %v2276
        %2309 = vst.msk [vmem:[#allocation4 + $0x98] sm:$0xff] %vm317, %v2277
        %2310 = vst.msk [vmem:[#allocation4 + $0xa0] sm:$0xff] %vm317, %v2278
        %2311 = vst.msk [vmem:[#allocation4 + $0xa8] sm:$0xff] %vm317, %v2279
        %2312 = vst.msk [vmem:[#allocation4 + $0xb0] sm:$0xff] %vm317, %v2280
        %2313 = vst.msk [vmem:[#allocation4 + $0xb8] sm:$0xff] %vm317, %v2281
        %2314 = vst.msk [vmem:[#allocation4 + $0xc0] sm:$0xff] %vm317, %v2282
        %2315 = vst.msk [vmem:[#allocation4 + $0xc8] sm:$0xff] %vm317, %v2283
        %2316 = vst.msk [vmem:[#allocation4 + $0xd0] sm:$0xff] %vm317, %v2284
        %2317 = vst.msk [vmem:[#allocation4 + $0xd8] sm:$0xff] %vm317, %v2285
        %2318 = vst.msk [vmem:[#allocation4 + $0xe0] sm:$0xff] %vm317, %v2286
        %2319 = vst.msk [vmem:[#allocation4 + $0xe8] sm:$0xff] %vm317, %v2287
        %2320 = vst.msk [vmem:[#allocation4 + $0xf0] sm:$0xff] %vm317, %v2288
        %2321 = vst.msk [vmem:[#allocation4 + $0xf8] sm:$0xff] %vm317, %v2289
        %v2322 = vmax.f32 %v1920, 0.0
        %v2324 = vcombine.high %v2322, %v2322
        %v2326 = vunpack.c.l.s4 1966171168
        %v2327 = vunpack.c.0.s8 %v2326
        %v2328 = vlaneseq
        %v2329 = vshrl.u32 %v2328, 7
        %v2330 = vsub.s32 %v2327, %v2329
        %v2331 = vrot.slane %v2322, %v2330
        %v2333 = vunpack.c.l.s4 1966171168
        %v2334 = vunpack.c.0.s8 %v2333
        %v2335 = vlaneseq
        %v2336 = vshrl.u32 %v2335, 7
        %v2337 = vsub.s32 %v2334, %v2336
        %v2338 = vrot.slane %v2324, %v2337
        %v2339 = vcombine.high %v2331, %v2331
        %v2340 = vcombine.high %v2338, %v2338
        %v2342 = vunpack.c.l.s4 1966171168
        %v2343 = vunpack.c.0.s8 %v2342
        %v2344 = vlaneseq
        %v2345 = vshrl.u32 %v2344, 7
        %v2346 = vsub.s32 %v2343, %v2345
        %v2347 = vrot.slane %v2331, %v2346
        %v2349 = vunpack.c.l.s4 1966171168
        %v2350 = vunpack.c.0.s8 %v2349
        %v2351 = vlaneseq
        %v2352 = vshrl.u32 %v2351, 7
        %v2353 = vsub.s32 %v2350, %v2352
        %v2354 = vrot.slane %v2338, %v2353
        %v2356 = vunpack.c.l.s4 1966171168
        %v2357 = vunpack.c.0.s8 %v2356
        %v2358 = vlaneseq
        %v2359 = vshrl.u32 %v2358, 7
        %v2360 = vsub.s32 %v2357, %v2359
        %v2361 = vrot.slane %v2339, %v2360
        %v2363 = vunpack.c.l.s4 1966171168
        %v2364 = vunpack.c.0.s8 %v2363
        %v2365 = vlaneseq
        %v2366 = vshrl.u32 %v2365, 7
        %v2367 = vsub.s32 %v2364, %v2366
        %v2368 = vrot.slane %v2340, %v2367
        %v2369 = vcombine.high %v2347, %v2347
        %v2370 = vcombine.high %v2354, %v2354
        %v2371 = vcombine.high %v2361, %v2361
        %v2372 = vcombine.high %v2368, %v2368
        %v2373 = vlaneseq
        %v2374 = vshrl.u32 %v2373, 7
        %v2375 = vsub.s32 0, %v2374
        %v2376 = vrot.slane %v2347, %v2375
        %v2377 = vlaneseq
        %v2378 = vshrl.u32 %v2377, 7
        %v2379 = vsub.s32 0, %v2378
        %v2380 = vrot.slane %v2361, %v2379
        %v2381 = vlaneseq
        %v2382 = vshrl.u32 %v2381, 7
        %v2383 = vsub.s32 0, %v2382
        %v2384 = vrot.slane %v2369, %v2383
        %v2385 = vlaneseq
        %v2386 = vshrl.u32 %v2385, 7
        %v2387 = vsub.s32 0, %v2386
        %v2388 = vrot.slane %v2371, %v2387
        %v2389 = vlaneseq
        %v2390 = vshrl.u32 %v2389, 7
        %v2391 = vsub.s32 0, %v2390
        %v2392 = vrot.slane %v2354, %v2391
        %v2393 = vlaneseq
        %v2394 = vshrl.u32 %v2393, 7
        %v2395 = vsub.s32 0, %v2394
        %v2396 = vrot.slane %v2368, %v2395
        %v2397 = vlaneseq
        %v2398 = vshrl.u32 %v2397, 7
        %v2399 = vsub.s32 0, %v2398
        %v2400 = vrot.slane %v2370, %v2399
        %v2401 = vlaneseq
        %v2402 = vshrl.u32 %v2401, 7
        %v2403 = vsub.s32 0, %v2402
        %v2404 = vrot.slane %v2372, %v2403
        %v2413 = vmul.f32 %v1813, %v2376
        %v2414 = vmul.f32 %v1814, %v2376
        %v2415 = vmul.f32 %v1815, %v2376
        %v2416 = vmul.f32 %v1816, %v2376
        %v2417 = vmul.f32 %v1817, %v2380
        %v2418 = vmul.f32 %v1818, %v2380
        %v2419 = vmul.f32 %v1819, %v2380
        %v2420 = vmul.f32 %v1820, %v2380
        %v2421 = vmul.f32 %v1821, %v2384
        %v2422 = vmul.f32 %v1822, %v2384
        %v2423 = vmul.f32 %v1823, %v2384
        %v2424 = vmul.f32 %v1824, %v2384
        %v2425 = vmul.f32 %v1825, %v2388
        %v2426 = vmul.f32 %v1826, %v2388
        %v2427 = vmul.f32 %v1827, %v2388
        %v2428 = vmul.f32 %v1828, %v2388
        %v2429 = vmul.f32 %v1829, %v2392
        %v2430 = vmul.f32 %v1830, %v2392
        %v2431 = vmul.f32 %v1831, %v2392
        %v2432 = vmul.f32 %v1832, %v2392
        %v2433 = vmul.f32 %v1833, %v2396
        %v2434 = vmul.f32 %v1834, %v2396
        %v2435 = vmul.f32 %v1835, %v2396
        %v2436 = vmul.f32 %v1836, %v2396
        %v2437 = vmul.f32 %v1837, %v2400
        %v2438 = vmul.f32 %v1838, %v2400
        %v2439 = vmul.f32 %v1839, %v2400
        %v2440 = vmul.f32 %v1840, %v2400
        %v2441 = vmul.f32 %v1841, %v2404
        %v2442 = vmul.f32 %v1842, %v2404
        %v2443 = vmul.f32 %v1843, %v2404
        %v2444 = vmul.f32 %v1844, %v2404
        %v2445 = vsel %vm317, %v2413, 0.0
        %2446 = vadd.xlane.f32.xlu0 %v2445
        %v2447 = vpop.xlane.xlu0 %2446
        %v2448 = vsel %vm317, %v2414, 0.0
        %2449 = vadd.xlane.f32.xlu0 %v2448
        %v2450 = vpop.xlane.xlu0 %2449
        %v2451 = vsel %vm317, %v2415, 0.0
        %2452 = vadd.xlane.f32.xlu0 %v2451
        %v2453 = vpop.xlane.xlu0 %2452
        %v2454 = vsel %vm317, %v2416, 0.0
        %2455 = vadd.xlane.f32.xlu0 %v2454
        %v2456 = vpop.xlane.xlu0 %2455
        %v2457 = vsel %vm317, %v2417, 0.0
        %2458 = vadd.xlane.f32.xlu0 %v2457
        %v2459 = vpop.xlane.xlu0 %2458
        %v2460 = vsel %vm317, %v2418, 0.0
        %2461 = vadd.xlane.f32.xlu0 %v2460
        %v2462 = vpop.xlane.xlu0 %2461
        %v2463 = vsel %vm317, %v2419, 0.0
        %2464 = vadd.xlane.f32.xlu0 %v2463
        %v2465 = vpop.xlane.xlu0 %2464
        %v2466 = vsel %vm317, %v2420, 0.0
        %2467 = vadd.xlane.f32.xlu0 %v2466
        %v2468 = vpop.xlane.xlu0 %2467
        %v2469 = vsel %vm317, %v2421, 0.0
        %2470 = vadd.xlane.f32.xlu0 %v2469
        %v2471 = vpop.xlane.xlu0 %2470
        %v2472 = vsel %vm317, %v2422, 0.0
        %2473 = vadd.xlane.f32.xlu0 %v2472
        %v2474 = vpop.xlane.xlu0 %2473
        %v2475 = vsel %vm317, %v2423, 0.0
        %2476 = vadd.xlane.f32.xlu0 %v2475
        %v2477 = vpop.xlane.xlu0 %2476
        %v2478 = vsel %vm317, %v2424, 0.0
        %2479 = vadd.xlane.f32.xlu0 %v2478
        %v2480 = vpop.xlane.xlu0 %2479
        %v2481 = vsel %vm317, %v2425, 0.0
        %2482 = vadd.xlane.f32.xlu0 %v2481
        %v2483 = vpop.xlane.xlu0 %2482
        %v2484 = vsel %vm317, %v2426, 0.0
        %2485 = vadd.xlane.f32.xlu0 %v2484
        %v2486 = vpop.xlane.xlu0 %2485
        %v2487 = vsel %vm317, %v2427, 0.0
        %2488 = vadd.xlane.f32.xlu0 %v2487
        %v2489 = vpop.xlane.xlu0 %2488
        %v2490 = vsel %vm317, %v2428, 0.0
        %2491 = vadd.xlane.f32.xlu0 %v2490
        %v2492 = vpop.xlane.xlu0 %2491
        %v2493 = vsel %vm317, %v2429, 0.0
        %2494 = vadd.xlane.f32.xlu0 %v2493
        %v2495 = vpop.xlane.xlu0 %2494
        %v2496 = vsel %vm317, %v2430, 0.0
        %2497 = vadd.xlane.f32.xlu0 %v2496
        %v2498 = vpop.xlane.xlu0 %2497
        %v2499 = vsel %vm317, %v2431, 0.0
        %2500 = vadd.xlane.f32.xlu0 %v2499
        %v2501 = vpop.xlane.xlu0 %2500
        %v2502 = vsel %vm317, %v2432, 0.0
        %2503 = vadd.xlane.f32.xlu0 %v2502
        %v2504 = vpop.xlane.xlu0 %2503
        %v2505 = vsel %vm317, %v2433, 0.0
        %2506 = vadd.xlane.f32.xlu0 %v2505
        %v2507 = vpop.xlane.xlu0 %2506
        %v2508 = vsel %vm317, %v2434, 0.0
        %2509 = vadd.xlane.f32.xlu0 %v2508
        %v2510 = vpop.xlane.xlu0 %2509
        %v2511 = vsel %vm317, %v2435, 0.0
        %2512 = vadd.xlane.f32.xlu0 %v2511
        %v2513 = vpop.xlane.xlu0 %2512
        %v2514 = vsel %vm317, %v2436, 0.0
        %2515 = vadd.xlane.f32.xlu0 %v2514
        %v2516 = vpop.xlane.xlu0 %2515
        %v2517 = vsel %vm317, %v2437, 0.0
        %2518 = vadd.xlane.f32.xlu0 %v2517
        %v2519 = vpop.xlane.xlu0 %2518
        %v2520 = vsel %vm317, %v2438, 0.0
        %2521 = vadd.xlane.f32.xlu0 %v2520
        %v2522 = vpop.xlane.xlu0 %2521
        %v2523 = vsel %vm317, %v2439, 0.0
        %2524 = vadd.xlane.f32.xlu0 %v2523
        %v2525 = vpop.xlane.xlu0 %2524
        %v2526 = vsel %vm317, %v2440, 0.0
        %2527 = vadd.xlane.f32.xlu0 %v2526
        %v2528 = vpop.xlane.xlu0 %2527
        %v2529 = vsel %vm317, %v2441, 0.0
        %2530 = vadd.xlane.f32.xlu0 %v2529
        %v2531 = vpop.xlane.xlu0 %2530
        %v2532 = vsel %vm317, %v2442, 0.0
        %2533 = vadd.xlane.f32.xlu0 %v2532
        %v2534 = vpop.xlane.xlu0 %2533
        %v2535 = vsel %vm317, %v2443, 0.0
        %2536 = vadd.xlane.f32.xlu0 %v2535
        %v2537 = vpop.xlane.xlu0 %2536
        %v2538 = vsel %vm317, %v2444, 0.0
        %2539 = vadd.xlane.f32.xlu0 %v2538
        %v2540 = vpop.xlane.xlu0 %2539
        %v2541 = vmul.f32 %v1812, %v2322
        %v2542 = vsel %vm317, %v2541, 0.0
        %2543 = vadd.xlane.f32.xlu0 %v2542
        %v2544 = vpop.xlane.xlu0 %2543
        %v2545 = vmul.f32 %v2447, 0.9
        %v2546 = vmul.f32 %v2450, 0.9
        %v2547 = vmul.f32 %v2453, 0.9
        %v2548 = vmul.f32 %v2456, 0.9
        %v2549 = vmul.f32 %v2459, 0.9
        %v2550 = vmul.f32 %v2462, 0.9
        %v2551 = vmul.f32 %v2465, 0.9
        %v2552 = vmul.f32 %v2468, 0.9
        %v2553 = vmul.f32 %v2471, 0.9
        %v2554 = vmul.f32 %v2474, 0.9
        %v2555 = vmul.f32 %v2477, 0.9
        %v2556 = vmul.f32 %v2480, 0.9
        %v2557 = vmul.f32 %v2483, 0.9
        %v2558 = vmul.f32 %v2486, 0.9
        %v2559 = vmul.f32 %v2489, 0.9
        %v2560 = vmul.f32 %v2492, 0.9
        %v2561 = vmul.f32 %v2495, 0.9
        %v2562 = vmul.f32 %v2498, 0.9
        %v2563 = vmul.f32 %v2501, 0.9
        %v2564 = vmul.f32 %v2504, 0.9
        %v2565 = vmul.f32 %v2507, 0.9
        %v2566 = vmul.f32 %v2510, 0.9
        %v2567 = vmul.f32 %v2513, 0.9
        %v2568 = vmul.f32 %v2516, 0.9
        %v2569 = vmul.f32 %v2519, 0.9
        %v2570 = vmul.f32 %v2522, 0.9
        %v2571 = vmul.f32 %v2525, 0.9
        %v2572 = vmul.f32 %v2528, 0.9
        %v2573 = vmul.f32 %v2531, 0.9
        %v2574 = vmul.f32 %v2534, 0.9
        %v2575 = vmul.f32 %v2537, 0.9
        %v2576 = vmul.f32 %v2540, 0.9
        %v2577 = vmul.f32 %v1812, %v2544
        %v2578 = vmul.f32 %v2577, 0.5
        %v2580 = vlaneseq
        %v2581 = vshrl.u32 %v2580, 7
        %v2582 = vsub.s32 0, %v2581
        %v2583 = vrot.slane %v2578, %v2582
        %2585 = vbcast.lane.b32.xlu0 %v2583, 256
        %v2586 = vpop.permute.xlu0 %2585
        %s2588 = sor.u32 256, 8
        %2589 = vbcast.lane.b32.xlu0 %v2583, %s2588
        %v2590 = vpop.permute.xlu0 %2589
        %s2592 = sor.u32 256, 16
        %2593 = vbcast.lane.b32.xlu0 %v2583, %s2592
        %v2594 = vpop.permute.xlu0 %2593
        %s2596 = sor.u32 256, 24
        %2597 = vbcast.lane.b32.xlu0 %v2583, %s2596
        %v2598 = vpop.permute.xlu0 %2597
        %v2599 = vlaneseq
        %v2600 = vshrl.u32 %v2599, 7
        %v2601 = vsub.s32 1, %v2600
        %v2602 = vrot.slane %v2578, %v2601
        %2604 = vbcast.lane.b32.xlu0 %v2602, 256
        %v2605 = vpop.permute.xlu0 %2604
        %s2607 = sor.u32 256, 8
        %2608 = vbcast.lane.b32.xlu0 %v2602, %s2607
        %v2609 = vpop.permute.xlu0 %2608
        %s2611 = sor.u32 256, 16
        %2612 = vbcast.lane.b32.xlu0 %v2602, %s2611
        %v2613 = vpop.permute.xlu0 %2612
        %s2615 = sor.u32 256, 24
        %2616 = vbcast.lane.b32.xlu0 %v2602, %s2615
        %v2617 = vpop.permute.xlu0 %2616
        %v2618 = vlaneseq
        %v2619 = vshrl.u32 %v2618, 7
        %v2620 = vsub.s32 2, %v2619
        %v2621 = vrot.slane %v2578, %v2620
        %2623 = vbcast.lane.b32.xlu0 %v2621, 256
        %v2624 = vpop.permute.xlu0 %2623
        %s2626 = sor.u32 256, 8
        %2627 = vbcast.lane.b32.xlu0 %v2621, %s2626
        %v2628 = vpop.permute.xlu0 %2627
        %s2630 = sor.u32 256, 16
        %2631 = vbcast.lane.b32.xlu0 %v2621, %s2630
        %v2632 = vpop.permute.xlu0 %2631
        %s2634 = sor.u32 256, 24
        %2635 = vbcast.lane.b32.xlu0 %v2621, %s2634
        %v2636 = vpop.permute.xlu0 %2635
        %v2637 = vlaneseq
        %v2638 = vshrl.u32 %v2637, 7
        %v2639 = vsub.s32 3, %v2638
        %v2640 = vrot.slane %v2578, %v2639
        %2642 = vbcast.lane.b32.xlu0 %v2640, 256
        %v2643 = vpop.permute.xlu0 %2642
        %s2645 = sor.u32 256, 8
        %2646 = vbcast.lane.b32.xlu0 %v2640, %s2645
        %v2647 = vpop.permute.xlu0 %2646
        %s2649 = sor.u32 256, 16
        %2650 = vbcast.lane.b32.xlu0 %v2640, %s2649
        %v2651 = vpop.permute.xlu0 %2650
        %s2653 = sor.u32 256, 24
        %2654 = vbcast.lane.b32.xlu0 %v2640, %s2653
        %v2655 = vpop.permute.xlu0 %2654
        %v2656 = vlaneseq
        %v2657 = vshrl.u32 %v2656, 7
        %v2658 = vsub.s32 4, %v2657
        %v2659 = vrot.slane %v2578, %v2658
        %2661 = vbcast.lane.b32.xlu0 %v2659, 256
        %v2662 = vpop.permute.xlu0 %2661
        %s2664 = sor.u32 256, 8
        %2665 = vbcast.lane.b32.xlu0 %v2659, %s2664
        %v2666 = vpop.permute.xlu0 %2665
        %s2668 = sor.u32 256, 16
        %2669 = vbcast.lane.b32.xlu0 %v2659, %s2668
        %v2670 = vpop.permute.xlu0 %2669
        %s2672 = sor.u32 256, 24
        %2673 = vbcast.lane.b32.xlu0 %v2659, %s2672
        %v2674 = vpop.permute.xlu0 %2673
        %v2675 = vlaneseq
        %v2676 = vshrl.u32 %v2675, 7
        %v2677 = vsub.s32 5, %v2676
        %v2678 = vrot.slane %v2578, %v2677
        %2680 = vbcast.lane.b32.xlu0 %v2678, 256
        %v2681 = vpop.permute.xlu0 %2680
        %s2683 = sor.u32 256, 8
        %2684 = vbcast.lane.b32.xlu0 %v2678, %s2683
        %v2685 = vpop.permute.xlu0 %2684
        %s2687 = sor.u32 256, 16
        %2688 = vbcast.lane.b32.xlu0 %v2678, %s2687
        %v2689 = vpop.permute.xlu0 %2688
        %s2691 = sor.u32 256, 24
        %2692 = vbcast.lane.b32.xlu0 %v2678, %s2691
        %v2693 = vpop.permute.xlu0 %2692
        %v2694 = vlaneseq
        %v2695 = vshrl.u32 %v2694, 7
        %v2696 = vsub.s32 6, %v2695
        %v2697 = vrot.slane %v2578, %v2696
        %2699 = vbcast.lane.b32.xlu0 %v2697, 256
        %v2700 = vpop.permute.xlu0 %2699
        %s2702 = sor.u32 256, 8
        %2703 = vbcast.lane.b32.xlu0 %v2697, %s2702
        %v2704 = vpop.permute.xlu0 %2703
        %s2706 = sor.u32 256, 16
        %2707 = vbcast.lane.b32.xlu0 %v2697, %s2706
        %v2708 = vpop.permute.xlu0 %2707
        %s2710 = sor.u32 256, 24
        %2711 = vbcast.lane.b32.xlu0 %v2697, %s2710
        %v2712 = vpop.permute.xlu0 %2711
        %v2713 = vlaneseq
        %v2714 = vshrl.u32 %v2713, 7
        %v2715 = vsub.s32 7, %v2714
        %v2716 = vrot.slane %v2578, %v2715
        %2718 = vbcast.lane.b32.xlu0 %v2716, 256
        %v2719 = vpop.permute.xlu0 %2718
        %s2721 = sor.u32 256, 8
        %2722 = vbcast.lane.b32.xlu0 %v2716, %s2721
        %v2723 = vpop.permute.xlu0 %2722
        %s2725 = sor.u32 256, 16
        %2726 = vbcast.lane.b32.xlu0 %v2716, %s2725
        %v2727 = vpop.permute.xlu0 %2726
        %s2729 = sor.u32 256, 24
        %2730 = vbcast.lane.b32.xlu0 %v2716, %s2729
        %v2731 = vpop.permute.xlu0 %2730
        %v2764 = vadd.f32 %v2545, %v2586
        %v2765 = vadd.f32 %v2546, %v2590
        %v2766 = vadd.f32 %v2547, %v2594
        %v2767 = vadd.f32 %v2548, %v2598
        %v2768 = vadd.f32 %v2549, %v2605
        %v2769 = vadd.f32 %v2550, %v2609
        %v2770 = vadd.f32 %v2551, %v2613
        %v2771 = vadd.f32 %v2552, %v2617
        %v2772 = vadd.f32 %v2553, %v2624
        %v2773 = vadd.f32 %v2554, %v2628
        %v2774 = vadd.f32 %v2555, %v2632
        %v2775 = vadd.f32 %v2556, %v2636
        %v2776 = vadd.f32 %v2557, %v2643
        %v2777 = vadd.f32 %v2558, %v2647
        %v2778 = vadd.f32 %v2559, %v2651
        %v2779 = vadd.f32 %v2560, %v2655
        %v2780 = vadd.f32 %v2561, %v2662
        %v2781 = vadd.f32 %v2562, %v2666
        %v2782 = vadd.f32 %v2563, %v2670
        %v2783 = vadd.f32 %v2564, %v2674
        %v2784 = vadd.f32 %v2565, %v2681
        %v2785 = vadd.f32 %v2566, %v2685
        %v2786 = vadd.f32 %v2567, %v2689
        %v2787 = vadd.f32 %v2568, %v2693
        %v2788 = vadd.f32 %v2569, %v2700
        %v2789 = vadd.f32 %v2570, %v2704
        %v2790 = vadd.f32 %v2571, %v2708
        %v2791 = vadd.f32 %v2572, %v2712
        %v2792 = vadd.f32 %v2573, %v2719
        %v2793 = vadd.f32 %v2574, %v2723
        %v2794 = vadd.f32 %v2575, %v2727
        %v2795 = vadd.f32 %v2576, %v2731
        %2828 = vset.pattern.permute.xlu0 0
        %2829 = vperm.xlu0 %2828, %v2764
        %v2830 = vpop.permute.xlu0 %2829
        %2831 = vset.pattern.permute.xlu0 0
        %2832 = vperm.xlu0 %2831, %v2765
        %v2833 = vpop.permute.xlu0 %2832
        %2834 = vset.pattern.permute.xlu0 0
        %2835 = vperm.xlu0 %2834, %v2766
        %v2836 = vpop.permute.xlu0 %2835
        %2837 = vset.pattern.permute.xlu0 0
        %2838 = vperm.xlu0 %2837, %v2767
        %v2839 = vpop.permute.xlu0 %2838
        %2840 = vset.pattern.permute.xlu0 0
        %2841 = vperm.xlu0 %2840, %v2768
        %v2842 = vpop.permute.xlu0 %2841
        %2843 = vset.pattern.permute.xlu0 0
        %2844 = vperm.xlu0 %2843, %v2769
        %v2845 = vpop.permute.xlu0 %2844
        %2846 = vset.pattern.permute.xlu0 0
        %2847 = vperm.xlu0 %2846, %v2770
        %v2848 = vpop.permute.xlu0 %2847
        %2849 = vset.pattern.permute.xlu0 0
        %2850 = vperm.xlu0 %2849, %v2771
        %v2851 = vpop.permute.xlu0 %2850
        %2852 = vset.pattern.permute.xlu0 0
        %2853 = vperm.xlu0 %2852, %v2772
        %v2854 = vpop.permute.xlu0 %2853
        %2855 = vset.pattern.permute.xlu0 0
        %2856 = vperm.xlu0 %2855, %v2773
        %v2857 = vpop.permute.xlu0 %2856
        %2858 = vset.pattern.permute.xlu0 0
        %2859 = vperm.xlu0 %2858, %v2774
        %v2860 = vpop.permute.xlu0 %2859
        %2861 = vset.pattern.permute.xlu0 0
        %2862 = vperm.xlu0 %2861, %v2775
        %v2863 = vpop.permute.xlu0 %2862
        %2864 = vset.pattern.permute.xlu0 0
        %2865 = vperm.xlu0 %2864, %v2776
        %v2866 = vpop.permute.xlu0 %2865
        %2867 = vset.pattern.permute.xlu0 0
        %2868 = vperm.xlu0 %2867, %v2777
        %v2869 = vpop.permute.xlu0 %2868
        %2870 = vset.pattern.permute.xlu0 0
        %2871 = vperm.xlu0 %2870, %v2778
        %v2872 = vpop.permute.xlu0 %2871
        %2873 = vset.pattern.permute.xlu0 0
        %2874 = vperm.xlu0 %2873, %v2779
        %v2875 = vpop.permute.xlu0 %2874
        %2876 = vset.pattern.permute.xlu0 0
        %2877 = vperm.xlu0 %2876, %v2780
        %v2878 = vpop.permute.xlu0 %2877
        %2879 = vset.pattern.permute.xlu0 0
        %2880 = vperm.xlu0 %2879, %v2781
        %v2881 = vpop.permute.xlu0 %2880
        %2882 = vset.pattern.permute.xlu0 0
        %2883 = vperm.xlu0 %2882, %v2782
        %v2884 = vpop.permute.xlu0 %2883
        %2885 = vset.pattern.permute.xlu0 0
        %2886 = vperm.xlu0 %2885, %v2783
        %v2887 = vpop.permute.xlu0 %2886
        %2888 = vset.pattern.permute.xlu0 0
        %2889 = vperm.xlu0 %2888, %v2784
        %v2890 = vpop.permute.xlu0 %2889
        %2891 = vset.pattern.permute.xlu0 0
        %2892 = vperm.xlu0 %2891, %v2785
        %v2893 = vpop.permute.xlu0 %2892
        %2894 = vset.pattern.permute.xlu0 0
        %2895 = vperm.xlu0 %2894, %v2786
        %v2896 = vpop.permute.xlu0 %2895
        %2897 = vset.pattern.permute.xlu0 0
        %2898 = vperm.xlu0 %2897, %v2787
        %v2899 = vpop.permute.xlu0 %2898
        %2900 = vset.pattern.permute.xlu0 0
        %2901 = vperm.xlu0 %2900, %v2788
        %v2902 = vpop.permute.xlu0 %2901
        %2903 = vset.pattern.permute.xlu0 0
        %2904 = vperm.xlu0 %2903, %v2789
        %v2905 = vpop.permute.xlu0 %2904
        %2906 = vset.pattern.permute.xlu0 0
        %2907 = vperm.xlu0 %2906, %v2790
        %v2908 = vpop.permute.xlu0 %2907
        %2909 = vset.pattern.permute.xlu0 0
        %2910 = vperm.xlu0 %2909, %v2791
        %v2911 = vpop.permute.xlu0 %2910
        %2912 = vset.pattern.permute.xlu0 0
        %2913 = vperm.xlu0 %2912, %v2792
        %v2914 = vpop.permute.xlu0 %2913
        %2915 = vset.pattern.permute.xlu0 0
        %2916 = vperm.xlu0 %2915, %v2793
        %v2917 = vpop.permute.xlu0 %2916
        %2918 = vset.pattern.permute.xlu0 0
        %2919 = vperm.xlu0 %2918, %v2794
        %v2920 = vpop.permute.xlu0 %2919
        %2921 = vset.pattern.permute.xlu0 0
        %2922 = vperm.xlu0 %2921, %v2795
        %v2923 = vpop.permute.xlu0 %2922
        %v2924 = vlaneseq
        %v2925 = vshrl.u32 %v2924, 7
        %v2926 = vsub.s32 %v1618, %v2925
        %v2927 = vrot.slane %v2830, %v2926
        %v2928 = vlaneseq
        %v2929 = vshrl.u32 %v2928, 7
        %v2930 = vsub.s32 %v1623, %v2929
        %v2931 = vrot.slane %v2833, %v2930
        %v2932 = vsel %vm1628, %v2931, %v2927
        %v2933 = vlaneseq
        %v2934 = vshrl.u32 %v2933, 7
        %v2935 = vsub.s32 %v1630, %v2934
        %v2936 = vrot.slane %v2836, %v2935
        %v2937 = vsel %vm1635, %v2936, %v2932
        %v2938 = vlaneseq
        %v2939 = vshrl.u32 %v2938, 7
        %v2940 = vsub.s32 %v1637, %v2939
        %v2941 = vrot.slane %v2839, %v2940
        %v2942 = vsel %vm1642, %v2941, %v2937
        %v2943 = vlaneseq
        %v2944 = vshrl.u32 %v2943, 7
        %v2945 = vsub.s32 %v1618, %v2944
        %v2946 = vrot.slane %v2842, %v2945
        %v2947 = vlaneseq
        %v2948 = vshrl.u32 %v2947, 7
        %v2949 = vsub.s32 %v1623, %v2948
        %v2950 = vrot.slane %v2845, %v2949
        %v2951 = vsel %vm1628, %v2950, %v2946
        %v2952 = vlaneseq
        %v2953 = vshrl.u32 %v2952, 7
        %v2954 = vsub.s32 %v1630, %v2953
        %v2955 = vrot.slane %v2848, %v2954
        %v2956 = vsel %vm1635, %v2955, %v2951
        %v2957 = vlaneseq
        %v2958 = vshrl.u32 %v2957, 7
        %v2959 = vsub.s32 %v1637, %v2958
        %v2960 = vrot.slane %v2851, %v2959
        %v2961 = vsel %vm1642, %v2960, %v2956
        %v2962 = vlaneseq
        %v2963 = vshrl.u32 %v2962, 7
        %v2964 = vsub.s32 %v1618, %v2963
        %v2965 = vrot.slane %v2854, %v2964
        %v2966 = vlaneseq
        %v2967 = vshrl.u32 %v2966, 7
        %v2968 = vsub.s32 %v1623, %v2967
        %v2969 = vrot.slane %v2857, %v2968
        %v2970 = vsel %vm1628, %v2969, %v2965
        %v2971 = vlaneseq
        %v2972 = vshrl.u32 %v2971, 7
        %v2973 = vsub.s32 %v1630, %v2972
        %v2974 = vrot.slane %v2860, %v2973
        %v2975 = vsel %vm1635, %v2974, %v2970
        %v2976 = vlaneseq
        %v2977 = vshrl.u32 %v2976, 7
        %v2978 = vsub.s32 %v1637, %v2977
        %v2979 = vrot.slane %v2863, %v2978
        %v2980 = vsel %vm1642, %v2979, %v2975
        %v2981 = vlaneseq
        %v2982 = vshrl.u32 %v2981, 7
        %v2983 = vsub.s32 %v1618, %v2982
        %v2984 = vrot.slane %v2866, %v2983
        %v2985 = vlaneseq
        %v2986 = vshrl.u32 %v2985, 7
        %v2987 = vsub.s32 %v1623, %v2986
        %v2988 = vrot.slane %v2869, %v2987
        %v2989 = vsel %vm1628, %v2988, %v2984
        %v2990 = vlaneseq
        %v2991 = vshrl.u32 %v2990, 7
        %v2992 = vsub.s32 %v1630, %v2991
        %v2993 = vrot.slane %v2872, %v2992
        %v2994 = vsel %vm1635, %v2993, %v2989
        %v2995 = vlaneseq
        %v2996 = vshrl.u32 %v2995, 7
        %v2997 = vsub.s32 %v1637, %v2996
        %v2998 = vrot.slane %v2875, %v2997
        %v2999 = vsel %vm1642, %v2998, %v2994
        %v3000 = vlaneseq
        %v3001 = vshrl.u32 %v3000, 7
        %v3002 = vsub.s32 %v1618, %v3001
        %v3003 = vrot.slane %v2878, %v3002
        %v3004 = vlaneseq
        %v3005 = vshrl.u32 %v3004, 7
        %v3006 = vsub.s32 %v1623, %v3005
        %v3007 = vrot.slane %v2881, %v3006
        %v3008 = vsel %vm1628, %v3007, %v3003
        %v3009 = vlaneseq
        %v3010 = vshrl.u32 %v3009, 7
        %v3011 = vsub.s32 %v1630, %v3010
        %v3012 = vrot.slane %v2884, %v3011
        %v3013 = vsel %vm1635, %v3012, %v3008
        %v3014 = vlaneseq
        %v3015 = vshrl.u32 %v3014, 7
        %v3016 = vsub.s32 %v1637, %v3015
        %v3017 = vrot.slane %v2887, %v3016
        %v3018 = vsel %vm1642, %v3017, %v3013
        %v3019 = vlaneseq
        %v3020 = vshrl.u32 %v3019, 7
        %v3021 = vsub.s32 %v1618, %v3020
        %v3022 = vrot.slane %v2890, %v3021
        %v3023 = vlaneseq
        %v3024 = vshrl.u32 %v3023, 7
        %v3025 = vsub.s32 %v1623, %v3024
        %v3026 = vrot.slane %v2893, %v3025
        %v3027 = vsel %vm1628, %v3026, %v3022
        %v3028 = vlaneseq
        %v3029 = vshrl.u32 %v3028, 7
        %v3030 = vsub.s32 %v1630, %v3029
        %v3031 = vrot.slane %v2896, %v3030
        %v3032 = vsel %vm1635, %v3031, %v3027
        %v3033 = vlaneseq
        %v3034 = vshrl.u32 %v3033, 7
        %v3035 = vsub.s32 %v1637, %v3034
        %v3036 = vrot.slane %v2899, %v3035
        %v3037 = vsel %vm1642, %v3036, %v3032
        %v3038 = vlaneseq
        %v3039 = vshrl.u32 %v3038, 7
        %v3040 = vsub.s32 %v1618, %v3039
        %v3041 = vrot.slane %v2902, %v3040
        %v3042 = vlaneseq
        %v3043 = vshrl.u32 %v3042, 7
        %v3044 = vsub.s32 %v1623, %v3043
        %v3045 = vrot.slane %v2905, %v3044
        %v3046 = vsel %vm1628, %v3045, %v3041
        %v3047 = vlaneseq
        %v3048 = vshrl.u32 %v3047, 7
        %v3049 = vsub.s32 %v1630, %v3048
        %v3050 = vrot.slane %v2908, %v3049
        %v3051 = vsel %vm1635, %v3050, %v3046
        %v3052 = vlaneseq
        %v3053 = vshrl.u32 %v3052, 7
        %v3054 = vsub.s32 %v1637, %v3053
        %v3055 = vrot.slane %v2911, %v3054
        %v3056 = vsel %vm1642, %v3055, %v3051
        %v3057 = vlaneseq
        %v3058 = vshrl.u32 %v3057, 7
        %v3059 = vsub.s32 %v1618, %v3058
        %v3060 = vrot.slane %v2914, %v3059
        %v3061 = vlaneseq
        %v3062 = vshrl.u32 %v3061, 7
        %v3063 = vsub.s32 %v1623, %v3062
        %v3064 = vrot.slane %v2917, %v3063
        %v3065 = vsel %vm1628, %v3064, %v3060
        %v3066 = vlaneseq
        %v3067 = vshrl.u32 %v3066, 7
        %v3068 = vsub.s32 %v1630, %v3067
        %v3069 = vrot.slane %v2920, %v3068
        %v3070 = vsel %vm1635, %v3069, %v3065
        %v3071 = vlaneseq
        %v3072 = vshrl.u32 %v3071, 7
        %v3073 = vsub.s32 %v1637, %v3072
        %v3074 = vrot.slane %v2923, %v3073
        %v3075 = vsel %vm1642, %v3074, %v3070
        %v3076 = vsel %vm1777, %v2961, %v2942
        %v3077 = vsel %vm1779, %v2980, %v3076
        %v3078 = vsel %vm1781, %v2999, %v3077
        %v3079 = vsel %vm1783, %v3018, %v3078
        %v3080 = vsel %vm1785, %v3037, %v3079
        %v3081 = vsel %vm1787, %v3056, %v3080
        %v3082 = vsel %vm1789, %v3075, %v3081
        %v3084 = vadd.f32 %v1920, %v3082
        %v3085 = vsel %vm317, %v3084, 0.0
        %3086 = vadd.xlane.f32.xlu0 %v3085
        %v3087 = vpop.xlane.xlu0 %3086
        %v3088 = vmul.f32 %v3087, %v1796
        %v3089 = vsub.f32 %v3084, %v3088
        %v3090 = vmul.f32 %v3089, %v3089
        %v3091 = vsel %vm317, %v3090, 0.0
        %3092 = vadd.xlane.f32.xlu0 %v3091
        %v3093 = vpop.xlane.xlu0 %3092
        %v3094 = vmul.f32 %v3093, %v1796
        %v3095 = vadd.f32 %v3094, 1e-05
        %v3096 = vrsqrt.pop %v3095
        %v3097 = vmul.f32 %v3089, %v3096
        %v3098 = vmul.f32 %v3097, %v497
        %v3099 = vadd.f32 %v3098, %v504
        %v3100 = vmax.f32 %v3099, 0.0
        %3101 = vst.msk [vmem:[#allocation3] sm:$0xff] %vm317, %v3100
        %s3102 = scalar_lea.vmem %s297, 8 [#allocation11]
        %3103 = vst.msk [vmem:[%s3102] sm:$0xff] %vm317, %v3100
        %v3104 = vld [vmem:[#allocation3] sm:$0xff]
        %v3105 = vld [vmem:[#allocation4] sm:$0xff]
        %v3106 = vld [vmem:[#allocation4 + $0x8] sm:$0xff]
        %v3107 = vld [vmem:[#allocation4 + $0x10] sm:$0xff]
        %v3108 = vld [vmem:[#allocation4 + $0x18] sm:$0xff]
        %v3109 = vld [vmem:[#allocation4 + $0x20] sm:$0xff]
        %v3110 = vld [vmem:[#allocation4 + $0x28] sm:$0xff]
        %v3111 = vld [vmem:[#allocation4 + $0x30] sm:$0xff]
        %v3112 = vld [vmem:[#allocation4 + $0x38] sm:$0xff]
        %v3113 = vld [vmem:[#allocation4 + $0x40] sm:$0xff]
        %v3114 = vld [vmem:[#allocation4 + $0x48] sm:$0xff]
        %v3115 = vld [vmem:[#allocation4 + $0x50] sm:$0xff]
        %v3116 = vld [vmem:[#allocation4 + $0x58] sm:$0xff]
        %v3117 = vld [vmem:[#allocation4 + $0x60] sm:$0xff]
        %v3118 = vld [vmem:[#allocation4 + $0x68] sm:$0xff]
        %v3119 = vld [vmem:[#allocation4 + $0x70] sm:$0xff]
        %v3120 = vld [vmem:[#allocation4 + $0x78] sm:$0xff]
        %v3121 = vld [vmem:[#allocation4 + $0x80] sm:$0xff]
        %v3122 = vld [vmem:[#allocation4 + $0x88] sm:$0xff]
        %v3123 = vld [vmem:[#allocation4 + $0x90] sm:$0xff]
        %v3124 = vld [vmem:[#allocation4 + $0x98] sm:$0xff]
        %v3125 = vld [vmem:[#allocation4 + $0xa0] sm:$0xff]
        %v3126 = vld [vmem:[#allocation4 + $0xa8] sm:$0xff]
        %v3127 = vld [vmem:[#allocation4 + $0xb0] sm:$0xff]
        %v3128 = vld [vmem:[#allocation4 + $0xb8] sm:$0xff]
        %v3129 = vld [vmem:[#allocation4 + $0xc0] sm:$0xff]
        %v3130 = vld [vmem:[#allocation4 + $0xc8] sm:$0xff]
        %v3131 = vld [vmem:[#allocation4 + $0xd0] sm:$0xff]
        %v3132 = vld [vmem:[#allocation4 + $0xd8] sm:$0xff]
        %v3133 = vld [vmem:[#allocation4 + $0xe0] sm:$0xff]
        %v3134 = vld [vmem:[#allocation4 + $0xe8] sm:$0xff]
        %v3135 = vld [vmem:[#allocation4 + $0xf0] sm:$0xff]
        %v3136 = vld [vmem:[#allocation4 + $0xf8] sm:$0xff]
        %s3137 = scalar_lea.vmem [#allocation2], 16
        %v3138 = vld [vmem:[%s3137] sm:$0xff]
        %v3140 = vsel %vm317, %v3104, 0
        %3142 = vmatprep.subr.mxu0 0.0
        %3143 = vmatpush1.msra.mxu0 0.0
        %3144 = vmatprep.subr.mxu0 0.0
        %3145 = vmatpush1.msra.mxu0 0.0
        %3146 = vmatprep.subr.mxu0 0.0
        %3147 = vmatpush1.msra.mxu0 0.0
        %3148 = vmatprep.subr.mxu0 0.0
        %3149 = vmatpush1.msra.mxu0 0.0
        %3150 = vmatprep.subr.mxu0 0.0
        %3151 = vmatpush1.msra.mxu0 0.0
        %3152 = vmatprep.subr.mxu0 0.0
        %3153 = vmatpush1.msra.mxu0 0.0
        %3154 = vmatprep.subr.mxu0 0.0
        %3155 = vmatpush1.msra.mxu0 0.0
        %3156 = vmatprep.subr.mxu0 0.0
        %3157 = vmatpush1.msra.mxu0 0.0
        %3158 = vmatprep.subr.mxu0 0.0
        %3159 = vmatpush1.msra.mxu0 0.0
        %3160 = vmatprep.subr.mxu0 0.0
        %3161 = vmatpush1.msra.mxu0 0.0
        %3162 = vmatprep.subr.mxu0 0.0
        %3163 = vmatpush1.msra.mxu0 0.0
        %3164 = vmatprep.subr.mxu0 0.0
        %3165 = vmatpush1.msra.mxu0 0.0
        %3166 = vmatprep.subr.mxu0 0.0
        %3167 = vmatpush1.msra.mxu0 %v491
        %3168 = vmatprep.subr.mxu0 0.0
        %3169 = vmatpush1.msra.mxu0 %v490
        %3170 = vmatprep.subr.mxu0 0.0
        %3171 = vmatpush1.msra.mxu0 %v489
        %3172 = vmatprep.subr.mxu0 0.0
        %3173 = vmatpush1.msra.mxu0 %v488
        %3174 = vmatprep.subr.mxu0 0.0
        %3175 = vmatpush2.msra.mxu0 0.0
        %3176 = vmatprep.subr.mxu0 0.0
        %3177 = vmatpush2.msra.mxu0 0.0
        %3178 = vmatprep.subr.mxu0 0.0
        %3179 = vmatpush2.msra.mxu0 0.0
        %3180 = vmatprep.subr.mxu0 0.0
        %3181 = vmatpush2.msra.mxu0 0.0
        %3182 = vmatprep.subr.mxu0 0.0
        %3183 = vmatpush2.msra.mxu0 0.0
        %3184 = vmatprep.subr.mxu0 0.0
        %3185 = vmatpush2.msra.mxu0 0.0
        %3186 = vmatprep.subr.mxu0 0.0
        %3187 = vmatpush2.msra.mxu0 0.0
        %3188 = vmatprep.subr.mxu0 0.0
        %3189 = vmatpush2.msra.mxu0 0.0
        %3190 = vmatprep.subr.mxu0 0.0
        %3191 = vmatpush2.msra.mxu0 0.0
        %3192 = vmatprep.subr.mxu0 0.0
        %3193 = vmatpush2.msra.mxu0 0.0
        %3194 = vmatprep.subr.mxu0 0.0
        %3195 = vmatpush2.msra.mxu0 0.0
        %3196 = vmatprep.subr.mxu0 0.0
        %3197 = vmatpush2.msra.mxu0 0.0
        %3198 = vmatprep.subr.mxu0 0.0
        %3199 = vmatpush2.msra.mxu0 0.0
        %3200 = vmatprep.subr.mxu0 0.0
        %3201 = vmatpush2.msra.mxu0 0.0
        %3202 = vmatprep.subr.mxu0 0.0
        %3203 = vmatpush2.msra.mxu0 0.0
        %3204 = vmatprep.subr.mxu0 0.0
        %3205 = vmatpush2.msra.mxu0 0.0
        %3206 = vmatprep.mubr.f32.mxu0 0.0
        %3207 = vmatmul.mubr.f32.gmra.mxu0 %v3140
        %v3208 = vpop.f32.mrf.mxu0
        %v3209 = vadd.f32 0.0, %v3208
        %v3210 = vpop.f32.mrf.mxu0
        %3211 = vdwg.mxu0
        %v3212 = vadd.f32 %v3138, %v3209
        %v3213 = vlaneseq
        %v3214 = vshrl.u32 %v3213, 7
        %v3215 = vsub.s32 0, %v3214
        %v3216 = vrot.slane %v3104, %v3215
        %3218 = vbcast.lane.b32.xlu0 %v3216, 256
        %v3219 = vpop.permute.xlu0 %3218
        %s3221 = sor.u32 256, 8
        %3222 = vbcast.lane.b32.xlu0 %v3216, %s3221
        %v3223 = vpop.permute.xlu0 %3222
        %s3225 = sor.u32 256, 16
        %3226 = vbcast.lane.b32.xlu0 %v3216, %s3225
        %v3227 = vpop.permute.xlu0 %3226
        %s3229 = sor.u32 256, 24
        %3230 = vbcast.lane.b32.xlu0 %v3216, %s3229
        %v3231 = vpop.permute.xlu0 %3230
        %v3232 = vlaneseq
        %v3233 = vshrl.u32 %v3232, 7
        %v3234 = vsub.s32 1, %v3233
        %v3235 = vrot.slane %v3104, %v3234
        %3237 = vbcast.lane.b32.xlu0 %v3235, 256
        %v3238 = vpop.permute.xlu0 %3237
        %s3240 = sor.u32 256, 8
        %3241 = vbcast.lane.b32.xlu0 %v3235, %s3240
        %v3242 = vpop.permute.xlu0 %3241
        %s3244 = sor.u32 256, 16
        %3245 = vbcast.lane.b32.xlu0 %v3235, %s3244
        %v3246 = vpop.permute.xlu0 %3245
        %s3248 = sor.u32 256, 24
        %3249 = vbcast.lane.b32.xlu0 %v3235, %s3248
        %v3250 = vpop.permute.xlu0 %3249
        %v3251 = vlaneseq
        %v3252 = vshrl.u32 %v3251, 7
        %v3253 = vsub.s32 2, %v3252
        %v3254 = vrot.slane %v3104, %v3253
        %3256 = vbcast.lane.b32.xlu0 %v3254, 256
        %v3257 = vpop.permute.xlu0 %3256
        %s3259 = sor.u32 256, 8
        %3260 = vbcast.lane.b32.xlu0 %v3254, %s3259
        %v3261 = vpop.permute.xlu0 %3260
        %s3263 = sor.u32 256, 16
        %3264 = vbcast.lane.b32.xlu0 %v3254, %s3263
        %v3265 = vpop.permute.xlu0 %3264
        %s3267 = sor.u32 256, 24
        %3268 = vbcast.lane.b32.xlu0 %v3254, %s3267
        %v3269 = vpop.permute.xlu0 %3268
        %v3270 = vlaneseq
        %v3271 = vshrl.u32 %v3270, 7
        %v3272 = vsub.s32 3, %v3271
        %v3273 = vrot.slane %v3104, %v3272
        %3275 = vbcast.lane.b32.xlu0 %v3273, 256
        %v3276 = vpop.permute.xlu0 %3275
        %s3278 = sor.u32 256, 8
        %3279 = vbcast.lane.b32.xlu0 %v3273, %s3278
        %v3280 = vpop.permute.xlu0 %3279
        %s3282 = sor.u32 256, 16
        %3283 = vbcast.lane.b32.xlu0 %v3273, %s3282
        %v3284 = vpop.permute.xlu0 %3283
        %s3286 = sor.u32 256, 24
        %3287 = vbcast.lane.b32.xlu0 %v3273, %s3286
        %v3288 = vpop.permute.xlu0 %3287
        %v3289 = vlaneseq
        %v3290 = vshrl.u32 %v3289, 7
        %v3291 = vsub.s32 4, %v3290
        %v3292 = vrot.slane %v3104, %v3291
        %3294 = vbcast.lane.b32.xlu0 %v3292, 256
        %v3295 = vpop.permute.xlu0 %3294
        %s3297 = sor.u32 256, 8
        %3298 = vbcast.lane.b32.xlu0 %v3292, %s3297
        %v3299 = vpop.permute.xlu0 %3298
        %s3301 = sor.u32 256, 16
        %3302 = vbcast.lane.b32.xlu0 %v3292, %s3301
        %v3303 = vpop.permute.xlu0 %3302
        %s3305 = sor.u32 256, 24
        %3306 = vbcast.lane.b32.xlu0 %v3292, %s3305
        %v3307 = vpop.permute.xlu0 %3306
        %v3308 = vlaneseq
        %v3309 = vshrl.u32 %v3308, 7
        %v3310 = vsub.s32 5, %v3309
        %v3311 = vrot.slane %v3104, %v3310
        %3313 = vbcast.lane.b32.xlu0 %v3311, 256
        %v3314 = vpop.permute.xlu0 %3313
        %s3316 = sor.u32 256, 8
        %3317 = vbcast.lane.b32.xlu0 %v3311, %s3316
        %v3318 = vpop.permute.xlu0 %3317
        %s3320 = sor.u32 256, 16
        %3321 = vbcast.lane.b32.xlu0 %v3311, %s3320
        %v3322 = vpop.permute.xlu0 %3321
        %s3324 = sor.u32 256, 24
        %3325 = vbcast.lane.b32.xlu0 %v3311, %s3324
        %v3326 = vpop.permute.xlu0 %3325
        %v3327 = vlaneseq
        %v3328 = vshrl.u32 %v3327, 7
        %v3329 = vsub.s32 6, %v3328
        %v3330 = vrot.slane %v3104, %v3329
        %3332 = vbcast.lane.b32.xlu0 %v3330, 256
        %v3333 = vpop.permute.xlu0 %3332
        %s3335 = sor.u32 256, 8
        %3336 = vbcast.lane.b32.xlu0 %v3330, %s3335
        %v3337 = vpop.permute.xlu0 %3336
        %s3339 = sor.u32 256, 16
        %3340 = vbcast.lane.b32.xlu0 %v3330, %s3339
        %v3341 = vpop.permute.xlu0 %3340
        %s3343 = sor.u32 256, 24
        %3344 = vbcast.lane.b32.xlu0 %v3330, %s3343
        %v3345 = vpop.permute.xlu0 %3344
        %v3346 = vlaneseq
        %v3347 = vshrl.u32 %v3346, 7
        %v3348 = vsub.s32 7, %v3347
        %v3349 = vrot.slane %v3104, %v3348
        %3351 = vbcast.lane.b32.xlu0 %v3349, 256
        %v3352 = vpop.permute.xlu0 %3351
        %s3354 = sor.u32 256, 8
        %3355 = vbcast.lane.b32.xlu0 %v3349, %s3354
        %v3356 = vpop.permute.xlu0 %3355
        %s3358 = sor.u32 256, 16
        %3359 = vbcast.lane.b32.xlu0 %v3349, %s3358
        %v3360 = vpop.permute.xlu0 %3359
        %s3362 = sor.u32 256, 24
        %3363 = vbcast.lane.b32.xlu0 %v3349, %s3362
        %v3364 = vpop.permute.xlu0 %3363
        %v3365 = vcombine.high %v3104, %v3104
        %v3367 = vunpack.c.l.s4 1966171168
        %v3368 = vunpack.c.0.s8 %v3367
        %v3369 = vlaneseq
        %v3370 = vshrl.u32 %v3369, 7
        %v3371 = vsub.s32 %v3368, %v3370
        %v3372 = vrot.slane %v3104, %v3371
        %v3374 = vunpack.c.l.s4 1966171168
        %v3375 = vunpack.c.0.s8 %v3374
        %v3376 = vlaneseq
        %v3377 = vshrl.u32 %v3376, 7
        %v3378 = vsub.s32 %v3375, %v3377
        %v3379 = vrot.slane %v3365, %v3378
        %v3380 = vcombine.high %v3372, %v3372
        %v3381 = vcombine.high %v3379, %v3379
        %v3383 = vunpack.c.l.s4 1966171168
        %v3384 = vunpack.c.0.s8 %v3383
        %v3385 = vlaneseq
        %v3386 = vshrl.u32 %v3385, 7
        %v3387 = vsub.s32 %v3384, %v3386
        %v3388 = vrot.slane %v3372, %v3387
        %v3390 = vunpack.c.l.s4 1966171168
        %v3391 = vunpack.c.0.s8 %v3390
        %v3392 = vlaneseq
        %v3393 = vshrl.u32 %v3392, 7
        %v3394 = vsub.s32 %v3391, %v3393
        %v3395 = vrot.slane %v3379, %v3394
        %v3397 = vunpack.c.l.s4 1966171168
        %v3398 = vunpack.c.0.s8 %v3397
        %v3399 = vlaneseq
        %v3400 = vshrl.u32 %v3399, 7
        %v3401 = vsub.s32 %v3398, %v3400
        %v3402 = vrot.slane %v3380, %v3401
        %v3404 = vunpack.c.l.s4 1966171168
        %v3405 = vunpack.c.0.s8 %v3404
        %v3406 = vlaneseq
        %v3407 = vshrl.u32 %v3406, 7
        %v3408 = vsub.s32 %v3405, %v3407
        %v3409 = vrot.slane %v3381, %v3408
        %v3410 = vcombine.high %v3388, %v3388
        %v3411 = vcombine.high %v3395, %v3395
        %v3412 = vcombine.high %v3402, %v3402
        %v3413 = vcombine.high %v3409, %v3409
        %v3414 = vlaneseq
        %v3415 = vshrl.u32 %v3414, 7
        %v3416 = vsub.s32 0, %v3415
        %v3417 = vrot.slane %v3388, %v3416
        %v3418 = vlaneseq
        %v3419 = vshrl.u32 %v3418, 7
        %v3420 = vsub.s32 0, %v3419
        %v3421 = vrot.slane %v3402, %v3420
        %v3422 = vlaneseq
        %v3423 = vshrl.u32 %v3422, 7
        %v3424 = vsub.s32 0, %v3423
        %v3425 = vrot.slane %v3410, %v3424
        %v3426 = vlaneseq
        %v3427 = vshrl.u32 %v3426, 7
        %v3428 = vsub.s32 0, %v3427
        %v3429 = vrot.slane %v3412, %v3428
        %v3430 = vlaneseq
        %v3431 = vshrl.u32 %v3430, 7
        %v3432 = vsub.s32 0, %v3431
        %v3433 = vrot.slane %v3395, %v3432
        %v3434 = vlaneseq
        %v3435 = vshrl.u32 %v3434, 7
        %v3436 = vsub.s32 0, %v3435
        %v3437 = vrot.slane %v3409, %v3436
        %v3438 = vlaneseq
        %v3439 = vshrl.u32 %v3438, 7
        %v3440 = vsub.s32 0, %v3439
        %v3441 = vrot.slane %v3411, %v3440
        %v3442 = vlaneseq
        %v3443 = vshrl.u32 %v3442, 7
        %v3444 = vsub.s32 0, %v3443
        %v3445 = vrot.slane %v3413, %v3444
        %v3454 = vmul.f32 %v3219, %v3417
        %v3455 = vmul.f32 %v3223, %v3417
        %v3456 = vmul.f32 %v3227, %v3417
        %v3457 = vmul.f32 %v3231, %v3417
        %v3458 = vmul.f32 %v3238, %v3421
        %v3459 = vmul.f32 %v3242, %v3421
        %v3460 = vmul.f32 %v3246, %v3421
        %v3461 = vmul.f32 %v3250, %v3421
        %v3462 = vmul.f32 %v3257, %v3425
        %v3463 = vmul.f32 %v3261, %v3425
        %v3464 = vmul.f32 %v3265, %v3425
        %v3465 = vmul.f32 %v3269, %v3425
        %v3466 = vmul.f32 %v3276, %v3429
        %v3467 = vmul.f32 %v3280, %v3429
        %v3468 = vmul.f32 %v3284, %v3429
        %v3469 = vmul.f32 %v3288, %v3429
        %v3470 = vmul.f32 %v3295, %v3433
        %v3471 = vmul.f32 %v3299, %v3433
        %v3472 = vmul.f32 %v3303, %v3433
        %v3473 = vmul.f32 %v3307, %v3433
        %v3474 = vmul.f32 %v3314, %v3437
        %v3475 = vmul.f32 %v3318, %v3437
        %v3476 = vmul.f32 %v3322, %v3437
        %v3477 = vmul.f32 %v3326, %v3437
        %v3478 = vmul.f32 %v3333, %v3441
        %v3479 = vmul.f32 %v3337, %v3441
        %v3480 = vmul.f32 %v3341, %v3441
        %v3481 = vmul.f32 %v3345, %v3441
        %v3482 = vmul.f32 %v3352, %v3445
        %v3483 = vmul.f32 %v3356, %v3445
        %v3484 = vmul.f32 %v3360, %v3445
        %v3485 = vmul.f32 %v3364, %v3445
        %v3486 = vmul.f32 %v3105, 0.9
        %v3487 = vmul.f32 %v3106, 0.9
        %v3488 = vmul.f32 %v3107, 0.9
        %v3489 = vmul.f32 %v3108, 0.9
        %v3490 = vmul.f32 %v3109, 0.9
        %v3491 = vmul.f32 %v3110, 0.9
        %v3492 = vmul.f32 %v3111, 0.9
        %v3493 = vmul.f32 %v3112, 0.9
        %v3494 = vmul.f32 %v3113, 0.9
        %v3495 = vmul.f32 %v3114, 0.9
        %v3496 = vmul.f32 %v3115, 0.9
        %v3497 = vmul.f32 %v3116, 0.9
        %v3498 = vmul.f32 %v3117, 0.9
        %v3499 = vmul.f32 %v3118, 0.9
        %v3500 = vmul.f32 %v3119, 0.9
        %v3501 = vmul.f32 %v3120, 0.9
        %v3502 = vmul.f32 %v3121, 0.9
        %v3503 = vmul.f32 %v3122, 0.9
        %v3504 = vmul.f32 %v3123, 0.9
        %v3505 = vmul.f32 %v3124, 0.9
        %v3506 = vmul.f32 %v3125, 0.9
        %v3507 = vmul.f32 %v3126, 0.9
        %v3508 = vmul.f32 %v3127, 0.9
        %v3509 = vmul.f32 %v3128, 0.9
        %v3510 = vmul.f32 %v3129, 0.9
        %v3511 = vmul.f32 %v3130, 0.9
        %v3512 = vmul.f32 %v3131, 0.9
        %v3513 = vmul.f32 %v3132, 0.9
        %v3514 = vmul.f32 %v3133, 0.9
        %v3515 = vmul.f32 %v3134, 0.9
        %v3516 = vmul.f32 %v3135, 0.9
        %v3517 = vmul.f32 %v3136, 0.9
        %v3518 = vmul.f32 %v3454, 0.5
        %v3519 = vmul.f32 %v3455, 0.5
        %v3520 = vmul.f32 %v3456, 0.5
        %v3521 = vmul.f32 %v3457, 0.5
        %v3522 = vmul.f32 %v3458, 0.5
        %v3523 = vmul.f32 %v3459, 0.5
        %v3524 = vmul.f32 %v3460, 0.5
        %v3525 = vmul.f32 %v3461, 0.5
        %v3526 = vmul.f32 %v3462, 0.5
        %v3527 = vmul.f32 %v3463, 0.5
        %v3528 = vmul.f32 %v3464, 0.5
        %v3529 = vmul.f32 %v3465, 0.5
        %v3530 = vmul.f32 %v3466, 0.5
        %v3531 = vmul.f32 %v3467, 0.5
        %v3532 = vmul.f32 %v3468, 0.5
        %v3533 = vmul.f32 %v3469, 0.5
        %v3534 = vmul.f32 %v3470, 0.5
        %v3535 = vmul.f32 %v3471, 0.5
        %v3536 = vmul.f32 %v3472, 0.5
        %v3537 = vmul.f32 %v3473, 0.5
        %v3538 = vmul.f32 %v3474, 0.5
        %v3539 = vmul.f32 %v3475, 0.5
        %v3540 = vmul.f32 %v3476, 0.5
        %v3541 = vmul.f32 %v3477, 0.5
        %v3542 = vmul.f32 %v3478, 0.5
        %v3543 = vmul.f32 %v3479, 0.5
        %v3544 = vmul.f32 %v3480, 0.5
        %v3545 = vmul.f32 %v3481, 0.5
        %v3546 = vmul.f32 %v3482, 0.5
        %v3547 = vmul.f32 %v3483, 0.5
        %v3548 = vmul.f32 %v3484, 0.5
        %v3549 = vmul.f32 %v3485, 0.5
        %v3550 = vadd.f32 %v3486, %v3518
        %v3551 = vadd.f32 %v3487, %v3519
        %v3552 = vadd.f32 %v3488, %v3520
        %v3553 = vadd.f32 %v3489, %v3521
        %v3554 = vadd.f32 %v3490, %v3522
        %v3555 = vadd.f32 %v3491, %v3523
        %v3556 = vadd.f32 %v3492, %v3524
        %v3557 = vadd.f32 %v3493, %v3525
        %v3558 = vadd.f32 %v3494, %v3526
        %v3559 = vadd.f32 %v3495, %v3527
        %v3560 = vadd.f32 %v3496, %v3528
        %v3561 = vadd.f32 %v3497, %v3529
        %v3562 = vadd.f32 %v3498, %v3530
        %v3563 = vadd.f32 %v3499, %v3531
        %v3564 = vadd.f32 %v3500, %v3532
        %v3565 = vadd.f32 %v3501, %v3533
        %v3566 = vadd.f32 %v3502, %v3534
        %v3567 = vadd.f32 %v3503, %v3535
        %v3568 = vadd.f32 %v3504, %v3536
        %v3569 = vadd.f32 %v3505, %v3537
        %v3570 = vadd.f32 %v3506, %v3538
        %v3571 = vadd.f32 %v3507, %v3539
        %v3572 = vadd.f32 %v3508, %v3540
        %v3573 = vadd.f32 %v3509, %v3541
        %v3574 = vadd.f32 %v3510, %v3542
        %v3575 = vadd.f32 %v3511, %v3543
        %v3576 = vadd.f32 %v3512, %v3544
        %v3577 = vadd.f32 %v3513, %v3545
        %v3578 = vadd.f32 %v3514, %v3546
        %v3579 = vadd.f32 %v3515, %v3547
        %v3580 = vadd.f32 %v3516, %v3548
        %v3581 = vadd.f32 %v3517, %v3549
        %3582 = vst.msk [vmem:[#allocation4] sm:$0xff] %vm317, %v3550
        %3583 = vst.msk [vmem:[#allocation4 + $0x8] sm:$0xff] %vm317, %v3551
        %3584 = vst.msk [vmem:[#allocation4 + $0x10] sm:$0xff] %vm317, %v3552
        %3585 = vst.msk [vmem:[#allocation4 + $0x18] sm:$0xff] %vm317, %v3553
        %3586 = vst.msk [vmem:[#allocation4 + $0x20] sm:$0xff] %vm317, %v3554
        %3587 = vst.msk [vmem:[#allocation4 + $0x28] sm:$0xff] %vm317, %v3555
        %3588 = vst.msk [vmem:[#allocation4 + $0x30] sm:$0xff] %vm317, %v3556
        %3589 = vst.msk [vmem:[#allocation4 + $0x38] sm:$0xff] %vm317, %v3557
        %3590 = vst.msk [vmem:[#allocation4 + $0x40] sm:$0xff] %vm317, %v3558
        %3591 = vst.msk [vmem:[#allocation4 + $0x48] sm:$0xff] %vm317, %v3559
        %3592 = vst.msk [vmem:[#allocation4 + $0x50] sm:$0xff] %vm317, %v3560
        %3593 = vst.msk [vmem:[#allocation4 + $0x58] sm:$0xff] %vm317, %v3561
        %3594 = vst.msk [vmem:[#allocation4 + $0x60] sm:$0xff] %vm317, %v3562
        %3595 = vst.msk [vmem:[#allocation4 + $0x68] sm:$0xff] %vm317, %v3563
        %3596 = vst.msk [vmem:[#allocation4 + $0x70] sm:$0xff] %vm317, %v3564
        %3597 = vst.msk [vmem:[#allocation4 + $0x78] sm:$0xff] %vm317, %v3565
        %3598 = vst.msk [vmem:[#allocation4 + $0x80] sm:$0xff] %vm317, %v3566
        %3599 = vst.msk [vmem:[#allocation4 + $0x88] sm:$0xff] %vm317, %v3567
        %3600 = vst.msk [vmem:[#allocation4 + $0x90] sm:$0xff] %vm317, %v3568
        %3601 = vst.msk [vmem:[#allocation4 + $0x98] sm:$0xff] %vm317, %v3569
        %3602 = vst.msk [vmem:[#allocation4 + $0xa0] sm:$0xff] %vm317, %v3570
        %3603 = vst.msk [vmem:[#allocation4 + $0xa8] sm:$0xff] %vm317, %v3571
        %3604 = vst.msk [vmem:[#allocation4 + $0xb0] sm:$0xff] %vm317, %v3572
        %3605 = vst.msk [vmem:[#allocation4 + $0xb8] sm:$0xff] %vm317, %v3573
        %3606 = vst.msk [vmem:[#allocation4 + $0xc0] sm:$0xff] %vm317, %v3574
        %3607 = vst.msk [vmem:[#allocation4 + $0xc8] sm:$0xff] %vm317, %v3575
        %3608 = vst.msk [vmem:[#allocation4 + $0xd0] sm:$0xff] %vm317, %v3576
        %3609 = vst.msk [vmem:[#allocation4 + $0xd8] sm:$0xff] %vm317, %v3577
        %3610 = vst.msk [vmem:[#allocation4 + $0xe0] sm:$0xff] %vm317, %v3578
        %3611 = vst.msk [vmem:[#allocation4 + $0xe8] sm:$0xff] %vm317, %v3579
        %3612 = vst.msk [vmem:[#allocation4 + $0xf0] sm:$0xff] %vm317, %v3580
        %3613 = vst.msk [vmem:[#allocation4 + $0xf8] sm:$0xff] %vm317, %v3581
        %v3614 = vmax.f32 %v3212, 0.0
        %v3616 = vcombine.high %v3614, %v3614
        %v3618 = vunpack.c.l.s4 1966171168
        %v3619 = vunpack.c.0.s8 %v3618
        %v3620 = vlaneseq
        %v3621 = vshrl.u32 %v3620, 7
        %v3622 = vsub.s32 %v3619, %v3621
        %v3623 = vrot.slane %v3614, %v3622
        %v3625 = vunpack.c.l.s4 1966171168
        %v3626 = vunpack.c.0.s8 %v3625
        %v3627 = vlaneseq
        %v3628 = vshrl.u32 %v3627, 7
        %v3629 = vsub.s32 %v3626, %v3628
        %v3630 = vrot.slane %v3616, %v3629
        %v3631 = vcombine.high %v3623, %v3623
        %v3632 = vcombine.high %v3630, %v3630
        %v3634 = vunpack.c.l.s4 1966171168
        %v3635 = vunpack.c.0.s8 %v3634
        %v3636 = vlaneseq
        %v3637 = vshrl.u32 %v3636, 7
        %v3638 = vsub.s32 %v3635, %v3637
        %v3639 = vrot.slane %v3623, %v3638
        %v3641 = vunpack.c.l.s4 1966171168
        %v3642 = vunpack.c.0.s8 %v3641
        %v3643 = vlaneseq
        %v3644 = vshrl.u32 %v3643, 7
        %v3645 = vsub.s32 %v3642, %v3644
        %v3646 = vrot.slane %v3630, %v3645
        %v3648 = vunpack.c.l.s4 1966171168
        %v3649 = vunpack.c.0.s8 %v3648
        %v3650 = vlaneseq
        %v3651 = vshrl.u32 %v3650, 7
        %v3652 = vsub.s32 %v3649, %v3651
        %v3653 = vrot.slane %v3631, %v3652
        %v3655 = vunpack.c.l.s4 1966171168
        %v3656 = vunpack.c.0.s8 %v3655
        %v3657 = vlaneseq
        %v3658 = vshrl.u32 %v3657, 7
        %v3659 = vsub.s32 %v3656, %v3658
        %v3660 = vrot.slane %v3632, %v3659
        %v3661 = vcombine.high %v3639, %v3639
        %v3662 = vcombine.high %v3646, %v3646
        %v3663 = vcombine.high %v3653, %v3653
        %v3664 = vcombine.high %v3660, %v3660
        %v3665 = vlaneseq
        %v3666 = vshrl.u32 %v3665, 7
        %v3667 = vsub.s32 0, %v3666
        %v3668 = vrot.slane %v3639, %v3667
        %v3669 = vlaneseq
        %v3670 = vshrl.u32 %v3669, 7
        %v3671 = vsub.s32 0, %v3670
        %v3672 = vrot.slane %v3653, %v3671
        %v3673 = vlaneseq
        %v3674 = vshrl.u32 %v3673, 7
        %v3675 = vsub.s32 0, %v3674
        %v3676 = vrot.slane %v3661, %v3675
        %v3677 = vlaneseq
        %v3678 = vshrl.u32 %v3677, 7
        %v3679 = vsub.s32 0, %v3678
        %v3680 = vrot.slane %v3663, %v3679
        %v3681 = vlaneseq
        %v3682 = vshrl.u32 %v3681, 7
        %v3683 = vsub.s32 0, %v3682
        %v3684 = vrot.slane %v3646, %v3683
        %v3685 = vlaneseq
        %v3686 = vshrl.u32 %v3685, 7
        %v3687 = vsub.s32 0, %v3686
        %v3688 = vrot.slane %v3660, %v3687
        %v3689 = vlaneseq
        %v3690 = vshrl.u32 %v3689, 7
        %v3691 = vsub.s32 0, %v3690
        %v3692 = vrot.slane %v3662, %v3691
        %v3693 = vlaneseq
        %v3694 = vshrl.u32 %v3693, 7
        %v3695 = vsub.s32 0, %v3694
        %v3696 = vrot.slane %v3664, %v3695
        %v3705 = vmul.f32 %v3105, %v3668
        %v3706 = vmul.f32 %v3106, %v3668
        %v3707 = vmul.f32 %v3107, %v3668
        %v3708 = vmul.f32 %v3108, %v3668
        %v3709 = vmul.f32 %v3109, %v3672
        %v3710 = vmul.f32 %v3110, %v3672
        %v3711 = vmul.f32 %v3111, %v3672
        %v3712 = vmul.f32 %v3112, %v3672
        %v3713 = vmul.f32 %v3113, %v3676
        %v3714 = vmul.f32 %v3114, %v3676
        %v3715 = vmul.f32 %v3115, %v3676
        %v3716 = vmul.f32 %v3116, %v3676
        %v3717 = vmul.f32 %v3117, %v3680
        %v3718 = vmul.f32 %v3118, %v3680
        %v3719 = vmul.f32 %v3119, %v3680
        %v3720 = vmul.f32 %v3120, %v3680
        %v3721 = vmul.f32 %v3121, %v3684
        %v3722 = vmul.f32 %v3122, %v3684
        %v3723 = vmul.f32 %v3123, %v3684
        %v3724 = vmul.f32 %v3124, %v3684
        %v3725 = vmul.f32 %v3125, %v3688
        %v3726 = vmul.f32 %v3126, %v3688
        %v3727 = vmul.f32 %v3127, %v3688
        %v3728 = vmul.f32 %v3128, %v3688
        %v3729 = vmul.f32 %v3129, %v3692
        %v3730 = vmul.f32 %v3130, %v3692
        %v3731 = vmul.f32 %v3131, %v3692
        %v3732 = vmul.f32 %v3132, %v3692
        %v3733 = vmul.f32 %v3133, %v3696
        %v3734 = vmul.f32 %v3134, %v3696
        %v3735 = vmul.f32 %v3135, %v3696
        %v3736 = vmul.f32 %v3136, %v3696
        %v3737 = vsel %vm317, %v3705, 0.0
        %3738 = vadd.xlane.f32.xlu0 %v3737
        %v3739 = vpop.xlane.xlu0 %3738
        %v3740 = vsel %vm317, %v3706, 0.0
        %3741 = vadd.xlane.f32.xlu0 %v3740
        %v3742 = vpop.xlane.xlu0 %3741
        %v3743 = vsel %vm317, %v3707, 0.0
        %3744 = vadd.xlane.f32.xlu0 %v3743
        %v3745 = vpop.xlane.xlu0 %3744
        %v3746 = vsel %vm317, %v3708, 0.0
        %3747 = vadd.xlane.f32.xlu0 %v3746
        %v3748 = vpop.xlane.xlu0 %3747
        %v3749 = vsel %vm317, %v3709, 0.0
        %3750 = vadd.xlane.f32.xlu0 %v3749
        %v3751 = vpop.xlane.xlu0 %3750
        %v3752 = vsel %vm317, %v3710, 0.0
        %3753 = vadd.xlane.f32.xlu0 %v3752
        %v3754 = vpop.xlane.xlu0 %3753
        %v3755 = vsel %vm317, %v3711, 0.0
        %3756 = vadd.xlane.f32.xlu0 %v3755
        %v3757 = vpop.xlane.xlu0 %3756
        %v3758 = vsel %vm317, %v3712, 0.0
        %3759 = vadd.xlane.f32.xlu0 %v3758
        %v3760 = vpop.xlane.xlu0 %3759
        %v3761 = vsel %vm317, %v3713, 0.0
        %3762 = vadd.xlane.f32.xlu0 %v3761
        %v3763 = vpop.xlane.xlu0 %3762
        %v3764 = vsel %vm317, %v3714, 0.0
        %3765 = vadd.xlane.f32.xlu0 %v3764
        %v3766 = vpop.xlane.xlu0 %3765
        %v3767 = vsel %vm317, %v3715, 0.0
        %3768 = vadd.xlane.f32.xlu0 %v3767
        %v3769 = vpop.xlane.xlu0 %3768
        %v3770 = vsel %vm317, %v3716, 0.0
        %3771 = vadd.xlane.f32.xlu0 %v3770
        %v3772 = vpop.xlane.xlu0 %3771
        %v3773 = vsel %vm317, %v3717, 0.0
        %3774 = vadd.xlane.f32.xlu0 %v3773
        %v3775 = vpop.xlane.xlu0 %3774
        %v3776 = vsel %vm317, %v3718, 0.0
        %3777 = vadd.xlane.f32.xlu0 %v3776
        %v3778 = vpop.xlane.xlu0 %3777
        %v3779 = vsel %vm317, %v3719, 0.0
        %3780 = vadd.xlane.f32.xlu0 %v3779
        %v3781 = vpop.xlane.xlu0 %3780
        %v3782 = vsel %vm317, %v3720, 0.0
        %3783 = vadd.xlane.f32.xlu0 %v3782
        %v3784 = vpop.xlane.xlu0 %3783
        %v3785 = vsel %vm317, %v3721, 0.0
        %3786 = vadd.xlane.f32.xlu0 %v3785
        %v3787 = vpop.xlane.xlu0 %3786
        %v3788 = vsel %vm317, %v3722, 0.0
        %3789 = vadd.xlane.f32.xlu0 %v3788
        %v3790 = vpop.xlane.xlu0 %3789
        %v3791 = vsel %vm317, %v3723, 0.0
        %3792 = vadd.xlane.f32.xlu0 %v3791
        %v3793 = vpop.xlane.xlu0 %3792
        %v3794 = vsel %vm317, %v3724, 0.0
        %3795 = vadd.xlane.f32.xlu0 %v3794
        %v3796 = vpop.xlane.xlu0 %3795
        %v3797 = vsel %vm317, %v3725, 0.0
        %3798 = vadd.xlane.f32.xlu0 %v3797
        %v3799 = vpop.xlane.xlu0 %3798
        %v3800 = vsel %vm317, %v3726, 0.0
        %3801 = vadd.xlane.f32.xlu0 %v3800
        %v3802 = vpop.xlane.xlu0 %3801
        %v3803 = vsel %vm317, %v3727, 0.0
        %3804 = vadd.xlane.f32.xlu0 %v3803
        %v3805 = vpop.xlane.xlu0 %3804
        %v3806 = vsel %vm317, %v3728, 0.0
        %3807 = vadd.xlane.f32.xlu0 %v3806
        %v3808 = vpop.xlane.xlu0 %3807
        %v3809 = vsel %vm317, %v3729, 0.0
        %3810 = vadd.xlane.f32.xlu0 %v3809
        %v3811 = vpop.xlane.xlu0 %3810
        %v3812 = vsel %vm317, %v3730, 0.0
        %3813 = vadd.xlane.f32.xlu0 %v3812
        %v3814 = vpop.xlane.xlu0 %3813
        %v3815 = vsel %vm317, %v3731, 0.0
        %3816 = vadd.xlane.f32.xlu0 %v3815
        %v3817 = vpop.xlane.xlu0 %3816
        %v3818 = vsel %vm317, %v3732, 0.0
        %3819 = vadd.xlane.f32.xlu0 %v3818
        %v3820 = vpop.xlane.xlu0 %3819
        %v3821 = vsel %vm317, %v3733, 0.0
        %3822 = vadd.xlane.f32.xlu0 %v3821
        %v3823 = vpop.xlane.xlu0 %3822
        %v3824 = vsel %vm317, %v3734, 0.0
        %3825 = vadd.xlane.f32.xlu0 %v3824
        %v3826 = vpop.xlane.xlu0 %3825
        %v3827 = vsel %vm317, %v3735, 0.0
        %3828 = vadd.xlane.f32.xlu0 %v3827
        %v3829 = vpop.xlane.xlu0 %3828
        %v3830 = vsel %vm317, %v3736, 0.0
        %3831 = vadd.xlane.f32.xlu0 %v3830
        %v3832 = vpop.xlane.xlu0 %3831
        %v3833 = vmul.f32 %v3104, %v3614
        %v3834 = vsel %vm317, %v3833, 0.0
        %3835 = vadd.xlane.f32.xlu0 %v3834
        %v3836 = vpop.xlane.xlu0 %3835
        %v3837 = vmul.f32 %v3739, 0.9
        %v3838 = vmul.f32 %v3742, 0.9
        %v3839 = vmul.f32 %v3745, 0.9
        %v3840 = vmul.f32 %v3748, 0.9
        %v3841 = vmul.f32 %v3751, 0.9
        %v3842 = vmul.f32 %v3754, 0.9
        %v3843 = vmul.f32 %v3757, 0.9
        %v3844 = vmul.f32 %v3760, 0.9
        %v3845 = vmul.f32 %v3763, 0.9
        %v3846 = vmul.f32 %v3766, 0.9
        %v3847 = vmul.f32 %v3769, 0.9
        %v3848 = vmul.f32 %v3772, 0.9
        %v3849 = vmul.f32 %v3775, 0.9
        %v3850 = vmul.f32 %v3778, 0.9
        %v3851 = vmul.f32 %v3781, 0.9
        %v3852 = vmul.f32 %v3784, 0.9
        %v3853 = vmul.f32 %v3787, 0.9
        %v3854 = vmul.f32 %v3790, 0.9
        %v3855 = vmul.f32 %v3793, 0.9
        %v3856 = vmul.f32 %v3796, 0.9
        %v3857 = vmul.f32 %v3799, 0.9
        %v3858 = vmul.f32 %v3802, 0.9
        %v3859 = vmul.f32 %v3805, 0.9
        %v3860 = vmul.f32 %v3808, 0.9
        %v3861 = vmul.f32 %v3811, 0.9
        %v3862 = vmul.f32 %v3814, 0.9
        %v3863 = vmul.f32 %v3817, 0.9
        %v3864 = vmul.f32 %v3820, 0.9
        %v3865 = vmul.f32 %v3823, 0.9
        %v3866 = vmul.f32 %v3826, 0.9
        %v3867 = vmul.f32 %v3829, 0.9
        %v3868 = vmul.f32 %v3832, 0.9
        %v3869 = vmul.f32 %v3104, %v3836
        %v3870 = vmul.f32 %v3869, 0.5
        %v3872 = vlaneseq
        %v3873 = vshrl.u32 %v3872, 7
        %v3874 = vsub.s32 0, %v3873
        %v3875 = vrot.slane %v3870, %v3874
        %3877 = vbcast.lane.b32.xlu0 %v3875, 256
        %v3878 = vpop.permute.xlu0 %3877
        %s3880 = sor.u32 256, 8
        %3881 = vbcast.lane.b32.xlu0 %v3875, %s3880
        %v3882 = vpop.permute.xlu0 %3881
        %s3884 = sor.u32 256, 16
        %3885 = vbcast.lane.b32.xlu0 %v3875, %s3884
        %v3886 = vpop.permute.xlu0 %3885
        %s3888 = sor.u32 256, 24
        %3889 = vbcast.lane.b32.xlu0 %v3875, %s3888
        %v3890 = vpop.permute.xlu0 %3889
        %v3891 = vlaneseq
        %v3892 = vshrl.u32 %v3891, 7
        %v3893 = vsub.s32 1, %v3892
        %v3894 = vrot.slane %v3870, %v3893
        %3896 = vbcast.lane.b32.xlu0 %v3894, 256
        %v3897 = vpop.permute.xlu0 %3896
        %s3899 = sor.u32 256, 8
        %3900 = vbcast.lane.b32.xlu0 %v3894, %s3899
        %v3901 = vpop.permute.xlu0 %3900
        %s3903 = sor.u32 256, 16
        %3904 = vbcast.lane.b32.xlu0 %v3894, %s3903
        %v3905 = vpop.permute.xlu0 %3904
        %s3907 = sor.u32 256, 24
        %3908 = vbcast.lane.b32.xlu0 %v3894, %s3907
        %v3909 = vpop.permute.xlu0 %3908
        %v3910 = vlaneseq
        %v3911 = vshrl.u32 %v3910, 7
        %v3912 = vsub.s32 2, %v3911
        %v3913 = vrot.slane %v3870, %v3912
        %3915 = vbcast.lane.b32.xlu0 %v3913, 256
        %v3916 = vpop.permute.xlu0 %3915
        %s3918 = sor.u32 256, 8
        %3919 = vbcast.lane.b32.xlu0 %v3913, %s3918
        %v3920 = vpop.permute.xlu0 %3919
        %s3922 = sor.u32 256, 16
        %3923 = vbcast.lane.b32.xlu0 %v3913, %s3922
        %v3924 = vpop.permute.xlu0 %3923
        %s3926 = sor.u32 256, 24
        %3927 = vbcast.lane.b32.xlu0 %v3913, %s3926
        %v3928 = vpop.permute.xlu0 %3927
        %v3929 = vlaneseq
        %v3930 = vshrl.u32 %v3929, 7
        %v3931 = vsub.s32 3, %v3930
        %v3932 = vrot.slane %v3870, %v3931
        %3934 = vbcast.lane.b32.xlu0 %v3932, 256
        %v3935 = vpop.permute.xlu0 %3934
        %s3937 = sor.u32 256, 8
        %3938 = vbcast.lane.b32.xlu0 %v3932, %s3937
        %v3939 = vpop.permute.xlu0 %3938
        %s3941 = sor.u32 256, 16
        %3942 = vbcast.lane.b32.xlu0 %v3932, %s3941
        %v3943 = vpop.permute.xlu0 %3942
        %s3945 = sor.u32 256, 24
        %3946 = vbcast.lane.b32.xlu0 %v3932, %s3945
        %v3947 = vpop.permute.xlu0 %3946
        %v3948 = vlaneseq
        %v3949 = vshrl.u32 %v3948, 7
        %v3950 = vsub.s32 4, %v3949
        %v3951 = vrot.slane %v3870, %v3950
        %3953 = vbcast.lane.b32.xlu0 %v3951, 256
        %v3954 = vpop.permute.xlu0 %3953
        %s3956 = sor.u32 256, 8
        %3957 = vbcast.lane.b32.xlu0 %v3951, %s3956
        %v3958 = vpop.permute.xlu0 %3957
        %s3960 = sor.u32 256, 16
        %3961 = vbcast.lane.b32.xlu0 %v3951, %s3960
        %v3962 = vpop.permute.xlu0 %3961
        %s3964 = sor.u32 256, 24
        %3965 = vbcast.lane.b32.xlu0 %v3951, %s3964
        %v3966 = vpop.permute.xlu0 %3965
        %v3967 = vlaneseq
        %v3968 = vshrl.u32 %v3967, 7
        %v3969 = vsub.s32 5, %v3968
        %v3970 = vrot.slane %v3870, %v3969
        %3972 = vbcast.lane.b32.xlu0 %v3970, 256
        %v3973 = vpop.permute.xlu0 %3972
        %s3975 = sor.u32 256, 8
        %3976 = vbcast.lane.b32.xlu0 %v3970, %s3975
        %v3977 = vpop.permute.xlu0 %3976
        %s3979 = sor.u32 256, 16
        %3980 = vbcast.lane.b32.xlu0 %v3970, %s3979
        %v3981 = vpop.permute.xlu0 %3980
        %s3983 = sor.u32 256, 24
        %3984 = vbcast.lane.b32.xlu0 %v3970, %s3983
        %v3985 = vpop.permute.xlu0 %3984
        %v3986 = vlaneseq
        %v3987 = vshrl.u32 %v3986, 7
        %v3988 = vsub.s32 6, %v3987
        %v3989 = vrot.slane %v3870, %v3988
        %3991 = vbcast.lane.b32.xlu0 %v3989, 256
        %v3992 = vpop.permute.xlu0 %3991
        %s3994 = sor.u32 256, 8
        %3995 = vbcast.lane.b32.xlu0 %v3989, %s3994
        %v3996 = vpop.permute.xlu0 %3995
        %s3998 = sor.u32 256, 16
        %3999 = vbcast.lane.b32.xlu0 %v3989, %s3998
        %v4000 = vpop.permute.xlu0 %3999
        %s4002 = sor.u32 256, 24
        %4003 = vbcast.lane.b32.xlu0 %v3989, %s4002
        %v4004 = vpop.permute.xlu0 %4003
        %v4005 = vlaneseq
        %v4006 = vshrl.u32 %v4005, 7
        %v4007 = vsub.s32 7, %v4006
        %v4008 = vrot.slane %v3870, %v4007
        %4010 = vbcast.lane.b32.xlu0 %v4008, 256
        %v4011 = vpop.permute.xlu0 %4010
        %s4013 = sor.u32 256, 8
        %4014 = vbcast.lane.b32.xlu0 %v4008, %s4013
        %v4015 = vpop.permute.xlu0 %4014
        %s4017 = sor.u32 256, 16
        %4018 = vbcast.lane.b32.xlu0 %v4008, %s4017
        %v4019 = vpop.permute.xlu0 %4018
        %s4021 = sor.u32 256, 24
        %4022 = vbcast.lane.b32.xlu0 %v4008, %s4021
        %v4023 = vpop.permute.xlu0 %4022
        %v4056 = vadd.f32 %v3837, %v3878
        %v4057 = vadd.f32 %v3838, %v3882
        %v4058 = vadd.f32 %v3839, %v3886
        %v4059 = vadd.f32 %v3840, %v3890
        %v4060 = vadd.f32 %v3841, %v3897
        %v4061 = vadd.f32 %v3842, %v3901
        %v4062 = vadd.f32 %v3843, %v3905
        %v4063 = vadd.f32 %v3844, %v3909
        %v4064 = vadd.f32 %v3845, %v3916
        %v4065 = vadd.f32 %v3846, %v3920
        %v4066 = vadd.f32 %v3847, %v3924
        %v4067 = vadd.f32 %v3848, %v3928
        %v4068 = vadd.f32 %v3849, %v3935
        %v4069 = vadd.f32 %v3850, %v3939
        %v4070 = vadd.f32 %v3851, %v3943
        %v4071 = vadd.f32 %v3852, %v3947
        %v4072 = vadd.f32 %v3853, %v3954
        %v4073 = vadd.f32 %v3854, %v3958
        %v4074 = vadd.f32 %v3855, %v3962
        %v4075 = vadd.f32 %v3856, %v3966
        %v4076 = vadd.f32 %v3857, %v3973
        %v4077 = vadd.f32 %v3858, %v3977
        %v4078 = vadd.f32 %v3859, %v3981
        %v4079 = vadd.f32 %v3860, %v3985
        %v4080 = vadd.f32 %v3861, %v3992
        %v4081 = vadd.f32 %v3862, %v3996
        %v4082 = vadd.f32 %v3863, %v4000
        %v4083 = vadd.f32 %v3864, %v4004
        %v4084 = vadd.f32 %v3865, %v4011
        %v4085 = vadd.f32 %v3866, %v4015
        %v4086 = vadd.f32 %v3867, %v4019
        %v4087 = vadd.f32 %v3868, %v4023
        %4120 = vset.pattern.permute.xlu0 0
        %4121 = vperm.xlu0 %4120, %v4056
        %v4122 = vpop.permute.xlu0 %4121
        %4123 = vset.pattern.permute.xlu0 0
        %4124 = vperm.xlu0 %4123, %v4057
        %v4125 = vpop.permute.xlu0 %4124
        %4126 = vset.pattern.permute.xlu0 0
        %4127 = vperm.xlu0 %4126, %v4058
        %v4128 = vpop.permute.xlu0 %4127
        %4129 = vset.pattern.permute.xlu0 0
        %4130 = vperm.xlu0 %4129, %v4059
        %v4131 = vpop.permute.xlu0 %4130
        %4132 = vset.pattern.permute.xlu0 0
        %4133 = vperm.xlu0 %4132, %v4060
        %v4134 = vpop.permute.xlu0 %4133
        %4135 = vset.pattern.permute.xlu0 0
        %4136 = vperm.xlu0 %4135, %v4061
        %v4137 = vpop.permute.xlu0 %4136
        %4138 = vset.pattern.permute.xlu0 0
        %4139 = vperm.xlu0 %4138, %v4062
        %v4140 = vpop.permute.xlu0 %4139
        %4141 = vset.pattern.permute.xlu0 0
        %4142 = vperm.xlu0 %4141, %v4063
        %v4143 = vpop.permute.xlu0 %4142
        %4144 = vset.pattern.permute.xlu0 0
        %4145 = vperm.xlu0 %4144, %v4064
        %v4146 = vpop.permute.xlu0 %4145
        %4147 = vset.pattern.permute.xlu0 0
        %4148 = vperm.xlu0 %4147, %v4065
        %v4149 = vpop.permute.xlu0 %4148
        %4150 = vset.pattern.permute.xlu0 0
        %4151 = vperm.xlu0 %4150, %v4066
        %v4152 = vpop.permute.xlu0 %4151
        %4153 = vset.pattern.permute.xlu0 0
        %4154 = vperm.xlu0 %4153, %v4067
        %v4155 = vpop.permute.xlu0 %4154
        %4156 = vset.pattern.permute.xlu0 0
        %4157 = vperm.xlu0 %4156, %v4068
        %v4158 = vpop.permute.xlu0 %4157
        %4159 = vset.pattern.permute.xlu0 0
        %4160 = vperm.xlu0 %4159, %v4069
        %v4161 = vpop.permute.xlu0 %4160
        %4162 = vset.pattern.permute.xlu0 0
        %4163 = vperm.xlu0 %4162, %v4070
        %v4164 = vpop.permute.xlu0 %4163
        %4165 = vset.pattern.permute.xlu0 0
        %4166 = vperm.xlu0 %4165, %v4071
        %v4167 = vpop.permute.xlu0 %4166
        %4168 = vset.pattern.permute.xlu0 0
        %4169 = vperm.xlu0 %4168, %v4072
        %v4170 = vpop.permute.xlu0 %4169
        %4171 = vset.pattern.permute.xlu0 0
        %4172 = vperm.xlu0 %4171, %v4073
        %v4173 = vpop.permute.xlu0 %4172
        %4174 = vset.pattern.permute.xlu0 0
        %4175 = vperm.xlu0 %4174, %v4074
        %v4176 = vpop.permute.xlu0 %4175
        %4177 = vset.pattern.permute.xlu0 0
        %4178 = vperm.xlu0 %4177, %v4075
        %v4179 = vpop.permute.xlu0 %4178
        %4180 = vset.pattern.permute.xlu0 0
        %4181 = vperm.xlu0 %4180, %v4076
        %v4182 = vpop.permute.xlu0 %4181
        %4183 = vset.pattern.permute.xlu0 0
        %4184 = vperm.xlu0 %4183, %v4077
        %v4185 = vpop.permute.xlu0 %4184
        %4186 = vset.pattern.permute.xlu0 0
        %4187 = vperm.xlu0 %4186, %v4078
        %v4188 = vpop.permute.xlu0 %4187
        %4189 = vset.pattern.permute.xlu0 0
        %4190 = vperm.xlu0 %4189, %v4079
        %v4191 = vpop.permute.xlu0 %4190
        %4192 = vset.pattern.permute.xlu0 0
        %4193 = vperm.xlu0 %4192, %v4080
        %v4194 = vpop.permute.xlu0 %4193
        %4195 = vset.pattern.permute.xlu0 0
        %4196 = vperm.xlu0 %4195, %v4081
        %v4197 = vpop.permute.xlu0 %4196
        %4198 = vset.pattern.permute.xlu0 0
        %4199 = vperm.xlu0 %4198, %v4082
        %v4200 = vpop.permute.xlu0 %4199
        %4201 = vset.pattern.permute.xlu0 0
        %4202 = vperm.xlu0 %4201, %v4083
        %v4203 = vpop.permute.xlu0 %4202
        %4204 = vset.pattern.permute.xlu0 0
        %4205 = vperm.xlu0 %4204, %v4084
        %v4206 = vpop.permute.xlu0 %4205
        %4207 = vset.pattern.permute.xlu0 0
        %4208 = vperm.xlu0 %4207, %v4085
        %v4209 = vpop.permute.xlu0 %4208
        %4210 = vset.pattern.permute.xlu0 0
        %4211 = vperm.xlu0 %4210, %v4086
        %v4212 = vpop.permute.xlu0 %4211
        %4213 = vset.pattern.permute.xlu0 0
        %4214 = vperm.xlu0 %4213, %v4087
        %v4215 = vpop.permute.xlu0 %4214
        %v4216 = vlaneseq
        %v4217 = vshrl.u32 %v4216, 7
        %v4218 = vsub.s32 %v1618, %v4217
        %v4219 = vrot.slane %v4122, %v4218
        %v4220 = vlaneseq
        %v4221 = vshrl.u32 %v4220, 7
        %v4222 = vsub.s32 %v1623, %v4221
        %v4223 = vrot.slane %v4125, %v4222
        %v4224 = vsel %vm1628, %v4223, %v4219
        %v4225 = vlaneseq
        %v4226 = vshrl.u32 %v4225, 7
        %v4227 = vsub.s32 %v1630, %v4226
        %v4228 = vrot.slane %v4128, %v4227
        %v4229 = vsel %vm1635, %v4228, %v4224
        %v4230 = vlaneseq
        %v4231 = vshrl.u32 %v4230, 7
        %v4232 = vsub.s32 %v1637, %v4231
        %v4233 = vrot.slane %v4131, %v4232
        %v4234 = vsel %vm1642, %v4233, %v4229
        %v4235 = vlaneseq
        %v4236 = vshrl.u32 %v4235, 7
        %v4237 = vsub.s32 %v1618, %v4236
        %v4238 = vrot.slane %v4134, %v4237
        %v4239 = vlaneseq
        %v4240 = vshrl.u32 %v4239, 7
        %v4241 = vsub.s32 %v1623, %v4240
        %v4242 = vrot.slane %v4137, %v4241
        %v4243 = vsel %vm1628, %v4242, %v4238
        %v4244 = vlaneseq
        %v4245 = vshrl.u32 %v4244, 7
        %v4246 = vsub.s32 %v1630, %v4245
        %v4247 = vrot.slane %v4140, %v4246
        %v4248 = vsel %vm1635, %v4247, %v4243
        %v4249 = vlaneseq
        %v4250 = vshrl.u32 %v4249, 7
        %v4251 = vsub.s32 %v1637, %v4250
        %v4252 = vrot.slane %v4143, %v4251
        %v4253 = vsel %vm1642, %v4252, %v4248
        %v4254 = vlaneseq
        %v4255 = vshrl.u32 %v4254, 7
        %v4256 = vsub.s32 %v1618, %v4255
        %v4257 = vrot.slane %v4146, %v4256
        %v4258 = vlaneseq
        %v4259 = vshrl.u32 %v4258, 7
        %v4260 = vsub.s32 %v1623, %v4259
        %v4261 = vrot.slane %v4149, %v4260
        %v4262 = vsel %vm1628, %v4261, %v4257
        %v4263 = vlaneseq
        %v4264 = vshrl.u32 %v4263, 7
        %v4265 = vsub.s32 %v1630, %v4264
        %v4266 = vrot.slane %v4152, %v4265
        %v4267 = vsel %vm1635, %v4266, %v4262
        %v4268 = vlaneseq
        %v4269 = vshrl.u32 %v4268, 7
        %v4270 = vsub.s32 %v1637, %v4269
        %v4271 = vrot.slane %v4155, %v4270
        %v4272 = vsel %vm1642, %v4271, %v4267
        %v4273 = vlaneseq
        %v4274 = vshrl.u32 %v4273, 7
        %v4275 = vsub.s32 %v1618, %v4274
        %v4276 = vrot.slane %v4158, %v4275
        %v4277 = vlaneseq
        %v4278 = vshrl.u32 %v4277, 7
        %v4279 = vsub.s32 %v1623, %v4278
        %v4280 = vrot.slane %v4161, %v4279
        %v4281 = vsel %vm1628, %v4280, %v4276
        %v4282 = vlaneseq
        %v4283 = vshrl.u32 %v4282, 7
        %v4284 = vsub.s32 %v1630, %v4283
        %v4285 = vrot.slane %v4164, %v4284
        %v4286 = vsel %vm1635, %v4285, %v4281
        %v4287 = vlaneseq
        %v4288 = vshrl.u32 %v4287, 7
        %v4289 = vsub.s32 %v1637, %v4288
        %v4290 = vrot.slane %v4167, %v4289
        %v4291 = vsel %vm1642, %v4290, %v4286
        %v4292 = vlaneseq
        %v4293 = vshrl.u32 %v4292, 7
        %v4294 = vsub.s32 %v1618, %v4293
        %v4295 = vrot.slane %v4170, %v4294
        %v4296 = vlaneseq
        %v4297 = vshrl.u32 %v4296, 7
        %v4298 = vsub.s32 %v1623, %v4297
        %v4299 = vrot.slane %v4173, %v4298
        %v4300 = vsel %vm1628, %v4299, %v4295
        %v4301 = vlaneseq
        %v4302 = vshrl.u32 %v4301, 7
        %v4303 = vsub.s32 %v1630, %v4302
        %v4304 = vrot.slane %v4176, %v4303
        %v4305 = vsel %vm1635, %v4304, %v4300
        %v4306 = vlaneseq
        %v4307 = vshrl.u32 %v4306, 7
        %v4308 = vsub.s32 %v1637, %v4307
        %v4309 = vrot.slane %v4179, %v4308
        %v4310 = vsel %vm1642, %v4309, %v4305
        %v4311 = vlaneseq
        %v4312 = vshrl.u32 %v4311, 7
        %v4313 = vsub.s32 %v1618, %v4312
        %v4314 = vrot.slane %v4182, %v4313
        %v4315 = vlaneseq
        %v4316 = vshrl.u32 %v4315, 7
        %v4317 = vsub.s32 %v1623, %v4316
        %v4318 = vrot.slane %v4185, %v4317
        %v4319 = vsel %vm1628, %v4318, %v4314
        %v4320 = vlaneseq
        %v4321 = vshrl.u32 %v4320, 7
        %v4322 = vsub.s32 %v1630, %v4321
        %v4323 = vrot.slane %v4188, %v4322
        %v4324 = vsel %vm1635, %v4323, %v4319
        %v4325 = vlaneseq
        %v4326 = vshrl.u32 %v4325, 7
        %v4327 = vsub.s32 %v1637, %v4326
        %v4328 = vrot.slane %v4191, %v4327
        %v4329 = vsel %vm1642, %v4328, %v4324
        %v4330 = vlaneseq
        %v4331 = vshrl.u32 %v4330, 7
        %v4332 = vsub.s32 %v1618, %v4331
        %v4333 = vrot.slane %v4194, %v4332
        %v4334 = vlaneseq
        %v4335 = vshrl.u32 %v4334, 7
        %v4336 = vsub.s32 %v1623, %v4335
        %v4337 = vrot.slane %v4197, %v4336
        %v4338 = vsel %vm1628, %v4337, %v4333
        %v4339 = vlaneseq
        %v4340 = vshrl.u32 %v4339, 7
        %v4341 = vsub.s32 %v1630, %v4340
        %v4342 = vrot.slane %v4200, %v4341
        %v4343 = vsel %vm1635, %v4342, %v4338
        %v4344 = vlaneseq
        %v4345 = vshrl.u32 %v4344, 7
        %v4346 = vsub.s32 %v1637, %v4345
        %v4347 = vrot.slane %v4203, %v4346
        %v4348 = vsel %vm1642, %v4347, %v4343
        %v4349 = vlaneseq
        %v4350 = vshrl.u32 %v4349, 7
        %v4351 = vsub.s32 %v1618, %v4350
        %v4352 = vrot.slane %v4206, %v4351
        %v4353 = vlaneseq
        %v4354 = vshrl.u32 %v4353, 7
        %v4355 = vsub.s32 %v1623, %v4354
        %v4356 = vrot.slane %v4209, %v4355
        %v4357 = vsel %vm1628, %v4356, %v4352
        %v4358 = vlaneseq
        %v4359 = vshrl.u32 %v4358, 7
        %v4360 = vsub.s32 %v1630, %v4359
        %v4361 = vrot.slane %v4212, %v4360
        %v4362 = vsel %vm1635, %v4361, %v4357
        %v4363 = vlaneseq
        %v4364 = vshrl.u32 %v4363, 7
        %v4365 = vsub.s32 %v1637, %v4364
        %v4366 = vrot.slane %v4215, %v4365
        %v4367 = vsel %vm1642, %v4366, %v4362
        %v4368 = vsel %vm1777, %v4253, %v4234
        %v4369 = vsel %vm1779, %v4272, %v4368
        %v4370 = vsel %vm1781, %v4291, %v4369
        %v4371 = vsel %vm1783, %v4310, %v4370
        %v4372 = vsel %vm1785, %v4329, %v4371
        %v4373 = vsel %vm1787, %v4348, %v4372
        %v4374 = vsel %vm1789, %v4367, %v4373
        %v4376 = vadd.f32 %v3212, %v4374
        %v4377 = vsel %vm317, %v4376, 0.0
        %4378 = vadd.xlane.f32.xlu0 %v4377
        %v4379 = vpop.xlane.xlu0 %4378
        %v4380 = vmul.f32 %v4379, %v1796
        %v4381 = vsub.f32 %v4376, %v4380
        %v4382 = vmul.f32 %v4381, %v4381
        %v4383 = vsel %vm317, %v4382, 0.0
        %4384 = vadd.xlane.f32.xlu0 %v4383
        %v4385 = vpop.xlane.xlu0 %4384
        %v4386 = vmul.f32 %v4385, %v1796
        %v4387 = vadd.f32 %v4386, 1e-05
        %v4388 = vrsqrt.pop %v4387
        %v4389 = vmul.f32 %v4381, %v4388
        %v4390 = vmul.f32 %v4389, %v497
        %v4391 = vadd.f32 %v4390, %v504
        %v4392 = vmax.f32 %v4391, 0.0
        %4393 = vst.msk [vmem:[#allocation3] sm:$0xff] %vm317, %v4392
        %s4394 = scalar_lea.vmem %s297, 16 [#allocation11]
        %4395 = vst.msk [vmem:[%s4394] sm:$0xff] %vm317, %v4392
        %v4396 = vld [vmem:[#allocation3] sm:$0xff]
        %v4397 = vld [vmem:[#allocation4] sm:$0xff]
        %v4398 = vld [vmem:[#allocation4 + $0x8] sm:$0xff]
        %v4399 = vld [vmem:[#allocation4 + $0x10] sm:$0xff]
        %v4400 = vld [vmem:[#allocation4 + $0x18] sm:$0xff]
        %v4401 = vld [vmem:[#allocation4 + $0x20] sm:$0xff]
        %v4402 = vld [vmem:[#allocation4 + $0x28] sm:$0xff]
        %v4403 = vld [vmem:[#allocation4 + $0x30] sm:$0xff]
        %v4404 = vld [vmem:[#allocation4 + $0x38] sm:$0xff]
        %v4405 = vld [vmem:[#allocation4 + $0x40] sm:$0xff]
        %v4406 = vld [vmem:[#allocation4 + $0x48] sm:$0xff]
        %v4407 = vld [vmem:[#allocation4 + $0x50] sm:$0xff]
        %v4408 = vld [vmem:[#allocation4 + $0x58] sm:$0xff]
        %v4409 = vld [vmem:[#allocation4 + $0x60] sm:$0xff]
        %v4410 = vld [vmem:[#allocation4 + $0x68] sm:$0xff]
        %v4411 = vld [vmem:[#allocation4 + $0x70] sm:$0xff]
        %v4412 = vld [vmem:[#allocation4 + $0x78] sm:$0xff]
        %v4413 = vld [vmem:[#allocation4 + $0x80] sm:$0xff]
        %v4414 = vld [vmem:[#allocation4 + $0x88] sm:$0xff]
        %v4415 = vld [vmem:[#allocation4 + $0x90] sm:$0xff]
        %v4416 = vld [vmem:[#allocation4 + $0x98] sm:$0xff]
        %v4417 = vld [vmem:[#allocation4 + $0xa0] sm:$0xff]
        %v4418 = vld [vmem:[#allocation4 + $0xa8] sm:$0xff]
        %v4419 = vld [vmem:[#allocation4 + $0xb0] sm:$0xff]
        %v4420 = vld [vmem:[#allocation4 + $0xb8] sm:$0xff]
        %v4421 = vld [vmem:[#allocation4 + $0xc0] sm:$0xff]
        %v4422 = vld [vmem:[#allocation4 + $0xc8] sm:$0xff]
        %v4423 = vld [vmem:[#allocation4 + $0xd0] sm:$0xff]
        %v4424 = vld [vmem:[#allocation4 + $0xd8] sm:$0xff]
        %v4425 = vld [vmem:[#allocation4 + $0xe0] sm:$0xff]
        %v4426 = vld [vmem:[#allocation4 + $0xe8] sm:$0xff]
        %v4427 = vld [vmem:[#allocation4 + $0xf0] sm:$0xff]
        %v4428 = vld [vmem:[#allocation4 + $0xf8] sm:$0xff]
        %s4429 = scalar_lea.vmem [#allocation2], 24
        %v4430 = vld [vmem:[%s4429] sm:$0xff]
        %v4432 = vsel %vm317, %v4396, 0
        %4434 = vmatprep.subr.mxu0 0.0
        %4435 = vmatpush1.msra.mxu0 0.0
        %4436 = vmatprep.subr.mxu0 0.0
        %4437 = vmatpush1.msra.mxu0 0.0
        %4438 = vmatprep.subr.mxu0 0.0
        %4439 = vmatpush1.msra.mxu0 0.0
        %4440 = vmatprep.subr.mxu0 0.0
        %4441 = vmatpush1.msra.mxu0 0.0
        %4442 = vmatprep.subr.mxu0 0.0
        %4443 = vmatpush1.msra.mxu0 0.0
        %4444 = vmatprep.subr.mxu0 0.0
        %4445 = vmatpush1.msra.mxu0 0.0
        %4446 = vmatprep.subr.mxu0 0.0
        %4447 = vmatpush1.msra.mxu0 0.0
        %4448 = vmatprep.subr.mxu0 0.0
        %4449 = vmatpush1.msra.mxu0 0.0
        %4450 = vmatprep.subr.mxu0 0.0
        %4451 = vmatpush1.msra.mxu0 0.0
        %4452 = vmatprep.subr.mxu0 0.0
        %4453 = vmatpush1.msra.mxu0 0.0
        %4454 = vmatprep.subr.mxu0 0.0
        %4455 = vmatpush1.msra.mxu0 0.0
        %4456 = vmatprep.subr.mxu0 0.0
        %4457 = vmatpush1.msra.mxu0 0.0
        %4458 = vmatprep.subr.mxu0 0.0
        %4459 = vmatpush1.msra.mxu0 %v491
        %4460 = vmatprep.subr.mxu0 0.0
        %4461 = vmatpush1.msra.mxu0 %v490
        %4462 = vmatprep.subr.mxu0 0.0
        %4463 = vmatpush1.msra.mxu0 %v489
        %4464 = vmatprep.subr.mxu0 0.0
        %4465 = vmatpush1.msra.mxu0 %v488
        %4466 = vmatprep.subr.mxu0 0.0
        %4467 = vmatpush2.msra.mxu0 0.0
        %4468 = vmatprep.subr.mxu0 0.0
        %4469 = vmatpush2.msra.mxu0 0.0
        %4470 = vmatprep.subr.mxu0 0.0
        %4471 = vmatpush2.msra.mxu0 0.0
        %4472 = vmatprep.subr.mxu0 0.0
        %4473 = vmatpush2.msra.mxu0 0.0
        %4474 = vmatprep.subr.mxu0 0.0
        %4475 = vmatpush2.msra.mxu0 0.0
        %4476 = vmatprep.subr.mxu0 0.0
        %4477 = vmatpush2.msra.mxu0 0.0
        %4478 = vmatprep.subr.mxu0 0.0
        %4479 = vmatpush2.msra.mxu0 0.0
        %4480 = vmatprep.subr.mxu0 0.0
        %4481 = vmatpush2.msra.mxu0 0.0
        %4482 = vmatprep.subr.mxu0 0.0
        %4483 = vmatpush2.msra.mxu0 0.0
        %4484 = vmatprep.subr.mxu0 0.0
        %4485 = vmatpush2.msra.mxu0 0.0
        %4486 = vmatprep.subr.mxu0 0.0
        %4487 = vmatpush2.msra.mxu0 0.0
        %4488 = vmatprep.subr.mxu0 0.0
        %4489 = vmatpush2.msra.mxu0 0.0
        %4490 = vmatprep.subr.mxu0 0.0
        %4491 = vmatpush2.msra.mxu0 0.0
        %4492 = vmatprep.subr.mxu0 0.0
        %4493 = vmatpush2.msra.mxu0 0.0
        %4494 = vmatprep.subr.mxu0 0.0
        %4495 = vmatpush2.msra.mxu0 0.0
        %4496 = vmatprep.subr.mxu0 0.0
        %4497 = vmatpush2.msra.mxu0 0.0
        %4498 = vmatprep.mubr.f32.mxu0 0.0
        %4499 = vmatmul.mubr.f32.gmra.mxu0 %v4432
        %v4500 = vpop.f32.mrf.mxu0
        %v4501 = vadd.f32 0.0, %v4500
        %v4502 = vpop.f32.mrf.mxu0
        %4503 = vdwg.mxu0
        %v4504 = vadd.f32 %v4430, %v4501
        %v4505 = vlaneseq
        %v4506 = vshrl.u32 %v4505, 7
        %v4507 = vsub.s32 0, %v4506
        %v4508 = vrot.slane %v4396, %v4507
        %4510 = vbcast.lane.b32.xlu0 %v4508, 256
        %v4511 = vpop.permute.xlu0 %4510
        %s4513 = sor.u32 256, 8
        %4514 = vbcast.lane.b32.xlu0 %v4508, %s4513
        %v4515 = vpop.permute.xlu0 %4514
        %s4517 = sor.u32 256, 16
        %4518 = vbcast.lane.b32.xlu0 %v4508, %s4517
        %v4519 = vpop.permute.xlu0 %4518
        %s4521 = sor.u32 256, 24
        %4522 = vbcast.lane.b32.xlu0 %v4508, %s4521
        %v4523 = vpop.permute.xlu0 %4522
        %v4524 = vlaneseq
        %v4525 = vshrl.u32 %v4524, 7
        %v4526 = vsub.s32 1, %v4525
        %v4527 = vrot.slane %v4396, %v4526
        %4529 = vbcast.lane.b32.xlu0 %v4527, 256
        %v4530 = vpop.permute.xlu0 %4529
        %s4532 = sor.u32 256, 8
        %4533 = vbcast.lane.b32.xlu0 %v4527, %s4532
        %v4534 = vpop.permute.xlu0 %4533
        %s4536 = sor.u32 256, 16
        %4537 = vbcast.lane.b32.xlu0 %v4527, %s4536
        %v4538 = vpop.permute.xlu0 %4537
        %s4540 = sor.u32 256, 24
        %4541 = vbcast.lane.b32.xlu0 %v4527, %s4540
        %v4542 = vpop.permute.xlu0 %4541
        %v4543 = vlaneseq
        %v4544 = vshrl.u32 %v4543, 7
        %v4545 = vsub.s32 2, %v4544
        %v4546 = vrot.slane %v4396, %v4545
        %4548 = vbcast.lane.b32.xlu0 %v4546, 256
        %v4549 = vpop.permute.xlu0 %4548
        %s4551 = sor.u32 256, 8
        %4552 = vbcast.lane.b32.xlu0 %v4546, %s4551
        %v4553 = vpop.permute.xlu0 %4552
        %s4555 = sor.u32 256, 16
        %4556 = vbcast.lane.b32.xlu0 %v4546, %s4555
        %v4557 = vpop.permute.xlu0 %4556
        %s4559 = sor.u32 256, 24
        %4560 = vbcast.lane.b32.xlu0 %v4546, %s4559
        %v4561 = vpop.permute.xlu0 %4560
        %v4562 = vlaneseq
        %v4563 = vshrl.u32 %v4562, 7
        %v4564 = vsub.s32 3, %v4563
        %v4565 = vrot.slane %v4396, %v4564
        %4567 = vbcast.lane.b32.xlu0 %v4565, 256
        %v4568 = vpop.permute.xlu0 %4567
        %s4570 = sor.u32 256, 8
        %4571 = vbcast.lane.b32.xlu0 %v4565, %s4570
        %v4572 = vpop.permute.xlu0 %4571
        %s4574 = sor.u32 256, 16
        %4575 = vbcast.lane.b32.xlu0 %v4565, %s4574
        %v4576 = vpop.permute.xlu0 %4575
        %s4578 = sor.u32 256, 24
        %4579 = vbcast.lane.b32.xlu0 %v4565, %s4578
        %v4580 = vpop.permute.xlu0 %4579
        %v4581 = vlaneseq
        %v4582 = vshrl.u32 %v4581, 7
        %v4583 = vsub.s32 4, %v4582
        %v4584 = vrot.slane %v4396, %v4583
        %4586 = vbcast.lane.b32.xlu0 %v4584, 256
        %v4587 = vpop.permute.xlu0 %4586
        %s4589 = sor.u32 256, 8
        %4590 = vbcast.lane.b32.xlu0 %v4584, %s4589
        %v4591 = vpop.permute.xlu0 %4590
        %s4593 = sor.u32 256, 16
        %4594 = vbcast.lane.b32.xlu0 %v4584, %s4593
        %v4595 = vpop.permute.xlu0 %4594
        %s4597 = sor.u32 256, 24
        %4598 = vbcast.lane.b32.xlu0 %v4584, %s4597
        %v4599 = vpop.permute.xlu0 %4598
        %v4600 = vlaneseq
        %v4601 = vshrl.u32 %v4600, 7
        %v4602 = vsub.s32 5, %v4601
        %v4603 = vrot.slane %v4396, %v4602
        %4605 = vbcast.lane.b32.xlu0 %v4603, 256
        %v4606 = vpop.permute.xlu0 %4605
        %s4608 = sor.u32 256, 8
        %4609 = vbcast.lane.b32.xlu0 %v4603, %s4608
        %v4610 = vpop.permute.xlu0 %4609
        %s4612 = sor.u32 256, 16
        %4613 = vbcast.lane.b32.xlu0 %v4603, %s4612
        %v4614 = vpop.permute.xlu0 %4613
        %s4616 = sor.u32 256, 24
        %4617 = vbcast.lane.b32.xlu0 %v4603, %s4616
        %v4618 = vpop.permute.xlu0 %4617
        %v4619 = vlaneseq
        %v4620 = vshrl.u32 %v4619, 7
        %v4621 = vsub.s32 6, %v4620
        %v4622 = vrot.slane %v4396, %v4621
        %4624 = vbcast.lane.b32.xlu0 %v4622, 256
        %v4625 = vpop.permute.xlu0 %4624
        %s4627 = sor.u32 256, 8
        %4628 = vbcast.lane.b32.xlu0 %v4622, %s4627
        %v4629 = vpop.permute.xlu0 %4628
        %s4631 = sor.u32 256, 16
        %4632 = vbcast.lane.b32.xlu0 %v4622, %s4631
        %v4633 = vpop.permute.xlu0 %4632
        %s4635 = sor.u32 256, 24
        %4636 = vbcast.lane.b32.xlu0 %v4622, %s4635
        %v4637 = vpop.permute.xlu0 %4636
        %v4638 = vlaneseq
        %v4639 = vshrl.u32 %v4638, 7
        %v4640 = vsub.s32 7, %v4639
        %v4641 = vrot.slane %v4396, %v4640
        %4643 = vbcast.lane.b32.xlu0 %v4641, 256
        %v4644 = vpop.permute.xlu0 %4643
        %s4646 = sor.u32 256, 8
        %4647 = vbcast.lane.b32.xlu0 %v4641, %s4646
        %v4648 = vpop.permute.xlu0 %4647
        %s4650 = sor.u32 256, 16
        %4651 = vbcast.lane.b32.xlu0 %v4641, %s4650
        %v4652 = vpop.permute.xlu0 %4651
        %s4654 = sor.u32 256, 24
        %4655 = vbcast.lane.b32.xlu0 %v4641, %s4654
        %v4656 = vpop.permute.xlu0 %4655
        %v4657 = vcombine.high %v4396, %v4396
        %v4659 = vunpack.c.l.s4 1966171168
        %v4660 = vunpack.c.0.s8 %v4659
        %v4661 = vlaneseq
        %v4662 = vshrl.u32 %v4661, 7
        %v4663 = vsub.s32 %v4660, %v4662
        %v4664 = vrot.slane %v4396, %v4663
        %v4666 = vunpack.c.l.s4 1966171168
        %v4667 = vunpack.c.0.s8 %v4666
        %v4668 = vlaneseq
        %v4669 = vshrl.u32 %v4668, 7
        %v4670 = vsub.s32 %v4667, %v4669
        %v4671 = vrot.slane %v4657, %v4670
        %v4672 = vcombine.high %v4664, %v4664
        %v4673 = vcombine.high %v4671, %v4671
        %v4675 = vunpack.c.l.s4 1966171168
        %v4676 = vunpack.c.0.s8 %v4675
        %v4677 = vlaneseq
        %v4678 = vshrl.u32 %v4677, 7
        %v4679 = vsub.s32 %v4676, %v4678
        %v4680 = vrot.slane %v4664, %v4679
        %v4682 = vunpack.c.l.s4 1966171168
        %v4683 = vunpack.c.0.s8 %v4682
        %v4684 = vlaneseq
        %v4685 = vshrl.u32 %v4684, 7
        %v4686 = vsub.s32 %v4683, %v4685
        %v4687 = vrot.slane %v4671, %v4686
        %v4689 = vunpack.c.l.s4 1966171168
        %v4690 = vunpack.c.0.s8 %v4689
        %v4691 = vlaneseq
        %v4692 = vshrl.u32 %v4691, 7
        %v4693 = vsub.s32 %v4690, %v4692
        %v4694 = vrot.slane %v4672, %v4693
        %v4696 = vunpack.c.l.s4 1966171168
        %v4697 = vunpack.c.0.s8 %v4696
        %v4698 = vlaneseq
        %v4699 = vshrl.u32 %v4698, 7
        %v4700 = vsub.s32 %v4697, %v4699
        %v4701 = vrot.slane %v4673, %v4700
        %v4702 = vcombine.high %v4680, %v4680
        %v4703 = vcombine.high %v4687, %v4687
        %v4704 = vcombine.high %v4694, %v4694
        %v4705 = vcombine.high %v4701, %v4701
        %v4706 = vlaneseq
        %v4707 = vshrl.u32 %v4706, 7
        %v4708 = vsub.s32 0, %v4707
        %v4709 = vrot.slane %v4680, %v4708
        %v4710 = vlaneseq
        %v4711 = vshrl.u32 %v4710, 7
        %v4712 = vsub.s32 0, %v4711
        %v4713 = vrot.slane %v4694, %v4712
        %v4714 = vlaneseq
        %v4715 = vshrl.u32 %v4714, 7
        %v4716 = vsub.s32 0, %v4715
        %v4717 = vrot.slane %v4702, %v4716
        %v4718 = vlaneseq
        %v4719 = vshrl.u32 %v4718, 7
        %v4720 = vsub.s32 0, %v4719
        %v4721 = vrot.slane %v4704, %v4720
        %v4722 = vlaneseq
        %v4723 = vshrl.u32 %v4722, 7
        %v4724 = vsub.s32 0, %v4723
        %v4725 = vrot.slane %v4687, %v4724
        %v4726 = vlaneseq
        %v4727 = vshrl.u32 %v4726, 7
        %v4728 = vsub.s32 0, %v4727
        %v4729 = vrot.slane %v4701, %v4728
        %v4730 = vlaneseq
        %v4731 = vshrl.u32 %v4730, 7
        %v4732 = vsub.s32 0, %v4731
        %v4733 = vrot.slane %v4703, %v4732
        %v4734 = vlaneseq
        %v4735 = vshrl.u32 %v4734, 7
        %v4736 = vsub.s32 0, %v4735
        %v4737 = vrot.slane %v4705, %v4736
        %v4746 = vmul.f32 %v4511, %v4709
        %v4747 = vmul.f32 %v4515, %v4709
        %v4748 = vmul.f32 %v4519, %v4709
        %v4749 = vmul.f32 %v4523, %v4709
        %v4750 = vmul.f32 %v4530, %v4713
        %v4751 = vmul.f32 %v4534, %v4713
        %v4752 = vmul.f32 %v4538, %v4713
        %v4753 = vmul.f32 %v4542, %v4713
        %v4754 = vmul.f32 %v4549, %v4717
        %v4755 = vmul.f32 %v4553, %v4717
        %v4756 = vmul.f32 %v4557, %v4717
        %v4757 = vmul.f32 %v4561, %v4717
        %v4758 = vmul.f32 %v4568, %v4721
        %v4759 = vmul.f32 %v4572, %v4721
        %v4760 = vmul.f32 %v4576, %v4721
        %v4761 = vmul.f32 %v4580, %v4721
        %v4762 = vmul.f32 %v4587, %v4725
        %v4763 = vmul.f32 %v4591, %v4725
        %v4764 = vmul.f32 %v4595, %v4725
        %v4765 = vmul.f32 %v4599, %v4725
        %v4766 = vmul.f32 %v4606, %v4729
        %v4767 = vmul.f32 %v4610, %v4729
        %v4768 = vmul.f32 %v4614, %v4729
        %v4769 = vmul.f32 %v4618, %v4729
        %v4770 = vmul.f32 %v4625, %v4733
        %v4771 = vmul.f32 %v4629, %v4733
        %v4772 = vmul.f32 %v4633, %v4733
        %v4773 = vmul.f32 %v4637, %v4733
        %v4774 = vmul.f32 %v4644, %v4737
        %v4775 = vmul.f32 %v4648, %v4737
        %v4776 = vmul.f32 %v4652, %v4737
        %v4777 = vmul.f32 %v4656, %v4737
        %v4778 = vmul.f32 %v4397, 0.9
        %v4779 = vmul.f32 %v4398, 0.9
        %v4780 = vmul.f32 %v4399, 0.9
        %v4781 = vmul.f32 %v4400, 0.9
        %v4782 = vmul.f32 %v4401, 0.9
        %v4783 = vmul.f32 %v4402, 0.9
        %v4784 = vmul.f32 %v4403, 0.9
        %v4785 = vmul.f32 %v4404, 0.9
        %v4786 = vmul.f32 %v4405, 0.9
        %v4787 = vmul.f32 %v4406, 0.9
        %v4788 = vmul.f32 %v4407, 0.9
        %v4789 = vmul.f32 %v4408, 0.9
        %v4790 = vmul.f32 %v4409, 0.9
        %v4791 = vmul.f32 %v4410, 0.9
        %v4792 = vmul.f32 %v4411, 0.9
        %v4793 = vmul.f32 %v4412, 0.9
        %v4794 = vmul.f32 %v4413, 0.9
        %v4795 = vmul.f32 %v4414, 0.9
        %v4796 = vmul.f32 %v4415, 0.9
        %v4797 = vmul.f32 %v4416, 0.9
        %v4798 = vmul.f32 %v4417, 0.9
        %v4799 = vmul.f32 %v4418, 0.9
        %v4800 = vmul.f32 %v4419, 0.9
        %v4801 = vmul.f32 %v4420, 0.9
        %v4802 = vmul.f32 %v4421, 0.9
        %v4803 = vmul.f32 %v4422, 0.9
        %v4804 = vmul.f32 %v4423, 0.9
        %v4805 = vmul.f32 %v4424, 0.9
        %v4806 = vmul.f32 %v4425, 0.9
        %v4807 = vmul.f32 %v4426, 0.9
        %v4808 = vmul.f32 %v4427, 0.9
        %v4809 = vmul.f32 %v4428, 0.9
        %v4810 = vmul.f32 %v4746, 0.5
        %v4811 = vmul.f32 %v4747, 0.5
        %v4812 = vmul.f32 %v4748, 0.5
        %v4813 = vmul.f32 %v4749, 0.5
        %v4814 = vmul.f32 %v4750, 0.5
        %v4815 = vmul.f32 %v4751, 0.5
        %v4816 = vmul.f32 %v4752, 0.5
        %v4817 = vmul.f32 %v4753, 0.5
        %v4818 = vmul.f32 %v4754, 0.5
        %v4819 = vmul.f32 %v4755, 0.5
        %v4820 = vmul.f32 %v4756, 0.5
        %v4821 = vmul.f32 %v4757, 0.5
        %v4822 = vmul.f32 %v4758, 0.5
        %v4823 = vmul.f32 %v4759, 0.5
        %v4824 = vmul.f32 %v4760, 0.5
        %v4825 = vmul.f32 %v4761, 0.5
        %v4826 = vmul.f32 %v4762, 0.5
        %v4827 = vmul.f32 %v4763, 0.5
        %v4828 = vmul.f32 %v4764, 0.5
        %v4829 = vmul.f32 %v4765, 0.5
        %v4830 = vmul.f32 %v4766, 0.5
        %v4831 = vmul.f32 %v4767, 0.5
        %v4832 = vmul.f32 %v4768, 0.5
        %v4833 = vmul.f32 %v4769, 0.5
        %v4834 = vmul.f32 %v4770, 0.5
        %v4835 = vmul.f32 %v4771, 0.5
        %v4836 = vmul.f32 %v4772, 0.5
        %v4837 = vmul.f32 %v4773, 0.5
        %v4838 = vmul.f32 %v4774, 0.5
        %v4839 = vmul.f32 %v4775, 0.5
        %v4840 = vmul.f32 %v4776, 0.5
        %v4841 = vmul.f32 %v4777, 0.5
        %v4842 = vadd.f32 %v4778, %v4810
        %v4843 = vadd.f32 %v4779, %v4811
        %v4844 = vadd.f32 %v4780, %v4812
        %v4845 = vadd.f32 %v4781, %v4813
        %v4846 = vadd.f32 %v4782, %v4814
        %v4847 = vadd.f32 %v4783, %v4815
        %v4848 = vadd.f32 %v4784, %v4816
        %v4849 = vadd.f32 %v4785, %v4817
        %v4850 = vadd.f32 %v4786, %v4818
        %v4851 = vadd.f32 %v4787, %v4819
        %v4852 = vadd.f32 %v4788, %v4820
        %v4853 = vadd.f32 %v4789, %v4821
        %v4854 = vadd.f32 %v4790, %v4822
        %v4855 = vadd.f32 %v4791, %v4823
        %v4856 = vadd.f32 %v4792, %v4824
        %v4857 = vadd.f32 %v4793, %v4825
        %v4858 = vadd.f32 %v4794, %v4826
        %v4859 = vadd.f32 %v4795, %v4827
        %v4860 = vadd.f32 %v4796, %v4828
        %v4861 = vadd.f32 %v4797, %v4829
        %v4862 = vadd.f32 %v4798, %v4830
        %v4863 = vadd.f32 %v4799, %v4831
        %v4864 = vadd.f32 %v4800, %v4832
        %v4865 = vadd.f32 %v4801, %v4833
        %v4866 = vadd.f32 %v4802, %v4834
        %v4867 = vadd.f32 %v4803, %v4835
        %v4868 = vadd.f32 %v4804, %v4836
        %v4869 = vadd.f32 %v4805, %v4837
        %v4870 = vadd.f32 %v4806, %v4838
        %v4871 = vadd.f32 %v4807, %v4839
        %v4872 = vadd.f32 %v4808, %v4840
        %v4873 = vadd.f32 %v4809, %v4841
        %4874 = vst.msk [vmem:[#allocation4] sm:$0xff] %vm317, %v4842
        %4875 = vst.msk [vmem:[#allocation4 + $0x8] sm:$0xff] %vm317, %v4843
        %4876 = vst.msk [vmem:[#allocation4 + $0x10] sm:$0xff] %vm317, %v4844
        %4877 = vst.msk [vmem:[#allocation4 + $0x18] sm:$0xff] %vm317, %v4845
        %4878 = vst.msk [vmem:[#allocation4 + $0x20] sm:$0xff] %vm317, %v4846
        %4879 = vst.msk [vmem:[#allocation4 + $0x28] sm:$0xff] %vm317, %v4847
        %4880 = vst.msk [vmem:[#allocation4 + $0x30] sm:$0xff] %vm317, %v4848
        %4881 = vst.msk [vmem:[#allocation4 + $0x38] sm:$0xff] %vm317, %v4849
        %4882 = vst.msk [vmem:[#allocation4 + $0x40] sm:$0xff] %vm317, %v4850
        %4883 = vst.msk [vmem:[#allocation4 + $0x48] sm:$0xff] %vm317, %v4851
        %4884 = vst.msk [vmem:[#allocation4 + $0x50] sm:$0xff] %vm317, %v4852
        %4885 = vst.msk [vmem:[#allocation4 + $0x58] sm:$0xff] %vm317, %v4853
        %4886 = vst.msk [vmem:[#allocation4 + $0x60] sm:$0xff] %vm317, %v4854
        %4887 = vst.msk [vmem:[#allocation4 + $0x68] sm:$0xff] %vm317, %v4855
        %4888 = vst.msk [vmem:[#allocation4 + $0x70] sm:$0xff] %vm317, %v4856
        %4889 = vst.msk [vmem:[#allocation4 + $0x78] sm:$0xff] %vm317, %v4857
        %4890 = vst.msk [vmem:[#allocation4 + $0x80] sm:$0xff] %vm317, %v4858
        %4891 = vst.msk [vmem:[#allocation4 + $0x88] sm:$0xff] %vm317, %v4859
        %4892 = vst.msk [vmem:[#allocation4 + $0x90] sm:$0xff] %vm317, %v4860
        %4893 = vst.msk [vmem:[#allocation4 + $0x98] sm:$0xff] %vm317, %v4861
        %4894 = vst.msk [vmem:[#allocation4 + $0xa0] sm:$0xff] %vm317, %v4862
        %4895 = vst.msk [vmem:[#allocation4 + $0xa8] sm:$0xff] %vm317, %v4863
        %4896 = vst.msk [vmem:[#allocation4 + $0xb0] sm:$0xff] %vm317, %v4864
        %4897 = vst.msk [vmem:[#allocation4 + $0xb8] sm:$0xff] %vm317, %v4865
        %4898 = vst.msk [vmem:[#allocation4 + $0xc0] sm:$0xff] %vm317, %v4866
        %4899 = vst.msk [vmem:[#allocation4 + $0xc8] sm:$0xff] %vm317, %v4867
        %4900 = vst.msk [vmem:[#allocation4 + $0xd0] sm:$0xff] %vm317, %v4868
        %4901 = vst.msk [vmem:[#allocation4 + $0xd8] sm:$0xff] %vm317, %v4869
        %4902 = vst.msk [vmem:[#allocation4 + $0xe0] sm:$0xff] %vm317, %v4870
        %4903 = vst.msk [vmem:[#allocation4 + $0xe8] sm:$0xff] %vm317, %v4871
        %4904 = vst.msk [vmem:[#allocation4 + $0xf0] sm:$0xff] %vm317, %v4872
        %4905 = vst.msk [vmem:[#allocation4 + $0xf8] sm:$0xff] %vm317, %v4873
        %v4906 = vmax.f32 %v4504, 0.0
        %v4908 = vcombine.high %v4906, %v4906
        %v4910 = vunpack.c.l.s4 1966171168
        %v4911 = vunpack.c.0.s8 %v4910
        %v4912 = vlaneseq
        %v4913 = vshrl.u32 %v4912, 7
        %v4914 = vsub.s32 %v4911, %v4913
        %v4915 = vrot.slane %v4906, %v4914
        %v4917 = vunpack.c.l.s4 1966171168
        %v4918 = vunpack.c.0.s8 %v4917
        %v4919 = vlaneseq
        %v4920 = vshrl.u32 %v4919, 7
        %v4921 = vsub.s32 %v4918, %v4920
        %v4922 = vrot.slane %v4908, %v4921
        %v4923 = vcombine.high %v4915, %v4915
        %v4924 = vcombine.high %v4922, %v4922
        %v4926 = vunpack.c.l.s4 1966171168
        %v4927 = vunpack.c.0.s8 %v4926
        %v4928 = vlaneseq
        %v4929 = vshrl.u32 %v4928, 7
        %v4930 = vsub.s32 %v4927, %v4929
        %v4931 = vrot.slane %v4915, %v4930
        %v4933 = vunpack.c.l.s4 1966171168
        %v4934 = vunpack.c.0.s8 %v4933
        %v4935 = vlaneseq
        %v4936 = vshrl.u32 %v4935, 7
        %v4937 = vsub.s32 %v4934, %v4936
        %v4938 = vrot.slane %v4922, %v4937
        %v4940 = vunpack.c.l.s4 1966171168
        %v4941 = vunpack.c.0.s8 %v4940
        %v4942 = vlaneseq
        %v4943 = vshrl.u32 %v4942, 7
        %v4944 = vsub.s32 %v4941, %v4943
        %v4945 = vrot.slane %v4923, %v4944
        %v4947 = vunpack.c.l.s4 1966171168
        %v4948 = vunpack.c.0.s8 %v4947
        %v4949 = vlaneseq
        %v4950 = vshrl.u32 %v4949, 7
        %v4951 = vsub.s32 %v4948, %v4950
        %v4952 = vrot.slane %v4924, %v4951
        %v4953 = vcombine.high %v4931, %v4931
        %v4954 = vcombine.high %v4938, %v4938
        %v4955 = vcombine.high %v4945, %v4945
        %v4956 = vcombine.high %v4952, %v4952
        %v4957 = vlaneseq
        %v4958 = vshrl.u32 %v4957, 7
        %v4959 = vsub.s32 0, %v4958
        %v4960 = vrot.slane %v4931, %v4959
        %v4961 = vlaneseq
        %v4962 = vshrl.u32 %v4961, 7
        %v4963 = vsub.s32 0, %v4962
        %v4964 = vrot.slane %v4945, %v4963
        %v4965 = vlaneseq
        %v4966 = vshrl.u32 %v4965, 7
        %v4967 = vsub.s32 0, %v4966
        %v4968 = vrot.slane %v4953, %v4967
        %v4969 = vlaneseq
        %v4970 = vshrl.u32 %v4969, 7
        %v4971 = vsub.s32 0, %v4970
        %v4972 = vrot.slane %v4955, %v4971
        %v4973 = vlaneseq
        %v4974 = vshrl.u32 %v4973, 7
        %v4975 = vsub.s32 0, %v4974
        %v4976 = vrot.slane %v4938, %v4975
        %v4977 = vlaneseq
        %v4978 = vshrl.u32 %v4977, 7
        %v4979 = vsub.s32 0, %v4978
        %v4980 = vrot.slane %v4952, %v4979
        %v4981 = vlaneseq
        %v4982 = vshrl.u32 %v4981, 7
        %v4983 = vsub.s32 0, %v4982
        %v4984 = vrot.slane %v4954, %v4983
        %v4985 = vlaneseq
        %v4986 = vshrl.u32 %v4985, 7
        %v4987 = vsub.s32 0, %v4986
        %v4988 = vrot.slane %v4956, %v4987
        %v4997 = vmul.f32 %v4397, %v4960
        %v4998 = vmul.f32 %v4398, %v4960
        %v4999 = vmul.f32 %v4399, %v4960
        %v5000 = vmul.f32 %v4400, %v4960
        %v5001 = vmul.f32 %v4401, %v4964
        %v5002 = vmul.f32 %v4402, %v4964
        %v5003 = vmul.f32 %v4403, %v4964
        %v5004 = vmul.f32 %v4404, %v4964
        %v5005 = vmul.f32 %v4405, %v4968
        %v5006 = vmul.f32 %v4406, %v4968
        %v5007 = vmul.f32 %v4407, %v4968
        %v5008 = vmul.f32 %v4408, %v4968
        %v5009 = vmul.f32 %v4409, %v4972
        %v5010 = vmul.f32 %v4410, %v4972
        %v5011 = vmul.f32 %v4411, %v4972
        %v5012 = vmul.f32 %v4412, %v4972
        %v5013 = vmul.f32 %v4413, %v4976
        %v5014 = vmul.f32 %v4414, %v4976
        %v5015 = vmul.f32 %v4415, %v4976
        %v5016 = vmul.f32 %v4416, %v4976
        %v5017 = vmul.f32 %v4417, %v4980
        %v5018 = vmul.f32 %v4418, %v4980
        %v5019 = vmul.f32 %v4419, %v4980
        %v5020 = vmul.f32 %v4420, %v4980
        %v5021 = vmul.f32 %v4421, %v4984
        %v5022 = vmul.f32 %v4422, %v4984
        %v5023 = vmul.f32 %v4423, %v4984
        %v5024 = vmul.f32 %v4424, %v4984
        %v5025 = vmul.f32 %v4425, %v4988
        %v5026 = vmul.f32 %v4426, %v4988
        %v5027 = vmul.f32 %v4427, %v4988
        %v5028 = vmul.f32 %v4428, %v4988
        %v5029 = vsel %vm317, %v4997, 0.0
        %5030 = vadd.xlane.f32.xlu0 %v5029
        %v5031 = vpop.xlane.xlu0 %5030
        %v5032 = vsel %vm317, %v4998, 0.0
        %5033 = vadd.xlane.f32.xlu0 %v5032
        %v5034 = vpop.xlane.xlu0 %5033
        %v5035 = vsel %vm317, %v4999, 0.0
        %5036 = vadd.xlane.f32.xlu0 %v5035
        %v5037 = vpop.xlane.xlu0 %5036
        %v5038 = vsel %vm317, %v5000, 0.0
        %5039 = vadd.xlane.f32.xlu0 %v5038
        %v5040 = vpop.xlane.xlu0 %5039
        %v5041 = vsel %vm317, %v5001, 0.0
        %5042 = vadd.xlane.f32.xlu0 %v5041
        %v5043 = vpop.xlane.xlu0 %5042
        %v5044 = vsel %vm317, %v5002, 0.0
        %5045 = vadd.xlane.f32.xlu0 %v5044
        %v5046 = vpop.xlane.xlu0 %5045
        %v5047 = vsel %vm317, %v5003, 0.0
        %5048 = vadd.xlane.f32.xlu0 %v5047
        %v5049 = vpop.xlane.xlu0 %5048
        %v5050 = vsel %vm317, %v5004, 0.0
        %5051 = vadd.xlane.f32.xlu0 %v5050
        %v5052 = vpop.xlane.xlu0 %5051
        %v5053 = vsel %vm317, %v5005, 0.0
        %5054 = vadd.xlane.f32.xlu0 %v5053
        %v5055 = vpop.xlane.xlu0 %5054
        %v5056 = vsel %vm317, %v5006, 0.0
        %5057 = vadd.xlane.f32.xlu0 %v5056
        %v5058 = vpop.xlane.xlu0 %5057
        %v5059 = vsel %vm317, %v5007, 0.0
        %5060 = vadd.xlane.f32.xlu0 %v5059
        %v5061 = vpop.xlane.xlu0 %5060
        %v5062 = vsel %vm317, %v5008, 0.0
        %5063 = vadd.xlane.f32.xlu0 %v5062
        %v5064 = vpop.xlane.xlu0 %5063
        %v5065 = vsel %vm317, %v5009, 0.0
        %5066 = vadd.xlane.f32.xlu0 %v5065
        %v5067 = vpop.xlane.xlu0 %5066
        %v5068 = vsel %vm317, %v5010, 0.0
        %5069 = vadd.xlane.f32.xlu0 %v5068
        %v5070 = vpop.xlane.xlu0 %5069
        %v5071 = vsel %vm317, %v5011, 0.0
        %5072 = vadd.xlane.f32.xlu0 %v5071
        %v5073 = vpop.xlane.xlu0 %5072
        %v5074 = vsel %vm317, %v5012, 0.0
        %5075 = vadd.xlane.f32.xlu0 %v5074
        %v5076 = vpop.xlane.xlu0 %5075
        %v5077 = vsel %vm317, %v5013, 0.0
        %5078 = vadd.xlane.f32.xlu0 %v5077
        %v5079 = vpop.xlane.xlu0 %5078
        %v5080 = vsel %vm317, %v5014, 0.0
        %5081 = vadd.xlane.f32.xlu0 %v5080
        %v5082 = vpop.xlane.xlu0 %5081
        %v5083 = vsel %vm317, %v5015, 0.0
        %5084 = vadd.xlane.f32.xlu0 %v5083
        %v5085 = vpop.xlane.xlu0 %5084
        %v5086 = vsel %vm317, %v5016, 0.0
        %5087 = vadd.xlane.f32.xlu0 %v5086
        %v5088 = vpop.xlane.xlu0 %5087
        %v5089 = vsel %vm317, %v5017, 0.0
        %5090 = vadd.xlane.f32.xlu0 %v5089
        %v5091 = vpop.xlane.xlu0 %5090
        %v5092 = vsel %vm317, %v5018, 0.0
        %5093 = vadd.xlane.f32.xlu0 %v5092
        %v5094 = vpop.xlane.xlu0 %5093
        %v5095 = vsel %vm317, %v5019, 0.0
        %5096 = vadd.xlane.f32.xlu0 %v5095
        %v5097 = vpop.xlane.xlu0 %5096
        %v5098 = vsel %vm317, %v5020, 0.0
        %5099 = vadd.xlane.f32.xlu0 %v5098
        %v5100 = vpop.xlane.xlu0 %5099
        %v5101 = vsel %vm317, %v5021, 0.0
        %5102 = vadd.xlane.f32.xlu0 %v5101
        %v5103 = vpop.xlane.xlu0 %5102
        %v5104 = vsel %vm317, %v5022, 0.0
        %5105 = vadd.xlane.f32.xlu0 %v5104
        %v5106 = vpop.xlane.xlu0 %5105
        %v5107 = vsel %vm317, %v5023, 0.0
        %5108 = vadd.xlane.f32.xlu0 %v5107
        %v5109 = vpop.xlane.xlu0 %5108
        %v5110 = vsel %vm317, %v5024, 0.0
        %5111 = vadd.xlane.f32.xlu0 %v5110
        %v5112 = vpop.xlane.xlu0 %5111
        %v5113 = vsel %vm317, %v5025, 0.0
        %5114 = vadd.xlane.f32.xlu0 %v5113
        %v5115 = vpop.xlane.xlu0 %5114
        %v5116 = vsel %vm317, %v5026, 0.0
        %5117 = vadd.xlane.f32.xlu0 %v5116
        %v5118 = vpop.xlane.xlu0 %5117
        %v5119 = vsel %vm317, %v5027, 0.0
        %5120 = vadd.xlane.f32.xlu0 %v5119
        %v5121 = vpop.xlane.xlu0 %5120
        %v5122 = vsel %vm317, %v5028, 0.0
        %5123 = vadd.xlane.f32.xlu0 %v5122
        %v5124 = vpop.xlane.xlu0 %5123
        %v5125 = vmul.f32 %v4396, %v4906
        %v5126 = vsel %vm317, %v5125, 0.0
        %5127 = vadd.xlane.f32.xlu0 %v5126
        %v5128 = vpop.xlane.xlu0 %5127
        %v5129 = vmul.f32 %v5031, 0.9
        %v5130 = vmul.f32 %v5034, 0.9
        %v5131 = vmul.f32 %v5037, 0.9
        %v5132 = vmul.f32 %v5040, 0.9
        %v5133 = vmul.f32 %v5043, 0.9
        %v5134 = vmul.f32 %v5046, 0.9
        %v5135 = vmul.f32 %v5049, 0.9
        %v5136 = vmul.f32 %v5052, 0.9
        %v5137 = vmul.f32 %v5055, 0.9
        %v5138 = vmul.f32 %v5058, 0.9
        %v5139 = vmul.f32 %v5061, 0.9
        %v5140 = vmul.f32 %v5064, 0.9
        %v5141 = vmul.f32 %v5067, 0.9
        %v5142 = vmul.f32 %v5070, 0.9
        %v5143 = vmul.f32 %v5073, 0.9
        %v5144 = vmul.f32 %v5076, 0.9
        %v5145 = vmul.f32 %v5079, 0.9
        %v5146 = vmul.f32 %v5082, 0.9
        %v5147 = vmul.f32 %v5085, 0.9
        %v5148 = vmul.f32 %v5088, 0.9
        %v5149 = vmul.f32 %v5091, 0.9
        %v5150 = vmul.f32 %v5094, 0.9
        %v5151 = vmul.f32 %v5097, 0.9
        %v5152 = vmul.f32 %v5100, 0.9
        %v5153 = vmul.f32 %v5103, 0.9
        %v5154 = vmul.f32 %v5106, 0.9
        %v5155 = vmul.f32 %v5109, 0.9
        %v5156 = vmul.f32 %v5112, 0.9
        %v5157 = vmul.f32 %v5115, 0.9
        %v5158 = vmul.f32 %v5118, 0.9
        %v5159 = vmul.f32 %v5121, 0.9
        %v5160 = vmul.f32 %v5124, 0.9
        %v5161 = vmul.f32 %v4396, %v5128
        %v5162 = vmul.f32 %v5161, 0.5
        %v5164 = vlaneseq
        %v5165 = vshrl.u32 %v5164, 7
        %v5166 = vsub.s32 0, %v5165
        %v5167 = vrot.slane %v5162, %v5166
        %5169 = vbcast.lane.b32.xlu0 %v5167, 256
        %v5170 = vpop.permute.xlu0 %5169
        %s5172 = sor.u32 256, 8
        %5173 = vbcast.lane.b32.xlu0 %v5167, %s5172
        %v5174 = vpop.permute.xlu0 %5173
        %s5176 = sor.u32 256, 16
        %5177 = vbcast.lane.b32.xlu0 %v5167, %s5176
        %v5178 = vpop.permute.xlu0 %5177
        %s5180 = sor.u32 256, 24
        %5181 = vbcast.lane.b32.xlu0 %v5167, %s5180
        %v5182 = vpop.permute.xlu0 %5181
        %v5183 = vlaneseq
        %v5184 = vshrl.u32 %v5183, 7
        %v5185 = vsub.s32 1, %v5184
        %v5186 = vrot.slane %v5162, %v5185
        %5188 = vbcast.lane.b32.xlu0 %v5186, 256
        %v5189 = vpop.permute.xlu0 %5188
        %s5191 = sor.u32 256, 8
        %5192 = vbcast.lane.b32.xlu0 %v5186, %s5191
        %v5193 = vpop.permute.xlu0 %5192
        %s5195 = sor.u32 256, 16
        %5196 = vbcast.lane.b32.xlu0 %v5186, %s5195
        %v5197 = vpop.permute.xlu0 %5196
        %s5199 = sor.u32 256, 24
        %5200 = vbcast.lane.b32.xlu0 %v5186, %s5199
        %v5201 = vpop.permute.xlu0 %5200
        %v5202 = vlaneseq
        %v5203 = vshrl.u32 %v5202, 7
        %v5204 = vsub.s32 2, %v5203
        %v5205 = vrot.slane %v5162, %v5204
        %5207 = vbcast.lane.b32.xlu0 %v5205, 256
        %v5208 = vpop.permute.xlu0 %5207
        %s5210 = sor.u32 256, 8
        %5211 = vbcast.lane.b32.xlu0 %v5205, %s5210
        %v5212 = vpop.permute.xlu0 %5211
        %s5214 = sor.u32 256, 16
        %5215 = vbcast.lane.b32.xlu0 %v5205, %s5214
        %v5216 = vpop.permute.xlu0 %5215
        %s5218 = sor.u32 256, 24
        %5219 = vbcast.lane.b32.xlu0 %v5205, %s5218
        %v5220 = vpop.permute.xlu0 %5219
        %v5221 = vlaneseq
        %v5222 = vshrl.u32 %v5221, 7
        %v5223 = vsub.s32 3, %v5222
        %v5224 = vrot.slane %v5162, %v5223
        %5226 = vbcast.lane.b32.xlu0 %v5224, 256
        %v5227 = vpop.permute.xlu0 %5226
        %s5229 = sor.u32 256, 8
        %5230 = vbcast.lane.b32.xlu0 %v5224, %s5229
        %v5231 = vpop.permute.xlu0 %5230
        %s5233 = sor.u32 256, 16
        %5234 = vbcast.lane.b32.xlu0 %v5224, %s5233
        %v5235 = vpop.permute.xlu0 %5234
        %s5237 = sor.u32 256, 24
        %5238 = vbcast.lane.b32.xlu0 %v5224, %s5237
        %v5239 = vpop.permute.xlu0 %5238
        %v5240 = vlaneseq
        %v5241 = vshrl.u32 %v5240, 7
        %v5242 = vsub.s32 4, %v5241
        %v5243 = vrot.slane %v5162, %v5242
        %5245 = vbcast.lane.b32.xlu0 %v5243, 256
        %v5246 = vpop.permute.xlu0 %5245
        %s5248 = sor.u32 256, 8
        %5249 = vbcast.lane.b32.xlu0 %v5243, %s5248
        %v5250 = vpop.permute.xlu0 %5249
        %s5252 = sor.u32 256, 16
        %5253 = vbcast.lane.b32.xlu0 %v5243, %s5252
        %v5254 = vpop.permute.xlu0 %5253
        %s5256 = sor.u32 256, 24
        %5257 = vbcast.lane.b32.xlu0 %v5243, %s5256
        %v5258 = vpop.permute.xlu0 %5257
        %v5259 = vlaneseq
        %v5260 = vshrl.u32 %v5259, 7
        %v5261 = vsub.s32 5, %v5260
        %v5262 = vrot.slane %v5162, %v5261
        %5264 = vbcast.lane.b32.xlu0 %v5262, 256
        %v5265 = vpop.permute.xlu0 %5264
        %s5267 = sor.u32 256, 8
        %5268 = vbcast.lane.b32.xlu0 %v5262, %s5267
        %v5269 = vpop.permute.xlu0 %5268
        %s5271 = sor.u32 256, 16
        %5272 = vbcast.lane.b32.xlu0 %v5262, %s5271
        %v5273 = vpop.permute.xlu0 %5272
        %s5275 = sor.u32 256, 24
        %5276 = vbcast.lane.b32.xlu0 %v5262, %s5275
        %v5277 = vpop.permute.xlu0 %5276
        %v5278 = vlaneseq
        %v5279 = vshrl.u32 %v5278, 7
        %v5280 = vsub.s32 6, %v5279
        %v5281 = vrot.slane %v5162, %v5280
        %5283 = vbcast.lane.b32.xlu0 %v5281, 256
        %v5284 = vpop.permute.xlu0 %5283
        %s5286 = sor.u32 256, 8
        %5287 = vbcast.lane.b32.xlu0 %v5281, %s5286
        %v5288 = vpop.permute.xlu0 %5287
        %s5290 = sor.u32 256, 16
        %5291 = vbcast.lane.b32.xlu0 %v5281, %s5290
        %v5292 = vpop.permute.xlu0 %5291
        %s5294 = sor.u32 256, 24
        %5295 = vbcast.lane.b32.xlu0 %v5281, %s5294
        %v5296 = vpop.permute.xlu0 %5295
        %v5297 = vlaneseq
        %v5298 = vshrl.u32 %v5297, 7
        %v5299 = vsub.s32 7, %v5298
        %v5300 = vrot.slane %v5162, %v5299
        %5302 = vbcast.lane.b32.xlu0 %v5300, 256
        %v5303 = vpop.permute.xlu0 %5302
        %s5305 = sor.u32 256, 8
        %5306 = vbcast.lane.b32.xlu0 %v5300, %s5305
        %v5307 = vpop.permute.xlu0 %5306
        %s5309 = sor.u32 256, 16
        %5310 = vbcast.lane.b32.xlu0 %v5300, %s5309
        %v5311 = vpop.permute.xlu0 %5310
        %s5313 = sor.u32 256, 24
        %5314 = vbcast.lane.b32.xlu0 %v5300, %s5313
        %v5315 = vpop.permute.xlu0 %5314
        %v5348 = vadd.f32 %v5129, %v5170
        %v5349 = vadd.f32 %v5130, %v5174
        %v5350 = vadd.f32 %v5131, %v5178
        %v5351 = vadd.f32 %v5132, %v5182
        %v5352 = vadd.f32 %v5133, %v5189
        %v5353 = vadd.f32 %v5134, %v5193
        %v5354 = vadd.f32 %v5135, %v5197
        %v5355 = vadd.f32 %v5136, %v5201
        %v5356 = vadd.f32 %v5137, %v5208
        %v5357 = vadd.f32 %v5138, %v5212
        %v5358 = vadd.f32 %v5139, %v5216
        %v5359 = vadd.f32 %v5140, %v5220
        %v5360 = vadd.f32 %v5141, %v5227
        %v5361 = vadd.f32 %v5142, %v5231
        %v5362 = vadd.f32 %v5143, %v5235
        %v5363 = vadd.f32 %v5144, %v5239
        %v5364 = vadd.f32 %v5145, %v5246
        %v5365 = vadd.f32 %v5146, %v5250
        %v5366 = vadd.f32 %v5147, %v5254
        %v5367 = vadd.f32 %v5148, %v5258
        %v5368 = vadd.f32 %v5149, %v5265
        %v5369 = vadd.f32 %v5150, %v5269
        %v5370 = vadd.f32 %v5151, %v5273
        %v5371 = vadd.f32 %v5152, %v5277
        %v5372 = vadd.f32 %v5153, %v5284
        %v5373 = vadd.f32 %v5154, %v5288
        %v5374 = vadd.f32 %v5155, %v5292
        %v5375 = vadd.f32 %v5156, %v5296
        %v5376 = vadd.f32 %v5157, %v5303
        %v5377 = vadd.f32 %v5158, %v5307
        %v5378 = vadd.f32 %v5159, %v5311
        %v5379 = vadd.f32 %v5160, %v5315
        %5412 = vset.pattern.permute.xlu0 0
        %5413 = vperm.xlu0 %5412, %v5348
        %v5414 = vpop.permute.xlu0 %5413
        %5415 = vset.pattern.permute.xlu0 0
        %5416 = vperm.xlu0 %5415, %v5349
        %v5417 = vpop.permute.xlu0 %5416
        %5418 = vset.pattern.permute.xlu0 0
        %5419 = vperm.xlu0 %5418, %v5350
        %v5420 = vpop.permute.xlu0 %5419
        %5421 = vset.pattern.permute.xlu0 0
        %5422 = vperm.xlu0 %5421, %v5351
        %v5423 = vpop.permute.xlu0 %5422
        %5424 = vset.pattern.permute.xlu0 0
        %5425 = vperm.xlu0 %5424, %v5352
        %v5426 = vpop.permute.xlu0 %5425
        %5427 = vset.pattern.permute.xlu0 0
        %5428 = vperm.xlu0 %5427, %v5353
        %v5429 = vpop.permute.xlu0 %5428
        %5430 = vset.pattern.permute.xlu0 0
        %5431 = vperm.xlu0 %5430, %v5354
        %v5432 = vpop.permute.xlu0 %5431
        %5433 = vset.pattern.permute.xlu0 0
        %5434 = vperm.xlu0 %5433, %v5355
        %v5435 = vpop.permute.xlu0 %5434
        %5436 = vset.pattern.permute.xlu0 0
        %5437 = vperm.xlu0 %5436, %v5356
        %v5438 = vpop.permute.xlu0 %5437
        %5439 = vset.pattern.permute.xlu0 0
        %5440 = vperm.xlu0 %5439, %v5357
        %v5441 = vpop.permute.xlu0 %5440
        %5442 = vset.pattern.permute.xlu0 0
        %5443 = vperm.xlu0 %5442, %v5358
        %v5444 = vpop.permute.xlu0 %5443
        %5445 = vset.pattern.permute.xlu0 0
        %5446 = vperm.xlu0 %5445, %v5359
        %v5447 = vpop.permute.xlu0 %5446
        %5448 = vset.pattern.permute.xlu0 0
        %5449 = vperm.xlu0 %5448, %v5360
        %v5450 = vpop.permute.xlu0 %5449
        %5451 = vset.pattern.permute.xlu0 0
        %5452 = vperm.xlu0 %5451, %v5361
        %v5453 = vpop.permute.xlu0 %5452
        %5454 = vset.pattern.permute.xlu0 0
        %5455 = vperm.xlu0 %5454, %v5362
        %v5456 = vpop.permute.xlu0 %5455
        %5457 = vset.pattern.permute.xlu0 0
        %5458 = vperm.xlu0 %5457, %v5363
        %v5459 = vpop.permute.xlu0 %5458
        %5460 = vset.pattern.permute.xlu0 0
        %5461 = vperm.xlu0 %5460, %v5364
        %v5462 = vpop.permute.xlu0 %5461
        %5463 = vset.pattern.permute.xlu0 0
        %5464 = vperm.xlu0 %5463, %v5365
        %v5465 = vpop.permute.xlu0 %5464
        %5466 = vset.pattern.permute.xlu0 0
        %5467 = vperm.xlu0 %5466, %v5366
        %v5468 = vpop.permute.xlu0 %5467
        %5469 = vset.pattern.permute.xlu0 0
        %5470 = vperm.xlu0 %5469, %v5367
        %v5471 = vpop.permute.xlu0 %5470
        %5472 = vset.pattern.permute.xlu0 0
        %5473 = vperm.xlu0 %5472, %v5368
        %v5474 = vpop.permute.xlu0 %5473
        %5475 = vset.pattern.permute.xlu0 0
        %5476 = vperm.xlu0 %5475, %v5369
        %v5477 = vpop.permute.xlu0 %5476
        %5478 = vset.pattern.permute.xlu0 0
        %5479 = vperm.xlu0 %5478, %v5370
        %v5480 = vpop.permute.xlu0 %5479
        %5481 = vset.pattern.permute.xlu0 0
        %5482 = vperm.xlu0 %5481, %v5371
        %v5483 = vpop.permute.xlu0 %5482
        %5484 = vset.pattern.permute.xlu0 0
        %5485 = vperm.xlu0 %5484, %v5372
        %v5486 = vpop.permute.xlu0 %5485
        %5487 = vset.pattern.permute.xlu0 0
        %5488 = vperm.xlu0 %5487, %v5373
        %v5489 = vpop.permute.xlu0 %5488
        %5490 = vset.pattern.permute.xlu0 0
        %5491 = vperm.xlu0 %5490, %v5374
        %v5492 = vpop.permute.xlu0 %5491
        %5493 = vset.pattern.permute.xlu0 0
        %5494 = vperm.xlu0 %5493, %v5375
        %v5495 = vpop.permute.xlu0 %5494
        %5496 = vset.pattern.permute.xlu0 0
        %5497 = vperm.xlu0 %5496, %v5376
        %v5498 = vpop.permute.xlu0 %5497
        %5499 = vset.pattern.permute.xlu0 0
        %5500 = vperm.xlu0 %5499, %v5377
        %v5501 = vpop.permute.xlu0 %5500
        %5502 = vset.pattern.permute.xlu0 0
        %5503 = vperm.xlu0 %5502, %v5378
        %v5504 = vpop.permute.xlu0 %5503
        %5505 = vset.pattern.permute.xlu0 0
        %5506 = vperm.xlu0 %5505, %v5379
        %v5507 = vpop.permute.xlu0 %5506
        %v5508 = vlaneseq
        %v5509 = vshrl.u32 %v5508, 7
        %v5510 = vsub.s32 %v1618, %v5509
        %v5511 = vrot.slane %v5414, %v5510
        %v5512 = vlaneseq
        %v5513 = vshrl.u32 %v5512, 7
        %v5514 = vsub.s32 %v1623, %v5513
        %v5515 = vrot.slane %v5417, %v5514
        %v5516 = vsel %vm1628, %v5515, %v5511
        %v5517 = vlaneseq
        %v5518 = vshrl.u32 %v5517, 7
        %v5519 = vsub.s32 %v1630, %v5518
        %v5520 = vrot.slane %v5420, %v5519
        %v5521 = vsel %vm1635, %v5520, %v5516
        %v5522 = vlaneseq
        %v5523 = vshrl.u32 %v5522, 7
        %v5524 = vsub.s32 %v1637, %v5523
        %v5525 = vrot.slane %v5423, %v5524
        %v5526 = vsel %vm1642, %v5525, %v5521
        %v5527 = vlaneseq
        %v5528 = vshrl.u32 %v5527, 7
        %v5529 = vsub.s32 %v1618, %v5528
        %v5530 = vrot.slane %v5426, %v5529
        %v5531 = vlaneseq
        %v5532 = vshrl.u32 %v5531, 7
        %v5533 = vsub.s32 %v1623, %v5532
        %v5534 = vrot.slane %v5429, %v5533
        %v5535 = vsel %vm1628, %v5534, %v5530
        %v5536 = vlaneseq
        %v5537 = vshrl.u32 %v5536, 7
        %v5538 = vsub.s32 %v1630, %v5537
        %v5539 = vrot.slane %v5432, %v5538
        %v5540 = vsel %vm1635, %v5539, %v5535
        %v5541 = vlaneseq
        %v5542 = vshrl.u32 %v5541, 7
        %v5543 = vsub.s32 %v1637, %v5542
        %v5544 = vrot.slane %v5435, %v5543
        %v5545 = vsel %vm1642, %v5544, %v5540
        %v5546 = vlaneseq
        %v5547 = vshrl.u32 %v5546, 7
        %v5548 = vsub.s32 %v1618, %v5547
        %v5549 = vrot.slane %v5438, %v5548
        %v5550 = vlaneseq
        %v5551 = vshrl.u32 %v5550, 7
        %v5552 = vsub.s32 %v1623, %v5551
        %v5553 = vrot.slane %v5441, %v5552
        %v5554 = vsel %vm1628, %v5553, %v5549
        %v5555 = vlaneseq
        %v5556 = vshrl.u32 %v5555, 7
        %v5557 = vsub.s32 %v1630, %v5556
        %v5558 = vrot.slane %v5444, %v5557
        %v5559 = vsel %vm1635, %v5558, %v5554
        %v5560 = vlaneseq
        %v5561 = vshrl.u32 %v5560, 7
        %v5562 = vsub.s32 %v1637, %v5561
        %v5563 = vrot.slane %v5447, %v5562
        %v5564 = vsel %vm1642, %v5563, %v5559
        %v5565 = vlaneseq
        %v5566 = vshrl.u32 %v5565, 7
        %v5567 = vsub.s32 %v1618, %v5566
        %v5568 = vrot.slane %v5450, %v5567
        %v5569 = vlaneseq
        %v5570 = vshrl.u32 %v5569, 7
        %v5571 = vsub.s32 %v1623, %v5570
        %v5572 = vrot.slane %v5453, %v5571
        %v5573 = vsel %vm1628, %v5572, %v5568
        %v5574 = vlaneseq
        %v5575 = vshrl.u32 %v5574, 7
        %v5576 = vsub.s32 %v1630, %v5575
        %v5577 = vrot.slane %v5456, %v5576
        %v5578 = vsel %vm1635, %v5577, %v5573
        %v5579 = vlaneseq
        %v5580 = vshrl.u32 %v5579, 7
        %v5581 = vsub.s32 %v1637, %v5580
        %v5582 = vrot.slane %v5459, %v5581
        %v5583 = vsel %vm1642, %v5582, %v5578
        %v5584 = vlaneseq
        %v5585 = vshrl.u32 %v5584, 7
        %v5586 = vsub.s32 %v1618, %v5585
        %v5587 = vrot.slane %v5462, %v5586
        %v5588 = vlaneseq
        %v5589 = vshrl.u32 %v5588, 7
        %v5590 = vsub.s32 %v1623, %v5589
        %v5591 = vrot.slane %v5465, %v5590
        %v5592 = vsel %vm1628, %v5591, %v5587
        %v5593 = vlaneseq
        %v5594 = vshrl.u32 %v5593, 7
        %v5595 = vsub.s32 %v1630, %v5594
        %v5596 = vrot.slane %v5468, %v5595
        %v5597 = vsel %vm1635, %v5596, %v5592
        %v5598 = vlaneseq
        %v5599 = vshrl.u32 %v5598, 7
        %v5600 = vsub.s32 %v1637, %v5599
        %v5601 = vrot.slane %v5471, %v5600
        %v5602 = vsel %vm1642, %v5601, %v5597
        %v5603 = vlaneseq
        %v5604 = vshrl.u32 %v5603, 7
        %v5605 = vsub.s32 %v1618, %v5604
        %v5606 = vrot.slane %v5474, %v5605
        %v5607 = vlaneseq
        %v5608 = vshrl.u32 %v5607, 7
        %v5609 = vsub.s32 %v1623, %v5608
        %v5610 = vrot.slane %v5477, %v5609
        %v5611 = vsel %vm1628, %v5610, %v5606
        %v5612 = vlaneseq
        %v5613 = vshrl.u32 %v5612, 7
        %v5614 = vsub.s32 %v1630, %v5613
        %v5615 = vrot.slane %v5480, %v5614
        %v5616 = vsel %vm1635, %v5615, %v5611
        %v5617 = vlaneseq
        %v5618 = vshrl.u32 %v5617, 7
        %v5619 = vsub.s32 %v1637, %v5618
        %v5620 = vrot.slane %v5483, %v5619
        %v5621 = vsel %vm1642, %v5620, %v5616
        %v5622 = vlaneseq
        %v5623 = vshrl.u32 %v5622, 7
        %v5624 = vsub.s32 %v1618, %v5623
        %v5625 = vrot.slane %v5486, %v5624
        %v5626 = vlaneseq
        %v5627 = vshrl.u32 %v5626, 7
        %v5628 = vsub.s32 %v1623, %v5627
        %v5629 = vrot.slane %v5489, %v5628
        %v5630 = vsel %vm1628, %v5629, %v5625
        %v5631 = vlaneseq
        %v5632 = vshrl.u32 %v5631, 7
        %v5633 = vsub.s32 %v1630, %v5632
        %v5634 = vrot.slane %v5492, %v5633
        %v5635 = vsel %vm1635, %v5634, %v5630
        %v5636 = vlaneseq
        %v5637 = vshrl.u32 %v5636, 7
        %v5638 = vsub.s32 %v1637, %v5637
        %v5639 = vrot.slane %v5495, %v5638
        %v5640 = vsel %vm1642, %v5639, %v5635
        %v5641 = vlaneseq
        %v5642 = vshrl.u32 %v5641, 7
        %v5643 = vsub.s32 %v1618, %v5642
        %v5644 = vrot.slane %v5498, %v5643
        %v5645 = vlaneseq
        %v5646 = vshrl.u32 %v5645, 7
        %v5647 = vsub.s32 %v1623, %v5646
        %v5648 = vrot.slane %v5501, %v5647
        %v5649 = vsel %vm1628, %v5648, %v5644
        %v5650 = vlaneseq
        %v5651 = vshrl.u32 %v5650, 7
        %v5652 = vsub.s32 %v1630, %v5651
        %v5653 = vrot.slane %v5504, %v5652
        %v5654 = vsel %vm1635, %v5653, %v5649
        %v5655 = vlaneseq
        %v5656 = vshrl.u32 %v5655, 7
        %v5657 = vsub.s32 %v1637, %v5656
        %v5658 = vrot.slane %v5507, %v5657
        %v5659 = vsel %vm1642, %v5658, %v5654
        %v5660 = vsel %vm1777, %v5545, %v5526
        %v5661 = vsel %vm1779, %v5564, %v5660
        %v5662 = vsel %vm1781, %v5583, %v5661
        %v5663 = vsel %vm1783, %v5602, %v5662
        %v5664 = vsel %vm1785, %v5621, %v5663
        %v5665 = vsel %vm1787, %v5640, %v5664
        %v5666 = vsel %vm1789, %v5659, %v5665
        %v5668 = vadd.f32 %v4504, %v5666
        %v5669 = vsel %vm317, %v5668, 0.0
        %5670 = vadd.xlane.f32.xlu0 %v5669
        %v5671 = vpop.xlane.xlu0 %5670
        %v5672 = vmul.f32 %v5671, %v1796
        %v5673 = vsub.f32 %v5668, %v5672
        %v5674 = vmul.f32 %v5673, %v5673
        %v5675 = vsel %vm317, %v5674, 0.0
        %5676 = vadd.xlane.f32.xlu0 %v5675
        %v5677 = vpop.xlane.xlu0 %5676
        %v5678 = vmul.f32 %v5677, %v1796
        %v5679 = vadd.f32 %v5678, 1e-05
        %v5680 = vrsqrt.pop %v5679
        %v5681 = vmul.f32 %v5673, %v5680
        %v5682 = vmul.f32 %v5681, %v497
        %v5683 = vadd.f32 %v5682, %v504
        %v5684 = vmax.f32 %v5683, 0.0
        %5685 = vst.msk [vmem:[#allocation3] sm:$0xff] %vm317, %v5684
        %s5686 = scalar_lea.vmem %s297, 24 [#allocation11]
        %5687 = vst.msk [vmem:[%s5686] sm:$0xff] %vm317, %v5684
        %v5688 = vld [vmem:[#allocation3] sm:$0xff]
        %v5689 = vld [vmem:[#allocation4] sm:$0xff]
        %v5690 = vld [vmem:[#allocation4 + $0x8] sm:$0xff]
        %v5691 = vld [vmem:[#allocation4 + $0x10] sm:$0xff]
        %v5692 = vld [vmem:[#allocation4 + $0x18] sm:$0xff]
        %v5693 = vld [vmem:[#allocation4 + $0x20] sm:$0xff]
        %v5694 = vld [vmem:[#allocation4 + $0x28] sm:$0xff]
        %v5695 = vld [vmem:[#allocation4 + $0x30] sm:$0xff]
        %v5696 = vld [vmem:[#allocation4 + $0x38] sm:$0xff]
        %v5697 = vld [vmem:[#allocation4 + $0x40] sm:$0xff]
        %v5698 = vld [vmem:[#allocation4 + $0x48] sm:$0xff]
        %v5699 = vld [vmem:[#allocation4 + $0x50] sm:$0xff]
        %v5700 = vld [vmem:[#allocation4 + $0x58] sm:$0xff]
        %v5701 = vld [vmem:[#allocation4 + $0x60] sm:$0xff]
        %v5702 = vld [vmem:[#allocation4 + $0x68] sm:$0xff]
        %v5703 = vld [vmem:[#allocation4 + $0x70] sm:$0xff]
        %v5704 = vld [vmem:[#allocation4 + $0x78] sm:$0xff]
        %v5705 = vld [vmem:[#allocation4 + $0x80] sm:$0xff]
        %v5706 = vld [vmem:[#allocation4 + $0x88] sm:$0xff]
        %v5707 = vld [vmem:[#allocation4 + $0x90] sm:$0xff]
        %v5708 = vld [vmem:[#allocation4 + $0x98] sm:$0xff]
        %v5709 = vld [vmem:[#allocation4 + $0xa0] sm:$0xff]
        %v5710 = vld [vmem:[#allocation4 + $0xa8] sm:$0xff]
        %v5711 = vld [vmem:[#allocation4 + $0xb0] sm:$0xff]
        %v5712 = vld [vmem:[#allocation4 + $0xb8] sm:$0xff]
        %v5713 = vld [vmem:[#allocation4 + $0xc0] sm:$0xff]
        %v5714 = vld [vmem:[#allocation4 + $0xc8] sm:$0xff]
        %v5715 = vld [vmem:[#allocation4 + $0xd0] sm:$0xff]
        %v5716 = vld [vmem:[#allocation4 + $0xd8] sm:$0xff]
        %v5717 = vld [vmem:[#allocation4 + $0xe0] sm:$0xff]
        %v5718 = vld [vmem:[#allocation4 + $0xe8] sm:$0xff]
        %v5719 = vld [vmem:[#allocation4 + $0xf0] sm:$0xff]
        %v5720 = vld [vmem:[#allocation4 + $0xf8] sm:$0xff]
        %s5721 = scalar_lea.vmem [#allocation2], 32
        %v5722 = vld [vmem:[%s5721] sm:$0xff]
        %v5724 = vsel %vm317, %v5688, 0
        %5726 = vmatprep.subr.mxu0 0.0
        %5727 = vmatpush1.msra.mxu0 0.0
        %5728 = vmatprep.subr.mxu0 0.0
        %5729 = vmatpush1.msra.mxu0 0.0
        %5730 = vmatprep.subr.mxu0 0.0
        %5731 = vmatpush1.msra.mxu0 0.0
        %5732 = vmatprep.subr.mxu0 0.0
        %5733 = vmatpush1.msra.mxu0 0.0
        %5734 = vmatprep.subr.mxu0 0.0
        %5735 = vmatpush1.msra.mxu0 0.0
        %5736 = vmatprep.subr.mxu0 0.0
        %5737 = vmatpush1.msra.mxu0 0.0
        %5738 = vmatprep.subr.mxu0 0.0
        %5739 = vmatpush1.msra.mxu0 0.0
        %5740 = vmatprep.subr.mxu0 0.0
        %5741 = vmatpush1.msra.mxu0 0.0
        %5742 = vmatprep.subr.mxu0 0.0
        %5743 = vmatpush1.msra.mxu0 0.0
        %5744 = vmatprep.subr.mxu0 0.0
        %5745 = vmatpush1.msra.mxu0 0.0
        %5746 = vmatprep.subr.mxu0 0.0
        %5747 = vmatpush1.msra.mxu0 0.0
        %5748 = vmatprep.subr.mxu0 0.0
        %5749 = vmatpush1.msra.mxu0 0.0
        %5750 = vmatprep.subr.mxu0 0.0
        %5751 = vmatpush1.msra.mxu0 %v491
        %5752 = vmatprep.subr.mxu0 0.0
        %5753 = vmatpush1.msra.mxu0 %v490
        %5754 = vmatprep.subr.mxu0 0.0
        %5755 = vmatpush1.msra.mxu0 %v489
        %5756 = vmatprep.subr.mxu0 0.0
        %5757 = vmatpush1.msra.mxu0 %v488
        %5758 = vmatprep.subr.mxu0 0.0
        %5759 = vmatpush2.msra.mxu0 0.0
        %5760 = vmatprep.subr.mxu0 0.0
        %5761 = vmatpush2.msra.mxu0 0.0
        %5762 = vmatprep.subr.mxu0 0.0
        %5763 = vmatpush2.msra.mxu0 0.0
        %5764 = vmatprep.subr.mxu0 0.0
        %5765 = vmatpush2.msra.mxu0 0.0
        %5766 = vmatprep.subr.mxu0 0.0
        %5767 = vmatpush2.msra.mxu0 0.0
        %5768 = vmatprep.subr.mxu0 0.0
        %5769 = vmatpush2.msra.mxu0 0.0
        %5770 = vmatprep.subr.mxu0 0.0
        %5771 = vmatpush2.msra.mxu0 0.0
        %5772 = vmatprep.subr.mxu0 0.0
        %5773 = vmatpush2.msra.mxu0 0.0
        %5774 = vmatprep.subr.mxu0 0.0
        %5775 = vmatpush2.msra.mxu0 0.0
        %5776 = vmatprep.subr.mxu0 0.0
        %5777 = vmatpush2.msra.mxu0 0.0
        %5778 = vmatprep.subr.mxu0 0.0
        %5779 = vmatpush2.msra.mxu0 0.0
        %5780 = vmatprep.subr.mxu0 0.0
        %5781 = vmatpush2.msra.mxu0 0.0
        %5782 = vmatprep.subr.mxu0 0.0
        %5783 = vmatpush2.msra.mxu0 0.0
        %5784 = vmatprep.subr.mxu0 0.0
        %5785 = vmatpush2.msra.mxu0 0.0
        %5786 = vmatprep.subr.mxu0 0.0
        %5787 = vmatpush2.msra.mxu0 0.0
        %5788 = vmatprep.subr.mxu0 0.0
        %5789 = vmatpush2.msra.mxu0 0.0
        %5790 = vmatprep.mubr.f32.mxu0 0.0
        %5791 = vmatmul.mubr.f32.gmra.mxu0 %v5724
        %v5792 = vpop.f32.mrf.mxu0
        %v5793 = vadd.f32 0.0, %v5792
        %v5794 = vpop.f32.mrf.mxu0
        %5795 = vdwg.mxu0
        %v5796 = vadd.f32 %v5722, %v5793
        %v5797 = vlaneseq
        %v5798 = vshrl.u32 %v5797, 7
        %v5799 = vsub.s32 0, %v5798
        %v5800 = vrot.slane %v5688, %v5799
        %5802 = vbcast.lane.b32.xlu0 %v5800, 256
        %v5803 = vpop.permute.xlu0 %5802
        %s5805 = sor.u32 256, 8
        %5806 = vbcast.lane.b32.xlu0 %v5800, %s5805
        %v5807 = vpop.permute.xlu0 %5806
        %s5809 = sor.u32 256, 16
        %5810 = vbcast.lane.b32.xlu0 %v5800, %s5809
        %v5811 = vpop.permute.xlu0 %5810
        %s5813 = sor.u32 256, 24
        %5814 = vbcast.lane.b32.xlu0 %v5800, %s5813
        %v5815 = vpop.permute.xlu0 %5814
        %v5816 = vlaneseq
        %v5817 = vshrl.u32 %v5816, 7
        %v5818 = vsub.s32 1, %v5817
        %v5819 = vrot.slane %v5688, %v5818
        %5821 = vbcast.lane.b32.xlu0 %v5819, 256
        %v5822 = vpop.permute.xlu0 %5821
        %s5824 = sor.u32 256, 8
        %5825 = vbcast.lane.b32.xlu0 %v5819, %s5824
        %v5826 = vpop.permute.xlu0 %5825
        %s5828 = sor.u32 256, 16
        %5829 = vbcast.lane.b32.xlu0 %v5819, %s5828
        %v5830 = vpop.permute.xlu0 %5829
        %s5832 = sor.u32 256, 24
        %5833 = vbcast.lane.b32.xlu0 %v5819, %s5832
        %v5834 = vpop.permute.xlu0 %5833
        %v5835 = vlaneseq
        %v5836 = vshrl.u32 %v5835, 7
        %v5837 = vsub.s32 2, %v5836
        %v5838 = vrot.slane %v5688, %v5837
        %5840 = vbcast.lane.b32.xlu0 %v5838, 256
        %v5841 = vpop.permute.xlu0 %5840
        %s5843 = sor.u32 256, 8
        %5844 = vbcast.lane.b32.xlu0 %v5838, %s5843
        %v5845 = vpop.permute.xlu0 %5844
        %s5847 = sor.u32 256, 16
        %5848 = vbcast.lane.b32.xlu0 %v5838, %s5847
        %v5849 = vpop.permute.xlu0 %5848
        %s5851 = sor.u32 256, 24
        %5852 = vbcast.lane.b32.xlu0 %v5838, %s5851
        %v5853 = vpop.permute.xlu0 %5852
        %v5854 = vlaneseq
        %v5855 = vshrl.u32 %v5854, 7
        %v5856 = vsub.s32 3, %v5855
        %v5857 = vrot.slane %v5688, %v5856
        %5859 = vbcast.lane.b32.xlu0 %v5857, 256
        %v5860 = vpop.permute.xlu0 %5859
        %s5862 = sor.u32 256, 8
        %5863 = vbcast.lane.b32.xlu0 %v5857, %s5862
        %v5864 = vpop.permute.xlu0 %5863
        %s5866 = sor.u32 256, 16
        %5867 = vbcast.lane.b32.xlu0 %v5857, %s5866
        %v5868 = vpop.permute.xlu0 %5867
        %s5870 = sor.u32 256, 24
        %5871 = vbcast.lane.b32.xlu0 %v5857, %s5870
        %v5872 = vpop.permute.xlu0 %5871
        %v5873 = vlaneseq
        %v5874 = vshrl.u32 %v5873, 7
        %v5875 = vsub.s32 4, %v5874
        %v5876 = vrot.slane %v5688, %v5875
        %5878 = vbcast.lane.b32.xlu0 %v5876, 256
        %v5879 = vpop.permute.xlu0 %5878
        %s5881 = sor.u32 256, 8
        %5882 = vbcast.lane.b32.xlu0 %v5876, %s5881
        %v5883 = vpop.permute.xlu0 %5882
        %s5885 = sor.u32 256, 16
        %5886 = vbcast.lane.b32.xlu0 %v5876, %s5885
        %v5887 = vpop.permute.xlu0 %5886
        %s5889 = sor.u32 256, 24
        %5890 = vbcast.lane.b32.xlu0 %v5876, %s5889
        %v5891 = vpop.permute.xlu0 %5890
        %v5892 = vlaneseq
        %v5893 = vshrl.u32 %v5892, 7
        %v5894 = vsub.s32 5, %v5893
        %v5895 = vrot.slane %v5688, %v5894
        %5897 = vbcast.lane.b32.xlu0 %v5895, 256
        %v5898 = vpop.permute.xlu0 %5897
        %s5900 = sor.u32 256, 8
        %5901 = vbcast.lane.b32.xlu0 %v5895, %s5900
        %v5902 = vpop.permute.xlu0 %5901
        %s5904 = sor.u32 256, 16
        %5905 = vbcast.lane.b32.xlu0 %v5895, %s5904
        %v5906 = vpop.permute.xlu0 %5905
        %s5908 = sor.u32 256, 24
        %5909 = vbcast.lane.b32.xlu0 %v5895, %s5908
        %v5910 = vpop.permute.xlu0 %5909
        %v5911 = vlaneseq
        %v5912 = vshrl.u32 %v5911, 7
        %v5913 = vsub.s32 6, %v5912
        %v5914 = vrot.slane %v5688, %v5913
        %5916 = vbcast.lane.b32.xlu0 %v5914, 256
        %v5917 = vpop.permute.xlu0 %5916
        %s5919 = sor.u32 256, 8
        %5920 = vbcast.lane.b32.xlu0 %v5914, %s5919
        %v5921 = vpop.permute.xlu0 %5920
        %s5923 = sor.u32 256, 16
        %5924 = vbcast.lane.b32.xlu0 %v5914, %s5923
        %v5925 = vpop.permute.xlu0 %5924
        %s5927 = sor.u32 256, 24
        %5928 = vbcast.lane.b32.xlu0 %v5914, %s5927
        %v5929 = vpop.permute.xlu0 %5928
        %v5930 = vlaneseq
        %v5931 = vshrl.u32 %v5930, 7
        %v5932 = vsub.s32 7, %v5931
        %v5933 = vrot.slane %v5688, %v5932
        %5935 = vbcast.lane.b32.xlu0 %v5933, 256
        %v5936 = vpop.permute.xlu0 %5935
        %s5938 = sor.u32 256, 8
        %5939 = vbcast.lane.b32.xlu0 %v5933, %s5938
        %v5940 = vpop.permute.xlu0 %5939
        %s5942 = sor.u32 256, 16
        %5943 = vbcast.lane.b32.xlu0 %v5933, %s5942
        %v5944 = vpop.permute.xlu0 %5943
        %s5946 = sor.u32 256, 24
        %5947 = vbcast.lane.b32.xlu0 %v5933, %s5946
        %v5948 = vpop.permute.xlu0 %5947
        %v5949 = vcombine.high %v5688, %v5688
        %v5951 = vunpack.c.l.s4 1966171168
        %v5952 = vunpack.c.0.s8 %v5951
        %v5953 = vlaneseq
        %v5954 = vshrl.u32 %v5953, 7
        %v5955 = vsub.s32 %v5952, %v5954
        %v5956 = vrot.slane %v5688, %v5955
        %v5958 = vunpack.c.l.s4 1966171168
        %v5959 = vunpack.c.0.s8 %v5958
        %v5960 = vlaneseq
        %v5961 = vshrl.u32 %v5960, 7
        %v5962 = vsub.s32 %v5959, %v5961
        %v5963 = vrot.slane %v5949, %v5962
        %v5964 = vcombine.high %v5956, %v5956
        %v5965 = vcombine.high %v5963, %v5963
        %v5967 = vunpack.c.l.s4 1966171168
        %v5968 = vunpack.c.0.s8 %v5967
        %v5969 = vlaneseq
        %v5970 = vshrl.u32 %v5969, 7
        %v5971 = vsub.s32 %v5968, %v5970
        %v5972 = vrot.slane %v5956, %v5971
        %v5974 = vunpack.c.l.s4 1966171168
        %v5975 = vunpack.c.0.s8 %v5974
        %v5976 = vlaneseq
        %v5977 = vshrl.u32 %v5976, 7
        %v5978 = vsub.s32 %v5975, %v5977
        %v5979 = vrot.slane %v5963, %v5978
        %v5981 = vunpack.c.l.s4 1966171168
        %v5982 = vunpack.c.0.s8 %v5981
        %v5983 = vlaneseq
        %v5984 = vshrl.u32 %v5983, 7
        %v5985 = vsub.s32 %v5982, %v5984
        %v5986 = vrot.slane %v5964, %v5985
        %v5988 = vunpack.c.l.s4 1966171168
        %v5989 = vunpack.c.0.s8 %v5988
        %v5990 = vlaneseq
        %v5991 = vshrl.u32 %v5990, 7
        %v5992 = vsub.s32 %v5989, %v5991
        %v5993 = vrot.slane %v5965, %v5992
        %v5994 = vcombine.high %v5972, %v5972
        %v5995 = vcombine.high %v5979, %v5979
        %v5996 = vcombine.high %v5986, %v5986
        %v5997 = vcombine.high %v5993, %v5993
        %v5998 = vlaneseq
        %v5999 = vshrl.u32 %v5998, 7
        %v6000 = vsub.s32 0, %v5999
        %v6001 = vrot.slane %v5972, %v6000
        %v6002 = vlaneseq
        %v6003 = vshrl.u32 %v6002, 7
        %v6004 = vsub.s32 0, %v6003
        %v6005 = vrot.slane %v5986, %v6004
        %v6006 = vlaneseq
        %v6007 = vshrl.u32 %v6006, 7
        %v6008 = vsub.s32 0, %v6007
        %v6009 = vrot.slane %v5994, %v6008
        %v6010 = vlaneseq
        %v6011 = vshrl.u32 %v6010, 7
        %v6012 = vsub.s32 0, %v6011
        %v6013 = vrot.slane %v5996, %v6012
        %v6014 = vlaneseq
        %v6015 = vshrl.u32 %v6014, 7
        %v6016 = vsub.s32 0, %v6015
        %v6017 = vrot.slane %v5979, %v6016
        %v6018 = vlaneseq
        %v6019 = vshrl.u32 %v6018, 7
        %v6020 = vsub.s32 0, %v6019
        %v6021 = vrot.slane %v5993, %v6020
        %v6022 = vlaneseq
        %v6023 = vshrl.u32 %v6022, 7
        %v6024 = vsub.s32 0, %v6023
        %v6025 = vrot.slane %v5995, %v6024
        %v6026 = vlaneseq
        %v6027 = vshrl.u32 %v6026, 7
        %v6028 = vsub.s32 0, %v6027
        %v6029 = vrot.slane %v5997, %v6028
        %v6038 = vmul.f32 %v5803, %v6001
        %v6039 = vmul.f32 %v5807, %v6001
        %v6040 = vmul.f32 %v5811, %v6001
        %v6041 = vmul.f32 %v5815, %v6001
        %v6042 = vmul.f32 %v5822, %v6005
        %v6043 = vmul.f32 %v5826, %v6005
        %v6044 = vmul.f32 %v5830, %v6005
        %v6045 = vmul.f32 %v5834, %v6005
        %v6046 = vmul.f32 %v5841, %v6009
        %v6047 = vmul.f32 %v5845, %v6009
        %v6048 = vmul.f32 %v5849, %v6009
        %v6049 = vmul.f32 %v5853, %v6009
        %v6050 = vmul.f32 %v5860, %v6013
        %v6051 = vmul.f32 %v5864, %v6013
        %v6052 = vmul.f32 %v5868, %v6013
        %v6053 = vmul.f32 %v5872, %v6013
        %v6054 = vmul.f32 %v5879, %v6017
        %v6055 = vmul.f32 %v5883, %v6017
        %v6056 = vmul.f32 %v5887, %v6017
        %v6057 = vmul.f32 %v5891, %v6017
        %v6058 = vmul.f32 %v5898, %v6021
        %v6059 = vmul.f32 %v5902, %v6021
        %v6060 = vmul.f32 %v5906, %v6021
        %v6061 = vmul.f32 %v5910, %v6021
        %v6062 = vmul.f32 %v5917, %v6025
        %v6063 = vmul.f32 %v5921, %v6025
        %v6064 = vmul.f32 %v5925, %v6025
        %v6065 = vmul.f32 %v5929, %v6025
        %v6066 = vmul.f32 %v5936, %v6029
        %v6067 = vmul.f32 %v5940, %v6029
        %v6068 = vmul.f32 %v5944, %v6029
        %v6069 = vmul.f32 %v5948, %v6029
        %v6070 = vmul.f32 %v5689, 0.9
        %v6071 = vmul.f32 %v5690, 0.9
        %v6072 = vmul.f32 %v5691, 0.9
        %v6073 = vmul.f32 %v5692, 0.9
        %v6074 = vmul.f32 %v5693, 0.9
        %v6075 = vmul.f32 %v5694, 0.9
        %v6076 = vmul.f32 %v5695, 0.9
        %v6077 = vmul.f32 %v5696, 0.9
        %v6078 = vmul.f32 %v5697, 0.9
        %v6079 = vmul.f32 %v5698, 0.9
        %v6080 = vmul.f32 %v5699, 0.9
        %v6081 = vmul.f32 %v5700, 0.9
        %v6082 = vmul.f32 %v5701, 0.9
        %v6083 = vmul.f32 %v5702, 0.9
        %v6084 = vmul.f32 %v5703, 0.9
        %v6085 = vmul.f32 %v5704, 0.9
        %v6086 = vmul.f32 %v5705, 0.9
        %v6087 = vmul.f32 %v5706, 0.9
        %v6088 = vmul.f32 %v5707, 0.9
        %v6089 = vmul.f32 %v5708, 0.9
        %v6090 = vmul.f32 %v5709, 0.9
        %v6091 = vmul.f32 %v5710, 0.9
        %v6092 = vmul.f32 %v5711, 0.9
        %v6093 = vmul.f32 %v5712, 0.9
        %v6094 = vmul.f32 %v5713, 0.9
        %v6095 = vmul.f32 %v5714, 0.9
        %v6096 = vmul.f32 %v5715, 0.9
        %v6097 = vmul.f32 %v5716, 0.9
        %v6098 = vmul.f32 %v5717, 0.9
        %v6099 = vmul.f32 %v5718, 0.9
        %v6100 = vmul.f32 %v5719, 0.9
        %v6101 = vmul.f32 %v5720, 0.9
        %v6102 = vmul.f32 %v6038, 0.5
        %v6103 = vmul.f32 %v6039, 0.5
        %v6104 = vmul.f32 %v6040, 0.5
        %v6105 = vmul.f32 %v6041, 0.5
        %v6106 = vmul.f32 %v6042, 0.5
        %v6107 = vmul.f32 %v6043, 0.5
        %v6108 = vmul.f32 %v6044, 0.5
        %v6109 = vmul.f32 %v6045, 0.5
        %v6110 = vmul.f32 %v6046, 0.5
        %v6111 = vmul.f32 %v6047, 0.5
        %v6112 = vmul.f32 %v6048, 0.5
        %v6113 = vmul.f32 %v6049, 0.5
        %v6114 = vmul.f32 %v6050, 0.5
        %v6115 = vmul.f32 %v6051, 0.5
        %v6116 = vmul.f32 %v6052, 0.5
        %v6117 = vmul.f32 %v6053, 0.5
        %v6118 = vmul.f32 %v6054, 0.5
        %v6119 = vmul.f32 %v6055, 0.5
        %v6120 = vmul.f32 %v6056, 0.5
        %v6121 = vmul.f32 %v6057, 0.5
        %v6122 = vmul.f32 %v6058, 0.5
        %v6123 = vmul.f32 %v6059, 0.5
        %v6124 = vmul.f32 %v6060, 0.5
        %v6125 = vmul.f32 %v6061, 0.5
        %v6126 = vmul.f32 %v6062, 0.5
        %v6127 = vmul.f32 %v6063, 0.5
        %v6128 = vmul.f32 %v6064, 0.5
        %v6129 = vmul.f32 %v6065, 0.5
        %v6130 = vmul.f32 %v6066, 0.5
        %v6131 = vmul.f32 %v6067, 0.5
        %v6132 = vmul.f32 %v6068, 0.5
        %v6133 = vmul.f32 %v6069, 0.5
        %v6134 = vadd.f32 %v6070, %v6102
        %v6135 = vadd.f32 %v6071, %v6103
        %v6136 = vadd.f32 %v6072, %v6104
        %v6137 = vadd.f32 %v6073, %v6105
        %v6138 = vadd.f32 %v6074, %v6106
        %v6139 = vadd.f32 %v6075, %v6107
        %v6140 = vadd.f32 %v6076, %v6108
        %v6141 = vadd.f32 %v6077, %v6109
        %v6142 = vadd.f32 %v6078, %v6110
        %v6143 = vadd.f32 %v6079, %v6111
        %v6144 = vadd.f32 %v6080, %v6112
        %v6145 = vadd.f32 %v6081, %v6113
        %v6146 = vadd.f32 %v6082, %v6114
        %v6147 = vadd.f32 %v6083, %v6115
        %v6148 = vadd.f32 %v6084, %v6116
        %v6149 = vadd.f32 %v6085, %v6117
        %v6150 = vadd.f32 %v6086, %v6118
        %v6151 = vadd.f32 %v6087, %v6119
        %v6152 = vadd.f32 %v6088, %v6120
        %v6153 = vadd.f32 %v6089, %v6121
        %v6154 = vadd.f32 %v6090, %v6122
        %v6155 = vadd.f32 %v6091, %v6123
        %v6156 = vadd.f32 %v6092, %v6124
        %v6157 = vadd.f32 %v6093, %v6125
        %v6158 = vadd.f32 %v6094, %v6126
        %v6159 = vadd.f32 %v6095, %v6127
        %v6160 = vadd.f32 %v6096, %v6128
        %v6161 = vadd.f32 %v6097, %v6129
        %v6162 = vadd.f32 %v6098, %v6130
        %v6163 = vadd.f32 %v6099, %v6131
        %v6164 = vadd.f32 %v6100, %v6132
        %v6165 = vadd.f32 %v6101, %v6133
        %6166 = vst.msk [vmem:[#allocation4] sm:$0xff] %vm317, %v6134
        %6167 = vst.msk [vmem:[#allocation4 + $0x8] sm:$0xff] %vm317, %v6135
        %6168 = vst.msk [vmem:[#allocation4 + $0x10] sm:$0xff] %vm317, %v6136
        %6169 = vst.msk [vmem:[#allocation4 + $0x18] sm:$0xff] %vm317, %v6137
        %6170 = vst.msk [vmem:[#allocation4 + $0x20] sm:$0xff] %vm317, %v6138
        %6171 = vst.msk [vmem:[#allocation4 + $0x28] sm:$0xff] %vm317, %v6139
        %6172 = vst.msk [vmem:[#allocation4 + $0x30] sm:$0xff] %vm317, %v6140
        %6173 = vst.msk [vmem:[#allocation4 + $0x38] sm:$0xff] %vm317, %v6141
        %6174 = vst.msk [vmem:[#allocation4 + $0x40] sm:$0xff] %vm317, %v6142
        %6175 = vst.msk [vmem:[#allocation4 + $0x48] sm:$0xff] %vm317, %v6143
        %6176 = vst.msk [vmem:[#allocation4 + $0x50] sm:$0xff] %vm317, %v6144
        %6177 = vst.msk [vmem:[#allocation4 + $0x58] sm:$0xff] %vm317, %v6145
        %6178 = vst.msk [vmem:[#allocation4 + $0x60] sm:$0xff] %vm317, %v6146
        %6179 = vst.msk [vmem:[#allocation4 + $0x68] sm:$0xff] %vm317, %v6147
        %6180 = vst.msk [vmem:[#allocation4 + $0x70] sm:$0xff] %vm317, %v6148
        %6181 = vst.msk [vmem:[#allocation4 + $0x78] sm:$0xff] %vm317, %v6149
        %6182 = vst.msk [vmem:[#allocation4 + $0x80] sm:$0xff] %vm317, %v6150
        %6183 = vst.msk [vmem:[#allocation4 + $0x88] sm:$0xff] %vm317, %v6151
        %6184 = vst.msk [vmem:[#allocation4 + $0x90] sm:$0xff] %vm317, %v6152
        %6185 = vst.msk [vmem:[#allocation4 + $0x98] sm:$0xff] %vm317, %v6153
        %6186 = vst.msk [vmem:[#allocation4 + $0xa0] sm:$0xff] %vm317, %v6154
        %6187 = vst.msk [vmem:[#allocation4 + $0xa8] sm:$0xff] %vm317, %v6155
        %6188 = vst.msk [vmem:[#allocation4 + $0xb0] sm:$0xff] %vm317, %v6156
        %6189 = vst.msk [vmem:[#allocation4 + $0xb8] sm:$0xff] %vm317, %v6157
        %6190 = vst.msk [vmem:[#allocation4 + $0xc0] sm:$0xff] %vm317, %v6158
        %6191 = vst.msk [vmem:[#allocation4 + $0xc8] sm:$0xff] %vm317, %v6159
        %6192 = vst.msk [vmem:[#allocation4 + $0xd0] sm:$0xff] %vm317, %v6160
        %6193 = vst.msk [vmem:[#allocation4 + $0xd8] sm:$0xff] %vm317, %v6161
        %6194 = vst.msk [vmem:[#allocation4 + $0xe0] sm:$0xff] %vm317, %v6162
        %6195 = vst.msk [vmem:[#allocation4 + $0xe8] sm:$0xff] %vm317, %v6163
        %6196 = vst.msk [vmem:[#allocation4 + $0xf0] sm:$0xff] %vm317, %v6164
        %6197 = vst.msk [vmem:[#allocation4 + $0xf8] sm:$0xff] %vm317, %v6165
        %v6198 = vmax.f32 %v5796, 0.0
        %v6200 = vcombine.high %v6198, %v6198
        %v6202 = vunpack.c.l.s4 1966171168
        %v6203 = vunpack.c.0.s8 %v6202
        %v6204 = vlaneseq
        %v6205 = vshrl.u32 %v6204, 7
        %v6206 = vsub.s32 %v6203, %v6205
        %v6207 = vrot.slane %v6198, %v6206
        %v6209 = vunpack.c.l.s4 1966171168
        %v6210 = vunpack.c.0.s8 %v6209
        %v6211 = vlaneseq
        %v6212 = vshrl.u32 %v6211, 7
        %v6213 = vsub.s32 %v6210, %v6212
        %v6214 = vrot.slane %v6200, %v6213
        %v6215 = vcombine.high %v6207, %v6207
        %v6216 = vcombine.high %v6214, %v6214
        %v6218 = vunpack.c.l.s4 1966171168
        %v6219 = vunpack.c.0.s8 %v6218
        %v6220 = vlaneseq
        %v6221 = vshrl.u32 %v6220, 7
        %v6222 = vsub.s32 %v6219, %v6221
        %v6223 = vrot.slane %v6207, %v6222
        %v6225 = vunpack.c.l.s4 1966171168
        %v6226 = vunpack.c.0.s8 %v6225
        %v6227 = vlaneseq
        %v6228 = vshrl.u32 %v6227, 7
        %v6229 = vsub.s32 %v6226, %v6228
        %v6230 = vrot.slane %v6214, %v6229
        %v6232 = vunpack.c.l.s4 1966171168
        %v6233 = vunpack.c.0.s8 %v6232
        %v6234 = vlaneseq
        %v6235 = vshrl.u32 %v6234, 7
        %v6236 = vsub.s32 %v6233, %v6235
        %v6237 = vrot.slane %v6215, %v6236
        %v6239 = vunpack.c.l.s4 1966171168
        %v6240 = vunpack.c.0.s8 %v6239
        %v6241 = vlaneseq
        %v6242 = vshrl.u32 %v6241, 7
        %v6243 = vsub.s32 %v6240, %v6242
        %v6244 = vrot.slane %v6216, %v6243
        %v6245 = vcombine.high %v6223, %v6223
        %v6246 = vcombine.high %v6230, %v6230
        %v6247 = vcombine.high %v6237, %v6237
        %v6248 = vcombine.high %v6244, %v6244
        %v6249 = vlaneseq
        %v6250 = vshrl.u32 %v6249, 7
        %v6251 = vsub.s32 0, %v6250
        %v6252 = vrot.slane %v6223, %v6251
        %v6253 = vlaneseq
        %v6254 = vshrl.u32 %v6253, 7
        %v6255 = vsub.s32 0, %v6254
        %v6256 = vrot.slane %v6237, %v6255
        %v6257 = vlaneseq
        %v6258 = vshrl.u32 %v6257, 7
        %v6259 = vsub.s32 0, %v6258
        %v6260 = vrot.slane %v6245, %v6259
        %v6261 = vlaneseq
        %v6262 = vshrl.u32 %v6261, 7
        %v6263 = vsub.s32 0, %v6262
        %v6264 = vrot.slane %v6247, %v6263
        %v6265 = vlaneseq
        %v6266 = vshrl.u32 %v6265, 7
        %v6267 = vsub.s32 0, %v6266
        %v6268 = vrot.slane %v6230, %v6267
        %v6269 = vlaneseq
        %v6270 = vshrl.u32 %v6269, 7
        %v6271 = vsub.s32 0, %v6270
        %v6272 = vrot.slane %v6244, %v6271
        %v6273 = vlaneseq
        %v6274 = vshrl.u32 %v6273, 7
        %v6275 = vsub.s32 0, %v6274
        %v6276 = vrot.slane %v6246, %v6275
        %v6277 = vlaneseq
        %v6278 = vshrl.u32 %v6277, 7
        %v6279 = vsub.s32 0, %v6278
        %v6280 = vrot.slane %v6248, %v6279
        %v6289 = vmul.f32 %v5689, %v6252
        %v6290 = vmul.f32 %v5690, %v6252
        %v6291 = vmul.f32 %v5691, %v6252
        %v6292 = vmul.f32 %v5692, %v6252
        %v6293 = vmul.f32 %v5693, %v6256
        %v6294 = vmul.f32 %v5694, %v6256
        %v6295 = vmul.f32 %v5695, %v6256
        %v6296 = vmul.f32 %v5696, %v6256
        %v6297 = vmul.f32 %v5697, %v6260
        %v6298 = vmul.f32 %v5698, %v6260
        %v6299 = vmul.f32 %v5699, %v6260
        %v6300 = vmul.f32 %v5700, %v6260
        %v6301 = vmul.f32 %v5701, %v6264
        %v6302 = vmul.f32 %v5702, %v6264
        %v6303 = vmul.f32 %v5703, %v6264
        %v6304 = vmul.f32 %v5704, %v6264
        %v6305 = vmul.f32 %v5705, %v6268
        %v6306 = vmul.f32 %v5706, %v6268
        %v6307 = vmul.f32 %v5707, %v6268
        %v6308 = vmul.f32 %v5708, %v6268
        %v6309 = vmul.f32 %v5709, %v6272
        %v6310 = vmul.f32 %v5710, %v6272
        %v6311 = vmul.f32 %v5711, %v6272
        %v6312 = vmul.f32 %v5712, %v6272
        %v6313 = vmul.f32 %v5713, %v6276
        %v6314 = vmul.f32 %v5714, %v6276
        %v6315 = vmul.f32 %v5715, %v6276
        %v6316 = vmul.f32 %v5716, %v6276
        %v6317 = vmul.f32 %v5717, %v6280
        %v6318 = vmul.f32 %v5718, %v6280
        %v6319 = vmul.f32 %v5719, %v6280
        %v6320 = vmul.f32 %v5720, %v6280
        %v6321 = vsel %vm317, %v6289, 0.0
        %6322 = vadd.xlane.f32.xlu0 %v6321
        %v6323 = vpop.xlane.xlu0 %6322
        %v6324 = vsel %vm317, %v6290, 0.0
        %6325 = vadd.xlane.f32.xlu0 %v6324
        %v6326 = vpop.xlane.xlu0 %6325
        %v6327 = vsel %vm317, %v6291, 0.0
        %6328 = vadd.xlane.f32.xlu0 %v6327
        %v6329 = vpop.xlane.xlu0 %6328
        %v6330 = vsel %vm317, %v6292, 0.0
        %6331 = vadd.xlane.f32.xlu0 %v6330
        %v6332 = vpop.xlane.xlu0 %6331
        %v6333 = vsel %vm317, %v6293, 0.0
        %6334 = vadd.xlane.f32.xlu0 %v6333
        %v6335 = vpop.xlane.xlu0 %6334
        %v6336 = vsel %vm317, %v6294, 0.0
        %6337 = vadd.xlane.f32.xlu0 %v6336
        %v6338 = vpop.xlane.xlu0 %6337
        %v6339 = vsel %vm317, %v6295, 0.0
        %6340 = vadd.xlane.f32.xlu0 %v6339
        %v6341 = vpop.xlane.xlu0 %6340
        %v6342 = vsel %vm317, %v6296, 0.0
        %6343 = vadd.xlane.f32.xlu0 %v6342
        %v6344 = vpop.xlane.xlu0 %6343
        %v6345 = vsel %vm317, %v6297, 0.0
        %6346 = vadd.xlane.f32.xlu0 %v6345
        %v6347 = vpop.xlane.xlu0 %6346
        %v6348 = vsel %vm317, %v6298, 0.0
        %6349 = vadd.xlane.f32.xlu0 %v6348
        %v6350 = vpop.xlane.xlu0 %6349
        %v6351 = vsel %vm317, %v6299, 0.0
        %6352 = vadd.xlane.f32.xlu0 %v6351
        %v6353 = vpop.xlane.xlu0 %6352
        %v6354 = vsel %vm317, %v6300, 0.0
        %6355 = vadd.xlane.f32.xlu0 %v6354
        %v6356 = vpop.xlane.xlu0 %6355
        %v6357 = vsel %vm317, %v6301, 0.0
        %6358 = vadd.xlane.f32.xlu0 %v6357
        %v6359 = vpop.xlane.xlu0 %6358
        %v6360 = vsel %vm317, %v6302, 0.0
        %6361 = vadd.xlane.f32.xlu0 %v6360
        %v6362 = vpop.xlane.xlu0 %6361
        %v6363 = vsel %vm317, %v6303, 0.0
        %6364 = vadd.xlane.f32.xlu0 %v6363
        %v6365 = vpop.xlane.xlu0 %6364
        %v6366 = vsel %vm317, %v6304, 0.0
        %6367 = vadd.xlane.f32.xlu0 %v6366
        %v6368 = vpop.xlane.xlu0 %6367
        %v6369 = vsel %vm317, %v6305, 0.0
        %6370 = vadd.xlane.f32.xlu0 %v6369
        %v6371 = vpop.xlane.xlu0 %6370
        %v6372 = vsel %vm317, %v6306, 0.0
        %6373 = vadd.xlane.f32.xlu0 %v6372
        %v6374 = vpop.xlane.xlu0 %6373
        %v6375 = vsel %vm317, %v6307, 0.0
        %6376 = vadd.xlane.f32.xlu0 %v6375
        %v6377 = vpop.xlane.xlu0 %6376
        %v6378 = vsel %vm317, %v6308, 0.0
        %6379 = vadd.xlane.f32.xlu0 %v6378
        %v6380 = vpop.xlane.xlu0 %6379
        %v6381 = vsel %vm317, %v6309, 0.0
        %6382 = vadd.xlane.f32.xlu0 %v6381
        %v6383 = vpop.xlane.xlu0 %6382
        %v6384 = vsel %vm317, %v6310, 0.0
        %6385 = vadd.xlane.f32.xlu0 %v6384
        %v6386 = vpop.xlane.xlu0 %6385
        %v6387 = vsel %vm317, %v6311, 0.0
        %6388 = vadd.xlane.f32.xlu0 %v6387
        %v6389 = vpop.xlane.xlu0 %6388
        %v6390 = vsel %vm317, %v6312, 0.0
        %6391 = vadd.xlane.f32.xlu0 %v6390
        %v6392 = vpop.xlane.xlu0 %6391
        %v6393 = vsel %vm317, %v6313, 0.0
        %6394 = vadd.xlane.f32.xlu0 %v6393
        %v6395 = vpop.xlane.xlu0 %6394
        %v6396 = vsel %vm317, %v6314, 0.0
        %6397 = vadd.xlane.f32.xlu0 %v6396
        %v6398 = vpop.xlane.xlu0 %6397
        %v6399 = vsel %vm317, %v6315, 0.0
        %6400 = vadd.xlane.f32.xlu0 %v6399
        %v6401 = vpop.xlane.xlu0 %6400
        %v6402 = vsel %vm317, %v6316, 0.0
        %6403 = vadd.xlane.f32.xlu0 %v6402
        %v6404 = vpop.xlane.xlu0 %6403
        %v6405 = vsel %vm317, %v6317, 0.0
        %6406 = vadd.xlane.f32.xlu0 %v6405
        %v6407 = vpop.xlane.xlu0 %6406
        %v6408 = vsel %vm317, %v6318, 0.0
        %6409 = vadd.xlane.f32.xlu0 %v6408
        %v6410 = vpop.xlane.xlu0 %6409
        %v6411 = vsel %vm317, %v6319, 0.0
        %6412 = vadd.xlane.f32.xlu0 %v6411
        %v6413 = vpop.xlane.xlu0 %6412
        %v6414 = vsel %vm317, %v6320, 0.0
        %6415 = vadd.xlane.f32.xlu0 %v6414
        %v6416 = vpop.xlane.xlu0 %6415
        %v6417 = vmul.f32 %v5688, %v6198
        %v6418 = vsel %vm317, %v6417, 0.0
        %6419 = vadd.xlane.f32.xlu0 %v6418
        %v6420 = vpop.xlane.xlu0 %6419
        %v6421 = vmul.f32 %v6323, 0.9
        %v6422 = vmul.f32 %v6326, 0.9
        %v6423 = vmul.f32 %v6329, 0.9
        %v6424 = vmul.f32 %v6332, 0.9
        %v6425 = vmul.f32 %v6335, 0.9
        %v6426 = vmul.f32 %v6338, 0.9
        %v6427 = vmul.f32 %v6341, 0.9
        %v6428 = vmul.f32 %v6344, 0.9
        %v6429 = vmul.f32 %v6347, 0.9
        %v6430 = vmul.f32 %v6350, 0.9
        %v6431 = vmul.f32 %v6353, 0.9
        %v6432 = vmul.f32 %v6356, 0.9
        %v6433 = vmul.f32 %v6359, 0.9
        %v6434 = vmul.f32 %v6362, 0.9
        %v6435 = vmul.f32 %v6365, 0.9
        %v6436 = vmul.f32 %v6368, 0.9
        %v6437 = vmul.f32 %v6371, 0.9
        %v6438 = vmul.f32 %v6374, 0.9
        %v6439 = vmul.f32 %v6377, 0.9
        %v6440 = vmul.f32 %v6380, 0.9
        %v6441 = vmul.f32 %v6383, 0.9
        %v6442 = vmul.f32 %v6386, 0.9
        %v6443 = vmul.f32 %v6389, 0.9
        %v6444 = vmul.f32 %v6392, 0.9
        %v6445 = vmul.f32 %v6395, 0.9
        %v6446 = vmul.f32 %v6398, 0.9
        %v6447 = vmul.f32 %v6401, 0.9
        %v6448 = vmul.f32 %v6404, 0.9
        %v6449 = vmul.f32 %v6407, 0.9
        %v6450 = vmul.f32 %v6410, 0.9
        %v6451 = vmul.f32 %v6413, 0.9
        %v6452 = vmul.f32 %v6416, 0.9
        %v6453 = vmul.f32 %v5688, %v6420
        %v6454 = vmul.f32 %v6453, 0.5
        %v6456 = vlaneseq
        %v6457 = vshrl.u32 %v6456, 7
        %v6458 = vsub.s32 0, %v6457
        %v6459 = vrot.slane %v6454, %v6458
        %6461 = vbcast.lane.b32.xlu0 %v6459, 256
        %v6462 = vpop.permute.xlu0 %6461
        %s6464 = sor.u32 256, 8
        %6465 = vbcast.lane.b32.xlu0 %v6459, %s6464
        %v6466 = vpop.permute.xlu0 %6465
        %s6468 = sor.u32 256, 16
        %6469 = vbcast.lane.b32.xlu0 %v6459, %s6468
        %v6470 = vpop.permute.xlu0 %6469
        %s6472 = sor.u32 256, 24
        %6473 = vbcast.lane.b32.xlu0 %v6459, %s6472
        %v6474 = vpop.permute.xlu0 %6473
        %v6475 = vlaneseq
        %v6476 = vshrl.u32 %v6475, 7
        %v6477 = vsub.s32 1, %v6476
        %v6478 = vrot.slane %v6454, %v6477
        %6480 = vbcast.lane.b32.xlu0 %v6478, 256
        %v6481 = vpop.permute.xlu0 %6480
        %s6483 = sor.u32 256, 8
        %6484 = vbcast.lane.b32.xlu0 %v6478, %s6483
        %v6485 = vpop.permute.xlu0 %6484
        %s6487 = sor.u32 256, 16
        %6488 = vbcast.lane.b32.xlu0 %v6478, %s6487
        %v6489 = vpop.permute.xlu0 %6488
        %s6491 = sor.u32 256, 24
        %6492 = vbcast.lane.b32.xlu0 %v6478, %s6491
        %v6493 = vpop.permute.xlu0 %6492
        %v6494 = vlaneseq
        %v6495 = vshrl.u32 %v6494, 7
        %v6496 = vsub.s32 2, %v6495
        %v6497 = vrot.slane %v6454, %v6496
        %6499 = vbcast.lane.b32.xlu0 %v6497, 256
        %v6500 = vpop.permute.xlu0 %6499
        %s6502 = sor.u32 256, 8
        %6503 = vbcast.lane.b32.xlu0 %v6497, %s6502
        %v6504 = vpop.permute.xlu0 %6503
        %s6506 = sor.u32 256, 16
        %6507 = vbcast.lane.b32.xlu0 %v6497, %s6506
        %v6508 = vpop.permute.xlu0 %6507
        %s6510 = sor.u32 256, 24
        %6511 = vbcast.lane.b32.xlu0 %v6497, %s6510
        %v6512 = vpop.permute.xlu0 %6511
        %v6513 = vlaneseq
        %v6514 = vshrl.u32 %v6513, 7
        %v6515 = vsub.s32 3, %v6514
        %v6516 = vrot.slane %v6454, %v6515
        %6518 = vbcast.lane.b32.xlu0 %v6516, 256
        %v6519 = vpop.permute.xlu0 %6518
        %s6521 = sor.u32 256, 8
        %6522 = vbcast.lane.b32.xlu0 %v6516, %s6521
        %v6523 = vpop.permute.xlu0 %6522
        %s6525 = sor.u32 256, 16
        %6526 = vbcast.lane.b32.xlu0 %v6516, %s6525
        %v6527 = vpop.permute.xlu0 %6526
        %s6529 = sor.u32 256, 24
        %6530 = vbcast.lane.b32.xlu0 %v6516, %s6529
        %v6531 = vpop.permute.xlu0 %6530
        %v6532 = vlaneseq
        %v6533 = vshrl.u32 %v6532, 7
        %v6534 = vsub.s32 4, %v6533
        %v6535 = vrot.slane %v6454, %v6534
        %6537 = vbcast.lane.b32.xlu0 %v6535, 256
        %v6538 = vpop.permute.xlu0 %6537
        %s6540 = sor.u32 256, 8
        %6541 = vbcast.lane.b32.xlu0 %v6535, %s6540
        %v6542 = vpop.permute.xlu0 %6541
        %s6544 = sor.u32 256, 16
        %6545 = vbcast.lane.b32.xlu0 %v6535, %s6544
        %v6546 = vpop.permute.xlu0 %6545
        %s6548 = sor.u32 256, 24
        %6549 = vbcast.lane.b32.xlu0 %v6535, %s6548
        %v6550 = vpop.permute.xlu0 %6549
        %v6551 = vlaneseq
        %v6552 = vshrl.u32 %v6551, 7
        %v6553 = vsub.s32 5, %v6552
        %v6554 = vrot.slane %v6454, %v6553
        %6556 = vbcast.lane.b32.xlu0 %v6554, 256
        %v6557 = vpop.permute.xlu0 %6556
        %s6559 = sor.u32 256, 8
        %6560 = vbcast.lane.b32.xlu0 %v6554, %s6559
        %v6561 = vpop.permute.xlu0 %6560
        %s6563 = sor.u32 256, 16
        %6564 = vbcast.lane.b32.xlu0 %v6554, %s6563
        %v6565 = vpop.permute.xlu0 %6564
        %s6567 = sor.u32 256, 24
        %6568 = vbcast.lane.b32.xlu0 %v6554, %s6567
        %v6569 = vpop.permute.xlu0 %6568
        %v6570 = vlaneseq
        %v6571 = vshrl.u32 %v6570, 7
        %v6572 = vsub.s32 6, %v6571
        %v6573 = vrot.slane %v6454, %v6572
        %6575 = vbcast.lane.b32.xlu0 %v6573, 256
        %v6576 = vpop.permute.xlu0 %6575
        %s6578 = sor.u32 256, 8
        %6579 = vbcast.lane.b32.xlu0 %v6573, %s6578
        %v6580 = vpop.permute.xlu0 %6579
        %s6582 = sor.u32 256, 16
        %6583 = vbcast.lane.b32.xlu0 %v6573, %s6582
        %v6584 = vpop.permute.xlu0 %6583
        %s6586 = sor.u32 256, 24
        %6587 = vbcast.lane.b32.xlu0 %v6573, %s6586
        %v6588 = vpop.permute.xlu0 %6587
        %v6589 = vlaneseq
        %v6590 = vshrl.u32 %v6589, 7
        %v6591 = vsub.s32 7, %v6590
        %v6592 = vrot.slane %v6454, %v6591
        %6594 = vbcast.lane.b32.xlu0 %v6592, 256
        %v6595 = vpop.permute.xlu0 %6594
        %s6597 = sor.u32 256, 8
        %6598 = vbcast.lane.b32.xlu0 %v6592, %s6597
        %v6599 = vpop.permute.xlu0 %6598
        %s6601 = sor.u32 256, 16
        %6602 = vbcast.lane.b32.xlu0 %v6592, %s6601
        %v6603 = vpop.permute.xlu0 %6602
        %s6605 = sor.u32 256, 24
        %6606 = vbcast.lane.b32.xlu0 %v6592, %s6605
        %v6607 = vpop.permute.xlu0 %6606
        %v6640 = vadd.f32 %v6421, %v6462
        %v6641 = vadd.f32 %v6422, %v6466
        %v6642 = vadd.f32 %v6423, %v6470
        %v6643 = vadd.f32 %v6424, %v6474
        %v6644 = vadd.f32 %v6425, %v6481
        %v6645 = vadd.f32 %v6426, %v6485
        %v6646 = vadd.f32 %v6427, %v6489
        %v6647 = vadd.f32 %v6428, %v6493
        %v6648 = vadd.f32 %v6429, %v6500
        %v6649 = vadd.f32 %v6430, %v6504
        %v6650 = vadd.f32 %v6431, %v6508
        %v6651 = vadd.f32 %v6432, %v6512
        %v6652 = vadd.f32 %v6433, %v6519
        %v6653 = vadd.f32 %v6434, %v6523
        %v6654 = vadd.f32 %v6435, %v6527
        %v6655 = vadd.f32 %v6436, %v6531
        %v6656 = vadd.f32 %v6437, %v6538
        %v6657 = vadd.f32 %v6438, %v6542
        %v6658 = vadd.f32 %v6439, %v6546
        %v6659 = vadd.f32 %v6440, %v6550
        %v6660 = vadd.f32 %v6441, %v6557
        %v6661 = vadd.f32 %v6442, %v6561
        %v6662 = vadd.f32 %v6443, %v6565
        %v6663 = vadd.f32 %v6444, %v6569
        %v6664 = vadd.f32 %v6445, %v6576
        %v6665 = vadd.f32 %v6446, %v6580
        %v6666 = vadd.f32 %v6447, %v6584
        %v6667 = vadd.f32 %v6448, %v6588
        %v6668 = vadd.f32 %v6449, %v6595
        %v6669 = vadd.f32 %v6450, %v6599
        %v6670 = vadd.f32 %v6451, %v6603
        %v6671 = vadd.f32 %v6452, %v6607
        %6704 = vset.pattern.permute.xlu0 0
        %6705 = vperm.xlu0 %6704, %v6640
        %v6706 = vpop.permute.xlu0 %6705
        %6707 = vset.pattern.permute.xlu0 0
        %6708 = vperm.xlu0 %6707, %v6641
        %v6709 = vpop.permute.xlu0 %6708
        %6710 = vset.pattern.permute.xlu0 0
        %6711 = vperm.xlu0 %6710, %v6642
        %v6712 = vpop.permute.xlu0 %6711
        %6713 = vset.pattern.permute.xlu0 0
        %6714 = vperm.xlu0 %6713, %v6643
        %v6715 = vpop.permute.xlu0 %6714
        %6716 = vset.pattern.permute.xlu0 0
        %6717 = vperm.xlu0 %6716, %v6644
        %v6718 = vpop.permute.xlu0 %6717
        %6719 = vset.pattern.permute.xlu0 0
        %6720 = vperm.xlu0 %6719, %v6645
        %v6721 = vpop.permute.xlu0 %6720
        %6722 = vset.pattern.permute.xlu0 0
        %6723 = vperm.xlu0 %6722, %v6646
        %v6724 = vpop.permute.xlu0 %6723
        %6725 = vset.pattern.permute.xlu0 0
        %6726 = vperm.xlu0 %6725, %v6647
        %v6727 = vpop.permute.xlu0 %6726
        %6728 = vset.pattern.permute.xlu0 0
        %6729 = vperm.xlu0 %6728, %v6648
        %v6730 = vpop.permute.xlu0 %6729
        %6731 = vset.pattern.permute.xlu0 0
        %6732 = vperm.xlu0 %6731, %v6649
        %v6733 = vpop.permute.xlu0 %6732
        %6734 = vset.pattern.permute.xlu0 0
        %6735 = vperm.xlu0 %6734, %v6650
        %v6736 = vpop.permute.xlu0 %6735
        %6737 = vset.pattern.permute.xlu0 0
        %6738 = vperm.xlu0 %6737, %v6651
        %v6739 = vpop.permute.xlu0 %6738
        %6740 = vset.pattern.permute.xlu0 0
        %6741 = vperm.xlu0 %6740, %v6652
        %v6742 = vpop.permute.xlu0 %6741
        %6743 = vset.pattern.permute.xlu0 0
        %6744 = vperm.xlu0 %6743, %v6653
        %v6745 = vpop.permute.xlu0 %6744
        %6746 = vset.pattern.permute.xlu0 0
        %6747 = vperm.xlu0 %6746, %v6654
        %v6748 = vpop.permute.xlu0 %6747
        %6749 = vset.pattern.permute.xlu0 0
        %6750 = vperm.xlu0 %6749, %v6655
        %v6751 = vpop.permute.xlu0 %6750
        %6752 = vset.pattern.permute.xlu0 0
        %6753 = vperm.xlu0 %6752, %v6656
        %v6754 = vpop.permute.xlu0 %6753
        %6755 = vset.pattern.permute.xlu0 0
        %6756 = vperm.xlu0 %6755, %v6657
        %v6757 = vpop.permute.xlu0 %6756
        %6758 = vset.pattern.permute.xlu0 0
        %6759 = vperm.xlu0 %6758, %v6658
        %v6760 = vpop.permute.xlu0 %6759
        %6761 = vset.pattern.permute.xlu0 0
        %6762 = vperm.xlu0 %6761, %v6659
        %v6763 = vpop.permute.xlu0 %6762
        %6764 = vset.pattern.permute.xlu0 0
        %6765 = vperm.xlu0 %6764, %v6660
        %v6766 = vpop.permute.xlu0 %6765
        %6767 = vset.pattern.permute.xlu0 0
        %6768 = vperm.xlu0 %6767, %v6661
        %v6769 = vpop.permute.xlu0 %6768
        %6770 = vset.pattern.permute.xlu0 0
        %6771 = vperm.xlu0 %6770, %v6662
        %v6772 = vpop.permute.xlu0 %6771
        %6773 = vset.pattern.permute.xlu0 0
        %6774 = vperm.xlu0 %6773, %v6663
        %v6775 = vpop.permute.xlu0 %6774
        %6776 = vset.pattern.permute.xlu0 0
        %6777 = vperm.xlu0 %6776, %v6664
        %v6778 = vpop.permute.xlu0 %6777
        %6779 = vset.pattern.permute.xlu0 0
        %6780 = vperm.xlu0 %6779, %v6665
        %v6781 = vpop.permute.xlu0 %6780
        %6782 = vset.pattern.permute.xlu0 0
        %6783 = vperm.xlu0 %6782, %v6666
        %v6784 = vpop.permute.xlu0 %6783
        %6785 = vset.pattern.permute.xlu0 0
        %6786 = vperm.xlu0 %6785, %v6667
        %v6787 = vpop.permute.xlu0 %6786
        %6788 = vset.pattern.permute.xlu0 0
        %6789 = vperm.xlu0 %6788, %v6668
        %v6790 = vpop.permute.xlu0 %6789
        %6791 = vset.pattern.permute.xlu0 0
        %6792 = vperm.xlu0 %6791, %v6669
        %v6793 = vpop.permute.xlu0 %6792
        %6794 = vset.pattern.permute.xlu0 0
        %6795 = vperm.xlu0 %6794, %v6670
        %v6796 = vpop.permute.xlu0 %6795
        %6797 = vset.pattern.permute.xlu0 0
        %6798 = vperm.xlu0 %6797, %v6671
        %v6799 = vpop.permute.xlu0 %6798
        %v6800 = vlaneseq
        %v6801 = vshrl.u32 %v6800, 7
        %v6802 = vsub.s32 %v1618, %v6801
        %v6803 = vrot.slane %v6706, %v6802
        %v6804 = vlaneseq
        %v6805 = vshrl.u32 %v6804, 7
        %v6806 = vsub.s32 %v1623, %v6805
        %v6807 = vrot.slane %v6709, %v6806
        %v6808 = vsel %vm1628, %v6807, %v6803
        %v6809 = vlaneseq
        %v6810 = vshrl.u32 %v6809, 7
        %v6811 = vsub.s32 %v1630, %v6810
        %v6812 = vrot.slane %v6712, %v6811
        %v6813 = vsel %vm1635, %v6812, %v6808
        %v6814 = vlaneseq
        %v6815 = vshrl.u32 %v6814, 7
        %v6816 = vsub.s32 %v1637, %v6815
        %v6817 = vrot.slane %v6715, %v6816
        %v6818 = vsel %vm1642, %v6817, %v6813
        %v6819 = vlaneseq
        %v6820 = vshrl.u32 %v6819, 7
        %v6821 = vsub.s32 %v1618, %v6820
        %v6822 = vrot.slane %v6718, %v6821
        %v6823 = vlaneseq
        %v6824 = vshrl.u32 %v6823, 7
        %v6825 = vsub.s32 %v1623, %v6824
        %v6826 = vrot.slane %v6721, %v6825
        %v6827 = vsel %vm1628, %v6826, %v6822
        %v6828 = vlaneseq
        %v6829 = vshrl.u32 %v6828, 7
        %v6830 = vsub.s32 %v1630, %v6829
        %v6831 = vrot.slane %v6724, %v6830
        %v6832 = vsel %vm1635, %v6831, %v6827
        %v6833 = vlaneseq
        %v6834 = vshrl.u32 %v6833, 7
        %v6835 = vsub.s32 %v1637, %v6834
        %v6836 = vrot.slane %v6727, %v6835
        %v6837 = vsel %vm1642, %v6836, %v6832
        %v6838 = vlaneseq
        %v6839 = vshrl.u32 %v6838, 7
        %v6840 = vsub.s32 %v1618, %v6839
        %v6841 = vrot.slane %v6730, %v6840
        %v6842 = vlaneseq
        %v6843 = vshrl.u32 %v6842, 7
        %v6844 = vsub.s32 %v1623, %v6843
        %v6845 = vrot.slane %v6733, %v6844
        %v6846 = vsel %vm1628, %v6845, %v6841
        %v6847 = vlaneseq
        %v6848 = vshrl.u32 %v6847, 7
        %v6849 = vsub.s32 %v1630, %v6848
        %v6850 = vrot.slane %v6736, %v6849
        %v6851 = vsel %vm1635, %v6850, %v6846
        %v6852 = vlaneseq
        %v6853 = vshrl.u32 %v6852, 7
        %v6854 = vsub.s32 %v1637, %v6853
        %v6855 = vrot.slane %v6739, %v6854
        %v6856 = vsel %vm1642, %v6855, %v6851
        %v6857 = vlaneseq
        %v6858 = vshrl.u32 %v6857, 7
        %v6859 = vsub.s32 %v1618, %v6858
        %v6860 = vrot.slane %v6742, %v6859
        %v6861 = vlaneseq
        %v6862 = vshrl.u32 %v6861, 7
        %v6863 = vsub.s32 %v1623, %v6862
        %v6864 = vrot.slane %v6745, %v6863
        %v6865 = vsel %vm1628, %v6864, %v6860
        %v6866 = vlaneseq
        %v6867 = vshrl.u32 %v6866, 7
        %v6868 = vsub.s32 %v1630, %v6867
        %v6869 = vrot.slane %v6748, %v6868
        %v6870 = vsel %vm1635, %v6869, %v6865
        %v6871 = vlaneseq
        %v6872 = vshrl.u32 %v6871, 7
        %v6873 = vsub.s32 %v1637, %v6872
        %v6874 = vrot.slane %v6751, %v6873
        %v6875 = vsel %vm1642, %v6874, %v6870
        %v6876 = vlaneseq
        %v6877 = vshrl.u32 %v6876, 7
        %v6878 = vsub.s32 %v1618, %v6877
        %v6879 = vrot.slane %v6754, %v6878
        %v6880 = vlaneseq
        %v6881 = vshrl.u32 %v6880, 7
        %v6882 = vsub.s32 %v1623, %v6881
        %v6883 = vrot.slane %v6757, %v6882
        %v6884 = vsel %vm1628, %v6883, %v6879
        %v6885 = vlaneseq
        %v6886 = vshrl.u32 %v6885, 7
        %v6887 = vsub.s32 %v1630, %v6886
        %v6888 = vrot.slane %v6760, %v6887
        %v6889 = vsel %vm1635, %v6888, %v6884
        %v6890 = vlaneseq
        %v6891 = vshrl.u32 %v6890, 7
        %v6892 = vsub.s32 %v1637, %v6891
        %v6893 = vrot.slane %v6763, %v6892
        %v6894 = vsel %vm1642, %v6893, %v6889
        %v6895 = vlaneseq
        %v6896 = vshrl.u32 %v6895, 7
        %v6897 = vsub.s32 %v1618, %v6896
        %v6898 = vrot.slane %v6766, %v6897
        %v6899 = vlaneseq
        %v6900 = vshrl.u32 %v6899, 7
        %v6901 = vsub.s32 %v1623, %v6900
        %v6902 = vrot.slane %v6769, %v6901
        %v6903 = vsel %vm1628, %v6902, %v6898
        %v6904 = vlaneseq
        %v6905 = vshrl.u32 %v6904, 7
        %v6906 = vsub.s32 %v1630, %v6905
        %v6907 = vrot.slane %v6772, %v6906
        %v6908 = vsel %vm1635, %v6907, %v6903
        %v6909 = vlaneseq
        %v6910 = vshrl.u32 %v6909, 7
        %v6911 = vsub.s32 %v1637, %v6910
        %v6912 = vrot.slane %v6775, %v6911
        %v6913 = vsel %vm1642, %v6912, %v6908
        %v6914 = vlaneseq
        %v6915 = vshrl.u32 %v6914, 7
        %v6916 = vsub.s32 %v1618, %v6915
        %v6917 = vrot.slane %v6778, %v6916
        %v6918 = vlaneseq
        %v6919 = vshrl.u32 %v6918, 7
        %v6920 = vsub.s32 %v1623, %v6919
        %v6921 = vrot.slane %v6781, %v6920
        %v6922 = vsel %vm1628, %v6921, %v6917
        %v6923 = vlaneseq
        %v6924 = vshrl.u32 %v6923, 7
        %v6925 = vsub.s32 %v1630, %v6924
        %v6926 = vrot.slane %v6784, %v6925
        %v6927 = vsel %vm1635, %v6926, %v6922
        %v6928 = vlaneseq
        %v6929 = vshrl.u32 %v6928, 7
        %v6930 = vsub.s32 %v1637, %v6929
        %v6931 = vrot.slane %v6787, %v6930
        %v6932 = vsel %vm1642, %v6931, %v6927
        %v6933 = vlaneseq
        %v6934 = vshrl.u32 %v6933, 7
        %v6935 = vsub.s32 %v1618, %v6934
        %v6936 = vrot.slane %v6790, %v6935
        %v6937 = vlaneseq
        %v6938 = vshrl.u32 %v6937, 7
        %v6939 = vsub.s32 %v1623, %v6938
        %v6940 = vrot.slane %v6793, %v6939
        %v6941 = vsel %vm1628, %v6940, %v6936
        %v6942 = vlaneseq
        %v6943 = vshrl.u32 %v6942, 7
        %v6944 = vsub.s32 %v1630, %v6943
        %v6945 = vrot.slane %v6796, %v6944
        %v6946 = vsel %vm1635, %v6945, %v6941
        %v6947 = vlaneseq
        %v6948 = vshrl.u32 %v6947, 7
        %v6949 = vsub.s32 %v1637, %v6948
        %v6950 = vrot.slane %v6799, %v6949
        %v6951 = vsel %vm1642, %v6950, %v6946
        %v6952 = vsel %vm1777, %v6837, %v6818
        %v6953 = vsel %vm1779, %v6856, %v6952
        %v6954 = vsel %vm1781, %v6875, %v6953
        %v6955 = vsel %vm1783, %v6894, %v6954
        %v6956 = vsel %vm1785, %v6913, %v6955
        %v6957 = vsel %vm1787, %v6932, %v6956
        %v6958 = vsel %vm1789, %v6951, %v6957
        %v6960 = vadd.f32 %v5796, %v6958
        %v6961 = vsel %vm317, %v6960, 0.0
        %6962 = vadd.xlane.f32.xlu0 %v6961
        %v6963 = vpop.xlane.xlu0 %6962
        %v6964 = vmul.f32 %v6963, %v1796
        %v6965 = vsub.f32 %v6960, %v6964
        %v6966 = vmul.f32 %v6965, %v6965
        %v6967 = vsel %vm317, %v6966, 0.0
        %6968 = vadd.xlane.f32.xlu0 %v6967
        %v6969 = vpop.xlane.xlu0 %6968
        %v6970 = vmul.f32 %v6969, %v1796
        %v6971 = vadd.f32 %v6970, 1e-05
        %v6972 = vrsqrt.pop %v6971
        %v6973 = vmul.f32 %v6965, %v6972
        %v6974 = vmul.f32 %v6973, %v497
        %v6975 = vadd.f32 %v6974, %v504
        %v6976 = vmax.f32 %v6975, 0.0
        %6977 = vst.msk [vmem:[#allocation3] sm:$0xff] %vm317, %v6976
        %s6978 = scalar_lea.vmem %s297, 32 [#allocation11]
        %6979 = vst.msk [vmem:[%s6978] sm:$0xff] %vm317, %v6976
        %v6980 = vld [vmem:[#allocation3] sm:$0xff]
        %v6981 = vld [vmem:[#allocation4] sm:$0xff]
        %v6982 = vld [vmem:[#allocation4 + $0x8] sm:$0xff]
        %v6983 = vld [vmem:[#allocation4 + $0x10] sm:$0xff]
        %v6984 = vld [vmem:[#allocation4 + $0x18] sm:$0xff]
        %v6985 = vld [vmem:[#allocation4 + $0x20] sm:$0xff]
        %v6986 = vld [vmem:[#allocation4 + $0x28] sm:$0xff]
        %v6987 = vld [vmem:[#allocation4 + $0x30] sm:$0xff]
        %v6988 = vld [vmem:[#allocation4 + $0x38] sm:$0xff]
        %v6989 = vld [vmem:[#allocation4 + $0x40] sm:$0xff]
        %v6990 = vld [vmem:[#allocation4 + $0x48] sm:$0xff]
        %v6991 = vld [vmem:[#allocation4 + $0x50] sm:$0xff]
        %v6992 = vld [vmem:[#allocation4 + $0x58] sm:$0xff]
        %v6993 = vld [vmem:[#allocation4 + $0x60] sm:$0xff]
        %v6994 = vld [vmem:[#allocation4 + $0x68] sm:$0xff]
        %v6995 = vld [vmem:[#allocation4 + $0x70] sm:$0xff]
        %v6996 = vld [vmem:[#allocation4 + $0x78] sm:$0xff]
        %v6997 = vld [vmem:[#allocation4 + $0x80] sm:$0xff]
        %v6998 = vld [vmem:[#allocation4 + $0x88] sm:$0xff]
        %v6999 = vld [vmem:[#allocation4 + $0x90] sm:$0xff]
        %v7000 = vld [vmem:[#allocation4 + $0x98] sm:$0xff]
        %v7001 = vld [vmem:[#allocation4 + $0xa0] sm:$0xff]
        %v7002 = vld [vmem:[#allocation4 + $0xa8] sm:$0xff]
        %v7003 = vld [vmem:[#allocation4 + $0xb0] sm:$0xff]
        %v7004 = vld [vmem:[#allocation4 + $0xb8] sm:$0xff]
        %v7005 = vld [vmem:[#allocation4 + $0xc0] sm:$0xff]
        %v7006 = vld [vmem:[#allocation4 + $0xc8] sm:$0xff]
        %v7007 = vld [vmem:[#allocation4 + $0xd0] sm:$0xff]
        %v7008 = vld [vmem:[#allocation4 + $0xd8] sm:$0xff]
        %v7009 = vld [vmem:[#allocation4 + $0xe0] sm:$0xff]
        %v7010 = vld [vmem:[#allocation4 + $0xe8] sm:$0xff]
        %v7011 = vld [vmem:[#allocation4 + $0xf0] sm:$0xff]
        %v7012 = vld [vmem:[#allocation4 + $0xf8] sm:$0xff]
        %s7013 = scalar_lea.vmem [#allocation2], 40
        %v7014 = vld [vmem:[%s7013] sm:$0xff]
        %v7016 = vsel %vm317, %v6980, 0
        %7018 = vmatprep.subr.mxu0 0.0
        %7019 = vmatpush1.msra.mxu0 0.0
        %7020 = vmatprep.subr.mxu0 0.0
        %7021 = vmatpush1.msra.mxu0 0.0
        %7022 = vmatprep.subr.mxu0 0.0
        %7023 = vmatpush1.msra.mxu0 0.0
        %7024 = vmatprep.subr.mxu0 0.0
        %7025 = vmatpush1.msra.mxu0 0.0
        %7026 = vmatprep.subr.mxu0 0.0
        %7027 = vmatpush1.msra.mxu0 0.0
        %7028 = vmatprep.subr.mxu0 0.0
        %7029 = vmatpush1.msra.mxu0 0.0
        %7030 = vmatprep.subr.mxu0 0.0
        %7031 = vmatpush1.msra.mxu0 0.0
        %7032 = vmatprep.subr.mxu0 0.0
        %7033 = vmatpush1.msra.mxu0 0.0
        %7034 = vmatprep.subr.mxu0 0.0
        %7035 = vmatpush1.msra.mxu0 0.0
        %7036 = vmatprep.subr.mxu0 0.0
        %7037 = vmatpush1.msra.mxu0 0.0
        %7038 = vmatprep.subr.mxu0 0.0
        %7039 = vmatpush1.msra.mxu0 0.0
        %7040 = vmatprep.subr.mxu0 0.0
        %7041 = vmatpush1.msra.mxu0 0.0
        %7042 = vmatprep.subr.mxu0 0.0
        %7043 = vmatpush1.msra.mxu0 %v491
        %7044 = vmatprep.subr.mxu0 0.0
        %7045 = vmatpush1.msra.mxu0 %v490
        %7046 = vmatprep.subr.mxu0 0.0
        %7047 = vmatpush1.msra.mxu0 %v489
        %7048 = vmatprep.subr.mxu0 0.0
        %7049 = vmatpush1.msra.mxu0 %v488
        %7050 = vmatprep.subr.mxu0 0.0
        %7051 = vmatpush2.msra.mxu0 0.0
        %7052 = vmatprep.subr.mxu0 0.0
        %7053 = vmatpush2.msra.mxu0 0.0
        %7054 = vmatprep.subr.mxu0 0.0
        %7055 = vmatpush2.msra.mxu0 0.0
        %7056 = vmatprep.subr.mxu0 0.0
        %7057 = vmatpush2.msra.mxu0 0.0
        %7058 = vmatprep.subr.mxu0 0.0
        %7059 = vmatpush2.msra.mxu0 0.0
        %7060 = vmatprep.subr.mxu0 0.0
        %7061 = vmatpush2.msra.mxu0 0.0
        %7062 = vmatprep.subr.mxu0 0.0
        %7063 = vmatpush2.msra.mxu0 0.0
        %7064 = vmatprep.subr.mxu0 0.0
        %7065 = vmatpush2.msra.mxu0 0.0
        %7066 = vmatprep.subr.mxu0 0.0
        %7067 = vmatpush2.msra.mxu0 0.0
        %7068 = vmatprep.subr.mxu0 0.0
        %7069 = vmatpush2.msra.mxu0 0.0
        %7070 = vmatprep.subr.mxu0 0.0
        %7071 = vmatpush2.msra.mxu0 0.0
        %7072 = vmatprep.subr.mxu0 0.0
        %7073 = vmatpush2.msra.mxu0 0.0
        %7074 = vmatprep.subr.mxu0 0.0
        %7075 = vmatpush2.msra.mxu0 0.0
        %7076 = vmatprep.subr.mxu0 0.0
        %7077 = vmatpush2.msra.mxu0 0.0
        %7078 = vmatprep.subr.mxu0 0.0
        %7079 = vmatpush2.msra.mxu0 0.0
        %7080 = vmatprep.subr.mxu0 0.0
        %7081 = vmatpush2.msra.mxu0 0.0
        %7082 = vmatprep.mubr.f32.mxu0 0.0
        %7083 = vmatmul.mubr.f32.gmra.mxu0 %v7016
        %v7084 = vpop.f32.mrf.mxu0
        %v7085 = vadd.f32 0.0, %v7084
        %v7086 = vpop.f32.mrf.mxu0
        %7087 = vdwg.mxu0
        %v7088 = vadd.f32 %v7014, %v7085
        %v7089 = vlaneseq
        %v7090 = vshrl.u32 %v7089, 7
        %v7091 = vsub.s32 0, %v7090
        %v7092 = vrot.slane %v6980, %v7091
        %7094 = vbcast.lane.b32.xlu0 %v7092, 256
        %v7095 = vpop.permute.xlu0 %7094
        %s7097 = sor.u32 256, 8
        %7098 = vbcast.lane.b32.xlu0 %v7092, %s7097
        %v7099 = vpop.permute.xlu0 %7098
        %s7101 = sor.u32 256, 16
        %7102 = vbcast.lane.b32.xlu0 %v7092, %s7101
        %v7103 = vpop.permute.xlu0 %7102
        %s7105 = sor.u32 256, 24
        %7106 = vbcast.lane.b32.xlu0 %v7092, %s7105
        %v7107 = vpop.permute.xlu0 %7106
        %v7108 = vlaneseq
        %v7109 = vshrl.u32 %v7108, 7
        %v7110 = vsub.s32 1, %v7109
        %v7111 = vrot.slane %v6980, %v7110
        %7113 = vbcast.lane.b32.xlu0 %v7111, 256
        %v7114 = vpop.permute.xlu0 %7113
        %s7116 = sor.u32 256, 8
        %7117 = vbcast.lane.b32.xlu0 %v7111, %s7116
        %v7118 = vpop.permute.xlu0 %7117
        %s7120 = sor.u32 256, 16
        %7121 = vbcast.lane.b32.xlu0 %v7111, %s7120
        %v7122 = vpop.permute.xlu0 %7121
        %s7124 = sor.u32 256, 24
        %7125 = vbcast.lane.b32.xlu0 %v7111, %s7124
        %v7126 = vpop.permute.xlu0 %7125
        %v7127 = vlaneseq
        %v7128 = vshrl.u32 %v7127, 7
        %v7129 = vsub.s32 2, %v7128
        %v7130 = vrot.slane %v6980, %v7129
        %7132 = vbcast.lane.b32.xlu0 %v7130, 256
        %v7133 = vpop.permute.xlu0 %7132
        %s7135 = sor.u32 256, 8
        %7136 = vbcast.lane.b32.xlu0 %v7130, %s7135
        %v7137 = vpop.permute.xlu0 %7136
        %s7139 = sor.u32 256, 16
        %7140 = vbcast.lane.b32.xlu0 %v7130, %s7139
        %v7141 = vpop.permute.xlu0 %7140
        %s7143 = sor.u32 256, 24
        %7144 = vbcast.lane.b32.xlu0 %v7130, %s7143
        %v7145 = vpop.permute.xlu0 %7144
        %v7146 = vlaneseq
        %v7147 = vshrl.u32 %v7146, 7
        %v7148 = vsub.s32 3, %v7147
        %v7149 = vrot.slane %v6980, %v7148
        %7151 = vbcast.lane.b32.xlu0 %v7149, 256
        %v7152 = vpop.permute.xlu0 %7151
        %s7154 = sor.u32 256, 8
        %7155 = vbcast.lane.b32.xlu0 %v7149, %s7154
        %v7156 = vpop.permute.xlu0 %7155
        %s7158 = sor.u32 256, 16
        %7159 = vbcast.lane.b32.xlu0 %v7149, %s7158
        %v7160 = vpop.permute.xlu0 %7159
        %s7162 = sor.u32 256, 24
        %7163 = vbcast.lane.b32.xlu0 %v7149, %s7162
        %v7164 = vpop.permute.xlu0 %7163
        %v7165 = vlaneseq
        %v7166 = vshrl.u32 %v7165, 7
        %v7167 = vsub.s32 4, %v7166
        %v7168 = vrot.slane %v6980, %v7167
        %7170 = vbcast.lane.b32.xlu0 %v7168, 256
        %v7171 = vpop.permute.xlu0 %7170
        %s7173 = sor.u32 256, 8
        %7174 = vbcast.lane.b32.xlu0 %v7168, %s7173
        %v7175 = vpop.permute.xlu0 %7174
        %s7177 = sor.u32 256, 16
        %7178 = vbcast.lane.b32.xlu0 %v7168, %s7177
        %v7179 = vpop.permute.xlu0 %7178
        %s7181 = sor.u32 256, 24
        %7182 = vbcast.lane.b32.xlu0 %v7168, %s7181
        %v7183 = vpop.permute.xlu0 %7182
        %v7184 = vlaneseq
        %v7185 = vshrl.u32 %v7184, 7
        %v7186 = vsub.s32 5, %v7185
        %v7187 = vrot.slane %v6980, %v7186
        %7189 = vbcast.lane.b32.xlu0 %v7187, 256
        %v7190 = vpop.permute.xlu0 %7189
        %s7192 = sor.u32 256, 8
        %7193 = vbcast.lane.b32.xlu0 %v7187, %s7192
        %v7194 = vpop.permute.xlu0 %7193
        %s7196 = sor.u32 256, 16
        %7197 = vbcast.lane.b32.xlu0 %v7187, %s7196
        %v7198 = vpop.permute.xlu0 %7197
        %s7200 = sor.u32 256, 24
        %7201 = vbcast.lane.b32.xlu0 %v7187, %s7200
        %v7202 = vpop.permute.xlu0 %7201
        %v7203 = vlaneseq
        %v7204 = vshrl.u32 %v7203, 7
        %v7205 = vsub.s32 6, %v7204
        %v7206 = vrot.slane %v6980, %v7205
        %7208 = vbcast.lane.b32.xlu0 %v7206, 256
        %v7209 = vpop.permute.xlu0 %7208
        %s7211 = sor.u32 256, 8
        %7212 = vbcast.lane.b32.xlu0 %v7206, %s7211
        %v7213 = vpop.permute.xlu0 %7212
        %s7215 = sor.u32 256, 16
        %7216 = vbcast.lane.b32.xlu0 %v7206, %s7215
        %v7217 = vpop.permute.xlu0 %7216
        %s7219 = sor.u32 256, 24
        %7220 = vbcast.lane.b32.xlu0 %v7206, %s7219
        %v7221 = vpop.permute.xlu0 %7220
        %v7222 = vlaneseq
        %v7223 = vshrl.u32 %v7222, 7
        %v7224 = vsub.s32 7, %v7223
        %v7225 = vrot.slane %v6980, %v7224
        %7227 = vbcast.lane.b32.xlu0 %v7225, 256
        %v7228 = vpop.permute.xlu0 %7227
        %s7230 = sor.u32 256, 8
        %7231 = vbcast.lane.b32.xlu0 %v7225, %s7230
        %v7232 = vpop.permute.xlu0 %7231
        %s7234 = sor.u32 256, 16
        %7235 = vbcast.lane.b32.xlu0 %v7225, %s7234
        %v7236 = vpop.permute.xlu0 %7235
        %s7238 = sor.u32 256, 24
        %7239 = vbcast.lane.b32.xlu0 %v7225, %s7238
        %v7240 = vpop.permute.xlu0 %7239
        %v7241 = vcombine.high %v6980, %v6980
        %v7243 = vunpack.c.l.s4 1966171168
        %v7244 = vunpack.c.0.s8 %v7243
        %v7245 = vlaneseq
        %v7246 = vshrl.u32 %v7245, 7
        %v7247 = vsub.s32 %v7244, %v7246
        %v7248 = vrot.slane %v6980, %v7247
        %v7250 = vunpack.c.l.s4 1966171168
        %v7251 = vunpack.c.0.s8 %v7250
        %v7252 = vlaneseq
        %v7253 = vshrl.u32 %v7252, 7
        %v7254 = vsub.s32 %v7251, %v7253
        %v7255 = vrot.slane %v7241, %v7254
        %v7256 = vcombine.high %v7248, %v7248
        %v7257 = vcombine.high %v7255, %v7255
        %v7259 = vunpack.c.l.s4 1966171168
        %v7260 = vunpack.c.0.s8 %v7259
        %v7261 = vlaneseq
        %v7262 = vshrl.u32 %v7261, 7
        %v7263 = vsub.s32 %v7260, %v7262
        %v7264 = vrot.slane %v7248, %v7263
        %v7266 = vunpack.c.l.s4 1966171168
        %v7267 = vunpack.c.0.s8 %v7266
        %v7268 = vlaneseq
        %v7269 = vshrl.u32 %v7268, 7
        %v7270 = vsub.s32 %v7267, %v7269
        %v7271 = vrot.slane %v7255, %v7270
        %v7273 = vunpack.c.l.s4 1966171168
        %v7274 = vunpack.c.0.s8 %v7273
        %v7275 = vlaneseq
        %v7276 = vshrl.u32 %v7275, 7
        %v7277 = vsub.s32 %v7274, %v7276
        %v7278 = vrot.slane %v7256, %v7277
        %v7280 = vunpack.c.l.s4 1966171168
        %v7281 = vunpack.c.0.s8 %v7280
        %v7282 = vlaneseq
        %v7283 = vshrl.u32 %v7282, 7
        %v7284 = vsub.s32 %v7281, %v7283
        %v7285 = vrot.slane %v7257, %v7284
        %v7286 = vcombine.high %v7264, %v7264
        %v7287 = vcombine.high %v7271, %v7271
        %v7288 = vcombine.high %v7278, %v7278
        %v7289 = vcombine.high %v7285, %v7285
        %v7290 = vlaneseq
        %v7291 = vshrl.u32 %v7290, 7
        %v7292 = vsub.s32 0, %v7291
        %v7293 = vrot.slane %v7264, %v7292
        %v7294 = vlaneseq
        %v7295 = vshrl.u32 %v7294, 7
        %v7296 = vsub.s32 0, %v7295
        %v7297 = vrot.slane %v7278, %v7296
        %v7298 = vlaneseq
        %v7299 = vshrl.u32 %v7298, 7
        %v7300 = vsub.s32 0, %v7299
        %v7301 = vrot.slane %v7286, %v7300
        %v7302 = vlaneseq
        %v7303 = vshrl.u32 %v7302, 7
        %v7304 = vsub.s32 0, %v7303
        %v7305 = vrot.slane %v7288, %v7304
        %v7306 = vlaneseq
        %v7307 = vshrl.u32 %v7306, 7
        %v7308 = vsub.s32 0, %v7307
        %v7309 = vrot.slane %v7271, %v7308
        %v7310 = vlaneseq
        %v7311 = vshrl.u32 %v7310, 7
        %v7312 = vsub.s32 0, %v7311
        %v7313 = vrot.slane %v7285, %v7312
        %v7314 = vlaneseq
        %v7315 = vshrl.u32 %v7314, 7
        %v7316 = vsub.s32 0, %v7315
        %v7317 = vrot.slane %v7287, %v7316
        %v7318 = vlaneseq
        %v7319 = vshrl.u32 %v7318, 7
        %v7320 = vsub.s32 0, %v7319
        %v7321 = vrot.slane %v7289, %v7320
        %v7330 = vmul.f32 %v7095, %v7293
        %v7331 = vmul.f32 %v7099, %v7293
        %v7332 = vmul.f32 %v7103, %v7293
        %v7333 = vmul.f32 %v7107, %v7293
        %v7334 = vmul.f32 %v7114, %v7297
        %v7335 = vmul.f32 %v7118, %v7297
        %v7336 = vmul.f32 %v7122, %v7297
        %v7337 = vmul.f32 %v7126, %v7297
        %v7338 = vmul.f32 %v7133, %v7301
        %v7339 = vmul.f32 %v7137, %v7301
        %v7340 = vmul.f32 %v7141, %v7301
        %v7341 = vmul.f32 %v7145, %v7301
        %v7342 = vmul.f32 %v7152, %v7305
        %v7343 = vmul.f32 %v7156, %v7305
        %v7344 = vmul.f32 %v7160, %v7305
        %v7345 = vmul.f32 %v7164, %v7305
        %v7346 = vmul.f32 %v7171, %v7309
        %v7347 = vmul.f32 %v7175, %v7309
        %v7348 = vmul.f32 %v7179, %v7309
        %v7349 = vmul.f32 %v7183, %v7309
        %v7350 = vmul.f32 %v7190, %v7313
        %v7351 = vmul.f32 %v7194, %v7313
        %v7352 = vmul.f32 %v7198, %v7313
        %v7353 = vmul.f32 %v7202, %v7313
        %v7354 = vmul.f32 %v7209, %v7317
        %v7355 = vmul.f32 %v7213, %v7317
        %v7356 = vmul.f32 %v7217, %v7317
        %v7357 = vmul.f32 %v7221, %v7317
        %v7358 = vmul.f32 %v7228, %v7321
        %v7359 = vmul.f32 %v7232, %v7321
        %v7360 = vmul.f32 %v7236, %v7321
        %v7361 = vmul.f32 %v7240, %v7321
        %v7362 = vmul.f32 %v6981, 0.9
        %v7363 = vmul.f32 %v6982, 0.9
        %v7364 = vmul.f32 %v6983, 0.9
        %v7365 = vmul.f32 %v6984, 0.9
        %v7366 = vmul.f32 %v6985, 0.9
        %v7367 = vmul.f32 %v6986, 0.9
        %v7368 = vmul.f32 %v6987, 0.9
        %v7369 = vmul.f32 %v6988, 0.9
        %v7370 = vmul.f32 %v6989, 0.9
        %v7371 = vmul.f32 %v6990, 0.9
        %v7372 = vmul.f32 %v6991, 0.9
        %v7373 = vmul.f32 %v6992, 0.9
        %v7374 = vmul.f32 %v6993, 0.9
        %v7375 = vmul.f32 %v6994, 0.9
        %v7376 = vmul.f32 %v6995, 0.9
        %v7377 = vmul.f32 %v6996, 0.9
        %v7378 = vmul.f32 %v6997, 0.9
        %v7379 = vmul.f32 %v6998, 0.9
        %v7380 = vmul.f32 %v6999, 0.9
        %v7381 = vmul.f32 %v7000, 0.9
        %v7382 = vmul.f32 %v7001, 0.9
        %v7383 = vmul.f32 %v7002, 0.9
        %v7384 = vmul.f32 %v7003, 0.9
        %v7385 = vmul.f32 %v7004, 0.9
        %v7386 = vmul.f32 %v7005, 0.9
        %v7387 = vmul.f32 %v7006, 0.9
        %v7388 = vmul.f32 %v7007, 0.9
        %v7389 = vmul.f32 %v7008, 0.9
        %v7390 = vmul.f32 %v7009, 0.9
        %v7391 = vmul.f32 %v7010, 0.9
        %v7392 = vmul.f32 %v7011, 0.9
        %v7393 = vmul.f32 %v7012, 0.9
        %v7394 = vmul.f32 %v7330, 0.5
        %v7395 = vmul.f32 %v7331, 0.5
        %v7396 = vmul.f32 %v7332, 0.5
        %v7397 = vmul.f32 %v7333, 0.5
        %v7398 = vmul.f32 %v7334, 0.5
        %v7399 = vmul.f32 %v7335, 0.5
        %v7400 = vmul.f32 %v7336, 0.5
        %v7401 = vmul.f32 %v7337, 0.5
        %v7402 = vmul.f32 %v7338, 0.5
        %v7403 = vmul.f32 %v7339, 0.5
        %v7404 = vmul.f32 %v7340, 0.5
        %v7405 = vmul.f32 %v7341, 0.5
        %v7406 = vmul.f32 %v7342, 0.5
        %v7407 = vmul.f32 %v7343, 0.5
        %v7408 = vmul.f32 %v7344, 0.5
        %v7409 = vmul.f32 %v7345, 0.5
        %v7410 = vmul.f32 %v7346, 0.5
        %v7411 = vmul.f32 %v7347, 0.5
        %v7412 = vmul.f32 %v7348, 0.5
        %v7413 = vmul.f32 %v7349, 0.5
        %v7414 = vmul.f32 %v7350, 0.5
        %v7415 = vmul.f32 %v7351, 0.5
        %v7416 = vmul.f32 %v7352, 0.5
        %v7417 = vmul.f32 %v7353, 0.5
        %v7418 = vmul.f32 %v7354, 0.5
        %v7419 = vmul.f32 %v7355, 0.5
        %v7420 = vmul.f32 %v7356, 0.5
        %v7421 = vmul.f32 %v7357, 0.5
        %v7422 = vmul.f32 %v7358, 0.5
        %v7423 = vmul.f32 %v7359, 0.5
        %v7424 = vmul.f32 %v7360, 0.5
        %v7425 = vmul.f32 %v7361, 0.5
        %v7426 = vadd.f32 %v7362, %v7394
        %v7427 = vadd.f32 %v7363, %v7395
        %v7428 = vadd.f32 %v7364, %v7396
        %v7429 = vadd.f32 %v7365, %v7397
        %v7430 = vadd.f32 %v7366, %v7398
        %v7431 = vadd.f32 %v7367, %v7399
        %v7432 = vadd.f32 %v7368, %v7400
        %v7433 = vadd.f32 %v7369, %v7401
        %v7434 = vadd.f32 %v7370, %v7402
        %v7435 = vadd.f32 %v7371, %v7403
        %v7436 = vadd.f32 %v7372, %v7404
        %v7437 = vadd.f32 %v7373, %v7405
        %v7438 = vadd.f32 %v7374, %v7406
        %v7439 = vadd.f32 %v7375, %v7407
        %v7440 = vadd.f32 %v7376, %v7408
        %v7441 = vadd.f32 %v7377, %v7409
        %v7442 = vadd.f32 %v7378, %v7410
        %v7443 = vadd.f32 %v7379, %v7411
        %v7444 = vadd.f32 %v7380, %v7412
        %v7445 = vadd.f32 %v7381, %v7413
        %v7446 = vadd.f32 %v7382, %v7414
        %v7447 = vadd.f32 %v7383, %v7415
        %v7448 = vadd.f32 %v7384, %v7416
        %v7449 = vadd.f32 %v7385, %v7417
        %v7450 = vadd.f32 %v7386, %v7418
        %v7451 = vadd.f32 %v7387, %v7419
        %v7452 = vadd.f32 %v7388, %v7420
        %v7453 = vadd.f32 %v7389, %v7421
        %v7454 = vadd.f32 %v7390, %v7422
        %v7455 = vadd.f32 %v7391, %v7423
        %v7456 = vadd.f32 %v7392, %v7424
        %v7457 = vadd.f32 %v7393, %v7425
        %7458 = vst.msk [vmem:[#allocation4] sm:$0xff] %vm317, %v7426
        %7459 = vst.msk [vmem:[#allocation4 + $0x8] sm:$0xff] %vm317, %v7427
        %7460 = vst.msk [vmem:[#allocation4 + $0x10] sm:$0xff] %vm317, %v7428
        %7461 = vst.msk [vmem:[#allocation4 + $0x18] sm:$0xff] %vm317, %v7429
        %7462 = vst.msk [vmem:[#allocation4 + $0x20] sm:$0xff] %vm317, %v7430
        %7463 = vst.msk [vmem:[#allocation4 + $0x28] sm:$0xff] %vm317, %v7431
        %7464 = vst.msk [vmem:[#allocation4 + $0x30] sm:$0xff] %vm317, %v7432
        %7465 = vst.msk [vmem:[#allocation4 + $0x38] sm:$0xff] %vm317, %v7433
        %7466 = vst.msk [vmem:[#allocation4 + $0x40] sm:$0xff] %vm317, %v7434
        %7467 = vst.msk [vmem:[#allocation4 + $0x48] sm:$0xff] %vm317, %v7435
        %7468 = vst.msk [vmem:[#allocation4 + $0x50] sm:$0xff] %vm317, %v7436
        %7469 = vst.msk [vmem:[#allocation4 + $0x58] sm:$0xff] %vm317, %v7437
        %7470 = vst.msk [vmem:[#allocation4 + $0x60] sm:$0xff] %vm317, %v7438
        %7471 = vst.msk [vmem:[#allocation4 + $0x68] sm:$0xff] %vm317, %v7439
        %7472 = vst.msk [vmem:[#allocation4 + $0x70] sm:$0xff] %vm317, %v7440
        %7473 = vst.msk [vmem:[#allocation4 + $0x78] sm:$0xff] %vm317, %v7441
        %7474 = vst.msk [vmem:[#allocation4 + $0x80] sm:$0xff] %vm317, %v7442
        %7475 = vst.msk [vmem:[#allocation4 + $0x88] sm:$0xff] %vm317, %v7443
        %7476 = vst.msk [vmem:[#allocation4 + $0x90] sm:$0xff] %vm317, %v7444
        %7477 = vst.msk [vmem:[#allocation4 + $0x98] sm:$0xff] %vm317, %v7445
        %7478 = vst.msk [vmem:[#allocation4 + $0xa0] sm:$0xff] %vm317, %v7446
        %7479 = vst.msk [vmem:[#allocation4 + $0xa8] sm:$0xff] %vm317, %v7447
        %7480 = vst.msk [vmem:[#allocation4 + $0xb0] sm:$0xff] %vm317, %v7448
        %7481 = vst.msk [vmem:[#allocation4 + $0xb8] sm:$0xff] %vm317, %v7449
        %7482 = vst.msk [vmem:[#allocation4 + $0xc0] sm:$0xff] %vm317, %v7450
        %7483 = vst.msk [vmem:[#allocation4 + $0xc8] sm:$0xff] %vm317, %v7451
        %7484 = vst.msk [vmem:[#allocation4 + $0xd0] sm:$0xff] %vm317, %v7452
        %7485 = vst.msk [vmem:[#allocation4 + $0xd8] sm:$0xff] %vm317, %v7453
        %7486 = vst.msk [vmem:[#allocation4 + $0xe0] sm:$0xff] %vm317, %v7454
        %7487 = vst.msk [vmem:[#allocation4 + $0xe8] sm:$0xff] %vm317, %v7455
        %7488 = vst.msk [vmem:[#allocation4 + $0xf0] sm:$0xff] %vm317, %v7456
        %7489 = vst.msk [vmem:[#allocation4 + $0xf8] sm:$0xff] %vm317, %v7457
        %v7490 = vmax.f32 %v7088, 0.0
        %v7492 = vcombine.high %v7490, %v7490
        %v7494 = vunpack.c.l.s4 1966171168
        %v7495 = vunpack.c.0.s8 %v7494
        %v7496 = vlaneseq
        %v7497 = vshrl.u32 %v7496, 7
        %v7498 = vsub.s32 %v7495, %v7497
        %v7499 = vrot.slane %v7490, %v7498
        %v7501 = vunpack.c.l.s4 1966171168
        %v7502 = vunpack.c.0.s8 %v7501
        %v7503 = vlaneseq
        %v7504 = vshrl.u32 %v7503, 7
        %v7505 = vsub.s32 %v7502, %v7504
        %v7506 = vrot.slane %v7492, %v7505
        %v7507 = vcombine.high %v7499, %v7499
        %v7508 = vcombine.high %v7506, %v7506
        %v7510 = vunpack.c.l.s4 1966171168
        %v7511 = vunpack.c.0.s8 %v7510
        %v7512 = vlaneseq
        %v7513 = vshrl.u32 %v7512, 7
        %v7514 = vsub.s32 %v7511, %v7513
        %v7515 = vrot.slane %v7499, %v7514
        %v7517 = vunpack.c.l.s4 1966171168
        %v7518 = vunpack.c.0.s8 %v7517
        %v7519 = vlaneseq
        %v7520 = vshrl.u32 %v7519, 7
        %v7521 = vsub.s32 %v7518, %v7520
        %v7522 = vrot.slane %v7506, %v7521
        %v7524 = vunpack.c.l.s4 1966171168
        %v7525 = vunpack.c.0.s8 %v7524
        %v7526 = vlaneseq
        %v7527 = vshrl.u32 %v7526, 7
        %v7528 = vsub.s32 %v7525, %v7527
        %v7529 = vrot.slane %v7507, %v7528
        %v7531 = vunpack.c.l.s4 1966171168
        %v7532 = vunpack.c.0.s8 %v7531
        %v7533 = vlaneseq
        %v7534 = vshrl.u32 %v7533, 7
        %v7535 = vsub.s32 %v7532, %v7534
        %v7536 = vrot.slane %v7508, %v7535
        %v7537 = vcombine.high %v7515, %v7515
        %v7538 = vcombine.high %v7522, %v7522
        %v7539 = vcombine.high %v7529, %v7529
        %v7540 = vcombine.high %v7536, %v7536
        %v7541 = vlaneseq
        %v7542 = vshrl.u32 %v7541, 7
        %v7543 = vsub.s32 0, %v7542
        %v7544 = vrot.slane %v7515, %v7543
        %v7545 = vlaneseq
        %v7546 = vshrl.u32 %v7545, 7
        %v7547 = vsub.s32 0, %v7546
        %v7548 = vrot.slane %v7529, %v7547
        %v7549 = vlaneseq
        %v7550 = vshrl.u32 %v7549, 7
        %v7551 = vsub.s32 0, %v7550
        %v7552 = vrot.slane %v7537, %v7551
        %v7553 = vlaneseq
        %v7554 = vshrl.u32 %v7553, 7
        %v7555 = vsub.s32 0, %v7554
        %v7556 = vrot.slane %v7539, %v7555
        %v7557 = vlaneseq
        %v7558 = vshrl.u32 %v7557, 7
        %v7559 = vsub.s32 0, %v7558
        %v7560 = vrot.slane %v7522, %v7559
        %v7561 = vlaneseq
        %v7562 = vshrl.u32 %v7561, 7
        %v7563 = vsub.s32 0, %v7562
        %v7564 = vrot.slane %v7536, %v7563
        %v7565 = vlaneseq
        %v7566 = vshrl.u32 %v7565, 7
        %v7567 = vsub.s32 0, %v7566
        %v7568 = vrot.slane %v7538, %v7567
        %v7569 = vlaneseq
        %v7570 = vshrl.u32 %v7569, 7
        %v7571 = vsub.s32 0, %v7570
        %v7572 = vrot.slane %v7540, %v7571
        %v7581 = vmul.f32 %v6981, %v7544
        %v7582 = vmul.f32 %v6982, %v7544
        %v7583 = vmul.f32 %v6983, %v7544
        %v7584 = vmul.f32 %v6984, %v7544
        %v7585 = vmul.f32 %v6985, %v7548
        %v7586 = vmul.f32 %v6986, %v7548
        %v7587 = vmul.f32 %v6987, %v7548
        %v7588 = vmul.f32 %v6988, %v7548
        %v7589 = vmul.f32 %v6989, %v7552
        %v7590 = vmul.f32 %v6990, %v7552
        %v7591 = vmul.f32 %v6991, %v7552
        %v7592 = vmul.f32 %v6992, %v7552
        %v7593 = vmul.f32 %v6993, %v7556
        %v7594 = vmul.f32 %v6994, %v7556
        %v7595 = vmul.f32 %v6995, %v7556
        %v7596 = vmul.f32 %v6996, %v7556
        %v7597 = vmul.f32 %v6997, %v7560
        %v7598 = vmul.f32 %v6998, %v7560
        %v7599 = vmul.f32 %v6999, %v7560
        %v7600 = vmul.f32 %v7000, %v7560
        %v7601 = vmul.f32 %v7001, %v7564
        %v7602 = vmul.f32 %v7002, %v7564
        %v7603 = vmul.f32 %v7003, %v7564
        %v7604 = vmul.f32 %v7004, %v7564
        %v7605 = vmul.f32 %v7005, %v7568
        %v7606 = vmul.f32 %v7006, %v7568
        %v7607 = vmul.f32 %v7007, %v7568
        %v7608 = vmul.f32 %v7008, %v7568
        %v7609 = vmul.f32 %v7009, %v7572
        %v7610 = vmul.f32 %v7010, %v7572
        %v7611 = vmul.f32 %v7011, %v7572
        %v7612 = vmul.f32 %v7012, %v7572
        %v7613 = vsel %vm317, %v7581, 0.0
        %7614 = vadd.xlane.f32.xlu0 %v7613
        %v7615 = vpop.xlane.xlu0 %7614
        %v7616 = vsel %vm317, %v7582, 0.0
        %7617 = vadd.xlane.f32.xlu0 %v7616
        %v7618 = vpop.xlane.xlu0 %7617
        %v7619 = vsel %vm317, %v7583, 0.0
        %7620 = vadd.xlane.f32.xlu0 %v7619
        %v7621 = vpop.xlane.xlu0 %7620
        %v7622 = vsel %vm317, %v7584, 0.0
        %7623 = vadd.xlane.f32.xlu0 %v7622
        %v7624 = vpop.xlane.xlu0 %7623
        %v7625 = vsel %vm317, %v7585, 0.0
        %7626 = vadd.xlane.f32.xlu0 %v7625
        %v7627 = vpop.xlane.xlu0 %7626
        %v7628 = vsel %vm317, %v7586, 0.0
        %7629 = vadd.xlane.f32.xlu0 %v7628
        %v7630 = vpop.xlane.xlu0 %7629
        %v7631 = vsel %vm317, %v7587, 0.0
        %7632 = vadd.xlane.f32.xlu0 %v7631
        %v7633 = vpop.xlane.xlu0 %7632
        %v7634 = vsel %vm317, %v7588, 0.0
        %7635 = vadd.xlane.f32.xlu0 %v7634
        %v7636 = vpop.xlane.xlu0 %7635
        %v7637 = vsel %vm317, %v7589, 0.0
        %7638 = vadd.xlane.f32.xlu0 %v7637
        %v7639 = vpop.xlane.xlu0 %7638
        %v7640 = vsel %vm317, %v7590, 0.0
        %7641 = vadd.xlane.f32.xlu0 %v7640
        %v7642 = vpop.xlane.xlu0 %7641
        %v7643 = vsel %vm317, %v7591, 0.0
        %7644 = vadd.xlane.f32.xlu0 %v7643
        %v7645 = vpop.xlane.xlu0 %7644
        %v7646 = vsel %vm317, %v7592, 0.0
        %7647 = vadd.xlane.f32.xlu0 %v7646
        %v7648 = vpop.xlane.xlu0 %7647
        %v7649 = vsel %vm317, %v7593, 0.0
        %7650 = vadd.xlane.f32.xlu0 %v7649
        %v7651 = vpop.xlane.xlu0 %7650
        %v7652 = vsel %vm317, %v7594, 0.0
        %7653 = vadd.xlane.f32.xlu0 %v7652
        %v7654 = vpop.xlane.xlu0 %7653
        %v7655 = vsel %vm317, %v7595, 0.0
        %7656 = vadd.xlane.f32.xlu0 %v7655
        %v7657 = vpop.xlane.xlu0 %7656
        %v7658 = vsel %vm317, %v7596, 0.0
        %7659 = vadd.xlane.f32.xlu0 %v7658
        %v7660 = vpop.xlane.xlu0 %7659
        %v7661 = vsel %vm317, %v7597, 0.0
        %7662 = vadd.xlane.f32.xlu0 %v7661
        %v7663 = vpop.xlane.xlu0 %7662
        %v7664 = vsel %vm317, %v7598, 0.0
        %7665 = vadd.xlane.f32.xlu0 %v7664
        %v7666 = vpop.xlane.xlu0 %7665
        %v7667 = vsel %vm317, %v7599, 0.0
        %7668 = vadd.xlane.f32.xlu0 %v7667
        %v7669 = vpop.xlane.xlu0 %7668
        %v7670 = vsel %vm317, %v7600, 0.0
        %7671 = vadd.xlane.f32.xlu0 %v7670
        %v7672 = vpop.xlane.xlu0 %7671
        %v7673 = vsel %vm317, %v7601, 0.0
        %7674 = vadd.xlane.f32.xlu0 %v7673
        %v7675 = vpop.xlane.xlu0 %7674
        %v7676 = vsel %vm317, %v7602, 0.0
        %7677 = vadd.xlane.f32.xlu0 %v7676
        %v7678 = vpop.xlane.xlu0 %7677
        %v7679 = vsel %vm317, %v7603, 0.0
        %7680 = vadd.xlane.f32.xlu0 %v7679
        %v7681 = vpop.xlane.xlu0 %7680
        %v7682 = vsel %vm317, %v7604, 0.0
        %7683 = vadd.xlane.f32.xlu0 %v7682
        %v7684 = vpop.xlane.xlu0 %7683
        %v7685 = vsel %vm317, %v7605, 0.0
        %7686 = vadd.xlane.f32.xlu0 %v7685
        %v7687 = vpop.xlane.xlu0 %7686
        %v7688 = vsel %vm317, %v7606, 0.0
        %7689 = vadd.xlane.f32.xlu0 %v7688
        %v7690 = vpop.xlane.xlu0 %7689
        %v7691 = vsel %vm317, %v7607, 0.0
        %7692 = vadd.xlane.f32.xlu0 %v7691
        %v7693 = vpop.xlane.xlu0 %7692
        %v7694 = vsel %vm317, %v7608, 0.0
        %7695 = vadd.xlane.f32.xlu0 %v7694
        %v7696 = vpop.xlane.xlu0 %7695
        %v7697 = vsel %vm317, %v7609, 0.0
        %7698 = vadd.xlane.f32.xlu0 %v7697
        %v7699 = vpop.xlane.xlu0 %7698
        %v7700 = vsel %vm317, %v7610, 0.0
        %7701 = vadd.xlane.f32.xlu0 %v7700
        %v7702 = vpop.xlane.xlu0 %7701
        %v7703 = vsel %vm317, %v7611, 0.0
        %7704 = vadd.xlane.f32.xlu0 %v7703
        %v7705 = vpop.xlane.xlu0 %7704
        %v7706 = vsel %vm317, %v7612, 0.0
        %7707 = vadd.xlane.f32.xlu0 %v7706
        %v7708 = vpop.xlane.xlu0 %7707
        %v7709 = vmul.f32 %v6980, %v7490
        %v7710 = vsel %vm317, %v7709, 0.0
        %7711 = vadd.xlane.f32.xlu0 %v7710
        %v7712 = vpop.xlane.xlu0 %7711
        %v7713 = vmul.f32 %v7615, 0.9
        %v7714 = vmul.f32 %v7618, 0.9
        %v7715 = vmul.f32 %v7621, 0.9
        %v7716 = vmul.f32 %v7624, 0.9
        %v7717 = vmul.f32 %v7627, 0.9
        %v7718 = vmul.f32 %v7630, 0.9
        %v7719 = vmul.f32 %v7633, 0.9
        %v7720 = vmul.f32 %v7636, 0.9
        %v7721 = vmul.f32 %v7639, 0.9
        %v7722 = vmul.f32 %v7642, 0.9
        %v7723 = vmul.f32 %v7645, 0.9
        %v7724 = vmul.f32 %v7648, 0.9
        %v7725 = vmul.f32 %v7651, 0.9
        %v7726 = vmul.f32 %v7654, 0.9
        %v7727 = vmul.f32 %v7657, 0.9
        %v7728 = vmul.f32 %v7660, 0.9
        %v7729 = vmul.f32 %v7663, 0.9
        %v7730 = vmul.f32 %v7666, 0.9
        %v7731 = vmul.f32 %v7669, 0.9
        %v7732 = vmul.f32 %v7672, 0.9
        %v7733 = vmul.f32 %v7675, 0.9
        %v7734 = vmul.f32 %v7678, 0.9
        %v7735 = vmul.f32 %v7681, 0.9
        %v7736 = vmul.f32 %v7684, 0.9
        %v7737 = vmul.f32 %v7687, 0.9
        %v7738 = vmul.f32 %v7690, 0.9
        %v7739 = vmul.f32 %v7693, 0.9
        %v7740 = vmul.f32 %v7696, 0.9
        %v7741 = vmul.f32 %v7699, 0.9
        %v7742 = vmul.f32 %v7702, 0.9
        %v7743 = vmul.f32 %v7705, 0.9
        %v7744 = vmul.f32 %v7708, 0.9
        %v7745 = vmul.f32 %v6980, %v7712
        %v7746 = vmul.f32 %v7745, 0.5
        %v7748 = vlaneseq
        %v7749 = vshrl.u32 %v7748, 7
        %v7750 = vsub.s32 0, %v7749
        %v7751 = vrot.slane %v7746, %v7750
        %7753 = vbcast.lane.b32.xlu0 %v7751, 256
        %v7754 = vpop.permute.xlu0 %7753
        %s7756 = sor.u32 256, 8
        %7757 = vbcast.lane.b32.xlu0 %v7751, %s7756
        %v7758 = vpop.permute.xlu0 %7757
        %s7760 = sor.u32 256, 16
        %7761 = vbcast.lane.b32.xlu0 %v7751, %s7760
        %v7762 = vpop.permute.xlu0 %7761
        %s7764 = sor.u32 256, 24
        %7765 = vbcast.lane.b32.xlu0 %v7751, %s7764
        %v7766 = vpop.permute.xlu0 %7765
        %v7767 = vlaneseq
        %v7768 = vshrl.u32 %v7767, 7
        %v7769 = vsub.s32 1, %v7768
        %v7770 = vrot.slane %v7746, %v7769
        %7772 = vbcast.lane.b32.xlu0 %v7770, 256
        %v7773 = vpop.permute.xlu0 %7772
        %s7775 = sor.u32 256, 8
        %7776 = vbcast.lane.b32.xlu0 %v7770, %s7775
        %v7777 = vpop.permute.xlu0 %7776
        %s7779 = sor.u32 256, 16
        %7780 = vbcast.lane.b32.xlu0 %v7770, %s7779
        %v7781 = vpop.permute.xlu0 %7780
        %s7783 = sor.u32 256, 24
        %7784 = vbcast.lane.b32.xlu0 %v7770, %s7783
        %v7785 = vpop.permute.xlu0 %7784
        %v7786 = vlaneseq
        %v7787 = vshrl.u32 %v7786, 7
        %v7788 = vsub.s32 2, %v7787
        %v7789 = vrot.slane %v7746, %v7788
        %7791 = vbcast.lane.b32.xlu0 %v7789, 256
        %v7792 = vpop.permute.xlu0 %7791
        %s7794 = sor.u32 256, 8
        %7795 = vbcast.lane.b32.xlu0 %v7789, %s7794
        %v7796 = vpop.permute.xlu0 %7795
        %s7798 = sor.u32 256, 16
        %7799 = vbcast.lane.b32.xlu0 %v7789, %s7798
        %v7800 = vpop.permute.xlu0 %7799
        %s7802 = sor.u32 256, 24
        %7803 = vbcast.lane.b32.xlu0 %v7789, %s7802
        %v7804 = vpop.permute.xlu0 %7803
        %v7805 = vlaneseq
        %v7806 = vshrl.u32 %v7805, 7
        %v7807 = vsub.s32 3, %v7806
        %v7808 = vrot.slane %v7746, %v7807
        %7810 = vbcast.lane.b32.xlu0 %v7808, 256
        %v7811 = vpop.permute.xlu0 %7810
        %s7813 = sor.u32 256, 8
        %7814 = vbcast.lane.b32.xlu0 %v7808, %s7813
        %v7815 = vpop.permute.xlu0 %7814
        %s7817 = sor.u32 256, 16
        %7818 = vbcast.lane.b32.xlu0 %v7808, %s7817
        %v7819 = vpop.permute.xlu0 %7818
        %s7821 = sor.u32 256, 24
        %7822 = vbcast.lane.b32.xlu0 %v7808, %s7821
        %v7823 = vpop.permute.xlu0 %7822
        %v7824 = vlaneseq
        %v7825 = vshrl.u32 %v7824, 7
        %v7826 = vsub.s32 4, %v7825
        %v7827 = vrot.slane %v7746, %v7826
        %7829 = vbcast.lane.b32.xlu0 %v7827, 256
        %v7830 = vpop.permute.xlu0 %7829
        %s7832 = sor.u32 256, 8
        %7833 = vbcast.lane.b32.xlu0 %v7827, %s7832
        %v7834 = vpop.permute.xlu0 %7833
        %s7836 = sor.u32 256, 16
        %7837 = vbcast.lane.b32.xlu0 %v7827, %s7836
        %v7838 = vpop.permute.xlu0 %7837
        %s7840 = sor.u32 256, 24
        %7841 = vbcast.lane.b32.xlu0 %v7827, %s7840
        %v7842 = vpop.permute.xlu0 %7841
        %v7843 = vlaneseq
        %v7844 = vshrl.u32 %v7843, 7
        %v7845 = vsub.s32 5, %v7844
        %v7846 = vrot.slane %v7746, %v7845
        %7848 = vbcast.lane.b32.xlu0 %v7846, 256
        %v7849 = vpop.permute.xlu0 %7848
        %s7851 = sor.u32 256, 8
        %7852 = vbcast.lane.b32.xlu0 %v7846, %s7851
        %v7853 = vpop.permute.xlu0 %7852
        %s7855 = sor.u32 256, 16
        %7856 = vbcast.lane.b32.xlu0 %v7846, %s7855
        %v7857 = vpop.permute.xlu0 %7856
        %s7859 = sor.u32 256, 24
        %7860 = vbcast.lane.b32.xlu0 %v7846, %s7859
        %v7861 = vpop.permute.xlu0 %7860
        %v7862 = vlaneseq
        %v7863 = vshrl.u32 %v7862, 7
        %v7864 = vsub.s32 6, %v7863
        %v7865 = vrot.slane %v7746, %v7864
        %7867 = vbcast.lane.b32.xlu0 %v7865, 256
        %v7868 = vpop.permute.xlu0 %7867
        %s7870 = sor.u32 256, 8
        %7871 = vbcast.lane.b32.xlu0 %v7865, %s7870
        %v7872 = vpop.permute.xlu0 %7871
        %s7874 = sor.u32 256, 16
        %7875 = vbcast.lane.b32.xlu0 %v7865, %s7874
        %v7876 = vpop.permute.xlu0 %7875
        %s7878 = sor.u32 256, 24
        %7879 = vbcast.lane.b32.xlu0 %v7865, %s7878
        %v7880 = vpop.permute.xlu0 %7879
        %v7881 = vlaneseq
        %v7882 = vshrl.u32 %v7881, 7
        %v7883 = vsub.s32 7, %v7882
        %v7884 = vrot.slane %v7746, %v7883
        %7886 = vbcast.lane.b32.xlu0 %v7884, 256
        %v7887 = vpop.permute.xlu0 %7886
        %s7889 = sor.u32 256, 8
        %7890 = vbcast.lane.b32.xlu0 %v7884, %s7889
        %v7891 = vpop.permute.xlu0 %7890
        %s7893 = sor.u32 256, 16
        %7894 = vbcast.lane.b32.xlu0 %v7884, %s7893
        %v7895 = vpop.permute.xlu0 %7894
        %s7897 = sor.u32 256, 24
        %7898 = vbcast.lane.b32.xlu0 %v7884, %s7897
        %v7899 = vpop.permute.xlu0 %7898
        %v7932 = vadd.f32 %v7713, %v7754
        %v7933 = vadd.f32 %v7714, %v7758
        %v7934 = vadd.f32 %v7715, %v7762
        %v7935 = vadd.f32 %v7716, %v7766
        %v7936 = vadd.f32 %v7717, %v7773
        %v7937 = vadd.f32 %v7718, %v7777
        %v7938 = vadd.f32 %v7719, %v7781
        %v7939 = vadd.f32 %v7720, %v7785
        %v7940 = vadd.f32 %v7721, %v7792
        %v7941 = vadd.f32 %v7722, %v7796
        %v7942 = vadd.f32 %v7723, %v7800
        %v7943 = vadd.f32 %v7724, %v7804
        %v7944 = vadd.f32 %v7725, %v7811
        %v7945 = vadd.f32 %v7726, %v7815
        %v7946 = vadd.f32 %v7727, %v7819
        %v7947 = vadd.f32 %v7728, %v7823
        %v7948 = vadd.f32 %v7729, %v7830
        %v7949 = vadd.f32 %v7730, %v7834
        %v7950 = vadd.f32 %v7731, %v7838
        %v7951 = vadd.f32 %v7732, %v7842
        %v7952 = vadd.f32 %v7733, %v7849
        %v7953 = vadd.f32 %v7734, %v7853
        %v7954 = vadd.f32 %v7735, %v7857
        %v7955 = vadd.f32 %v7736, %v7861
        %v7956 = vadd.f32 %v7737, %v7868
        %v7957 = vadd.f32 %v7738, %v7872
        %v7958 = vadd.f32 %v7739, %v7876
        %v7959 = vadd.f32 %v7740, %v7880
        %v7960 = vadd.f32 %v7741, %v7887
        %v7961 = vadd.f32 %v7742, %v7891
        %v7962 = vadd.f32 %v7743, %v7895
        %v7963 = vadd.f32 %v7744, %v7899
        %7996 = vset.pattern.permute.xlu0 0
        %7997 = vperm.xlu0 %7996, %v7932
        %v7998 = vpop.permute.xlu0 %7997
        %7999 = vset.pattern.permute.xlu0 0
        %8000 = vperm.xlu0 %7999, %v7933
        %v8001 = vpop.permute.xlu0 %8000
        %8002 = vset.pattern.permute.xlu0 0
        %8003 = vperm.xlu0 %8002, %v7934
        %v8004 = vpop.permute.xlu0 %8003
        %8005 = vset.pattern.permute.xlu0 0
        %8006 = vperm.xlu0 %8005, %v7935
        %v8007 = vpop.permute.xlu0 %8006
        %8008 = vset.pattern.permute.xlu0 0
        %8009 = vperm.xlu0 %8008, %v7936
        %v8010 = vpop.permute.xlu0 %8009
        %8011 = vset.pattern.permute.xlu0 0
        %8012 = vperm.xlu0 %8011, %v7937
        %v8013 = vpop.permute.xlu0 %8012
        %8014 = vset.pattern.permute.xlu0 0
        %8015 = vperm.xlu0 %8014, %v7938
        %v8016 = vpop.permute.xlu0 %8015
        %8017 = vset.pattern.permute.xlu0 0
        %8018 = vperm.xlu0 %8017, %v7939
        %v8019 = vpop.permute.xlu0 %8018
        %8020 = vset.pattern.permute.xlu0 0
        %8021 = vperm.xlu0 %8020, %v7940
        %v8022 = vpop.permute.xlu0 %8021
        %8023 = vset.pattern.permute.xlu0 0
        %8024 = vperm.xlu0 %8023, %v7941
        %v8025 = vpop.permute.xlu0 %8024
        %8026 = vset.pattern.permute.xlu0 0
        %8027 = vperm.xlu0 %8026, %v7942
        %v8028 = vpop.permute.xlu0 %8027
        %8029 = vset.pattern.permute.xlu0 0
        %8030 = vperm.xlu0 %8029, %v7943
        %v8031 = vpop.permute.xlu0 %8030
        %8032 = vset.pattern.permute.xlu0 0
        %8033 = vperm.xlu0 %8032, %v7944
        %v8034 = vpop.permute.xlu0 %8033
        %8035 = vset.pattern.permute.xlu0 0
        %8036 = vperm.xlu0 %8035, %v7945
        %v8037 = vpop.permute.xlu0 %8036
        %8038 = vset.pattern.permute.xlu0 0
        %8039 = vperm.xlu0 %8038, %v7946
        %v8040 = vpop.permute.xlu0 %8039
        %8041 = vset.pattern.permute.xlu0 0
        %8042 = vperm.xlu0 %8041, %v7947
        %v8043 = vpop.permute.xlu0 %8042
        %8044 = vset.pattern.permute.xlu0 0
        %8045 = vperm.xlu0 %8044, %v7948
        %v8046 = vpop.permute.xlu0 %8045
        %8047 = vset.pattern.permute.xlu0 0
        %8048 = vperm.xlu0 %8047, %v7949
        %v8049 = vpop.permute.xlu0 %8048
        %8050 = vset.pattern.permute.xlu0 0
        %8051 = vperm.xlu0 %8050, %v7950
        %v8052 = vpop.permute.xlu0 %8051
        %8053 = vset.pattern.permute.xlu0 0
        %8054 = vperm.xlu0 %8053, %v7951
        %v8055 = vpop.permute.xlu0 %8054
        %8056 = vset.pattern.permute.xlu0 0
        %8057 = vperm.xlu0 %8056, %v7952
        %v8058 = vpop.permute.xlu0 %8057
        %8059 = vset.pattern.permute.xlu0 0
        %8060 = vperm.xlu0 %8059, %v7953
        %v8061 = vpop.permute.xlu0 %8060
        %8062 = vset.pattern.permute.xlu0 0
        %8063 = vperm.xlu0 %8062, %v7954
        %v8064 = vpop.permute.xlu0 %8063
        %8065 = vset.pattern.permute.xlu0 0
        %8066 = vperm.xlu0 %8065, %v7955
        %v8067 = vpop.permute.xlu0 %8066
        %8068 = vset.pattern.permute.xlu0 0
        %8069 = vperm.xlu0 %8068, %v7956
        %v8070 = vpop.permute.xlu0 %8069
        %8071 = vset.pattern.permute.xlu0 0
        %8072 = vperm.xlu0 %8071, %v7957
        %v8073 = vpop.permute.xlu0 %8072
        %8074 = vset.pattern.permute.xlu0 0
        %8075 = vperm.xlu0 %8074, %v7958
        %v8076 = vpop.permute.xlu0 %8075
        %8077 = vset.pattern.permute.xlu0 0
        %8078 = vperm.xlu0 %8077, %v7959
        %v8079 = vpop.permute.xlu0 %8078
        %8080 = vset.pattern.permute.xlu0 0
        %8081 = vperm.xlu0 %8080, %v7960
        %v8082 = vpop.permute.xlu0 %8081
        %8083 = vset.pattern.permute.xlu0 0
        %8084 = vperm.xlu0 %8083, %v7961
        %v8085 = vpop.permute.xlu0 %8084
        %8086 = vset.pattern.permute.xlu0 0
        %8087 = vperm.xlu0 %8086, %v7962
        %v8088 = vpop.permute.xlu0 %8087
        %8089 = vset.pattern.permute.xlu0 0
        %8090 = vperm.xlu0 %8089, %v7963
        %v8091 = vpop.permute.xlu0 %8090
        %v8092 = vlaneseq
        %v8093 = vshrl.u32 %v8092, 7
        %v8094 = vsub.s32 %v1618, %v8093
        %v8095 = vrot.slane %v7998, %v8094
        %v8096 = vlaneseq
        %v8097 = vshrl.u32 %v8096, 7
        %v8098 = vsub.s32 %v1623, %v8097
        %v8099 = vrot.slane %v8001, %v8098
        %v8100 = vsel %vm1628, %v8099, %v8095
        %v8101 = vlaneseq
        %v8102 = vshrl.u32 %v8101, 7
        %v8103 = vsub.s32 %v1630, %v8102
        %v8104 = vrot.slane %v8004, %v8103
        %v8105 = vsel %vm1635, %v8104, %v8100
        %v8106 = vlaneseq
        %v8107 = vshrl.u32 %v8106, 7
        %v8108 = vsub.s32 %v1637, %v8107
        %v8109 = vrot.slane %v8007, %v8108
        %v8110 = vsel %vm1642, %v8109, %v8105
        %v8111 = vlaneseq
        %v8112 = vshrl.u32 %v8111, 7
        %v8113 = vsub.s32 %v1618, %v8112
        %v8114 = vrot.slane %v8010, %v8113
        %v8115 = vlaneseq
        %v8116 = vshrl.u32 %v8115, 7
        %v8117 = vsub.s32 %v1623, %v8116
        %v8118 = vrot.slane %v8013, %v8117
        %v8119 = vsel %vm1628, %v8118, %v8114
        %v8120 = vlaneseq
        %v8121 = vshrl.u32 %v8120, 7
        %v8122 = vsub.s32 %v1630, %v8121
        %v8123 = vrot.slane %v8016, %v8122
        %v8124 = vsel %vm1635, %v8123, %v8119
        %v8125 = vlaneseq
        %v8126 = vshrl.u32 %v8125, 7
        %v8127 = vsub.s32 %v1637, %v8126
        %v8128 = vrot.slane %v8019, %v8127
        %v8129 = vsel %vm1642, %v8128, %v8124
        %v8130 = vlaneseq
        %v8131 = vshrl.u32 %v8130, 7
        %v8132 = vsub.s32 %v1618, %v8131
        %v8133 = vrot.slane %v8022, %v8132
        %v8134 = vlaneseq
        %v8135 = vshrl.u32 %v8134, 7
        %v8136 = vsub.s32 %v1623, %v8135
        %v8137 = vrot.slane %v8025, %v8136
        %v8138 = vsel %vm1628, %v8137, %v8133
        %v8139 = vlaneseq
        %v8140 = vshrl.u32 %v8139, 7
        %v8141 = vsub.s32 %v1630, %v8140
        %v8142 = vrot.slane %v8028, %v8141
        %v8143 = vsel %vm1635, %v8142, %v8138
        %v8144 = vlaneseq
        %v8145 = vshrl.u32 %v8144, 7
        %v8146 = vsub.s32 %v1637, %v8145
        %v8147 = vrot.slane %v8031, %v8146
        %v8148 = vsel %vm1642, %v8147, %v8143
        %v8149 = vlaneseq
        %v8150 = vshrl.u32 %v8149, 7
        %v8151 = vsub.s32 %v1618, %v8150
        %v8152 = vrot.slane %v8034, %v8151
        %v8153 = vlaneseq
        %v8154 = vshrl.u32 %v8153, 7
        %v8155 = vsub.s32 %v1623, %v8154
        %v8156 = vrot.slane %v8037, %v8155
        %v8157 = vsel %vm1628, %v8156, %v8152
        %v8158 = vlaneseq
        %v8159 = vshrl.u32 %v8158, 7
        %v8160 = vsub.s32 %v1630, %v8159
        %v8161 = vrot.slane %v8040, %v8160
        %v8162 = vsel %vm1635, %v8161, %v8157
        %v8163 = vlaneseq
        %v8164 = vshrl.u32 %v8163, 7
        %v8165 = vsub.s32 %v1637, %v8164
        %v8166 = vrot.slane %v8043, %v8165
        %v8167 = vsel %vm1642, %v8166, %v8162
        %v8168 = vlaneseq
        %v8169 = vshrl.u32 %v8168, 7
        %v8170 = vsub.s32 %v1618, %v8169
        %v8171 = vrot.slane %v8046, %v8170
        %v8172 = vlaneseq
        %v8173 = vshrl.u32 %v8172, 7
        %v8174 = vsub.s32 %v1623, %v8173
        %v8175 = vrot.slane %v8049, %v8174
        %v8176 = vsel %vm1628, %v8175, %v8171
        %v8177 = vlaneseq
        %v8178 = vshrl.u32 %v8177, 7
        %v8179 = vsub.s32 %v1630, %v8178
        %v8180 = vrot.slane %v8052, %v8179
        %v8181 = vsel %vm1635, %v8180, %v8176
        %v8182 = vlaneseq
        %v8183 = vshrl.u32 %v8182, 7
        %v8184 = vsub.s32 %v1637, %v8183
        %v8185 = vrot.slane %v8055, %v8184
        %v8186 = vsel %vm1642, %v8185, %v8181
        %v8187 = vlaneseq
        %v8188 = vshrl.u32 %v8187, 7
        %v8189 = vsub.s32 %v1618, %v8188
        %v8190 = vrot.slane %v8058, %v8189
        %v8191 = vlaneseq
        %v8192 = vshrl.u32 %v8191, 7
        %v8193 = vsub.s32 %v1623, %v8192
        %v8194 = vrot.slane %v8061, %v8193
        %v8195 = vsel %vm1628, %v8194, %v8190
        %v8196 = vlaneseq
        %v8197 = vshrl.u32 %v8196, 7
        %v8198 = vsub.s32 %v1630, %v8197
        %v8199 = vrot.slane %v8064, %v8198
        %v8200 = vsel %vm1635, %v8199, %v8195
        %v8201 = vlaneseq
        %v8202 = vshrl.u32 %v8201, 7
        %v8203 = vsub.s32 %v1637, %v8202
        %v8204 = vrot.slane %v8067, %v8203
        %v8205 = vsel %vm1642, %v8204, %v8200
        %v8206 = vlaneseq
        %v8207 = vshrl.u32 %v8206, 7
        %v8208 = vsub.s32 %v1618, %v8207
        %v8209 = vrot.slane %v8070, %v8208
        %v8210 = vlaneseq
        %v8211 = vshrl.u32 %v8210, 7
        %v8212 = vsub.s32 %v1623, %v8211
        %v8213 = vrot.slane %v8073, %v8212
        %v8214 = vsel %vm1628, %v8213, %v8209
        %v8215 = vlaneseq
        %v8216 = vshrl.u32 %v8215, 7
        %v8217 = vsub.s32 %v1630, %v8216
        %v8218 = vrot.slane %v8076, %v8217
        %v8219 = vsel %vm1635, %v8218, %v8214
        %v8220 = vlaneseq
        %v8221 = vshrl.u32 %v8220, 7
        %v8222 = vsub.s32 %v1637, %v8221
        %v8223 = vrot.slane %v8079, %v8222
        %v8224 = vsel %vm1642, %v8223, %v8219
        %v8225 = vlaneseq
        %v8226 = vshrl.u32 %v8225, 7
        %v8227 = vsub.s32 %v1618, %v8226
        %v8228 = vrot.slane %v8082, %v8227
        %v8229 = vlaneseq
        %v8230 = vshrl.u32 %v8229, 7
        %v8231 = vsub.s32 %v1623, %v8230
        %v8232 = vrot.slane %v8085, %v8231
        %v8233 = vsel %vm1628, %v8232, %v8228
        %v8234 = vlaneseq
        %v8235 = vshrl.u32 %v8234, 7
        %v8236 = vsub.s32 %v1630, %v8235
        %v8237 = vrot.slane %v8088, %v8236
        %v8238 = vsel %vm1635, %v8237, %v8233
        %v8239 = vlaneseq
        %v8240 = vshrl.u32 %v8239, 7
        %v8241 = vsub.s32 %v1637, %v8240
        %v8242 = vrot.slane %v8091, %v8241
        %v8243 = vsel %vm1642, %v8242, %v8238
        %v8244 = vsel %vm1777, %v8129, %v8110
        %v8245 = vsel %vm1779, %v8148, %v8244
        %v8246 = vsel %vm1781, %v8167, %v8245
        %v8247 = vsel %vm1783, %v8186, %v8246
        %v8248 = vsel %vm1785, %v8205, %v8247
        %v8249 = vsel %vm1787, %v8224, %v8248
        %v8250 = vsel %vm1789, %v8243, %v8249
        %v8252 = vadd.f32 %v7088, %v8250
        %v8253 = vsel %vm317, %v8252, 0.0
        %8254 = vadd.xlane.f32.xlu0 %v8253
        %v8255 = vpop.xlane.xlu0 %8254
        %v8256 = vmul.f32 %v8255, %v1796
        %v8257 = vsub.f32 %v8252, %v8256
        %v8258 = vmul.f32 %v8257, %v8257
        %v8259 = vsel %vm317, %v8258, 0.0
        %8260 = vadd.xlane.f32.xlu0 %v8259
        %v8261 = vpop.xlane.xlu0 %8260
        %v8262 = vmul.f32 %v8261, %v1796
        %v8263 = vadd.f32 %v8262, 1e-05
        %v8264 = vrsqrt.pop %v8263
        %v8265 = vmul.f32 %v8257, %v8264
        %v8266 = vmul.f32 %v8265, %v497
        %v8267 = vadd.f32 %v8266, %v504
        %v8268 = vmax.f32 %v8267, 0.0
        %8269 = vst.msk [vmem:[#allocation3] sm:$0xff] %vm317, %v8268
        %s8270 = scalar_lea.vmem %s297, 40 [#allocation11]
        %8271 = vst.msk [vmem:[%s8270] sm:$0xff] %vm317, %v8268
        %v8272 = vld [vmem:[#allocation3] sm:$0xff]
        %v8273 = vld [vmem:[#allocation4] sm:$0xff]
        %v8274 = vld [vmem:[#allocation4 + $0x8] sm:$0xff]
        %v8275 = vld [vmem:[#allocation4 + $0x10] sm:$0xff]
        %v8276 = vld [vmem:[#allocation4 + $0x18] sm:$0xff]
        %v8277 = vld [vmem:[#allocation4 + $0x20] sm:$0xff]
        %v8278 = vld [vmem:[#allocation4 + $0x28] sm:$0xff]
        %v8279 = vld [vmem:[#allocation4 + $0x30] sm:$0xff]
        %v8280 = vld [vmem:[#allocation4 + $0x38] sm:$0xff]
        %v8281 = vld [vmem:[#allocation4 + $0x40] sm:$0xff]
        %v8282 = vld [vmem:[#allocation4 + $0x48] sm:$0xff]
        %v8283 = vld [vmem:[#allocation4 + $0x50] sm:$0xff]
        %v8284 = vld [vmem:[#allocation4 + $0x58] sm:$0xff]
        %v8285 = vld [vmem:[#allocation4 + $0x60] sm:$0xff]
        %v8286 = vld [vmem:[#allocation4 + $0x68] sm:$0xff]
        %v8287 = vld [vmem:[#allocation4 + $0x70] sm:$0xff]
        %v8288 = vld [vmem:[#allocation4 + $0x78] sm:$0xff]
        %v8289 = vld [vmem:[#allocation4 + $0x80] sm:$0xff]
        %v8290 = vld [vmem:[#allocation4 + $0x88] sm:$0xff]
        %v8291 = vld [vmem:[#allocation4 + $0x90] sm:$0xff]
        %v8292 = vld [vmem:[#allocation4 + $0x98] sm:$0xff]
        %v8293 = vld [vmem:[#allocation4 + $0xa0] sm:$0xff]
        %v8294 = vld [vmem:[#allocation4 + $0xa8] sm:$0xff]
        %v8295 = vld [vmem:[#allocation4 + $0xb0] sm:$0xff]
        %v8296 = vld [vmem:[#allocation4 + $0xb8] sm:$0xff]
        %v8297 = vld [vmem:[#allocation4 + $0xc0] sm:$0xff]
        %v8298 = vld [vmem:[#allocation4 + $0xc8] sm:$0xff]
        %v8299 = vld [vmem:[#allocation4 + $0xd0] sm:$0xff]
        %v8300 = vld [vmem:[#allocation4 + $0xd8] sm:$0xff]
        %v8301 = vld [vmem:[#allocation4 + $0xe0] sm:$0xff]
        %v8302 = vld [vmem:[#allocation4 + $0xe8] sm:$0xff]
        %v8303 = vld [vmem:[#allocation4 + $0xf0] sm:$0xff]
        %v8304 = vld [vmem:[#allocation4 + $0xf8] sm:$0xff]
        %s8305 = scalar_lea.vmem [#allocation2], 48
        %v8306 = vld [vmem:[%s8305] sm:$0xff]
        %v8308 = vsel %vm317, %v8272, 0
        %8310 = vmatprep.subr.mxu0 0.0
        %8311 = vmatpush1.msra.mxu0 0.0
        %8312 = vmatprep.subr.mxu0 0.0
        %8313 = vmatpush1.msra.mxu0 0.0
        %8314 = vmatprep.subr.mxu0 0.0
        %8315 = vmatpush1.msra.mxu0 0.0
        %8316 = vmatprep.subr.mxu0 0.0
        %8317 = vmatpush1.msra.mxu0 0.0
        %8318 = vmatprep.subr.mxu0 0.0
        %8319 = vmatpush1.msra.mxu0 0.0
        %8320 = vmatprep.subr.mxu0 0.0
        %8321 = vmatpush1.msra.mxu0 0.0
        %8322 = vmatprep.subr.mxu0 0.0
        %8323 = vmatpush1.msra.mxu0 0.0
        %8324 = vmatprep.subr.mxu0 0.0
        %8325 = vmatpush1.msra.mxu0 0.0
        %8326 = vmatprep.subr.mxu0 0.0
        %8327 = vmatpush1.msra.mxu0 0.0
        %8328 = vmatprep.subr.mxu0 0.0
        %8329 = vmatpush1.msra.mxu0 0.0
        %8330 = vmatprep.subr.mxu0 0.0
        %8331 = vmatpush1.msra.mxu0 0.0
        %8332 = vmatprep.subr.mxu0 0.0
        %8333 = vmatpush1.msra.mxu0 0.0
        %8334 = vmatprep.subr.mxu0 0.0
        %8335 = vmatpush1.msra.mxu0 %v491
        %8336 = vmatprep.subr.mxu0 0.0
        %8337 = vmatpush1.msra.mxu0 %v490
        %8338 = vmatprep.subr.mxu0 0.0
        %8339 = vmatpush1.msra.mxu0 %v489
        %8340 = vmatprep.subr.mxu0 0.0
        %8341 = vmatpush1.msra.mxu0 %v488
        %8342 = vmatprep.subr.mxu0 0.0
        %8343 = vmatpush2.msra.mxu0 0.0
        %8344 = vmatprep.subr.mxu0 0.0
        %8345 = vmatpush2.msra.mxu0 0.0
        %8346 = vmatprep.subr.mxu0 0.0
        %8347 = vmatpush2.msra.mxu0 0.0
        %8348 = vmatprep.subr.mxu0 0.0
        %8349 = vmatpush2.msra.mxu0 0.0
        %8350 = vmatprep.subr.mxu0 0.0
        %8351 = vmatpush2.msra.mxu0 0.0
        %8352 = vmatprep.subr.mxu0 0.0
        %8353 = vmatpush2.msra.mxu0 0.0
        %8354 = vmatprep.subr.mxu0 0.0
        %8355 = vmatpush2.msra.mxu0 0.0
        %8356 = vmatprep.subr.mxu0 0.0
        %8357 = vmatpush2.msra.mxu0 0.0
        %8358 = vmatprep.subr.mxu0 0.0
        %8359 = vmatpush2.msra.mxu0 0.0
        %8360 = vmatprep.subr.mxu0 0.0
        %8361 = vmatpush2.msra.mxu0 0.0
        %8362 = vmatprep.subr.mxu0 0.0
        %8363 = vmatpush2.msra.mxu0 0.0
        %8364 = vmatprep.subr.mxu0 0.0
        %8365 = vmatpush2.msra.mxu0 0.0
        %8366 = vmatprep.subr.mxu0 0.0
        %8367 = vmatpush2.msra.mxu0 0.0
        %8368 = vmatprep.subr.mxu0 0.0
        %8369 = vmatpush2.msra.mxu0 0.0
        %8370 = vmatprep.subr.mxu0 0.0
        %8371 = vmatpush2.msra.mxu0 0.0
        %8372 = vmatprep.subr.mxu0 0.0
        %8373 = vmatpush2.msra.mxu0 0.0
        %8374 = vmatprep.mubr.f32.mxu0 0.0
        %8375 = vmatmul.mubr.f32.gmra.mxu0 %v8308
        %v8376 = vpop.f32.mrf.mxu0
        %v8377 = vadd.f32 0.0, %v8376
        %v8378 = vpop.f32.mrf.mxu0
        %8379 = vdwg.mxu0
        %v8380 = vadd.f32 %v8306, %v8377
        %v8381 = vlaneseq
        %v8382 = vshrl.u32 %v8381, 7
        %v8383 = vsub.s32 0, %v8382
        %v8384 = vrot.slane %v8272, %v8383
        %8386 = vbcast.lane.b32.xlu0 %v8384, 256
        %v8387 = vpop.permute.xlu0 %8386
        %s8389 = sor.u32 256, 8
        %8390 = vbcast.lane.b32.xlu0 %v8384, %s8389
        %v8391 = vpop.permute.xlu0 %8390
        %s8393 = sor.u32 256, 16
        %8394 = vbcast.lane.b32.xlu0 %v8384, %s8393
        %v8395 = vpop.permute.xlu0 %8394
        %s8397 = sor.u32 256, 24
        %8398 = vbcast.lane.b32.xlu0 %v8384, %s8397
        %v8399 = vpop.permute.xlu0 %8398
        %v8400 = vlaneseq
        %v8401 = vshrl.u32 %v8400, 7
        %v8402 = vsub.s32 1, %v8401
        %v8403 = vrot.slane %v8272, %v8402
        %8405 = vbcast.lane.b32.xlu0 %v8403, 256
        %v8406 = vpop.permute.xlu0 %8405
        %s8408 = sor.u32 256, 8
        %8409 = vbcast.lane.b32.xlu0 %v8403, %s8408
        %v8410 = vpop.permute.xlu0 %8409
        %s8412 = sor.u32 256, 16
        %8413 = vbcast.lane.b32.xlu0 %v8403, %s8412
        %v8414 = vpop.permute.xlu0 %8413
        %s8416 = sor.u32 256, 24
        %8417 = vbcast.lane.b32.xlu0 %v8403, %s8416
        %v8418 = vpop.permute.xlu0 %8417
        %v8419 = vlaneseq
        %v8420 = vshrl.u32 %v8419, 7
        %v8421 = vsub.s32 2, %v8420
        %v8422 = vrot.slane %v8272, %v8421
        %8424 = vbcast.lane.b32.xlu0 %v8422, 256
        %v8425 = vpop.permute.xlu0 %8424
        %s8427 = sor.u32 256, 8
        %8428 = vbcast.lane.b32.xlu0 %v8422, %s8427
        %v8429 = vpop.permute.xlu0 %8428
        %s8431 = sor.u32 256, 16
        %8432 = vbcast.lane.b32.xlu0 %v8422, %s8431
        %v8433 = vpop.permute.xlu0 %8432
        %s8435 = sor.u32 256, 24
        %8436 = vbcast.lane.b32.xlu0 %v8422, %s8435
        %v8437 = vpop.permute.xlu0 %8436
        %v8438 = vlaneseq
        %v8439 = vshrl.u32 %v8438, 7
        %v8440 = vsub.s32 3, %v8439
        %v8441 = vrot.slane %v8272, %v8440
        %8443 = vbcast.lane.b32.xlu0 %v8441, 256
        %v8444 = vpop.permute.xlu0 %8443
        %s8446 = sor.u32 256, 8
        %8447 = vbcast.lane.b32.xlu0 %v8441, %s8446
        %v8448 = vpop.permute.xlu0 %8447
        %s8450 = sor.u32 256, 16
        %8451 = vbcast.lane.b32.xlu0 %v8441, %s8450
        %v8452 = vpop.permute.xlu0 %8451
        %s8454 = sor.u32 256, 24
        %8455 = vbcast.lane.b32.xlu0 %v8441, %s8454
        %v8456 = vpop.permute.xlu0 %8455
        %v8457 = vlaneseq
        %v8458 = vshrl.u32 %v8457, 7
        %v8459 = vsub.s32 4, %v8458
        %v8460 = vrot.slane %v8272, %v8459
        %8462 = vbcast.lane.b32.xlu0 %v8460, 256
        %v8463 = vpop.permute.xlu0 %8462
        %s8465 = sor.u32 256, 8
        %8466 = vbcast.lane.b32.xlu0 %v8460, %s8465
        %v8467 = vpop.permute.xlu0 %8466
        %s8469 = sor.u32 256, 16
        %8470 = vbcast.lane.b32.xlu0 %v8460, %s8469
        %v8471 = vpop.permute.xlu0 %8470
        %s8473 = sor.u32 256, 24
        %8474 = vbcast.lane.b32.xlu0 %v8460, %s8473
        %v8475 = vpop.permute.xlu0 %8474
        %v8476 = vlaneseq
        %v8477 = vshrl.u32 %v8476, 7
        %v8478 = vsub.s32 5, %v8477
        %v8479 = vrot.slane %v8272, %v8478
        %8481 = vbcast.lane.b32.xlu0 %v8479, 256
        %v8482 = vpop.permute.xlu0 %8481
        %s8484 = sor.u32 256, 8
        %8485 = vbcast.lane.b32.xlu0 %v8479, %s8484
        %v8486 = vpop.permute.xlu0 %8485
        %s8488 = sor.u32 256, 16
        %8489 = vbcast.lane.b32.xlu0 %v8479, %s8488
        %v8490 = vpop.permute.xlu0 %8489
        %s8492 = sor.u32 256, 24
        %8493 = vbcast.lane.b32.xlu0 %v8479, %s8492
        %v8494 = vpop.permute.xlu0 %8493
        %v8495 = vlaneseq
        %v8496 = vshrl.u32 %v8495, 7
        %v8497 = vsub.s32 6, %v8496
        %v8498 = vrot.slane %v8272, %v8497
        %8500 = vbcast.lane.b32.xlu0 %v8498, 256
        %v8501 = vpop.permute.xlu0 %8500
        %s8503 = sor.u32 256, 8
        %8504 = vbcast.lane.b32.xlu0 %v8498, %s8503
        %v8505 = vpop.permute.xlu0 %8504
        %s8507 = sor.u32 256, 16
        %8508 = vbcast.lane.b32.xlu0 %v8498, %s8507
        %v8509 = vpop.permute.xlu0 %8508
        %s8511 = sor.u32 256, 24
        %8512 = vbcast.lane.b32.xlu0 %v8498, %s8511
        %v8513 = vpop.permute.xlu0 %8512
        %v8514 = vlaneseq
        %v8515 = vshrl.u32 %v8514, 7
        %v8516 = vsub.s32 7, %v8515
        %v8517 = vrot.slane %v8272, %v8516
        %8519 = vbcast.lane.b32.xlu0 %v8517, 256
        %v8520 = vpop.permute.xlu0 %8519
        %s8522 = sor.u32 256, 8
        %8523 = vbcast.lane.b32.xlu0 %v8517, %s8522
        %v8524 = vpop.permute.xlu0 %8523
        %s8526 = sor.u32 256, 16
        %8527 = vbcast.lane.b32.xlu0 %v8517, %s8526
        %v8528 = vpop.permute.xlu0 %8527
        %s8530 = sor.u32 256, 24
        %8531 = vbcast.lane.b32.xlu0 %v8517, %s8530
        %v8532 = vpop.permute.xlu0 %8531
        %v8533 = vcombine.high %v8272, %v8272
        %v8535 = vunpack.c.l.s4 1966171168
        %v8536 = vunpack.c.0.s8 %v8535
        %v8537 = vlaneseq
        %v8538 = vshrl.u32 %v8537, 7
        %v8539 = vsub.s32 %v8536, %v8538
        %v8540 = vrot.slane %v8272, %v8539
        %v8542 = vunpack.c.l.s4 1966171168
        %v8543 = vunpack.c.0.s8 %v8542
        %v8544 = vlaneseq
        %v8545 = vshrl.u32 %v8544, 7
        %v8546 = vsub.s32 %v8543, %v8545
        %v8547 = vrot.slane %v8533, %v8546
        %v8548 = vcombine.high %v8540, %v8540
        %v8549 = vcombine.high %v8547, %v8547
        %v8551 = vunpack.c.l.s4 1966171168
        %v8552 = vunpack.c.0.s8 %v8551
        %v8553 = vlaneseq
        %v8554 = vshrl.u32 %v8553, 7
        %v8555 = vsub.s32 %v8552, %v8554
        %v8556 = vrot.slane %v8540, %v8555
        %v8558 = vunpack.c.l.s4 1966171168
        %v8559 = vunpack.c.0.s8 %v8558
        %v8560 = vlaneseq
        %v8561 = vshrl.u32 %v8560, 7
        %v8562 = vsub.s32 %v8559, %v8561
        %v8563 = vrot.slane %v8547, %v8562
        %v8565 = vunpack.c.l.s4 1966171168
        %v8566 = vunpack.c.0.s8 %v8565
        %v8567 = vlaneseq
        %v8568 = vshrl.u32 %v8567, 7
        %v8569 = vsub.s32 %v8566, %v8568
        %v8570 = vrot.slane %v8548, %v8569
        %v8572 = vunpack.c.l.s4 1966171168
        %v8573 = vunpack.c.0.s8 %v8572
        %v8574 = vlaneseq
        %v8575 = vshrl.u32 %v8574, 7
        %v8576 = vsub.s32 %v8573, %v8575
        %v8577 = vrot.slane %v8549, %v8576
        %v8578 = vcombine.high %v8556, %v8556
        %v8579 = vcombine.high %v8563, %v8563
        %v8580 = vcombine.high %v8570, %v8570
        %v8581 = vcombine.high %v8577, %v8577
        %v8582 = vlaneseq
        %v8583 = vshrl.u32 %v8582, 7
        %v8584 = vsub.s32 0, %v8583
        %v8585 = vrot.slane %v8556, %v8584
        %v8586 = vlaneseq
        %v8587 = vshrl.u32 %v8586, 7
        %v8588 = vsub.s32 0, %v8587
        %v8589 = vrot.slane %v8570, %v8588
        %v8590 = vlaneseq
        %v8591 = vshrl.u32 %v8590, 7
        %v8592 = vsub.s32 0, %v8591
        %v8593 = vrot.slane %v8578, %v8592
        %v8594 = vlaneseq
        %v8595 = vshrl.u32 %v8594, 7
        %v8596 = vsub.s32 0, %v8595
        %v8597 = vrot.slane %v8580, %v8596
        %v8598 = vlaneseq
        %v8599 = vshrl.u32 %v8598, 7
        %v8600 = vsub.s32 0, %v8599
        %v8601 = vrot.slane %v8563, %v8600
        %v8602 = vlaneseq
        %v8603 = vshrl.u32 %v8602, 7
        %v8604 = vsub.s32 0, %v8603
        %v8605 = vrot.slane %v8577, %v8604
        %v8606 = vlaneseq
        %v8607 = vshrl.u32 %v8606, 7
        %v8608 = vsub.s32 0, %v8607
        %v8609 = vrot.slane %v8579, %v8608
        %v8610 = vlaneseq
        %v8611 = vshrl.u32 %v8610, 7
        %v8612 = vsub.s32 0, %v8611
        %v8613 = vrot.slane %v8581, %v8612
        %v8622 = vmul.f32 %v8387, %v8585
        %v8623 = vmul.f32 %v8391, %v8585
        %v8624 = vmul.f32 %v8395, %v8585
        %v8625 = vmul.f32 %v8399, %v8585
        %v8626 = vmul.f32 %v8406, %v8589
        %v8627 = vmul.f32 %v8410, %v8589
        %v8628 = vmul.f32 %v8414, %v8589
        %v8629 = vmul.f32 %v8418, %v8589
        %v8630 = vmul.f32 %v8425, %v8593
        %v8631 = vmul.f32 %v8429, %v8593
        %v8632 = vmul.f32 %v8433, %v8593
        %v8633 = vmul.f32 %v8437, %v8593
        %v8634 = vmul.f32 %v8444, %v8597
        %v8635 = vmul.f32 %v8448, %v8597
        %v8636 = vmul.f32 %v8452, %v8597
        %v8637 = vmul.f32 %v8456, %v8597
        %v8638 = vmul.f32 %v8463, %v8601
        %v8639 = vmul.f32 %v8467, %v8601
        %v8640 = vmul.f32 %v8471, %v8601
        %v8641 = vmul.f32 %v8475, %v8601
        %v8642 = vmul.f32 %v8482, %v8605
        %v8643 = vmul.f32 %v8486, %v8605
        %v8644 = vmul.f32 %v8490, %v8605
        %v8645 = vmul.f32 %v8494, %v8605
        %v8646 = vmul.f32 %v8501, %v8609
        %v8647 = vmul.f32 %v8505, %v8609
        %v8648 = vmul.f32 %v8509, %v8609
        %v8649 = vmul.f32 %v8513, %v8609
        %v8650 = vmul.f32 %v8520, %v8613
        %v8651 = vmul.f32 %v8524, %v8613
        %v8652 = vmul.f32 %v8528, %v8613
        %v8653 = vmul.f32 %v8532, %v8613
        %v8654 = vmul.f32 %v8273, 0.9
        %v8655 = vmul.f32 %v8274, 0.9
        %v8656 = vmul.f32 %v8275, 0.9
        %v8657 = vmul.f32 %v8276, 0.9
        %v8658 = vmul.f32 %v8277, 0.9
        %v8659 = vmul.f32 %v8278, 0.9
        %v8660 = vmul.f32 %v8279, 0.9
        %v8661 = vmul.f32 %v8280, 0.9
        %v8662 = vmul.f32 %v8281, 0.9
        %v8663 = vmul.f32 %v8282, 0.9
        %v8664 = vmul.f32 %v8283, 0.9
        %v8665 = vmul.f32 %v8284, 0.9
        %v8666 = vmul.f32 %v8285, 0.9
        %v8667 = vmul.f32 %v8286, 0.9
        %v8668 = vmul.f32 %v8287, 0.9
        %v8669 = vmul.f32 %v8288, 0.9
        %v8670 = vmul.f32 %v8289, 0.9
        %v8671 = vmul.f32 %v8290, 0.9
        %v8672 = vmul.f32 %v8291, 0.9
        %v8673 = vmul.f32 %v8292, 0.9
        %v8674 = vmul.f32 %v8293, 0.9
        %v8675 = vmul.f32 %v8294, 0.9
        %v8676 = vmul.f32 %v8295, 0.9
        %v8677 = vmul.f32 %v8296, 0.9
        %v8678 = vmul.f32 %v8297, 0.9
        %v8679 = vmul.f32 %v8298, 0.9
        %v8680 = vmul.f32 %v8299, 0.9
        %v8681 = vmul.f32 %v8300, 0.9
        %v8682 = vmul.f32 %v8301, 0.9
        %v8683 = vmul.f32 %v8302, 0.9
        %v8684 = vmul.f32 %v8303, 0.9
        %v8685 = vmul.f32 %v8304, 0.9
        %v8686 = vmul.f32 %v8622, 0.5
        %v8687 = vmul.f32 %v8623, 0.5
        %v8688 = vmul.f32 %v8624, 0.5
        %v8689 = vmul.f32 %v8625, 0.5
        %v8690 = vmul.f32 %v8626, 0.5
        %v8691 = vmul.f32 %v8627, 0.5
        %v8692 = vmul.f32 %v8628, 0.5
        %v8693 = vmul.f32 %v8629, 0.5
        %v8694 = vmul.f32 %v8630, 0.5
        %v8695 = vmul.f32 %v8631, 0.5
        %v8696 = vmul.f32 %v8632, 0.5
        %v8697 = vmul.f32 %v8633, 0.5
        %v8698 = vmul.f32 %v8634, 0.5
        %v8699 = vmul.f32 %v8635, 0.5
        %v8700 = vmul.f32 %v8636, 0.5
        %v8701 = vmul.f32 %v8637, 0.5
        %v8702 = vmul.f32 %v8638, 0.5
        %v8703 = vmul.f32 %v8639, 0.5
        %v8704 = vmul.f32 %v8640, 0.5
        %v8705 = vmul.f32 %v8641, 0.5
        %v8706 = vmul.f32 %v8642, 0.5
        %v8707 = vmul.f32 %v8643, 0.5
        %v8708 = vmul.f32 %v8644, 0.5
        %v8709 = vmul.f32 %v8645, 0.5
        %v8710 = vmul.f32 %v8646, 0.5
        %v8711 = vmul.f32 %v8647, 0.5
        %v8712 = vmul.f32 %v8648, 0.5
        %v8713 = vmul.f32 %v8649, 0.5
        %v8714 = vmul.f32 %v8650, 0.5
        %v8715 = vmul.f32 %v8651, 0.5
        %v8716 = vmul.f32 %v8652, 0.5
        %v8717 = vmul.f32 %v8653, 0.5
        %v8718 = vadd.f32 %v8654, %v8686
        %v8719 = vadd.f32 %v8655, %v8687
        %v8720 = vadd.f32 %v8656, %v8688
        %v8721 = vadd.f32 %v8657, %v8689
        %v8722 = vadd.f32 %v8658, %v8690
        %v8723 = vadd.f32 %v8659, %v8691
        %v8724 = vadd.f32 %v8660, %v8692
        %v8725 = vadd.f32 %v8661, %v8693
        %v8726 = vadd.f32 %v8662, %v8694
        %v8727 = vadd.f32 %v8663, %v8695
        %v8728 = vadd.f32 %v8664, %v8696
        %v8729 = vadd.f32 %v8665, %v8697
        %v8730 = vadd.f32 %v8666, %v8698
        %v8731 = vadd.f32 %v8667, %v8699
        %v8732 = vadd.f32 %v8668, %v8700
        %v8733 = vadd.f32 %v8669, %v8701
        %v8734 = vadd.f32 %v8670, %v8702
        %v8735 = vadd.f32 %v8671, %v8703
        %v8736 = vadd.f32 %v8672, %v8704
        %v8737 = vadd.f32 %v8673, %v8705
        %v8738 = vadd.f32 %v8674, %v8706
        %v8739 = vadd.f32 %v8675, %v8707
        %v8740 = vadd.f32 %v8676, %v8708
        %v8741 = vadd.f32 %v8677, %v8709
        %v8742 = vadd.f32 %v8678, %v8710
        %v8743 = vadd.f32 %v8679, %v8711
        %v8744 = vadd.f32 %v8680, %v8712
        %v8745 = vadd.f32 %v8681, %v8713
        %v8746 = vadd.f32 %v8682, %v8714
        %v8747 = vadd.f32 %v8683, %v8715
        %v8748 = vadd.f32 %v8684, %v8716
        %v8749 = vadd.f32 %v8685, %v8717
        %8750 = vst.msk [vmem:[#allocation4] sm:$0xff] %vm317, %v8718
        %8751 = vst.msk [vmem:[#allocation4 + $0x8] sm:$0xff] %vm317, %v8719
        %8752 = vst.msk [vmem:[#allocation4 + $0x10] sm:$0xff] %vm317, %v8720
        %8753 = vst.msk [vmem:[#allocation4 + $0x18] sm:$0xff] %vm317, %v8721
        %8754 = vst.msk [vmem:[#allocation4 + $0x20] sm:$0xff] %vm317, %v8722
        %8755 = vst.msk [vmem:[#allocation4 + $0x28] sm:$0xff] %vm317, %v8723
        %8756 = vst.msk [vmem:[#allocation4 + $0x30] sm:$0xff] %vm317, %v8724
        %8757 = vst.msk [vmem:[#allocation4 + $0x38] sm:$0xff] %vm317, %v8725
        %8758 = vst.msk [vmem:[#allocation4 + $0x40] sm:$0xff] %vm317, %v8726
        %8759 = vst.msk [vmem:[#allocation4 + $0x48] sm:$0xff] %vm317, %v8727
        %8760 = vst.msk [vmem:[#allocation4 + $0x50] sm:$0xff] %vm317, %v8728
        %8761 = vst.msk [vmem:[#allocation4 + $0x58] sm:$0xff] %vm317, %v8729
        %8762 = vst.msk [vmem:[#allocation4 + $0x60] sm:$0xff] %vm317, %v8730
        %8763 = vst.msk [vmem:[#allocation4 + $0x68] sm:$0xff] %vm317, %v8731
        %8764 = vst.msk [vmem:[#allocation4 + $0x70] sm:$0xff] %vm317, %v8732
        %8765 = vst.msk [vmem:[#allocation4 + $0x78] sm:$0xff] %vm317, %v8733
        %8766 = vst.msk [vmem:[#allocation4 + $0x80] sm:$0xff] %vm317, %v8734
        %8767 = vst.msk [vmem:[#allocation4 + $0x88] sm:$0xff] %vm317, %v8735
        %8768 = vst.msk [vmem:[#allocation4 + $0x90] sm:$0xff] %vm317, %v8736
        %8769 = vst.msk [vmem:[#allocation4 + $0x98] sm:$0xff] %vm317, %v8737
        %8770 = vst.msk [vmem:[#allocation4 + $0xa0] sm:$0xff] %vm317, %v8738
        %8771 = vst.msk [vmem:[#allocation4 + $0xa8] sm:$0xff] %vm317, %v8739
        %8772 = vst.msk [vmem:[#allocation4 + $0xb0] sm:$0xff] %vm317, %v8740
        %8773 = vst.msk [vmem:[#allocation4 + $0xb8] sm:$0xff] %vm317, %v8741
        %8774 = vst.msk [vmem:[#allocation4 + $0xc0] sm:$0xff] %vm317, %v8742
        %8775 = vst.msk [vmem:[#allocation4 + $0xc8] sm:$0xff] %vm317, %v8743
        %8776 = vst.msk [vmem:[#allocation4 + $0xd0] sm:$0xff] %vm317, %v8744
        %8777 = vst.msk [vmem:[#allocation4 + $0xd8] sm:$0xff] %vm317, %v8745
        %8778 = vst.msk [vmem:[#allocation4 + $0xe0] sm:$0xff] %vm317, %v8746
        %8779 = vst.msk [vmem:[#allocation4 + $0xe8] sm:$0xff] %vm317, %v8747
        %8780 = vst.msk [vmem:[#allocation4 + $0xf0] sm:$0xff] %vm317, %v8748
        %8781 = vst.msk [vmem:[#allocation4 + $0xf8] sm:$0xff] %vm317, %v8749
        %v8782 = vmax.f32 %v8380, 0.0
        %v8784 = vcombine.high %v8782, %v8782
        %v8786 = vunpack.c.l.s4 1966171168
        %v8787 = vunpack.c.0.s8 %v8786
        %v8788 = vlaneseq
        %v8789 = vshrl.u32 %v8788, 7
        %v8790 = vsub.s32 %v8787, %v8789
        %v8791 = vrot.slane %v8782, %v8790
        %v8793 = vunpack.c.l.s4 1966171168
        %v8794 = vunpack.c.0.s8 %v8793
        %v8795 = vlaneseq
        %v8796 = vshrl.u32 %v8795, 7
        %v8797 = vsub.s32 %v8794, %v8796
        %v8798 = vrot.slane %v8784, %v8797
        %v8799 = vcombine.high %v8791, %v8791
        %v8800 = vcombine.high %v8798, %v8798
        %v8802 = vunpack.c.l.s4 1966171168
        %v8803 = vunpack.c.0.s8 %v8802
        %v8804 = vlaneseq
        %v8805 = vshrl.u32 %v8804, 7
        %v8806 = vsub.s32 %v8803, %v8805
        %v8807 = vrot.slane %v8791, %v8806
        %v8809 = vunpack.c.l.s4 1966171168
        %v8810 = vunpack.c.0.s8 %v8809
        %v8811 = vlaneseq
        %v8812 = vshrl.u32 %v8811, 7
        %v8813 = vsub.s32 %v8810, %v8812
        %v8814 = vrot.slane %v8798, %v8813
        %v8816 = vunpack.c.l.s4 1966171168
        %v8817 = vunpack.c.0.s8 %v8816
        %v8818 = vlaneseq
        %v8819 = vshrl.u32 %v8818, 7
        %v8820 = vsub.s32 %v8817, %v8819
        %v8821 = vrot.slane %v8799, %v8820
        %v8823 = vunpack.c.l.s4 1966171168
        %v8824 = vunpack.c.0.s8 %v8823
        %v8825 = vlaneseq
        %v8826 = vshrl.u32 %v8825, 7
        %v8827 = vsub.s32 %v8824, %v8826
        %v8828 = vrot.slane %v8800, %v8827
        %v8829 = vcombine.high %v8807, %v8807
        %v8830 = vcombine.high %v8814, %v8814
        %v8831 = vcombine.high %v8821, %v8821
        %v8832 = vcombine.high %v8828, %v8828
        %v8833 = vlaneseq
        %v8834 = vshrl.u32 %v8833, 7
        %v8835 = vsub.s32 0, %v8834
        %v8836 = vrot.slane %v8807, %v8835
        %v8837 = vlaneseq
        %v8838 = vshrl.u32 %v8837, 7
        %v8839 = vsub.s32 0, %v8838
        %v8840 = vrot.slane %v8821, %v8839
        %v8841 = vlaneseq
        %v8842 = vshrl.u32 %v8841, 7
        %v8843 = vsub.s32 0, %v8842
        %v8844 = vrot.slane %v8829, %v8843
        %v8845 = vlaneseq
        %v8846 = vshrl.u32 %v8845, 7
        %v8847 = vsub.s32 0, %v8846
        %v8848 = vrot.slane %v8831, %v8847
        %v8849 = vlaneseq
        %v8850 = vshrl.u32 %v8849, 7
        %v8851 = vsub.s32 0, %v8850
        %v8852 = vrot.slane %v8814, %v8851
        %v8853 = vlaneseq
        %v8854 = vshrl.u32 %v8853, 7
        %v8855 = vsub.s32 0, %v8854
        %v8856 = vrot.slane %v8828, %v8855
        %v8857 = vlaneseq
        %v8858 = vshrl.u32 %v8857, 7
        %v8859 = vsub.s32 0, %v8858
        %v8860 = vrot.slane %v8830, %v8859
        %v8861 = vlaneseq
        %v8862 = vshrl.u32 %v8861, 7
        %v8863 = vsub.s32 0, %v8862
        %v8864 = vrot.slane %v8832, %v8863
        %v8873 = vmul.f32 %v8273, %v8836
        %v8874 = vmul.f32 %v8274, %v8836
        %v8875 = vmul.f32 %v8275, %v8836
        %v8876 = vmul.f32 %v8276, %v8836
        %v8877 = vmul.f32 %v8277, %v8840
        %v8878 = vmul.f32 %v8278, %v8840
        %v8879 = vmul.f32 %v8279, %v8840
        %v8880 = vmul.f32 %v8280, %v8840
        %v8881 = vmul.f32 %v8281, %v8844
        %v8882 = vmul.f32 %v8282, %v8844
        %v8883 = vmul.f32 %v8283, %v8844
        %v8884 = vmul.f32 %v8284, %v8844
        %v8885 = vmul.f32 %v8285, %v8848
        %v8886 = vmul.f32 %v8286, %v8848
        %v8887 = vmul.f32 %v8287, %v8848
        %v8888 = vmul.f32 %v8288, %v8848
        %v8889 = vmul.f32 %v8289, %v8852
        %v8890 = vmul.f32 %v8290, %v8852
        %v8891 = vmul.f32 %v8291, %v8852
        %v8892 = vmul.f32 %v8292, %v8852
        %v8893 = vmul.f32 %v8293, %v8856
        %v8894 = vmul.f32 %v8294, %v8856
        %v8895 = vmul.f32 %v8295, %v8856
        %v8896 = vmul.f32 %v8296, %v8856
        %v8897 = vmul.f32 %v8297, %v8860
        %v8898 = vmul.f32 %v8298, %v8860
        %v8899 = vmul.f32 %v8299, %v8860
        %v8900 = vmul.f32 %v8300, %v8860
        %v8901 = vmul.f32 %v8301, %v8864
        %v8902 = vmul.f32 %v8302, %v8864
        %v8903 = vmul.f32 %v8303, %v8864
        %v8904 = vmul.f32 %v8304, %v8864
        %v8905 = vsel %vm317, %v8873, 0.0
        %8906 = vadd.xlane.f32.xlu0 %v8905
        %v8907 = vpop.xlane.xlu0 %8906
        %v8908 = vsel %vm317, %v8874, 0.0
        %8909 = vadd.xlane.f32.xlu0 %v8908
        %v8910 = vpop.xlane.xlu0 %8909
        %v8911 = vsel %vm317, %v8875, 0.0
        %8912 = vadd.xlane.f32.xlu0 %v8911
        %v8913 = vpop.xlane.xlu0 %8912
        %v8914 = vsel %vm317, %v8876, 0.0
        %8915 = vadd.xlane.f32.xlu0 %v8914
        %v8916 = vpop.xlane.xlu0 %8915
        %v8917 = vsel %vm317, %v8877, 0.0
        %8918 = vadd.xlane.f32.xlu0 %v8917
        %v8919 = vpop.xlane.xlu0 %8918
        %v8920 = vsel %vm317, %v8878, 0.0
        %8921 = vadd.xlane.f32.xlu0 %v8920
        %v8922 = vpop.xlane.xlu0 %8921
        %v8923 = vsel %vm317, %v8879, 0.0
        %8924 = vadd.xlane.f32.xlu0 %v8923
        %v8925 = vpop.xlane.xlu0 %8924
        %v8926 = vsel %vm317, %v8880, 0.0
        %8927 = vadd.xlane.f32.xlu0 %v8926
        %v8928 = vpop.xlane.xlu0 %8927
        %v8929 = vsel %vm317, %v8881, 0.0
        %8930 = vadd.xlane.f32.xlu0 %v8929
        %v8931 = vpop.xlane.xlu0 %8930
        %v8932 = vsel %vm317, %v8882, 0.0
        %8933 = vadd.xlane.f32.xlu0 %v8932
        %v8934 = vpop.xlane.xlu0 %8933
        %v8935 = vsel %vm317, %v8883, 0.0
        %8936 = vadd.xlane.f32.xlu0 %v8935
        %v8937 = vpop.xlane.xlu0 %8936
        %v8938 = vsel %vm317, %v8884, 0.0
        %8939 = vadd.xlane.f32.xlu0 %v8938
        %v8940 = vpop.xlane.xlu0 %8939
        %v8941 = vsel %vm317, %v8885, 0.0
        %8942 = vadd.xlane.f32.xlu0 %v8941
        %v8943 = vpop.xlane.xlu0 %8942
        %v8944 = vsel %vm317, %v8886, 0.0
        %8945 = vadd.xlane.f32.xlu0 %v8944
        %v8946 = vpop.xlane.xlu0 %8945
        %v8947 = vsel %vm317, %v8887, 0.0
        %8948 = vadd.xlane.f32.xlu0 %v8947
        %v8949 = vpop.xlane.xlu0 %8948
        %v8950 = vsel %vm317, %v8888, 0.0
        %8951 = vadd.xlane.f32.xlu0 %v8950
        %v8952 = vpop.xlane.xlu0 %8951
        %v8953 = vsel %vm317, %v8889, 0.0
        %8954 = vadd.xlane.f32.xlu0 %v8953
        %v8955 = vpop.xlane.xlu0 %8954
        %v8956 = vsel %vm317, %v8890, 0.0
        %8957 = vadd.xlane.f32.xlu0 %v8956
        %v8958 = vpop.xlane.xlu0 %8957
        %v8959 = vsel %vm317, %v8891, 0.0
        %8960 = vadd.xlane.f32.xlu0 %v8959
        %v8961 = vpop.xlane.xlu0 %8960
        %v8962 = vsel %vm317, %v8892, 0.0
        %8963 = vadd.xlane.f32.xlu0 %v8962
        %v8964 = vpop.xlane.xlu0 %8963
        %v8965 = vsel %vm317, %v8893, 0.0
        %8966 = vadd.xlane.f32.xlu0 %v8965
        %v8967 = vpop.xlane.xlu0 %8966
        %v8968 = vsel %vm317, %v8894, 0.0
        %8969 = vadd.xlane.f32.xlu0 %v8968
        %v8970 = vpop.xlane.xlu0 %8969
        %v8971 = vsel %vm317, %v8895, 0.0
        %8972 = vadd.xlane.f32.xlu0 %v8971
        %v8973 = vpop.xlane.xlu0 %8972
        %v8974 = vsel %vm317, %v8896, 0.0
        %8975 = vadd.xlane.f32.xlu0 %v8974
        %v8976 = vpop.xlane.xlu0 %8975
        %v8977 = vsel %vm317, %v8897, 0.0
        %8978 = vadd.xlane.f32.xlu0 %v8977
        %v8979 = vpop.xlane.xlu0 %8978
        %v8980 = vsel %vm317, %v8898, 0.0
        %8981 = vadd.xlane.f32.xlu0 %v8980
        %v8982 = vpop.xlane.xlu0 %8981
        %v8983 = vsel %vm317, %v8899, 0.0
        %8984 = vadd.xlane.f32.xlu0 %v8983
        %v8985 = vpop.xlane.xlu0 %8984
        %v8986 = vsel %vm317, %v8900, 0.0
        %8987 = vadd.xlane.f32.xlu0 %v8986
        %v8988 = vpop.xlane.xlu0 %8987
        %v8989 = vsel %vm317, %v8901, 0.0
        %8990 = vadd.xlane.f32.xlu0 %v8989
        %v8991 = vpop.xlane.xlu0 %8990
        %v8992 = vsel %vm317, %v8902, 0.0
        %8993 = vadd.xlane.f32.xlu0 %v8992
        %v8994 = vpop.xlane.xlu0 %8993
        %v8995 = vsel %vm317, %v8903, 0.0
        %8996 = vadd.xlane.f32.xlu0 %v8995
        %v8997 = vpop.xlane.xlu0 %8996
        %v8998 = vsel %vm317, %v8904, 0.0
        %8999 = vadd.xlane.f32.xlu0 %v8998
        %v9000 = vpop.xlane.xlu0 %8999
        %v9001 = vmul.f32 %v8272, %v8782
        %v9002 = vsel %vm317, %v9001, 0.0
        %9003 = vadd.xlane.f32.xlu0 %v9002
        %v9004 = vpop.xlane.xlu0 %9003
        %v9005 = vmul.f32 %v8907, 0.9
        %v9006 = vmul.f32 %v8910, 0.9
        %v9007 = vmul.f32 %v8913, 0.9
        %v9008 = vmul.f32 %v8916, 0.9
        %v9009 = vmul.f32 %v8919, 0.9
        %v9010 = vmul.f32 %v8922, 0.9
        %v9011 = vmul.f32 %v8925, 0.9
        %v9012 = vmul.f32 %v8928, 0.9
        %v9013 = vmul.f32 %v8931, 0.9
        %v9014 = vmul.f32 %v8934, 0.9
        %v9015 = vmul.f32 %v8937, 0.9
        %v9016 = vmul.f32 %v8940, 0.9
        %v9017 = vmul.f32 %v8943, 0.9
        %v9018 = vmul.f32 %v8946, 0.9
        %v9019 = vmul.f32 %v8949, 0.9
        %v9020 = vmul.f32 %v8952, 0.9
        %v9021 = vmul.f32 %v8955, 0.9
        %v9022 = vmul.f32 %v8958, 0.9
        %v9023 = vmul.f32 %v8961, 0.9
        %v9024 = vmul.f32 %v8964, 0.9
        %v9025 = vmul.f32 %v8967, 0.9
        %v9026 = vmul.f32 %v8970, 0.9
        %v9027 = vmul.f32 %v8973, 0.9
        %v9028 = vmul.f32 %v8976, 0.9
        %v9029 = vmul.f32 %v8979, 0.9
        %v9030 = vmul.f32 %v8982, 0.9
        %v9031 = vmul.f32 %v8985, 0.9
        %v9032 = vmul.f32 %v8988, 0.9
        %v9033 = vmul.f32 %v8991, 0.9
        %v9034 = vmul.f32 %v8994, 0.9
        %v9035 = vmul.f32 %v8997, 0.9
        %v9036 = vmul.f32 %v9000, 0.9
        %v9037 = vmul.f32 %v8272, %v9004
        %v9038 = vmul.f32 %v9037, 0.5
        %v9040 = vlaneseq
        %v9041 = vshrl.u32 %v9040, 7
        %v9042 = vsub.s32 0, %v9041
        %v9043 = vrot.slane %v9038, %v9042
        %9045 = vbcast.lane.b32.xlu0 %v9043, 256
        %v9046 = vpop.permute.xlu0 %9045
        %s9048 = sor.u32 256, 8
        %9049 = vbcast.lane.b32.xlu0 %v9043, %s9048
        %v9050 = vpop.permute.xlu0 %9049
        %s9052 = sor.u32 256, 16
        %9053 = vbcast.lane.b32.xlu0 %v9043, %s9052
        %v9054 = vpop.permute.xlu0 %9053
        %s9056 = sor.u32 256, 24
        %9057 = vbcast.lane.b32.xlu0 %v9043, %s9056
        %v9058 = vpop.permute.xlu0 %9057
        %v9059 = vlaneseq
        %v9060 = vshrl.u32 %v9059, 7
        %v9061 = vsub.s32 1, %v9060
        %v9062 = vrot.slane %v9038, %v9061
        %9064 = vbcast.lane.b32.xlu0 %v9062, 256
        %v9065 = vpop.permute.xlu0 %9064
        %s9067 = sor.u32 256, 8
        %9068 = vbcast.lane.b32.xlu0 %v9062, %s9067
        %v9069 = vpop.permute.xlu0 %9068
        %s9071 = sor.u32 256, 16
        %9072 = vbcast.lane.b32.xlu0 %v9062, %s9071
        %v9073 = vpop.permute.xlu0 %9072
        %s9075 = sor.u32 256, 24
        %9076 = vbcast.lane.b32.xlu0 %v9062, %s9075
        %v9077 = vpop.permute.xlu0 %9076
        %v9078 = vlaneseq
        %v9079 = vshrl.u32 %v9078, 7
        %v9080 = vsub.s32 2, %v9079
        %v9081 = vrot.slane %v9038, %v9080
        %9083 = vbcast.lane.b32.xlu0 %v9081, 256
        %v9084 = vpop.permute.xlu0 %9083
        %s9086 = sor.u32 256, 8
        %9087 = vbcast.lane.b32.xlu0 %v9081, %s9086
        %v9088 = vpop.permute.xlu0 %9087
        %s9090 = sor.u32 256, 16
        %9091 = vbcast.lane.b32.xlu0 %v9081, %s9090
        %v9092 = vpop.permute.xlu0 %9091
        %s9094 = sor.u32 256, 24
        %9095 = vbcast.lane.b32.xlu0 %v9081, %s9094
        %v9096 = vpop.permute.xlu0 %9095
        %v9097 = vlaneseq
        %v9098 = vshrl.u32 %v9097, 7
        %v9099 = vsub.s32 3, %v9098
        %v9100 = vrot.slane %v9038, %v9099
        %9102 = vbcast.lane.b32.xlu0 %v9100, 256
        %v9103 = vpop.permute.xlu0 %9102
        %s9105 = sor.u32 256, 8
        %9106 = vbcast.lane.b32.xlu0 %v9100, %s9105
        %v9107 = vpop.permute.xlu0 %9106
        %s9109 = sor.u32 256, 16
        %9110 = vbcast.lane.b32.xlu0 %v9100, %s9109
        %v9111 = vpop.permute.xlu0 %9110
        %s9113 = sor.u32 256, 24
        %9114 = vbcast.lane.b32.xlu0 %v9100, %s9113
        %v9115 = vpop.permute.xlu0 %9114
        %v9116 = vlaneseq
        %v9117 = vshrl.u32 %v9116, 7
        %v9118 = vsub.s32 4, %v9117
        %v9119 = vrot.slane %v9038, %v9118
        %9121 = vbcast.lane.b32.xlu0 %v9119, 256
        %v9122 = vpop.permute.xlu0 %9121
        %s9124 = sor.u32 256, 8
        %9125 = vbcast.lane.b32.xlu0 %v9119, %s9124
        %v9126 = vpop.permute.xlu0 %9125
        %s9128 = sor.u32 256, 16
        %9129 = vbcast.lane.b32.xlu0 %v9119, %s9128
        %v9130 = vpop.permute.xlu0 %9129
        %s9132 = sor.u32 256, 24
        %9133 = vbcast.lane.b32.xlu0 %v9119, %s9132
        %v9134 = vpop.permute.xlu0 %9133
        %v9135 = vlaneseq
        %v9136 = vshrl.u32 %v9135, 7
        %v9137 = vsub.s32 5, %v9136
        %v9138 = vrot.slane %v9038, %v9137
        %9140 = vbcast.lane.b32.xlu0 %v9138, 256
        %v9141 = vpop.permute.xlu0 %9140
        %s9143 = sor.u32 256, 8
        %9144 = vbcast.lane.b32.xlu0 %v9138, %s9143
        %v9145 = vpop.permute.xlu0 %9144
        %s9147 = sor.u32 256, 16
        %9148 = vbcast.lane.b32.xlu0 %v9138, %s9147
        %v9149 = vpop.permute.xlu0 %9148
        %s9151 = sor.u32 256, 24
        %9152 = vbcast.lane.b32.xlu0 %v9138, %s9151
        %v9153 = vpop.permute.xlu0 %9152
        %v9154 = vlaneseq
        %v9155 = vshrl.u32 %v9154, 7
        %v9156 = vsub.s32 6, %v9155
        %v9157 = vrot.slane %v9038, %v9156
        %9159 = vbcast.lane.b32.xlu0 %v9157, 256
        %v9160 = vpop.permute.xlu0 %9159
        %s9162 = sor.u32 256, 8
        %9163 = vbcast.lane.b32.xlu0 %v9157, %s9162
        %v9164 = vpop.permute.xlu0 %9163
        %s9166 = sor.u32 256, 16
        %9167 = vbcast.lane.b32.xlu0 %v9157, %s9166
        %v9168 = vpop.permute.xlu0 %9167
        %s9170 = sor.u32 256, 24
        %9171 = vbcast.lane.b32.xlu0 %v9157, %s9170
        %v9172 = vpop.permute.xlu0 %9171
        %v9173 = vlaneseq
        %v9174 = vshrl.u32 %v9173, 7
        %v9175 = vsub.s32 7, %v9174
        %v9176 = vrot.slane %v9038, %v9175
        %9178 = vbcast.lane.b32.xlu0 %v9176, 256
        %v9179 = vpop.permute.xlu0 %9178
        %s9181 = sor.u32 256, 8
        %9182 = vbcast.lane.b32.xlu0 %v9176, %s9181
        %v9183 = vpop.permute.xlu0 %9182
        %s9185 = sor.u32 256, 16
        %9186 = vbcast.lane.b32.xlu0 %v9176, %s9185
        %v9187 = vpop.permute.xlu0 %9186
        %s9189 = sor.u32 256, 24
        %9190 = vbcast.lane.b32.xlu0 %v9176, %s9189
        %v9191 = vpop.permute.xlu0 %9190
        %v9224 = vadd.f32 %v9005, %v9046
        %v9225 = vadd.f32 %v9006, %v9050
        %v9226 = vadd.f32 %v9007, %v9054
        %v9227 = vadd.f32 %v9008, %v9058
        %v9228 = vadd.f32 %v9009, %v9065
        %v9229 = vadd.f32 %v9010, %v9069
        %v9230 = vadd.f32 %v9011, %v9073
        %v9231 = vadd.f32 %v9012, %v9077
        %v9232 = vadd.f32 %v9013, %v9084
        %v9233 = vadd.f32 %v9014, %v9088
        %v9234 = vadd.f32 %v9015, %v9092
        %v9235 = vadd.f32 %v9016, %v9096
        %v9236 = vadd.f32 %v9017, %v9103
        %v9237 = vadd.f32 %v9018, %v9107
        %v9238 = vadd.f32 %v9019, %v9111
        %v9239 = vadd.f32 %v9020, %v9115
        %v9240 = vadd.f32 %v9021, %v9122
        %v9241 = vadd.f32 %v9022, %v9126
        %v9242 = vadd.f32 %v9023, %v9130
        %v9243 = vadd.f32 %v9024, %v9134
        %v9244 = vadd.f32 %v9025, %v9141
        %v9245 = vadd.f32 %v9026, %v9145
        %v9246 = vadd.f32 %v9027, %v9149
        %v9247 = vadd.f32 %v9028, %v9153
        %v9248 = vadd.f32 %v9029, %v9160
        %v9249 = vadd.f32 %v9030, %v9164
        %v9250 = vadd.f32 %v9031, %v9168
        %v9251 = vadd.f32 %v9032, %v9172
        %v9252 = vadd.f32 %v9033, %v9179
        %v9253 = vadd.f32 %v9034, %v9183
        %v9254 = vadd.f32 %v9035, %v9187
        %v9255 = vadd.f32 %v9036, %v9191
        %9288 = vset.pattern.permute.xlu0 0
        %9289 = vperm.xlu0 %9288, %v9224
        %v9290 = vpop.permute.xlu0 %9289
        %9291 = vset.pattern.permute.xlu0 0
        %9292 = vperm.xlu0 %9291, %v9225
        %v9293 = vpop.permute.xlu0 %9292
        %9294 = vset.pattern.permute.xlu0 0
        %9295 = vperm.xlu0 %9294, %v9226
        %v9296 = vpop.permute.xlu0 %9295
        %9297 = vset.pattern.permute.xlu0 0
        %9298 = vperm.xlu0 %9297, %v9227
        %v9299 = vpop.permute.xlu0 %9298
        %9300 = vset.pattern.permute.xlu0 0
        %9301 = vperm.xlu0 %9300, %v9228
        %v9302 = vpop.permute.xlu0 %9301
        %9303 = vset.pattern.permute.xlu0 0
        %9304 = vperm.xlu0 %9303, %v9229
        %v9305 = vpop.permute.xlu0 %9304
        %9306 = vset.pattern.permute.xlu0 0
        %9307 = vperm.xlu0 %9306, %v9230
        %v9308 = vpop.permute.xlu0 %9307
        %9309 = vset.pattern.permute.xlu0 0
        %9310 = vperm.xlu0 %9309, %v9231
        %v9311 = vpop.permute.xlu0 %9310
        %9312 = vset.pattern.permute.xlu0 0
        %9313 = vperm.xlu0 %9312, %v9232
        %v9314 = vpop.permute.xlu0 %9313
        %9315 = vset.pattern.permute.xlu0 0
        %9316 = vperm.xlu0 %9315, %v9233
        %v9317 = vpop.permute.xlu0 %9316
        %9318 = vset.pattern.permute.xlu0 0
        %9319 = vperm.xlu0 %9318, %v9234
        %v9320 = vpop.permute.xlu0 %9319
        %9321 = vset.pattern.permute.xlu0 0
        %9322 = vperm.xlu0 %9321, %v9235
        %v9323 = vpop.permute.xlu0 %9322
        %9324 = vset.pattern.permute.xlu0 0
        %9325 = vperm.xlu0 %9324, %v9236
        %v9326 = vpop.permute.xlu0 %9325
        %9327 = vset.pattern.permute.xlu0 0
        %9328 = vperm.xlu0 %9327, %v9237
        %v9329 = vpop.permute.xlu0 %9328
        %9330 = vset.pattern.permute.xlu0 0
        %9331 = vperm.xlu0 %9330, %v9238
        %v9332 = vpop.permute.xlu0 %9331
        %9333 = vset.pattern.permute.xlu0 0
        %9334 = vperm.xlu0 %9333, %v9239
        %v9335 = vpop.permute.xlu0 %9334
        %9336 = vset.pattern.permute.xlu0 0
        %9337 = vperm.xlu0 %9336, %v9240
        %v9338 = vpop.permute.xlu0 %9337
        %9339 = vset.pattern.permute.xlu0 0
        %9340 = vperm.xlu0 %9339, %v9241
        %v9341 = vpop.permute.xlu0 %9340
        %9342 = vset.pattern.permute.xlu0 0
        %9343 = vperm.xlu0 %9342, %v9242
        %v9344 = vpop.permute.xlu0 %9343
        %9345 = vset.pattern.permute.xlu0 0
        %9346 = vperm.xlu0 %9345, %v9243
        %v9347 = vpop.permute.xlu0 %9346
        %9348 = vset.pattern.permute.xlu0 0
        %9349 = vperm.xlu0 %9348, %v9244
        %v9350 = vpop.permute.xlu0 %9349
        %9351 = vset.pattern.permute.xlu0 0
        %9352 = vperm.xlu0 %9351, %v9245
        %v9353 = vpop.permute.xlu0 %9352
        %9354 = vset.pattern.permute.xlu0 0
        %9355 = vperm.xlu0 %9354, %v9246
        %v9356 = vpop.permute.xlu0 %9355
        %9357 = vset.pattern.permute.xlu0 0
        %9358 = vperm.xlu0 %9357, %v9247
        %v9359 = vpop.permute.xlu0 %9358
        %9360 = vset.pattern.permute.xlu0 0
        %9361 = vperm.xlu0 %9360, %v9248
        %v9362 = vpop.permute.xlu0 %9361
        %9363 = vset.pattern.permute.xlu0 0
        %9364 = vperm.xlu0 %9363, %v9249
        %v9365 = vpop.permute.xlu0 %9364
        %9366 = vset.pattern.permute.xlu0 0
        %9367 = vperm.xlu0 %9366, %v9250
        %v9368 = vpop.permute.xlu0 %9367
        %9369 = vset.pattern.permute.xlu0 0
        %9370 = vperm.xlu0 %9369, %v9251
        %v9371 = vpop.permute.xlu0 %9370
        %9372 = vset.pattern.permute.xlu0 0
        %9373 = vperm.xlu0 %9372, %v9252
        %v9374 = vpop.permute.xlu0 %9373
        %9375 = vset.pattern.permute.xlu0 0
        %9376 = vperm.xlu0 %9375, %v9253
        %v9377 = vpop.permute.xlu0 %9376
        %9378 = vset.pattern.permute.xlu0 0
        %9379 = vperm.xlu0 %9378, %v9254
        %v9380 = vpop.permute.xlu0 %9379
        %9381 = vset.pattern.permute.xlu0 0
        %9382 = vperm.xlu0 %9381, %v9255
        %v9383 = vpop.permute.xlu0 %9382
        %v9384 = vlaneseq
        %v9385 = vshrl.u32 %v9384, 7
        %v9386 = vsub.s32 %v1618, %v9385
        %v9387 = vrot.slane %v9290, %v9386
        %v9388 = vlaneseq
        %v9389 = vshrl.u32 %v9388, 7
        %v9390 = vsub.s32 %v1623, %v9389
        %v9391 = vrot.slane %v9293, %v9390
        %v9392 = vsel %vm1628, %v9391, %v9387
        %v9393 = vlaneseq
        %v9394 = vshrl.u32 %v9393, 7
        %v9395 = vsub.s32 %v1630, %v9394
        %v9396 = vrot.slane %v9296, %v9395
        %v9397 = vsel %vm1635, %v9396, %v9392
        %v9398 = vlaneseq
        %v9399 = vshrl.u32 %v9398, 7
        %v9400 = vsub.s32 %v1637, %v9399
        %v9401 = vrot.slane %v9299, %v9400
        %v9402 = vsel %vm1642, %v9401, %v9397
        %v9403 = vlaneseq
        %v9404 = vshrl.u32 %v9403, 7
        %v9405 = vsub.s32 %v1618, %v9404
        %v9406 = vrot.slane %v9302, %v9405
        %v9407 = vlaneseq
        %v9408 = vshrl.u32 %v9407, 7
        %v9409 = vsub.s32 %v1623, %v9408
        %v9410 = vrot.slane %v9305, %v9409
        %v9411 = vsel %vm1628, %v9410, %v9406
        %v9412 = vlaneseq
        %v9413 = vshrl.u32 %v9412, 7
        %v9414 = vsub.s32 %v1630, %v9413
        %v9415 = vrot.slane %v9308, %v9414
        %v9416 = vsel %vm1635, %v9415, %v9411
        %v9417 = vlaneseq
        %v9418 = vshrl.u32 %v9417, 7
        %v9419 = vsub.s32 %v1637, %v9418
        %v9420 = vrot.slane %v9311, %v9419
        %v9421 = vsel %vm1642, %v9420, %v9416
        %v9422 = vlaneseq
        %v9423 = vshrl.u32 %v9422, 7
        %v9424 = vsub.s32 %v1618, %v9423
        %v9425 = vrot.slane %v9314, %v9424
        %v9426 = vlaneseq
        %v9427 = vshrl.u32 %v9426, 7
        %v9428 = vsub.s32 %v1623, %v9427
        %v9429 = vrot.slane %v9317, %v9428
        %v9430 = vsel %vm1628, %v9429, %v9425
        %v9431 = vlaneseq
        %v9432 = vshrl.u32 %v9431, 7
        %v9433 = vsub.s32 %v1630, %v9432
        %v9434 = vrot.slane %v9320, %v9433
        %v9435 = vsel %vm1635, %v9434, %v9430
        %v9436 = vlaneseq
        %v9437 = vshrl.u32 %v9436, 7
        %v9438 = vsub.s32 %v1637, %v9437
        %v9439 = vrot.slane %v9323, %v9438
        %v9440 = vsel %vm1642, %v9439, %v9435
        %v9441 = vlaneseq
        %v9442 = vshrl.u32 %v9441, 7
        %v9443 = vsub.s32 %v1618, %v9442
        %v9444 = vrot.slane %v9326, %v9443
        %v9445 = vlaneseq
        %v9446 = vshrl.u32 %v9445, 7
        %v9447 = vsub.s32 %v1623, %v9446
        %v9448 = vrot.slane %v9329, %v9447
        %v9449 = vsel %vm1628, %v9448, %v9444
        %v9450 = vlaneseq
        %v9451 = vshrl.u32 %v9450, 7
        %v9452 = vsub.s32 %v1630, %v9451
        %v9453 = vrot.slane %v9332, %v9452
        %v9454 = vsel %vm1635, %v9453, %v9449
        %v9455 = vlaneseq
        %v9456 = vshrl.u32 %v9455, 7
        %v9457 = vsub.s32 %v1637, %v9456
        %v9458 = vrot.slane %v9335, %v9457
        %v9459 = vsel %vm1642, %v9458, %v9454
        %v9460 = vlaneseq
        %v9461 = vshrl.u32 %v9460, 7
        %v9462 = vsub.s32 %v1618, %v9461
        %v9463 = vrot.slane %v9338, %v9462
        %v9464 = vlaneseq
        %v9465 = vshrl.u32 %v9464, 7
        %v9466 = vsub.s32 %v1623, %v9465
        %v9467 = vrot.slane %v9341, %v9466
        %v9468 = vsel %vm1628, %v9467, %v9463
        %v9469 = vlaneseq
        %v9470 = vshrl.u32 %v9469, 7
        %v9471 = vsub.s32 %v1630, %v9470
        %v9472 = vrot.slane %v9344, %v9471
        %v9473 = vsel %vm1635, %v9472, %v9468
        %v9474 = vlaneseq
        %v9475 = vshrl.u32 %v9474, 7
        %v9476 = vsub.s32 %v1637, %v9475
        %v9477 = vrot.slane %v9347, %v9476
        %v9478 = vsel %vm1642, %v9477, %v9473
        %v9479 = vlaneseq
        %v9480 = vshrl.u32 %v9479, 7
        %v9481 = vsub.s32 %v1618, %v9480
        %v9482 = vrot.slane %v9350, %v9481
        %v9483 = vlaneseq
        %v9484 = vshrl.u32 %v9483, 7
        %v9485 = vsub.s32 %v1623, %v9484
        %v9486 = vrot.slane %v9353, %v9485
        %v9487 = vsel %vm1628, %v9486, %v9482
        %v9488 = vlaneseq
        %v9489 = vshrl.u32 %v9488, 7
        %v9490 = vsub.s32 %v1630, %v9489
        %v9491 = vrot.slane %v9356, %v9490
        %v9492 = vsel %vm1635, %v9491, %v9487
        %v9493 = vlaneseq
        %v9494 = vshrl.u32 %v9493, 7
        %v9495 = vsub.s32 %v1637, %v9494
        %v9496 = vrot.slane %v9359, %v9495
        %v9497 = vsel %vm1642, %v9496, %v9492
        %v9498 = vlaneseq
        %v9499 = vshrl.u32 %v9498, 7
        %v9500 = vsub.s32 %v1618, %v9499
        %v9501 = vrot.slane %v9362, %v9500
        %v9502 = vlaneseq
        %v9503 = vshrl.u32 %v9502, 7
        %v9504 = vsub.s32 %v1623, %v9503
        %v9505 = vrot.slane %v9365, %v9504
        %v9506 = vsel %vm1628, %v9505, %v9501
        %v9507 = vlaneseq
        %v9508 = vshrl.u32 %v9507, 7
        %v9509 = vsub.s32 %v1630, %v9508
        %v9510 = vrot.slane %v9368, %v9509
        %v9511 = vsel %vm1635, %v9510, %v9506
        %v9512 = vlaneseq
        %v9513 = vshrl.u32 %v9512, 7
        %v9514 = vsub.s32 %v1637, %v9513
        %v9515 = vrot.slane %v9371, %v9514
        %v9516 = vsel %vm1642, %v9515, %v9511
        %v9517 = vlaneseq
        %v9518 = vshrl.u32 %v9517, 7
        %v9519 = vsub.s32 %v1618, %v9518
        %v9520 = vrot.slane %v9374, %v9519
        %v9521 = vlaneseq
        %v9522 = vshrl.u32 %v9521, 7
        %v9523 = vsub.s32 %v1623, %v9522
        %v9524 = vrot.slane %v9377, %v9523
        %v9525 = vsel %vm1628, %v9524, %v9520
        %v9526 = vlaneseq
        %v9527 = vshrl.u32 %v9526, 7
        %v9528 = vsub.s32 %v1630, %v9527
        %v9529 = vrot.slane %v9380, %v9528
        %v9530 = vsel %vm1635, %v9529, %v9525
        %v9531 = vlaneseq
        %v9532 = vshrl.u32 %v9531, 7
        %v9533 = vsub.s32 %v1637, %v9532
        %v9534 = vrot.slane %v9383, %v9533
        %v9535 = vsel %vm1642, %v9534, %v9530
        %v9536 = vsel %vm1777, %v9421, %v9402
        %v9537 = vsel %vm1779, %v9440, %v9536
        %v9538 = vsel %vm1781, %v9459, %v9537
        %v9539 = vsel %vm1783, %v9478, %v9538
        %v9540 = vsel %vm1785, %v9497, %v9539
        %v9541 = vsel %vm1787, %v9516, %v9540
        %v9542 = vsel %vm1789, %v9535, %v9541
        %v9544 = vadd.f32 %v8380, %v9542
        %v9545 = vsel %vm317, %v9544, 0.0
        %9546 = vadd.xlane.f32.xlu0 %v9545
        %v9547 = vpop.xlane.xlu0 %9546
        %v9548 = vmul.f32 %v9547, %v1796
        %v9549 = vsub.f32 %v9544, %v9548
        %v9550 = vmul.f32 %v9549, %v9549
        %v9551 = vsel %vm317, %v9550, 0.0
        %9552 = vadd.xlane.f32.xlu0 %v9551
        %v9553 = vpop.xlane.xlu0 %9552
        %v9554 = vmul.f32 %v9553, %v1796
        %v9555 = vadd.f32 %v9554, 1e-05
        %v9556 = vrsqrt.pop %v9555
        %v9557 = vmul.f32 %v9549, %v9556
        %v9558 = vmul.f32 %v9557, %v497
        %v9559 = vadd.f32 %v9558, %v504
        %v9560 = vmax.f32 %v9559, 0.0
        %9561 = vst.msk [vmem:[#allocation3] sm:$0xff] %vm317, %v9560
        %s9562 = scalar_lea.vmem %s297, 48 [#allocation11]
        %9563 = vst.msk [vmem:[%s9562] sm:$0xff] %vm317, %v9560
        %v9564 = vld [vmem:[#allocation3] sm:$0xff]
        %v9565 = vld [vmem:[#allocation4] sm:$0xff]
        %v9566 = vld [vmem:[#allocation4 + $0x8] sm:$0xff]
        %v9567 = vld [vmem:[#allocation4 + $0x10] sm:$0xff]
        %v9568 = vld [vmem:[#allocation4 + $0x18] sm:$0xff]
        %v9569 = vld [vmem:[#allocation4 + $0x20] sm:$0xff]
        %v9570 = vld [vmem:[#allocation4 + $0x28] sm:$0xff]
        %v9571 = vld [vmem:[#allocation4 + $0x30] sm:$0xff]
        %v9572 = vld [vmem:[#allocation4 + $0x38] sm:$0xff]
        %v9573 = vld [vmem:[#allocation4 + $0x40] sm:$0xff]
        %v9574 = vld [vmem:[#allocation4 + $0x48] sm:$0xff]
        %v9575 = vld [vmem:[#allocation4 + $0x50] sm:$0xff]
        %v9576 = vld [vmem:[#allocation4 + $0x58] sm:$0xff]
        %v9577 = vld [vmem:[#allocation4 + $0x60] sm:$0xff]
        %v9578 = vld [vmem:[#allocation4 + $0x68] sm:$0xff]
        %v9579 = vld [vmem:[#allocation4 + $0x70] sm:$0xff]
        %v9580 = vld [vmem:[#allocation4 + $0x78] sm:$0xff]
        %v9581 = vld [vmem:[#allocation4 + $0x80] sm:$0xff]
        %v9582 = vld [vmem:[#allocation4 + $0x88] sm:$0xff]
        %v9583 = vld [vmem:[#allocation4 + $0x90] sm:$0xff]
        %v9584 = vld [vmem:[#allocation4 + $0x98] sm:$0xff]
        %v9585 = vld [vmem:[#allocation4 + $0xa0] sm:$0xff]
        %v9586 = vld [vmem:[#allocation4 + $0xa8] sm:$0xff]
        %v9587 = vld [vmem:[#allocation4 + $0xb0] sm:$0xff]
        %v9588 = vld [vmem:[#allocation4 + $0xb8] sm:$0xff]
        %v9589 = vld [vmem:[#allocation4 + $0xc0] sm:$0xff]
        %v9590 = vld [vmem:[#allocation4 + $0xc8] sm:$0xff]
        %v9591 = vld [vmem:[#allocation4 + $0xd0] sm:$0xff]
        %v9592 = vld [vmem:[#allocation4 + $0xd8] sm:$0xff]
        %v9593 = vld [vmem:[#allocation4 + $0xe0] sm:$0xff]
        %v9594 = vld [vmem:[#allocation4 + $0xe8] sm:$0xff]
        %v9595 = vld [vmem:[#allocation4 + $0xf0] sm:$0xff]
        %v9596 = vld [vmem:[#allocation4 + $0xf8] sm:$0xff]
        %s9597 = scalar_lea.vmem [#allocation2], 56
        %v9598 = vld [vmem:[%s9597] sm:$0xff]
        %v9600 = vsel %vm317, %v9564, 0
        %9602 = vmatprep.subr.mxu0 0.0
        %9603 = vmatpush1.msra.mxu0 0.0
        %9604 = vmatprep.subr.mxu0 0.0
        %9605 = vmatpush1.msra.mxu0 0.0
        %9606 = vmatprep.subr.mxu0 0.0
        %9607 = vmatpush1.msra.mxu0 0.0
        %9608 = vmatprep.subr.mxu0 0.0
        %9609 = vmatpush1.msra.mxu0 0.0
        %9610 = vmatprep.subr.mxu0 0.0
        %9611 = vmatpush1.msra.mxu0 0.0
        %9612 = vmatprep.subr.mxu0 0.0
        %9613 = vmatpush1.msra.mxu0 0.0
        %9614 = vmatprep.subr.mxu0 0.0
        %9615 = vmatpush1.msra.mxu0 0.0
        %9616 = vmatprep.subr.mxu0 0.0
        %9617 = vmatpush1.msra.mxu0 0.0
        %9618 = vmatprep.subr.mxu0 0.0
        %9619 = vmatpush1.msra.mxu0 0.0
        %9620 = vmatprep.subr.mxu0 0.0
        %9621 = vmatpush1.msra.mxu0 0.0
        %9622 = vmatprep.subr.mxu0 0.0
        %9623 = vmatpush1.msra.mxu0 0.0
        %9624 = vmatprep.subr.mxu0 0.0
        %9625 = vmatpush1.msra.mxu0 0.0
        %9626 = vmatprep.subr.mxu0 0.0
        %9627 = vmatpush1.msra.mxu0 %v491
        %9628 = vmatprep.subr.mxu0 0.0
        %9629 = vmatpush1.msra.mxu0 %v490
        %9630 = vmatprep.subr.mxu0 0.0
        %9631 = vmatpush1.msra.mxu0 %v489
        %9632 = vmatprep.subr.mxu0 0.0
        %9633 = vmatpush1.msra.mxu0 %v488
        %9634 = vmatprep.subr.mxu0 0.0
        %9635 = vmatpush2.msra.mxu0 0.0
        %9636 = vmatprep.subr.mxu0 0.0
        %9637 = vmatpush2.msra.mxu0 0.0
        %9638 = vmatprep.subr.mxu0 0.0
        %9639 = vmatpush2.msra.mxu0 0.0
        %9640 = vmatprep.subr.mxu0 0.0
        %9641 = vmatpush2.msra.mxu0 0.0
        %9642 = vmatprep.subr.mxu0 0.0
        %9643 = vmatpush2.msra.mxu0 0.0
        %9644 = vmatprep.subr.mxu0 0.0
        %9645 = vmatpush2.msra.mxu0 0.0
        %9646 = vmatprep.subr.mxu0 0.0
        %9647 = vmatpush2.msra.mxu0 0.0
        %9648 = vmatprep.subr.mxu0 0.0
        %9649 = vmatpush2.msra.mxu0 0.0
        %9650 = vmatprep.subr.mxu0 0.0
        %9651 = vmatpush2.msra.mxu0 0.0
        %9652 = vmatprep.subr.mxu0 0.0
        %9653 = vmatpush2.msra.mxu0 0.0
        %9654 = vmatprep.subr.mxu0 0.0
        %9655 = vmatpush2.msra.mxu0 0.0
        %9656 = vmatprep.subr.mxu0 0.0
        %9657 = vmatpush2.msra.mxu0 0.0
        %9658 = vmatprep.subr.mxu0 0.0
        %9659 = vmatpush2.msra.mxu0 0.0
        %9660 = vmatprep.subr.mxu0 0.0
        %9661 = vmatpush2.msra.mxu0 0.0
        %9662 = vmatprep.subr.mxu0 0.0
        %9663 = vmatpush2.msra.mxu0 0.0
        %9664 = vmatprep.subr.mxu0 0.0
        %9665 = vmatpush2.msra.mxu0 0.0
        %9666 = vmatprep.mubr.f32.mxu0 0.0
        %9667 = vmatmul.mubr.f32.gmra.mxu0 %v9600
        %v9668 = vpop.f32.mrf.mxu0
        %v9669 = vadd.f32 0.0, %v9668
        %v9670 = vpop.f32.mrf.mxu0
        %9671 = vdwg.mxu0
        %v9672 = vadd.f32 %v9598, %v9669
        %v9673 = vlaneseq
        %v9674 = vshrl.u32 %v9673, 7
        %v9675 = vsub.s32 0, %v9674
        %v9676 = vrot.slane %v9564, %v9675
        %9678 = vbcast.lane.b32.xlu0 %v9676, 256
        %v9679 = vpop.permute.xlu0 %9678
        %s9681 = sor.u32 256, 8
        %9682 = vbcast.lane.b32.xlu0 %v9676, %s9681
        %v9683 = vpop.permute.xlu0 %9682
        %s9685 = sor.u32 256, 16
        %9686 = vbcast.lane.b32.xlu0 %v9676, %s9685
        %v9687 = vpop.permute.xlu0 %9686
        %s9689 = sor.u32 256, 24
        %9690 = vbcast.lane.b32.xlu0 %v9676, %s9689
        %v9691 = vpop.permute.xlu0 %9690
        %v9692 = vlaneseq
        %v9693 = vshrl.u32 %v9692, 7
        %v9694 = vsub.s32 1, %v9693
        %v9695 = vrot.slane %v9564, %v9694
        %9697 = vbcast.lane.b32.xlu0 %v9695, 256
        %v9698 = vpop.permute.xlu0 %9697
        %s9700 = sor.u32 256, 8
        %9701 = vbcast.lane.b32.xlu0 %v9695, %s9700
        %v9702 = vpop.permute.xlu0 %9701
        %s9704 = sor.u32 256, 16
        %9705 = vbcast.lane.b32.xlu0 %v9695, %s9704
        %v9706 = vpop.permute.xlu0 %9705
        %s9708 = sor.u32 256, 24
        %9709 = vbcast.lane.b32.xlu0 %v9695, %s9708
        %v9710 = vpop.permute.xlu0 %9709
        %v9711 = vlaneseq
        %v9712 = vshrl.u32 %v9711, 7
        %v9713 = vsub.s32 2, %v9712
        %v9714 = vrot.slane %v9564, %v9713
        %9716 = vbcast.lane.b32.xlu0 %v9714, 256
        %v9717 = vpop.permute.xlu0 %9716
        %s9719 = sor.u32 256, 8
        %9720 = vbcast.lane.b32.xlu0 %v9714, %s9719
        %v9721 = vpop.permute.xlu0 %9720
        %s9723 = sor.u32 256, 16
        %9724 = vbcast.lane.b32.xlu0 %v9714, %s9723
        %v9725 = vpop.permute.xlu0 %9724
        %s9727 = sor.u32 256, 24
        %9728 = vbcast.lane.b32.xlu0 %v9714, %s9727
        %v9729 = vpop.permute.xlu0 %9728
        %v9730 = vlaneseq
        %v9731 = vshrl.u32 %v9730, 7
        %v9732 = vsub.s32 3, %v9731
        %v9733 = vrot.slane %v9564, %v9732
        %9735 = vbcast.lane.b32.xlu0 %v9733, 256
        %v9736 = vpop.permute.xlu0 %9735
        %s9738 = sor.u32 256, 8
        %9739 = vbcast.lane.b32.xlu0 %v9733, %s9738
        %v9740 = vpop.permute.xlu0 %9739
        %s9742 = sor.u32 256, 16
        %9743 = vbcast.lane.b32.xlu0 %v9733, %s9742
        %v9744 = vpop.permute.xlu0 %9743
        %s9746 = sor.u32 256, 24
        %9747 = vbcast.lane.b32.xlu0 %v9733, %s9746
        %v9748 = vpop.permute.xlu0 %9747
        %v9749 = vlaneseq
        %v9750 = vshrl.u32 %v9749, 7
        %v9751 = vsub.s32 4, %v9750
        %v9752 = vrot.slane %v9564, %v9751
        %9754 = vbcast.lane.b32.xlu0 %v9752, 256
        %v9755 = vpop.permute.xlu0 %9754
        %s9757 = sor.u32 256, 8
        %9758 = vbcast.lane.b32.xlu0 %v9752, %s9757
        %v9759 = vpop.permute.xlu0 %9758
        %s9761 = sor.u32 256, 16
        %9762 = vbcast.lane.b32.xlu0 %v9752, %s9761
        %v9763 = vpop.permute.xlu0 %9762
        %s9765 = sor.u32 256, 24
        %9766 = vbcast.lane.b32.xlu0 %v9752, %s9765
        %v9767 = vpop.permute.xlu0 %9766
        %v9768 = vlaneseq
        %v9769 = vshrl.u32 %v9768, 7
        %v9770 = vsub.s32 5, %v9769
        %v9771 = vrot.slane %v9564, %v9770
        %9773 = vbcast.lane.b32.xlu0 %v9771, 256
        %v9774 = vpop.permute.xlu0 %9773
        %s9776 = sor.u32 256, 8
        %9777 = vbcast.lane.b32.xlu0 %v9771, %s9776
        %v9778 = vpop.permute.xlu0 %9777
        %s9780 = sor.u32 256, 16
        %9781 = vbcast.lane.b32.xlu0 %v9771, %s9780
        %v9782 = vpop.permute.xlu0 %9781
        %s9784 = sor.u32 256, 24
        %9785 = vbcast.lane.b32.xlu0 %v9771, %s9784
        %v9786 = vpop.permute.xlu0 %9785
        %v9787 = vlaneseq
        %v9788 = vshrl.u32 %v9787, 7
        %v9789 = vsub.s32 6, %v9788
        %v9790 = vrot.slane %v9564, %v9789
        %9792 = vbcast.lane.b32.xlu0 %v9790, 256
        %v9793 = vpop.permute.xlu0 %9792
        %s9795 = sor.u32 256, 8
        %9796 = vbcast.lane.b32.xlu0 %v9790, %s9795
        %v9797 = vpop.permute.xlu0 %9796
        %s9799 = sor.u32 256, 16
        %9800 = vbcast.lane.b32.xlu0 %v9790, %s9799
        %v9801 = vpop.permute.xlu0 %9800
        %s9803 = sor.u32 256, 24
        %9804 = vbcast.lane.b32.xlu0 %v9790, %s9803
        %v9805 = vpop.permute.xlu0 %9804
        %v9806 = vlaneseq
        %v9807 = vshrl.u32 %v9806, 7
        %v9808 = vsub.s32 7, %v9807
        %v9809 = vrot.slane %v9564, %v9808
        %9811 = vbcast.lane.b32.xlu0 %v9809, 256
        %v9812 = vpop.permute.xlu0 %9811
        %s9814 = sor.u32 256, 8
        %9815 = vbcast.lane.b32.xlu0 %v9809, %s9814
        %v9816 = vpop.permute.xlu0 %9815
        %s9818 = sor.u32 256, 16
        %9819 = vbcast.lane.b32.xlu0 %v9809, %s9818
        %v9820 = vpop.permute.xlu0 %9819
        %s9822 = sor.u32 256, 24
        %9823 = vbcast.lane.b32.xlu0 %v9809, %s9822
        %v9824 = vpop.permute.xlu0 %9823
        %v9825 = vcombine.high %v9564, %v9564
        %v9827 = vunpack.c.l.s4 1966171168
        %v9828 = vunpack.c.0.s8 %v9827
        %v9829 = vlaneseq
        %v9830 = vshrl.u32 %v9829, 7
        %v9831 = vsub.s32 %v9828, %v9830
        %v9832 = vrot.slane %v9564, %v9831
        %v9834 = vunpack.c.l.s4 1966171168
        %v9835 = vunpack.c.0.s8 %v9834
        %v9836 = vlaneseq
        %v9837 = vshrl.u32 %v9836, 7
        %v9838 = vsub.s32 %v9835, %v9837
        %v9839 = vrot.slane %v9825, %v9838
        %v9840 = vcombine.high %v9832, %v9832
        %v9841 = vcombine.high %v9839, %v9839
        %v9843 = vunpack.c.l.s4 1966171168
        %v9844 = vunpack.c.0.s8 %v9843
        %v9845 = vlaneseq
        %v9846 = vshrl.u32 %v9845, 7
        %v9847 = vsub.s32 %v9844, %v9846
        %v9848 = vrot.slane %v9832, %v9847
        %v9850 = vunpack.c.l.s4 1966171168
        %v9851 = vunpack.c.0.s8 %v9850
        %v9852 = vlaneseq
        %v9853 = vshrl.u32 %v9852, 7
        %v9854 = vsub.s32 %v9851, %v9853
        %v9855 = vrot.slane %v9839, %v9854
        %v9857 = vunpack.c.l.s4 1966171168
        %v9858 = vunpack.c.0.s8 %v9857
        %v9859 = vlaneseq
        %v9860 = vshrl.u32 %v9859, 7
        %v9861 = vsub.s32 %v9858, %v9860
        %v9862 = vrot.slane %v9840, %v9861
        %v9864 = vunpack.c.l.s4 1966171168
        %v9865 = vunpack.c.0.s8 %v9864
        %v9866 = vlaneseq
        %v9867 = vshrl.u32 %v9866, 7
        %v9868 = vsub.s32 %v9865, %v9867
        %v9869 = vrot.slane %v9841, %v9868
        %v9870 = vcombine.high %v9848, %v9848
        %v9871 = vcombine.high %v9855, %v9855
        %v9872 = vcombine.high %v9862, %v9862
        %v9873 = vcombine.high %v9869, %v9869
        %v9874 = vlaneseq
        %v9875 = vshrl.u32 %v9874, 7
        %v9876 = vsub.s32 0, %v9875
        %v9877 = vrot.slane %v9848, %v9876
        %v9878 = vlaneseq
        %v9879 = vshrl.u32 %v9878, 7
        %v9880 = vsub.s32 0, %v9879
        %v9881 = vrot.slane %v9862, %v9880
        %v9882 = vlaneseq
        %v9883 = vshrl.u32 %v9882, 7
        %v9884 = vsub.s32 0, %v9883
        %v9885 = vrot.slane %v9870, %v9884
        %v9886 = vlaneseq
        %v9887 = vshrl.u32 %v9886, 7
        %v9888 = vsub.s32 0, %v9887
        %v9889 = vrot.slane %v9872, %v9888
        %v9890 = vlaneseq
        %v9891 = vshrl.u32 %v9890, 7
        %v9892 = vsub.s32 0, %v9891
        %v9893 = vrot.slane %v9855, %v9892
        %v9894 = vlaneseq
        %v9895 = vshrl.u32 %v9894, 7
        %v9896 = vsub.s32 0, %v9895
        %v9897 = vrot.slane %v9869, %v9896
        %v9898 = vlaneseq
        %v9899 = vshrl.u32 %v9898, 7
        %v9900 = vsub.s32 0, %v9899
        %v9901 = vrot.slane %v9871, %v9900
        %v9902 = vlaneseq
        %v9903 = vshrl.u32 %v9902, 7
        %v9904 = vsub.s32 0, %v9903
        %v9905 = vrot.slane %v9873, %v9904
        %v9914 = vmul.f32 %v9679, %v9877
        %v9915 = vmul.f32 %v9683, %v9877
        %v9916 = vmul.f32 %v9687, %v9877
        %v9917 = vmul.f32 %v9691, %v9877
        %v9918 = vmul.f32 %v9698, %v9881
        %v9919 = vmul.f32 %v9702, %v9881
        %v9920 = vmul.f32 %v9706, %v9881
        %v9921 = vmul.f32 %v9710, %v9881
        %v9922 = vmul.f32 %v9717, %v9885
        %v9923 = vmul.f32 %v9721, %v9885
        %v9924 = vmul.f32 %v9725, %v9885
        %v9925 = vmul.f32 %v9729, %v9885
        %v9926 = vmul.f32 %v9736, %v9889
        %v9927 = vmul.f32 %v9740, %v9889
        %v9928 = vmul.f32 %v9744, %v9889
        %v9929 = vmul.f32 %v9748, %v9889
        %v9930 = vmul.f32 %v9755, %v9893
        %v9931 = vmul.f32 %v9759, %v9893
        %v9932 = vmul.f32 %v9763, %v9893
        %v9933 = vmul.f32 %v9767, %v9893
        %v9934 = vmul.f32 %v9774, %v9897
        %v9935 = vmul.f32 %v9778, %v9897
        %v9936 = vmul.f32 %v9782, %v9897
        %v9937 = vmul.f32 %v9786, %v9897
        %v9938 = vmul.f32 %v9793, %v9901
        %v9939 = vmul.f32 %v9797, %v9901
        %v9940 = vmul.f32 %v9801, %v9901
        %v9941 = vmul.f32 %v9805, %v9901
        %v9942 = vmul.f32 %v9812, %v9905
        %v9943 = vmul.f32 %v9816, %v9905
        %v9944 = vmul.f32 %v9820, %v9905
        %v9945 = vmul.f32 %v9824, %v9905
        %v9946 = vmul.f32 %v9565, 0.9
        %v9947 = vmul.f32 %v9566, 0.9
        %v9948 = vmul.f32 %v9567, 0.9
        %v9949 = vmul.f32 %v9568, 0.9
        %v9950 = vmul.f32 %v9569, 0.9
        %v9951 = vmul.f32 %v9570, 0.9
        %v9952 = vmul.f32 %v9571, 0.9
        %v9953 = vmul.f32 %v9572, 0.9
        %v9954 = vmul.f32 %v9573, 0.9
        %v9955 = vmul.f32 %v9574, 0.9
        %v9956 = vmul.f32 %v9575, 0.9
        %v9957 = vmul.f32 %v9576, 0.9
        %v9958 = vmul.f32 %v9577, 0.9
        %v9959 = vmul.f32 %v9578, 0.9
        %v9960 = vmul.f32 %v9579, 0.9
        %v9961 = vmul.f32 %v9580, 0.9
        %v9962 = vmul.f32 %v9581, 0.9
        %v9963 = vmul.f32 %v9582, 0.9
        %v9964 = vmul.f32 %v9583, 0.9
        %v9965 = vmul.f32 %v9584, 0.9
        %v9966 = vmul.f32 %v9585, 0.9
        %v9967 = vmul.f32 %v9586, 0.9
        %v9968 = vmul.f32 %v9587, 0.9
        %v9969 = vmul.f32 %v9588, 0.9
        %v9970 = vmul.f32 %v9589, 0.9
        %v9971 = vmul.f32 %v9590, 0.9
        %v9972 = vmul.f32 %v9591, 0.9
        %v9973 = vmul.f32 %v9592, 0.9
        %v9974 = vmul.f32 %v9593, 0.9
        %v9975 = vmul.f32 %v9594, 0.9
        %v9976 = vmul.f32 %v9595, 0.9
        %v9977 = vmul.f32 %v9596, 0.9
        %v9978 = vmul.f32 %v9914, 0.5
        %v9979 = vmul.f32 %v9915, 0.5
        %v9980 = vmul.f32 %v9916, 0.5
        %v9981 = vmul.f32 %v9917, 0.5
        %v9982 = vmul.f32 %v9918, 0.5
        %v9983 = vmul.f32 %v9919, 0.5
        %v9984 = vmul.f32 %v9920, 0.5
        %v9985 = vmul.f32 %v9921, 0.5
        %v9986 = vmul.f32 %v9922, 0.5
        %v9987 = vmul.f32 %v9923, 0.5
        %v9988 = vmul.f32 %v9924, 0.5
        %v9989 = vmul.f32 %v9925, 0.5
        %v9990 = vmul.f32 %v9926, 0.5
        %v9991 = vmul.f32 %v9927, 0.5
        %v9992 = vmul.f32 %v9928, 0.5
        %v9993 = vmul.f32 %v9929, 0.5
        %v9994 = vmul.f32 %v9930, 0.5
        %v9995 = vmul.f32 %v9931, 0.5
        %v9996 = vmul.f32 %v9932, 0.5
        %v9997 = vmul.f32 %v9933, 0.5
        %v9998 = vmul.f32 %v9934, 0.5
        %v9999 = vmul.f32 %v9935, 0.5
        %v10000 = vmul.f32 %v9936, 0.5
        %v10001 = vmul.f32 %v9937, 0.5
        %v10002 = vmul.f32 %v9938, 0.5
        %v10003 = vmul.f32 %v9939, 0.5
        %v10004 = vmul.f32 %v9940, 0.5
        %v10005 = vmul.f32 %v9941, 0.5
        %v10006 = vmul.f32 %v9942, 0.5
        %v10007 = vmul.f32 %v9943, 0.5
        %v10008 = vmul.f32 %v9944, 0.5
        %v10009 = vmul.f32 %v9945, 0.5
        %v10010 = vadd.f32 %v9946, %v9978
        %v10011 = vadd.f32 %v9947, %v9979
        %v10012 = vadd.f32 %v9948, %v9980
        %v10013 = vadd.f32 %v9949, %v9981
        %v10014 = vadd.f32 %v9950, %v9982
        %v10015 = vadd.f32 %v9951, %v9983
        %v10016 = vadd.f32 %v9952, %v9984
        %v10017 = vadd.f32 %v9953, %v9985
        %v10018 = vadd.f32 %v9954, %v9986
        %v10019 = vadd.f32 %v9955, %v9987
        %v10020 = vadd.f32 %v9956, %v9988
        %v10021 = vadd.f32 %v9957, %v9989
        %v10022 = vadd.f32 %v9958, %v9990
        %v10023 = vadd.f32 %v9959, %v9991
        %v10024 = vadd.f32 %v9960, %v9992
        %v10025 = vadd.f32 %v9961, %v9993
        %v10026 = vadd.f32 %v9962, %v9994
        %v10027 = vadd.f32 %v9963, %v9995
        %v10028 = vadd.f32 %v9964, %v9996
        %v10029 = vadd.f32 %v9965, %v9997
        %v10030 = vadd.f32 %v9966, %v9998
        %v10031 = vadd.f32 %v9967, %v9999
        %v10032 = vadd.f32 %v9968, %v10000
        %v10033 = vadd.f32 %v9969, %v10001
        %v10034 = vadd.f32 %v9970, %v10002
        %v10035 = vadd.f32 %v9971, %v10003
        %v10036 = vadd.f32 %v9972, %v10004
        %v10037 = vadd.f32 %v9973, %v10005
        %v10038 = vadd.f32 %v9974, %v10006
        %v10039 = vadd.f32 %v9975, %v10007
        %v10040 = vadd.f32 %v9976, %v10008
        %v10041 = vadd.f32 %v9977, %v10009
        %10042 = vst.msk [vmem:[#allocation4] sm:$0xff] %vm317, %v10010
        %10043 = vst.msk [vmem:[#allocation4 + $0x8] sm:$0xff] %vm317, %v10011
        %10044 = vst.msk [vmem:[#allocation4 + $0x10] sm:$0xff] %vm317, %v10012
        %10045 = vst.msk [vmem:[#allocation4 + $0x18] sm:$0xff] %vm317, %v10013
        %10046 = vst.msk [vmem:[#allocation4 + $0x20] sm:$0xff] %vm317, %v10014
        %10047 = vst.msk [vmem:[#allocation4 + $0x28] sm:$0xff] %vm317, %v10015
        %10048 = vst.msk [vmem:[#allocation4 + $0x30] sm:$0xff] %vm317, %v10016
        %10049 = vst.msk [vmem:[#allocation4 + $0x38] sm:$0xff] %vm317, %v10017
        %10050 = vst.msk [vmem:[#allocation4 + $0x40] sm:$0xff] %vm317, %v10018
        %10051 = vst.msk [vmem:[#allocation4 + $0x48] sm:$0xff] %vm317, %v10019
        %10052 = vst.msk [vmem:[#allocation4 + $0x50] sm:$0xff] %vm317, %v10020
        %10053 = vst.msk [vmem:[#allocation4 + $0x58] sm:$0xff] %vm317, %v10021
        %10054 = vst.msk [vmem:[#allocation4 + $0x60] sm:$0xff] %vm317, %v10022
        %10055 = vst.msk [vmem:[#allocation4 + $0x68] sm:$0xff] %vm317, %v10023
        %10056 = vst.msk [vmem:[#allocation4 + $0x70] sm:$0xff] %vm317, %v10024
        %10057 = vst.msk [vmem:[#allocation4 + $0x78] sm:$0xff] %vm317, %v10025
        %10058 = vst.msk [vmem:[#allocation4 + $0x80] sm:$0xff] %vm317, %v10026
        %10059 = vst.msk [vmem:[#allocation4 + $0x88] sm:$0xff] %vm317, %v10027
        %10060 = vst.msk [vmem:[#allocation4 + $0x90] sm:$0xff] %vm317, %v10028
        %10061 = vst.msk [vmem:[#allocation4 + $0x98] sm:$0xff] %vm317, %v10029
        %10062 = vst.msk [vmem:[#allocation4 + $0xa0] sm:$0xff] %vm317, %v10030
        %10063 = vst.msk [vmem:[#allocation4 + $0xa8] sm:$0xff] %vm317, %v10031
        %10064 = vst.msk [vmem:[#allocation4 + $0xb0] sm:$0xff] %vm317, %v10032
        %10065 = vst.msk [vmem:[#allocation4 + $0xb8] sm:$0xff] %vm317, %v10033
        %10066 = vst.msk [vmem:[#allocation4 + $0xc0] sm:$0xff] %vm317, %v10034
        %10067 = vst.msk [vmem:[#allocation4 + $0xc8] sm:$0xff] %vm317, %v10035
        %10068 = vst.msk [vmem:[#allocation4 + $0xd0] sm:$0xff] %vm317, %v10036
        %10069 = vst.msk [vmem:[#allocation4 + $0xd8] sm:$0xff] %vm317, %v10037
        %10070 = vst.msk [vmem:[#allocation4 + $0xe0] sm:$0xff] %vm317, %v10038
        %10071 = vst.msk [vmem:[#allocation4 + $0xe8] sm:$0xff] %vm317, %v10039
        %10072 = vst.msk [vmem:[#allocation4 + $0xf0] sm:$0xff] %vm317, %v10040
        %10073 = vst.msk [vmem:[#allocation4 + $0xf8] sm:$0xff] %vm317, %v10041
        %v10074 = vmax.f32 %v9672, 0.0
        %v10076 = vcombine.high %v10074, %v10074
        %v10078 = vunpack.c.l.s4 1966171168
        %v10079 = vunpack.c.0.s8 %v10078
        %v10080 = vlaneseq
        %v10081 = vshrl.u32 %v10080, 7
        %v10082 = vsub.s32 %v10079, %v10081
        %v10083 = vrot.slane %v10074, %v10082
        %v10085 = vunpack.c.l.s4 1966171168
        %v10086 = vunpack.c.0.s8 %v10085
        %v10087 = vlaneseq
        %v10088 = vshrl.u32 %v10087, 7
        %v10089 = vsub.s32 %v10086, %v10088
        %v10090 = vrot.slane %v10076, %v10089
        %v10091 = vcombine.high %v10083, %v10083
        %v10092 = vcombine.high %v10090, %v10090
        %v10094 = vunpack.c.l.s4 1966171168
        %v10095 = vunpack.c.0.s8 %v10094
        %v10096 = vlaneseq
        %v10097 = vshrl.u32 %v10096, 7
        %v10098 = vsub.s32 %v10095, %v10097
        %v10099 = vrot.slane %v10083, %v10098
        %v10101 = vunpack.c.l.s4 1966171168
        %v10102 = vunpack.c.0.s8 %v10101
        %v10103 = vlaneseq
        %v10104 = vshrl.u32 %v10103, 7
        %v10105 = vsub.s32 %v10102, %v10104
        %v10106 = vrot.slane %v10090, %v10105
        %v10108 = vunpack.c.l.s4 1966171168
        %v10109 = vunpack.c.0.s8 %v10108
        %v10110 = vlaneseq
        %v10111 = vshrl.u32 %v10110, 7
        %v10112 = vsub.s32 %v10109, %v10111
        %v10113 = vrot.slane %v10091, %v10112
        %v10115 = vunpack.c.l.s4 1966171168
        %v10116 = vunpack.c.0.s8 %v10115
        %v10117 = vlaneseq
        %v10118 = vshrl.u32 %v10117, 7
        %v10119 = vsub.s32 %v10116, %v10118
        %v10120 = vrot.slane %v10092, %v10119
        %v10121 = vcombine.high %v10099, %v10099
        %v10122 = vcombine.high %v10106, %v10106
        %v10123 = vcombine.high %v10113, %v10113
        %v10124 = vcombine.high %v10120, %v10120
        %v10125 = vlaneseq
        %v10126 = vshrl.u32 %v10125, 7
        %v10127 = vsub.s32 0, %v10126
        %v10128 = vrot.slane %v10099, %v10127
        %v10129 = vlaneseq
        %v10130 = vshrl.u32 %v10129, 7
        %v10131 = vsub.s32 0, %v10130
        %v10132 = vrot.slane %v10113, %v10131
        %v10133 = vlaneseq
        %v10134 = vshrl.u32 %v10133, 7
        %v10135 = vsub.s32 0, %v10134
        %v10136 = vrot.slane %v10121, %v10135
        %v10137 = vlaneseq
        %v10138 = vshrl.u32 %v10137, 7
        %v10139 = vsub.s32 0, %v10138
        %v10140 = vrot.slane %v10123, %v10139
        %v10141 = vlaneseq
        %v10142 = vshrl.u32 %v10141, 7
        %v10143 = vsub.s32 0, %v10142
        %v10144 = vrot.slane %v10106, %v10143
        %v10145 = vlaneseq
        %v10146 = vshrl.u32 %v10145, 7
        %v10147 = vsub.s32 0, %v10146
        %v10148 = vrot.slane %v10120, %v10147
        %v10149 = vlaneseq
        %v10150 = vshrl.u32 %v10149, 7
        %v10151 = vsub.s32 0, %v10150
        %v10152 = vrot.slane %v10122, %v10151
        %v10153 = vlaneseq
        %v10154 = vshrl.u32 %v10153, 7
        %v10155 = vsub.s32 0, %v10154
        %v10156 = vrot.slane %v10124, %v10155
        %v10165 = vmul.f32 %v9565, %v10128
        %v10166 = vmul.f32 %v9566, %v10128
        %v10167 = vmul.f32 %v9567, %v10128
        %v10168 = vmul.f32 %v9568, %v10128
        %v10169 = vmul.f32 %v9569, %v10132
        %v10170 = vmul.f32 %v9570, %v10132
        %v10171 = vmul.f32 %v9571, %v10132
        %v10172 = vmul.f32 %v9572, %v10132
        %v10173 = vmul.f32 %v9573, %v10136
        %v10174 = vmul.f32 %v9574, %v10136
        %v10175 = vmul.f32 %v9575, %v10136
        %v10176 = vmul.f32 %v9576, %v10136
        %v10177 = vmul.f32 %v9577, %v10140
        %v10178 = vmul.f32 %v9578, %v10140
        %v10179 = vmul.f32 %v9579, %v10140
        %v10180 = vmul.f32 %v9580, %v10140
        %v10181 = vmul.f32 %v9581, %v10144
        %v10182 = vmul.f32 %v9582, %v10144
        %v10183 = vmul.f32 %v9583, %v10144
        %v10184 = vmul.f32 %v9584, %v10144
        %v10185 = vmul.f32 %v9585, %v10148
        %v10186 = vmul.f32 %v9586, %v10148
        %v10187 = vmul.f32 %v9587, %v10148
        %v10188 = vmul.f32 %v9588, %v10148
        %v10189 = vmul.f32 %v9589, %v10152
        %v10190 = vmul.f32 %v9590, %v10152
        %v10191 = vmul.f32 %v9591, %v10152
        %v10192 = vmul.f32 %v9592, %v10152
        %v10193 = vmul.f32 %v9593, %v10156
        %v10194 = vmul.f32 %v9594, %v10156
        %v10195 = vmul.f32 %v9595, %v10156
        %v10196 = vmul.f32 %v9596, %v10156
        %v10197 = vsel %vm317, %v10165, 0.0
        %10198 = vadd.xlane.f32.xlu0 %v10197
        %v10199 = vpop.xlane.xlu0 %10198
        %v10200 = vsel %vm317, %v10166, 0.0
        %10201 = vadd.xlane.f32.xlu0 %v10200
        %v10202 = vpop.xlane.xlu0 %10201
        %v10203 = vsel %vm317, %v10167, 0.0
        %10204 = vadd.xlane.f32.xlu0 %v10203
        %v10205 = vpop.xlane.xlu0 %10204
        %v10206 = vsel %vm317, %v10168, 0.0
        %10207 = vadd.xlane.f32.xlu0 %v10206
        %v10208 = vpop.xlane.xlu0 %10207
        %v10209 = vsel %vm317, %v10169, 0.0
        %10210 = vadd.xlane.f32.xlu0 %v10209
        %v10211 = vpop.xlane.xlu0 %10210
        %v10212 = vsel %vm317, %v10170, 0.0
        %10213 = vadd.xlane.f32.xlu0 %v10212
        %v10214 = vpop.xlane.xlu0 %10213
        %v10215 = vsel %vm317, %v10171, 0.0
        %10216 = vadd.xlane.f32.xlu0 %v10215
        %v10217 = vpop.xlane.xlu0 %10216
        %v10218 = vsel %vm317, %v10172, 0.0
        %10219 = vadd.xlane.f32.xlu0 %v10218
        %v10220 = vpop.xlane.xlu0 %10219
        %v10221 = vsel %vm317, %v10173, 0.0
        %10222 = vadd.xlane.f32.xlu0 %v10221
        %v10223 = vpop.xlane.xlu0 %10222
        %v10224 = vsel %vm317, %v10174, 0.0
        %10225 = vadd.xlane.f32.xlu0 %v10224
        %v10226 = vpop.xlane.xlu0 %10225
        %v10227 = vsel %vm317, %v10175, 0.0
        %10228 = vadd.xlane.f32.xlu0 %v10227
        %v10229 = vpop.xlane.xlu0 %10228
        %v10230 = vsel %vm317, %v10176, 0.0
        %10231 = vadd.xlane.f32.xlu0 %v10230
        %v10232 = vpop.xlane.xlu0 %10231
        %v10233 = vsel %vm317, %v10177, 0.0
        %10234 = vadd.xlane.f32.xlu0 %v10233
        %v10235 = vpop.xlane.xlu0 %10234
        %v10236 = vsel %vm317, %v10178, 0.0
        %10237 = vadd.xlane.f32.xlu0 %v10236
        %v10238 = vpop.xlane.xlu0 %10237
        %v10239 = vsel %vm317, %v10179, 0.0
        %10240 = vadd.xlane.f32.xlu0 %v10239
        %v10241 = vpop.xlane.xlu0 %10240
        %v10242 = vsel %vm317, %v10180, 0.0
        %10243 = vadd.xlane.f32.xlu0 %v10242
        %v10244 = vpop.xlane.xlu0 %10243
        %v10245 = vsel %vm317, %v10181, 0.0
        %10246 = vadd.xlane.f32.xlu0 %v10245
        %v10247 = vpop.xlane.xlu0 %10246
        %v10248 = vsel %vm317, %v10182, 0.0
        %10249 = vadd.xlane.f32.xlu0 %v10248
        %v10250 = vpop.xlane.xlu0 %10249
        %v10251 = vsel %vm317, %v10183, 0.0
        %10252 = vadd.xlane.f32.xlu0 %v10251
        %v10253 = vpop.xlane.xlu0 %10252
        %v10254 = vsel %vm317, %v10184, 0.0
        %10255 = vadd.xlane.f32.xlu0 %v10254
        %v10256 = vpop.xlane.xlu0 %10255
        %v10257 = vsel %vm317, %v10185, 0.0
        %10258 = vadd.xlane.f32.xlu0 %v10257
        %v10259 = vpop.xlane.xlu0 %10258
        %v10260 = vsel %vm317, %v10186, 0.0
        %10261 = vadd.xlane.f32.xlu0 %v10260
        %v10262 = vpop.xlane.xlu0 %10261
        %v10263 = vsel %vm317, %v10187, 0.0
        %10264 = vadd.xlane.f32.xlu0 %v10263
        %v10265 = vpop.xlane.xlu0 %10264
        %v10266 = vsel %vm317, %v10188, 0.0
        %10267 = vadd.xlane.f32.xlu0 %v10266
        %v10268 = vpop.xlane.xlu0 %10267
        %v10269 = vsel %vm317, %v10189, 0.0
        %10270 = vadd.xlane.f32.xlu0 %v10269
        %v10271 = vpop.xlane.xlu0 %10270
        %v10272 = vsel %vm317, %v10190, 0.0
        %10273 = vadd.xlane.f32.xlu0 %v10272
        %v10274 = vpop.xlane.xlu0 %10273
        %v10275 = vsel %vm317, %v10191, 0.0
        %10276 = vadd.xlane.f32.xlu0 %v10275
        %v10277 = vpop.xlane.xlu0 %10276
        %v10278 = vsel %vm317, %v10192, 0.0
        %10279 = vadd.xlane.f32.xlu0 %v10278
        %v10280 = vpop.xlane.xlu0 %10279
        %v10281 = vsel %vm317, %v10193, 0.0
        %10282 = vadd.xlane.f32.xlu0 %v10281
        %v10283 = vpop.xlane.xlu0 %10282
        %v10284 = vsel %vm317, %v10194, 0.0
        %10285 = vadd.xlane.f32.xlu0 %v10284
        %v10286 = vpop.xlane.xlu0 %10285
        %v10287 = vsel %vm317, %v10195, 0.0
        %10288 = vadd.xlane.f32.xlu0 %v10287
        %v10289 = vpop.xlane.xlu0 %10288
        %v10290 = vsel %vm317, %v10196, 0.0
        %10291 = vadd.xlane.f32.xlu0 %v10290
        %v10292 = vpop.xlane.xlu0 %10291
        %v10293 = vmul.f32 %v9564, %v10074
        %v10294 = vsel %vm317, %v10293, 0.0
        %10295 = vadd.xlane.f32.xlu0 %v10294
        %v10296 = vpop.xlane.xlu0 %10295
        %v10297 = vmul.f32 %v10199, 0.9
        %v10298 = vmul.f32 %v10202, 0.9
        %v10299 = vmul.f32 %v10205, 0.9
        %v10300 = vmul.f32 %v10208, 0.9
        %v10301 = vmul.f32 %v10211, 0.9
        %v10302 = vmul.f32 %v10214, 0.9
        %v10303 = vmul.f32 %v10217, 0.9
        %v10304 = vmul.f32 %v10220, 0.9
        %v10305 = vmul.f32 %v10223, 0.9
        %v10306 = vmul.f32 %v10226, 0.9
        %v10307 = vmul.f32 %v10229, 0.9
        %v10308 = vmul.f32 %v10232, 0.9
        %v10309 = vmul.f32 %v10235, 0.9
        %v10310 = vmul.f32 %v10238, 0.9
        %v10311 = vmul.f32 %v10241, 0.9
        %v10312 = vmul.f32 %v10244, 0.9
        %v10313 = vmul.f32 %v10247, 0.9
        %v10314 = vmul.f32 %v10250, 0.9
        %v10315 = vmul.f32 %v10253, 0.9
        %v10316 = vmul.f32 %v10256, 0.9
        %v10317 = vmul.f32 %v10259, 0.9
        %v10318 = vmul.f32 %v10262, 0.9
        %v10319 = vmul.f32 %v10265, 0.9
        %v10320 = vmul.f32 %v10268, 0.9
        %v10321 = vmul.f32 %v10271, 0.9
        %v10322 = vmul.f32 %v10274, 0.9
        %v10323 = vmul.f32 %v10277, 0.9
        %v10324 = vmul.f32 %v10280, 0.9
        %v10325 = vmul.f32 %v10283, 0.9
        %v10326 = vmul.f32 %v10286, 0.9
        %v10327 = vmul.f32 %v10289, 0.9
        %v10328 = vmul.f32 %v10292, 0.9
        %v10329 = vmul.f32 %v9564, %v10296
        %v10330 = vmul.f32 %v10329, 0.5
        %v10332 = vlaneseq
        %v10333 = vshrl.u32 %v10332, 7
        %v10334 = vsub.s32 0, %v10333
        %v10335 = vrot.slane %v10330, %v10334
        %10337 = vbcast.lane.b32.xlu0 %v10335, 256
        %v10338 = vpop.permute.xlu0 %10337
        %s10340 = sor.u32 256, 8
        %10341 = vbcast.lane.b32.xlu0 %v10335, %s10340
        %v10342 = vpop.permute.xlu0 %10341
        %s10344 = sor.u32 256, 16
        %10345 = vbcast.lane.b32.xlu0 %v10335, %s10344
        %v10346 = vpop.permute.xlu0 %10345
        %s10348 = sor.u32 256, 24
        %10349 = vbcast.lane.b32.xlu0 %v10335, %s10348
        %v10350 = vpop.permute.xlu0 %10349
        %v10351 = vlaneseq
        %v10352 = vshrl.u32 %v10351, 7
        %v10353 = vsub.s32 1, %v10352
        %v10354 = vrot.slane %v10330, %v10353
        %10356 = vbcast.lane.b32.xlu0 %v10354, 256
        %v10357 = vpop.permute.xlu0 %10356
        %s10359 = sor.u32 256, 8
        %10360 = vbcast.lane.b32.xlu0 %v10354, %s10359
        %v10361 = vpop.permute.xlu0 %10360
        %s10363 = sor.u32 256, 16
        %10364 = vbcast.lane.b32.xlu0 %v10354, %s10363
        %v10365 = vpop.permute.xlu0 %10364
        %s10367 = sor.u32 256, 24
        %10368 = vbcast.lane.b32.xlu0 %v10354, %s10367
        %v10369 = vpop.permute.xlu0 %10368
        %v10370 = vlaneseq
        %v10371 = vshrl.u32 %v10370, 7
        %v10372 = vsub.s32 2, %v10371
        %v10373 = vrot.slane %v10330, %v10372
        %10375 = vbcast.lane.b32.xlu0 %v10373, 256
        %v10376 = vpop.permute.xlu0 %10375
        %s10378 = sor.u32 256, 8
        %10379 = vbcast.lane.b32.xlu0 %v10373, %s10378
        %v10380 = vpop.permute.xlu0 %10379
        %s10382 = sor.u32 256, 16
        %10383 = vbcast.lane.b32.xlu0 %v10373, %s10382
        %v10384 = vpop.permute.xlu0 %10383
        %s10386 = sor.u32 256, 24
        %10387 = vbcast.lane.b32.xlu0 %v10373, %s10386
        %v10388 = vpop.permute.xlu0 %10387
        %v10389 = vlaneseq
        %v10390 = vshrl.u32 %v10389, 7
        %v10391 = vsub.s32 3, %v10390
        %v10392 = vrot.slane %v10330, %v10391
        %10394 = vbcast.lane.b32.xlu0 %v10392, 256
        %v10395 = vpop.permute.xlu0 %10394
        %s10397 = sor.u32 256, 8
        %10398 = vbcast.lane.b32.xlu0 %v10392, %s10397
        %v10399 = vpop.permute.xlu0 %10398
        %s10401 = sor.u32 256, 16
        %10402 = vbcast.lane.b32.xlu0 %v10392, %s10401
        %v10403 = vpop.permute.xlu0 %10402
        %s10405 = sor.u32 256, 24
        %10406 = vbcast.lane.b32.xlu0 %v10392, %s10405
        %v10407 = vpop.permute.xlu0 %10406
        %v10408 = vlaneseq
        %v10409 = vshrl.u32 %v10408, 7
        %v10410 = vsub.s32 4, %v10409
        %v10411 = vrot.slane %v10330, %v10410
        %10413 = vbcast.lane.b32.xlu0 %v10411, 256
        %v10414 = vpop.permute.xlu0 %10413
        %s10416 = sor.u32 256, 8
        %10417 = vbcast.lane.b32.xlu0 %v10411, %s10416
        %v10418 = vpop.permute.xlu0 %10417
        %s10420 = sor.u32 256, 16
        %10421 = vbcast.lane.b32.xlu0 %v10411, %s10420
        %v10422 = vpop.permute.xlu0 %10421
        %s10424 = sor.u32 256, 24
        %10425 = vbcast.lane.b32.xlu0 %v10411, %s10424
        %v10426 = vpop.permute.xlu0 %10425
        %v10427 = vlaneseq
        %v10428 = vshrl.u32 %v10427, 7
        %v10429 = vsub.s32 5, %v10428
        %v10430 = vrot.slane %v10330, %v10429
        %10432 = vbcast.lane.b32.xlu0 %v10430, 256
        %v10433 = vpop.permute.xlu0 %10432
        %s10435 = sor.u32 256, 8
        %10436 = vbcast.lane.b32.xlu0 %v10430, %s10435
        %v10437 = vpop.permute.xlu0 %10436
        %s10439 = sor.u32 256, 16
        %10440 = vbcast.lane.b32.xlu0 %v10430, %s10439
        %v10441 = vpop.permute.xlu0 %10440
        %s10443 = sor.u32 256, 24
        %10444 = vbcast.lane.b32.xlu0 %v10430, %s10443
        %v10445 = vpop.permute.xlu0 %10444
        %v10446 = vlaneseq
        %v10447 = vshrl.u32 %v10446, 7
        %v10448 = vsub.s32 6, %v10447
        %v10449 = vrot.slane %v10330, %v10448
        %10451 = vbcast.lane.b32.xlu0 %v10449, 256
        %v10452 = vpop.permute.xlu0 %10451
        %s10454 = sor.u32 256, 8
        %10455 = vbcast.lane.b32.xlu0 %v10449, %s10454
        %v10456 = vpop.permute.xlu0 %10455
        %s10458 = sor.u32 256, 16
        %10459 = vbcast.lane.b32.xlu0 %v10449, %s10458
        %v10460 = vpop.permute.xlu0 %10459
        %s10462 = sor.u32 256, 24
        %10463 = vbcast.lane.b32.xlu0 %v10449, %s10462
        %v10464 = vpop.permute.xlu0 %10463
        %v10465 = vlaneseq
        %v10466 = vshrl.u32 %v10465, 7
        %v10467 = vsub.s32 7, %v10466
        %v10468 = vrot.slane %v10330, %v10467
        %10470 = vbcast.lane.b32.xlu0 %v10468, 256
        %v10471 = vpop.permute.xlu0 %10470
        %s10473 = sor.u32 256, 8
        %10474 = vbcast.lane.b32.xlu0 %v10468, %s10473
        %v10475 = vpop.permute.xlu0 %10474
        %s10477 = sor.u32 256, 16
        %10478 = vbcast.lane.b32.xlu0 %v10468, %s10477
        %v10479 = vpop.permute.xlu0 %10478
        %s10481 = sor.u32 256, 24
        %10482 = vbcast.lane.b32.xlu0 %v10468, %s10481
        %v10483 = vpop.permute.xlu0 %10482
        %v10516 = vadd.f32 %v10297, %v10338
        %v10517 = vadd.f32 %v10298, %v10342
        %v10518 = vadd.f32 %v10299, %v10346
        %v10519 = vadd.f32 %v10300, %v10350
        %v10520 = vadd.f32 %v10301, %v10357
        %v10521 = vadd.f32 %v10302, %v10361
        %v10522 = vadd.f32 %v10303, %v10365
        %v10523 = vadd.f32 %v10304, %v10369
        %v10524 = vadd.f32 %v10305, %v10376
        %v10525 = vadd.f32 %v10306, %v10380
        %v10526 = vadd.f32 %v10307, %v10384
        %v10527 = vadd.f32 %v10308, %v10388
        %v10528 = vadd.f32 %v10309, %v10395
        %v10529 = vadd.f32 %v10310, %v10399
        %v10530 = vadd.f32 %v10311, %v10403
        %v10531 = vadd.f32 %v10312, %v10407
        %v10532 = vadd.f32 %v10313, %v10414
        %v10533 = vadd.f32 %v10314, %v10418
        %v10534 = vadd.f32 %v10315, %v10422
        %v10535 = vadd.f32 %v10316, %v10426
        %v10536 = vadd.f32 %v10317, %v10433
        %v10537 = vadd.f32 %v10318, %v10437
        %v10538 = vadd.f32 %v10319, %v10441
        %v10539 = vadd.f32 %v10320, %v10445
        %v10540 = vadd.f32 %v10321, %v10452
        %v10541 = vadd.f32 %v10322, %v10456
        %v10542 = vadd.f32 %v10323, %v10460
        %v10543 = vadd.f32 %v10324, %v10464
        %v10544 = vadd.f32 %v10325, %v10471
        %v10545 = vadd.f32 %v10326, %v10475
        %v10546 = vadd.f32 %v10327, %v10479
        %v10547 = vadd.f32 %v10328, %v10483
        %10580 = vset.pattern.permute.xlu0 0
        %10581 = vperm.xlu0 %10580, %v10516
        %v10582 = vpop.permute.xlu0 %10581
        %10583 = vset.pattern.permute.xlu0 0
        %10584 = vperm.xlu0 %10583, %v10517
        %v10585 = vpop.permute.xlu0 %10584
        %10586 = vset.pattern.permute.xlu0 0
        %10587 = vperm.xlu0 %10586, %v10518
        %v10588 = vpop.permute.xlu0 %10587
        %10589 = vset.pattern.permute.xlu0 0
        %10590 = vperm.xlu0 %10589, %v10519
        %v10591 = vpop.permute.xlu0 %10590
        %10592 = vset.pattern.permute.xlu0 0
        %10593 = vperm.xlu0 %10592, %v10520
        %v10594 = vpop.permute.xlu0 %10593
        %10595 = vset.pattern.permute.xlu0 0
        %10596 = vperm.xlu0 %10595, %v10521
        %v10597 = vpop.permute.xlu0 %10596
        %10598 = vset.pattern.permute.xlu0 0
        %10599 = vperm.xlu0 %10598, %v10522
        %v10600 = vpop.permute.xlu0 %10599
        %10601 = vset.pattern.permute.xlu0 0
        %10602 = vperm.xlu0 %10601, %v10523
        %v10603 = vpop.permute.xlu0 %10602
        %10604 = vset.pattern.permute.xlu0 0
        %10605 = vperm.xlu0 %10604, %v10524
        %v10606 = vpop.permute.xlu0 %10605
        %10607 = vset.pattern.permute.xlu0 0
        %10608 = vperm.xlu0 %10607, %v10525
        %v10609 = vpop.permute.xlu0 %10608
        %10610 = vset.pattern.permute.xlu0 0
        %10611 = vperm.xlu0 %10610, %v10526
        %v10612 = vpop.permute.xlu0 %10611
        %10613 = vset.pattern.permute.xlu0 0
        %10614 = vperm.xlu0 %10613, %v10527
        %v10615 = vpop.permute.xlu0 %10614
        %10616 = vset.pattern.permute.xlu0 0
        %10617 = vperm.xlu0 %10616, %v10528
        %v10618 = vpop.permute.xlu0 %10617
        %10619 = vset.pattern.permute.xlu0 0
        %10620 = vperm.xlu0 %10619, %v10529
        %v10621 = vpop.permute.xlu0 %10620
        %10622 = vset.pattern.permute.xlu0 0
        %10623 = vperm.xlu0 %10622, %v10530
        %v10624 = vpop.permute.xlu0 %10623
        %10625 = vset.pattern.permute.xlu0 0
        %10626 = vperm.xlu0 %10625, %v10531
        %v10627 = vpop.permute.xlu0 %10626
        %10628 = vset.pattern.permute.xlu0 0
        %10629 = vperm.xlu0 %10628, %v10532
        %v10630 = vpop.permute.xlu0 %10629
        %10631 = vset.pattern.permute.xlu0 0
        %10632 = vperm.xlu0 %10631, %v10533
        %v10633 = vpop.permute.xlu0 %10632
        %10634 = vset.pattern.permute.xlu0 0
        %10635 = vperm.xlu0 %10634, %v10534
        %v10636 = vpop.permute.xlu0 %10635
        %10637 = vset.pattern.permute.xlu0 0
        %10638 = vperm.xlu0 %10637, %v10535
        %v10639 = vpop.permute.xlu0 %10638
        %10640 = vset.pattern.permute.xlu0 0
        %10641 = vperm.xlu0 %10640, %v10536
        %v10642 = vpop.permute.xlu0 %10641
        %10643 = vset.pattern.permute.xlu0 0
        %10644 = vperm.xlu0 %10643, %v10537
        %v10645 = vpop.permute.xlu0 %10644
        %10646 = vset.pattern.permute.xlu0 0
        %10647 = vperm.xlu0 %10646, %v10538
        %v10648 = vpop.permute.xlu0 %10647
        %10649 = vset.pattern.permute.xlu0 0
        %10650 = vperm.xlu0 %10649, %v10539
        %v10651 = vpop.permute.xlu0 %10650
        %10652 = vset.pattern.permute.xlu0 0
        %10653 = vperm.xlu0 %10652, %v10540
        %v10654 = vpop.permute.xlu0 %10653
        %10655 = vset.pattern.permute.xlu0 0
        %10656 = vperm.xlu0 %10655, %v10541
        %v10657 = vpop.permute.xlu0 %10656
        %10658 = vset.pattern.permute.xlu0 0
        %10659 = vperm.xlu0 %10658, %v10542
        %v10660 = vpop.permute.xlu0 %10659
        %10661 = vset.pattern.permute.xlu0 0
        %10662 = vperm.xlu0 %10661, %v10543
        %v10663 = vpop.permute.xlu0 %10662
        %10664 = vset.pattern.permute.xlu0 0
        %10665 = vperm.xlu0 %10664, %v10544
        %v10666 = vpop.permute.xlu0 %10665
        %10667 = vset.pattern.permute.xlu0 0
        %10668 = vperm.xlu0 %10667, %v10545
        %v10669 = vpop.permute.xlu0 %10668
        %10670 = vset.pattern.permute.xlu0 0
        %10671 = vperm.xlu0 %10670, %v10546
        %v10672 = vpop.permute.xlu0 %10671
        %10673 = vset.pattern.permute.xlu0 0
        %10674 = vperm.xlu0 %10673, %v10547
        %v10675 = vpop.permute.xlu0 %10674
        %v10676 = vlaneseq
        %v10677 = vshrl.u32 %v10676, 7
        %v10678 = vsub.s32 %v1618, %v10677
        %v10679 = vrot.slane %v10582, %v10678
        %v10680 = vlaneseq
        %v10681 = vshrl.u32 %v10680, 7
        %v10682 = vsub.s32 %v1623, %v10681
        %v10683 = vrot.slane %v10585, %v10682
        %v10684 = vsel %vm1628, %v10683, %v10679
        %v10685 = vlaneseq
        %v10686 = vshrl.u32 %v10685, 7
        %v10687 = vsub.s32 %v1630, %v10686
        %v10688 = vrot.slane %v10588, %v10687
        %v10689 = vsel %vm1635, %v10688, %v10684
        %v10690 = vlaneseq
        %v10691 = vshrl.u32 %v10690, 7
        %v10692 = vsub.s32 %v1637, %v10691
        %v10693 = vrot.slane %v10591, %v10692
        %v10694 = vsel %vm1642, %v10693, %v10689
        %v10695 = vlaneseq
        %v10696 = vshrl.u32 %v10695, 7
        %v10697 = vsub.s32 %v1618, %v10696
        %v10698 = vrot.slane %v10594, %v10697
        %v10699 = vlaneseq
        %v10700 = vshrl.u32 %v10699, 7
        %v10701 = vsub.s32 %v1623, %v10700
        %v10702 = vrot.slane %v10597, %v10701
        %v10703 = vsel %vm1628, %v10702, %v10698
        %v10704 = vlaneseq
        %v10705 = vshrl.u32 %v10704, 7
        %v10706 = vsub.s32 %v1630, %v10705
        %v10707 = vrot.slane %v10600, %v10706
        %v10708 = vsel %vm1635, %v10707, %v10703
        %v10709 = vlaneseq
        %v10710 = vshrl.u32 %v10709, 7
        %v10711 = vsub.s32 %v1637, %v10710
        %v10712 = vrot.slane %v10603, %v10711
        %v10713 = vsel %vm1642, %v10712, %v10708
        %v10714 = vlaneseq
        %v10715 = vshrl.u32 %v10714, 7
        %v10716 = vsub.s32 %v1618, %v10715
        %v10717 = vrot.slane %v10606, %v10716
        %v10718 = vlaneseq
        %v10719 = vshrl.u32 %v10718, 7
        %v10720 = vsub.s32 %v1623, %v10719
        %v10721 = vrot.slane %v10609, %v10720
        %v10722 = vsel %vm1628, %v10721, %v10717
        %v10723 = vlaneseq
        %v10724 = vshrl.u32 %v10723, 7
        %v10725 = vsub.s32 %v1630, %v10724
        %v10726 = vrot.slane %v10612, %v10725
        %v10727 = vsel %vm1635, %v10726, %v10722
        %v10728 = vlaneseq
        %v10729 = vshrl.u32 %v10728, 7
        %v10730 = vsub.s32 %v1637, %v10729
        %v10731 = vrot.slane %v10615, %v10730
        %v10732 = vsel %vm1642, %v10731, %v10727
        %v10733 = vlaneseq
        %v10734 = vshrl.u32 %v10733, 7
        %v10735 = vsub.s32 %v1618, %v10734
        %v10736 = vrot.slane %v10618, %v10735
        %v10737 = vlaneseq
        %v10738 = vshrl.u32 %v10737, 7
        %v10739 = vsub.s32 %v1623, %v10738
        %v10740 = vrot.slane %v10621, %v10739
        %v10741 = vsel %vm1628, %v10740, %v10736
        %v10742 = vlaneseq
        %v10743 = vshrl.u32 %v10742, 7
        %v10744 = vsub.s32 %v1630, %v10743
        %v10745 = vrot.slane %v10624, %v10744
        %v10746 = vsel %vm1635, %v10745, %v10741
        %v10747 = vlaneseq
        %v10748 = vshrl.u32 %v10747, 7
        %v10749 = vsub.s32 %v1637, %v10748
        %v10750 = vrot.slane %v10627, %v10749
        %v10751 = vsel %vm1642, %v10750, %v10746
        %v10752 = vlaneseq
        %v10753 = vshrl.u32 %v10752, 7
        %v10754 = vsub.s32 %v1618, %v10753
        %v10755 = vrot.slane %v10630, %v10754
        %v10756 = vlaneseq
        %v10757 = vshrl.u32 %v10756, 7
        %v10758 = vsub.s32 %v1623, %v10757
        %v10759 = vrot.slane %v10633, %v10758
        %v10760 = vsel %vm1628, %v10759, %v10755
        %v10761 = vlaneseq
        %v10762 = vshrl.u32 %v10761, 7
        %v10763 = vsub.s32 %v1630, %v10762
        %v10764 = vrot.slane %v10636, %v10763
        %v10765 = vsel %vm1635, %v10764, %v10760
        %v10766 = vlaneseq
        %v10767 = vshrl.u32 %v10766, 7
        %v10768 = vsub.s32 %v1637, %v10767
        %v10769 = vrot.slane %v10639, %v10768
        %v10770 = vsel %vm1642, %v10769, %v10765
        %v10771 = vlaneseq
        %v10772 = vshrl.u32 %v10771, 7
        %v10773 = vsub.s32 %v1618, %v10772
        %v10774 = vrot.slane %v10642, %v10773
        %v10775 = vlaneseq
        %v10776 = vshrl.u32 %v10775, 7
        %v10777 = vsub.s32 %v1623, %v10776
        %v10778 = vrot.slane %v10645, %v10777
        %v10779 = vsel %vm1628, %v10778, %v10774
        %v10780 = vlaneseq
        %v10781 = vshrl.u32 %v10780, 7
        %v10782 = vsub.s32 %v1630, %v10781
        %v10783 = vrot.slane %v10648, %v10782
        %v10784 = vsel %vm1635, %v10783, %v10779
        %v10785 = vlaneseq
        %v10786 = vshrl.u32 %v10785, 7
        %v10787 = vsub.s32 %v1637, %v10786
        %v10788 = vrot.slane %v10651, %v10787
        %v10789 = vsel %vm1642, %v10788, %v10784
        %v10790 = vlaneseq
        %v10791 = vshrl.u32 %v10790, 7
        %v10792 = vsub.s32 %v1618, %v10791
        %v10793 = vrot.slane %v10654, %v10792
        %v10794 = vlaneseq
        %v10795 = vshrl.u32 %v10794, 7
        %v10796 = vsub.s32 %v1623, %v10795
        %v10797 = vrot.slane %v10657, %v10796
        %v10798 = vsel %vm1628, %v10797, %v10793
        %v10799 = vlaneseq
        %v10800 = vshrl.u32 %v10799, 7
        %v10801 = vsub.s32 %v1630, %v10800
        %v10802 = vrot.slane %v10660, %v10801
        %v10803 = vsel %vm1635, %v10802, %v10798
        %v10804 = vlaneseq
        %v10805 = vshrl.u32 %v10804, 7
        %v10806 = vsub.s32 %v1637, %v10805
        %v10807 = vrot.slane %v10663, %v10806
        %v10808 = vsel %vm1642, %v10807, %v10803
        %v10809 = vlaneseq
        %v10810 = vshrl.u32 %v10809, 7
        %v10811 = vsub.s32 %v1618, %v10810
        %v10812 = vrot.slane %v10666, %v10811
        %v10813 = vlaneseq
        %v10814 = vshrl.u32 %v10813, 7
        %v10815 = vsub.s32 %v1623, %v10814
        %v10816 = vrot.slane %v10669, %v10815
        %v10817 = vsel %vm1628, %v10816, %v10812
        %v10818 = vlaneseq
        %v10819 = vshrl.u32 %v10818, 7
        %v10820 = vsub.s32 %v1630, %v10819
        %v10821 = vrot.slane %v10672, %v10820
        %v10822 = vsel %vm1635, %v10821, %v10817
        %v10823 = vlaneseq
        %v10824 = vshrl.u32 %v10823, 7
        %v10825 = vsub.s32 %v1637, %v10824
        %v10826 = vrot.slane %v10675, %v10825
        %v10827 = vsel %vm1642, %v10826, %v10822
        %v10828 = vsel %vm1777, %v10713, %v10694
        %v10829 = vsel %vm1779, %v10732, %v10828
        %v10830 = vsel %vm1781, %v10751, %v10829
        %v10831 = vsel %vm1783, %v10770, %v10830
        %v10832 = vsel %vm1785, %v10789, %v10831
        %v10833 = vsel %vm1787, %v10808, %v10832
        %v10834 = vsel %vm1789, %v10827, %v10833
        %v10836 = vadd.f32 %v9672, %v10834
        %v10837 = vsel %vm317, %v10836, 0.0
        %10838 = vadd.xlane.f32.xlu0 %v10837
        %v10839 = vpop.xlane.xlu0 %10838
        %v10840 = vmul.f32 %v10839, %v1796
        %v10841 = vsub.f32 %v10836, %v10840
        %v10842 = vmul.f32 %v10841, %v10841
        %v10843 = vsel %vm317, %v10842, 0.0
        %10844 = vadd.xlane.f32.xlu0 %v10843
        %v10845 = vpop.xlane.xlu0 %10844
        %v10846 = vmul.f32 %v10845, %v1796
        %v10847 = vadd.f32 %v10846, 1e-05
        %v10848 = vrsqrt.pop %v10847
        %v10849 = vmul.f32 %v10841, %v10848
        %v10850 = vmul.f32 %v10849, %v497
        %v10851 = vadd.f32 %v10850, %v504
        %v10852 = vmax.f32 %v10851, 0.0
        %10853 = vst.msk [vmem:[#allocation3] sm:$0xff] %vm317, %v10852
        %s10854 = scalar_lea.vmem %s297, 56 [#allocation11]
        %10855 = vst.msk [vmem:[%s10854] sm:$0xff] %vm317, %v10852
        %s10856 = sand.u32 %s163, 1
        %s10857 = scalar_lea.sflag [#allocation7], %s10856
        %s10858 = sand.u32 %s163, 1
        %s10859 = smul.addr %s10858, 64
        %s10860 = scalar_lea.vmem [#allocation11], %s10859
        // Predicated region
        $region57: #{tpu_custom_call.1} parent=43 // pred_check
          %p10861 = pneg %p173
        $region58: #{tpu_custom_call.1} parent=43 // pred_check_branch
          %10863 = sbr.rel (%p10861) target = $region60
        $region59: #{tpu_custom_call.1} parent=43 // pred_region
          %s10865 = ssub.s32 1024, 1024
          %10866 = vsyncadd %s10857, %s10865
          %s10867 = smul.addr %s24, 128
          %s10868 = scalar_lea.hbm %s6, %s10867
          %s10869 = sshll.u32 %s10860, 4
          %s10870 = int_to_ptr.vmem [resolvable:$true] %s10869
          %10875 = dma.vmem_to_hbm [thread:$0]  %s10870, 1024, %s10868, %s10857, 128, 256, 8
        $region60: #{tpu_custom_call.1} parent=43 // pred_fallthru
          _
      $region44: #{tpu_custom_call.1} parent=5 // pred_fallthru
        _
      %p10876 = scmp.le.s32.totalorder 2, %s19
      // Predicated region
      $region61: #{tpu_custom_call.1} parent=5 // pred_check
        %p10877 = pneg %p10876
      $region62: #{tpu_custom_call.1} parent=5 // pred_check_branch
        %10879 = sbr.rel (%p10877) target = $region64
      $region63: #{tpu_custom_call.1} parent=5 // pred_region
        %s10880 = ssub.s32 %s19, 2
        // Predicated region
        $region65: #{tpu_custom_call.1} parent=63 // pred_check
          %p10881 = pneg %p179
        $region66: #{tpu_custom_call.1} parent=63 // pred_check_branch
          %10883 = sbr.rel (%p10881) target = $region68
        $region67: #{tpu_custom_call.1} parent=63 // pred_region
          %s10884 = sand.u32 %s164, 1
          %s10885 = scalar_lea.sflag [#allocation7], %s10884
          %s10886 = sand.u32 %s164, 1
          %s10887 = smul.addr %s10886, 64
          %s10888 = scalar_lea.vmem [#allocation11], %s10887
          %10889 = dma.done %s10885, 1024
        $region68: #{tpu_custom_call.1} parent=63 // pred_fallthru
          _
      $region64: #{tpu_custom_call.1} parent=5 // pred_fallthru
        _
    $region6: #{tpu_custom_call.1} parent=1 // loop_footer
      %s23 = sadd.s32 1, %s19
    $region7: #{tpu_custom_call.1} parent=1 // loop_footer_branch
      %18 = sbr.rel target = $region3
    $region8: #{tpu_custom_call.1} parent=1 // loop_exit
      _
    %10890 = vsyncpa [#allocation6], 1
    %s10891 = scalar_lea.sflag [#allocation6], 1
    %10892 = vsyncpa %s10891, 1
    %10893 = vsyncpa [#allocation9], 1
    %10894 = vsyncpa [#allocation7], 1
    %s10895 = scalar_lea.sflag [#allocation7], 1
    %10896 = vsyncpa %s10895, 1

</llo_original>
